<compile_context>
chip_gen: v7x
topology: tpu7x:2x2x1
jax: 0.10.0
libtpu: 0.0.40
codegen_flags: <defaults>
</compile_context>

<pallas_src>
import functools

import jax
import jax.numpy as jnp
from jax.experimental import pallas as pl
from jax.experimental.pallas import tpu as pltpu


# 28 MiB keeps double-buffered blocks comfortably inside every generation's VMEM
# (raises v5e's 16 MiB default scoped limit, stays well under v7x's 64 MiB physical).
_VMEM_LIMIT_BYTES = 28 * 1024 * 1024


# -----------------------------------------------------------------------------
# Tiling helpers (VMEM budgeting)
# -----------------------------------------------------------------------------
def _pick_row_tile(hout, wout, channels, budget=2 * 1024 * 1024):
    """Largest divisor of `hout` whose f32 accumulator + output tile fits `budget`."""
    best = 1
    for tr in range(1, hout + 1):
        if hout % tr == 0 and tr * wout * channels * 4 * 3 <= budget:
            best = tr
    return best


def _largest_divisor_under(n, per_unit_bytes, budget=6 * 1024 * 1024):
    best = 1
    for d in range(1, n + 1):
        if n % d == 0 and d * per_unit_bytes <= budget:
            best = d
    return best


# -----------------------------------------------------------------------------
# Pallas kernels
# -----------------------------------------------------------------------------
def _conv_block_kernel(x_ref, w1_ref, b1_ref, *rest, stride, kh, kw, tr, wout,
                       relu, fuse):
    """Direct conv (kh x kw, given stride) + bias (+ReLU) (+ fused 1x1 conv + bias).

    x_ref  : (stride*stride, Hph, Wph, Cin)  phase-split, zero-padded image (bf16)
    w1_ref : (kh*kw, Cin, C1)                bf16 tap weights
    b1_ref : (1, C1)                         f32 bias
    rest   : [w2_ref (C1, C2) bf16, b2_ref (1, C2) f32,] o_ref (1, tr, wout, Cout)
    """
    if fuse:
        w2_ref, b2_ref, o_ref = rest
    else:
        (o_ref,) = rest

    row0 = pl.program_id(1) * tr
    cin = x_ref.shape[-1]
    c1 = w1_ref.shape[-1]

    acc = jnp.zeros((tr * wout, c1), jnp.float32)
    for di in range(kh):                      # static, unrolled: kh*kw accumulated
        for dj in range(kw):                  # bf16 matmuls over shifted slices
            ph = (di % stride) * stride + (dj % stride)
            ro, co = di // stride, dj // stride
            xw = x_ref[ph, pl.ds(row0 + ro, tr), pl.ds(co, wout), :]   # [tr,wout,cin]
            acc = acc + jnp.dot(xw.reshape(tr * wout, cin),
                                w1_ref[di * kw + dj],
                                preferred_element_type=jnp.float32)

    h = acc + b1_ref[...]                     # f32 epilogue (v5e has no bf16 VPU)
    if relu:
        h = jnp.maximum(h, 0.0)
    if fuse:                                  # fused 1x1 head conv, no HBM round trip
        h = jnp.dot(h.astype(w2_ref.dtype), w2_ref[...],
                    preferred_element_type=jnp.float32) + b2_ref[...]
    o_ref[...] = h.reshape(1, tr, wout, h.shape[-1]).astype(o_ref.dtype)


def _upsample_blend_kernel(m_ref, a_ref, whm_ref, wwmT_ref, wha_ref, wwaT_ref,
                           o_ref):
    """out = 0.5 * bilinear_up(main) + 0.5 * bilinear_up(aux), NCHW-flat layout.

    m_ref:(TB,h4,w4)  a_ref:(TB,h3,w3)  wh_*:(H,h_in)  ww*T:(w_in,W)  o:(TB,H,W)
    """
    def up(f_ref, wh, wwT):
        tb, h, w = f_ref.shape
        wide = wwT.shape[-1]
        # width pass: one flat 2-D matmul, lane-dense output width
        fw = jnp.dot(f_ref[...].reshape(tb * h, w), wwT,
                     preferred_element_type=jnp.float32)
        fw = fw.reshape(tb, h, wide)
        # height pass: small batched contraction over h
        return jnp.einsum('bhw,oh->bow', fw, wh,
                          preferred_element_type=jnp.float32)

    up_m = up(m_ref, whm_ref[...], wwmT_ref[...])
    up_a = up(a_ref, wha_ref[...], wwaT_ref[...])
    o_ref[...] = (0.5 * up_m + 0.5 * up_a).astype(o_ref.dtype)


# -----------------------------------------------------------------------------
# Wrappers (layout plumbing in plain JAX, hot path in Pallas)
# -----------------------------------------------------------------------------
def conv_block(x_nhwc, w1, b1, *, stride, pad, relu, w2=None, b2=None,
               out_dtype=jnp.float32):
    """Conv with PyTorch weights w1:[C1,Cin,kh,kw]; optional fused 1x1 w2:[C2,C1,1,1]."""
    N, H, W, Cin = x_nhwc.shape
    C1, cin_w, kh, kw = w1.shape
    assert cin_w == Cin

    Hout = (H + 2 * pad - kh) // stride + 1
    Wout = (W + 2 * pad - kw) // stride + 1
    Hph = Hout + (kh - 1) // stride
    Wph = Wout + (kw - 1) // stride
    Hp = max(stride * Hph, H + 2 * pad)
    Wp = max(stride * Wph, W + 2 * pad)

    # One-pass phase (space-to-depth) split so every conv tap is a contiguous slice.
    xpad = jnp.pad(x_nhwc, ((0, 0), (pad, Hp - H - pad), (pad, Wp - W - pad), (0, 0)))
    phases = [xpad[:, p::stride, q::stride, :][:, :Hph, :Wph, :]
              for p in range(stride) for q in range(stride)]
    ss = stride * stride
    xph = jnp.stack(phases, axis=1).astype(jnp.bfloat16)
    xph = xph.reshape(N * ss, Hph, Wph, Cin)

    w1m = jnp.transpose(w1, (2, 3, 1, 0)).reshape(kh * kw, Cin, C1).astype(jnp.bfloat16)
    b1m = b1.reshape(1, C1).astype(jnp.float32)

    fuse = w2 is not None
    if fuse:
        C2 = w2.shape[0]
        w2m = jnp.transpose(w2.reshape(C2, C1), (1, 0)).astype(jnp.bfloat16)
        b2m = b2.reshape(1, C2).astype(jnp.float32)
        cout = C2
    else:
        cout = C1

    tr = _pick_row_tile(Hout, Wout, max(C1, cout))
    grid = (N, Hout // tr)

    in_specs = [
        pl.BlockSpec((ss, Hph, Wph, Cin), lambda n, t: (n, 0, 0, 0)),
        pl.BlockSpec((kh * kw, Cin, C1), lambda n, t: (0, 0, 0)),
        pl.BlockSpec((1, C1), lambda n, t: (0, 0)),
    ]
    args = [xph, w1m, b1m]
    if fuse:
        in_specs += [pl.BlockSpec((C1, cout), lambda n, t: (0, 0)),
                     pl.BlockSpec((1, cout), lambda n, t: (0, 0))]
        args += [w2m, b2m]

    kern = functools.partial(_conv_block_kernel, stride=stride, kh=kh, kw=kw,
                             tr=tr, wout=Wout, relu=relu, fuse=fuse)

    flops = 2 * N * Hout * Wout * kh * kw * Cin * C1
    if fuse:
        flops += 2 * N * Hout * Wout * C1 * cout
    bytes_accessed = int(xph.size * 2 + w1m.size * 2
                         + N * Hout * Wout * cout * jnp.dtype(out_dtype).itemsize)

    return pl.pallas_call(
        kern,
        out_shape=jax.ShapeDtypeStruct((N, Hout, Wout, cout), out_dtype),
        grid=grid,
        in_specs=in_specs,
        out_specs=pl.BlockSpec((1, tr, Wout, cout), lambda n, t: (n, t, 0, 0)),
        compiler_params=pltpu.CompilerParams(
            dimension_semantics=("parallel", "parallel"),
            vmem_limit_bytes=_VMEM_LIMIT_BYTES),
        cost_estimate=pl.CostEstimate(flops=flops, transcendentals=0,
                                      bytes_accessed=bytes_accessed),
    )(*args)


def bilinear_matrix(out_size, in_size):
    """Row-stochastic M so y = M @ x matches F.interpolate(bilinear, align_corners=False)."""
    i = jnp.arange(out_size, dtype=jnp.float32)
    scale = in_size / out_size
    src = jnp.clip((i + 0.5) * scale - 0.5, 0.0, float(in_size - 1))
    lo = jnp.floor(src).astype(jnp.int32)
    hi = jnp.minimum(lo + 1, in_size - 1)
    w_hi = src - lo.astype(jnp.float32)
    w_lo = 1.0 - w_hi
    rows = jnp.arange(out_size)
    M = jnp.zeros((out_size, in_size), jnp.float32)
    M = M.at[rows, lo].add(w_lo)
    M = M.at[rows, hi].add(w_hi)
    return M


def upsample_blend(main_b, aux_b, H, W, out_dtype=jnp.float32):
    """main_b:[B,h4,w4], aux_b:[B,h3,w3] -> 0.5*up(main)+0.5*up(aux) as [B,H,W]."""
    B, h4, w4 = main_b.shape
    _, h3, w3 = aux_b.shape
    wh_m = bilinear_matrix(H, h4)
    wwT_m = bilinear_matrix(W, w4).T
    wh_a = bilinear_matrix(H, h3)
    wwT_a = bilinear_matrix(W, w3).T

    per_b_bytes = (H * W + h4 * w4 + h3 * w3 + h4 * W + h3 * W) * 4 * 3
    tb = _largest_divisor_under(B, per_b_bytes)
    grid = (B // tb,)

    flops = 2 * B * (h4 * w4 * W + h4 * W * H) + 2 * B * (h3 * w3 * W + h3 * W * H)
    bytes_accessed = 4 * (B * h4 * w4 + B * h3 * w3 + B * H * W)

    return pl.pallas_call(
        _upsample_blend_kernel,
        out_shape=jax.ShapeDtypeStruct((B, H, W), out_dtype),
        grid=grid,
        in_specs=[
            pl.BlockSpec((tb, h4, w4), lambda i: (i, 0, 0)),
            pl.BlockSpec((tb, h3, w3), lambda i: (i, 0, 0)),
            pl.BlockSpec((H, h4), lambda i: (0, 0)),
            pl.BlockSpec((w4, W), lambda i: (0, 0)),
            pl.BlockSpec((H, h3), lambda i: (0, 0)),
            pl.BlockSpec((w3, W), lambda i: (0, 0)),
        ],
        out_specs=pl.BlockSpec((tb, H, W), lambda i: (i, 0, 0)),
        compiler_params=pltpu.CompilerParams(
            dimension_semantics=("parallel",),
            vmem_limit_bytes=_VMEM_LIMIT_BYTES),
        cost_estimate=pl.CostEstimate(flops=flops, transcendentals=0,
                                      bytes_accessed=bytes_accessed),
    )(main_b, aux_b, wh_m, wwT_m, wh_a, wwT_a)


def fcn_forward(x_nchw, params):
    N, _, H, W = x_nchw.shape
    x = jnp.transpose(x_nchw, (0, 2, 3, 1))                        # NHWC

    # --- backbone: features['layer3'], features['layer4'] (bf16 activations) ---
    l3 = conv_block(x, params['bb1_w'], params['bb1_b'], stride=2, pad=1,
                    relu=True, out_dtype=jnp.bfloat16)
    l4 = conv_block(l3, params['bb2_w'], params['bb2_b'], stride=2, pad=1,
                    relu=True, out_dtype=jnp.bfloat16)

    # --- fused heads: conv3x3 + ReLU + conv1x1 in one pallas_call each ---
    c = conv_block(l4, params['cls1_w'], params['cls1_b'], stride=1, pad=1,
                   relu=True, w2=params['cls2_w'], b2=params['cls2_b'],
                   out_dtype=jnp.float32)
    a = conv_block(l3, params['aux1_w'], params['aux1_b'], stride=1, pad=1,
                   relu=True, w2=params['aux2_w'], b2=params['aux2_b'],
                   out_dtype=jnp.float32)

    ncls = c.shape[-1]
    h4, w4 = c.shape[1], c.shape[2]
    h3, w3 = a.shape[1], a.shape[2]
    # small head outputs -> [N*ncls, h, w] so the big upsampled result lands in NCHW
    c_b = jnp.transpose(c, (0, 3, 1, 2)).reshape(N * ncls, h4, w4)
    a_b = jnp.transpose(a, (0, 3, 1, 2)).reshape(N * ncls, h3, w3)

    out = upsample_blend(c_b, a_b, H, W)
    # result = 0.5 * interp(classifier(layer4)) + 0.5 * interp(aux(layer3))  (NCHW)
    return out.reshape(N, ncls, H, W)


# -----------------------------------------------------------------------------
# Deterministic parameter init + driver
# -----------------------------------------------------------------------------
def init_params(key, cin=4, c3=8, c4=16, c_head=8, c_aux_head=4, num_classes=6):
    ks = jax.random.split(key, 12)

    def w(k, shape):
        return 0.1 * jax.random.normal(k, shape, jnp.float32)

    return {
        'bb1_w':  w(ks[0],  (c3, cin, 3, 3)),        'bb1_b':  w(ks[1],  (c3,)),
        'bb2_w':  w(ks[2],  (c4, c3, 3, 3)),         'bb2_b':  w(ks[3],  (c4,)),
        'cls1_w': w(ks[4],  (c_head, c4, 3, 3)),     'cls1_b': w(ks[5],  (c_head,)),
        'cls2_w': w(ks[6],  (num_classes, c_head, 1, 1)),
        'cls2_b': w(ks[7],  (num_classes,)),
        'aux1_w': w(ks[8],  (c_aux_head, c3, 3, 3)), 'aux1_b': w(ks[9],  (c_aux_head,)),
        'aux2_w': w(ks[10], (num_classes, c_aux_head, 1, 1)),
        'aux2_b': w(ks[11], (num_classes,)),
    }


if __name__ == "__main__":
    key = jax.random.PRNGKey(0)
    k_x, k_p = jax.random.split(key)
    x = jax.random.normal(k_x, (2, 4, 16, 16), jnp.float32)   # NCHW, like PyTorch
    params = init_params(k_p)

    out = jax.jit(fcn_forward)(x, params)
    out = jax.block_until_ready(out)
    assert out.shape == (2, 6, 16, 16)
    assert bool(jnp.isfinite(out).all())
    print("KERNEL_OK")
</pallas_src>

<mosaic_0001>
module attributes {stable_mosaic.version = 11 : i64} {
  func.func private @main(%arg0: i32) attributes {dimension_semantics = [#tpu.dimension_semantics<core_parallel>], iteration_bounds = array<i64: 2>, tpu.core_type = #tpu.core_type<sc_scalar_subcore>, window_params = []} {
    return
  }
}

module attributes {stable_mosaic.version = 11 : i64} {
  func.func private @main(%arg0: i32) attributes {dimension_semantics = [#tpu.dimension_semantics<core_parallel>], iteration_bounds = array<i64: 2>, tpu.core_type = #tpu.core_type<sc_scalar_subcore>, window_params = []} {
    return
  }
}

module attributes {stable_mosaic.version = 11 : i64} {
  func.func @_conv_block_kernel(%arg0: i32, %arg1: i32, %arg2: memref<4x9x9x4xbf16, #tpu.memory_space<vmem>>, %arg3: memref<9x4x8xbf16, #tpu.memory_space<vmem>>, %arg4: memref<1x8xf32, #tpu.memory_space<vmem>>, %arg5: memref<1x8x8x8xbf16, #tpu.memory_space<vmem>>) attributes {dimension_semantics = [#tpu.dimension_semantics<parallel>, #tpu.dimension_semantics<parallel>], iteration_bounds = array<i64: 2, 1>, scalar_prefetch = 0 : i64, scratch_operands = 0 : i64, tpu.core_type = #tpu.core_type<tc>, window_params = [{transform_indices = @transform_0, window_bounds = array<i64: 4, 9, 9, 4>}, {pipeline_mode = #tpu.pipeline_mode<synchronous>, transform_indices = @transform_1, window_bounds = array<i64: 9, 4, 8>}, {pipeline_mode = #tpu.pipeline_mode<synchronous>, transform_indices = @transform_2, window_bounds = array<i64: 1, 8>}, {transform_indices = @transform_3, window_bounds = array<i64: 1, 8, 8, 8>}]} {
    %c8_i32 = arith.constant 8 : i32
    %0 = arith.muli %arg1, %c8_i32 : i32
    %cst = arith.constant 0.000000e+00 : f32
    %1 = vector.broadcast %cst : f32 to vector<64x8xf32>
    %c0_i32 = arith.constant 0 : i32
    %2 = arith.addi %0, %c0_i32 : i32
    %c0 = arith.constant 0 : index
    %3 = arith.index_cast %2 : i32 to index
    %c0_0 = arith.constant 0 : index
    %c0_1 = arith.constant 0 : index
    %4 = vector.load %arg2[%c0, %3, %c0_0, %c0_1] : memref<4x9x9x4xbf16, #tpu.memory_space<vmem>>, vector<1x8x8x4xbf16>
    %5 = vector.shape_cast %4 : vector<1x8x8x4xbf16> to vector<8x8x4xbf16>
    %6 = vector.shape_cast %5 : vector<8x8x4xbf16> to vector<64x4xbf16>
    %c0_2 = arith.constant 0 : index
    %c0_3 = arith.constant 0 : index
    %c0_4 = arith.constant 0 : index
    %7 = vector.load %arg3[%c0_2, %c0_3, %c0_4] : memref<9x4x8xbf16, #tpu.memory_space<vmem>>, vector<1x4x8xbf16>
    %8 = vector.shape_cast %7 : vector<1x4x8xbf16> to vector<4x8xbf16>
    %cst_5 = arith.constant dense<0.000000e+00> : vector<64x8xf32>
    %9 = tpu.matmul %6, %8, %cst_5 {dimension_numbers = #tpu.dot_dimension_numbers<[1], [0], [0], [1], [0, 0, 1, 1], [], []>} : vector<64x4xbf16>, vector<4x8xbf16>, vector<64x8xf32> -> vector<64x8xf32>
    %10 = arith.addf %1, %9 : vector<64x8xf32>
    %c0_i32_6 = arith.constant 0 : i32
    %11 = arith.addi %0, %c0_i32_6 : i32
    %c1 = arith.constant 1 : index
    %12 = arith.index_cast %11 : i32 to index
    %c0_7 = arith.constant 0 : index
    %c0_8 = arith.constant 0 : index
    %13 = vector.load %arg2[%c1, %12, %c0_7, %c0_8] : memref<4x9x9x4xbf16, #tpu.memory_space<vmem>>, vector<1x8x8x4xbf16>
    %14 = vector.shape_cast %13 : vector<1x8x8x4xbf16> to vector<8x8x4xbf16>
    %15 = vector.shape_cast %14 : vector<8x8x4xbf16> to vector<64x4xbf16>
    %c1_9 = arith.constant 1 : index
    %c0_10 = arith.constant 0 : index
    %c0_11 = arith.constant 0 : index
    %16 = vector.load %arg3[%c1_9, %c0_10, %c0_11] : memref<9x4x8xbf16, #tpu.memory_space<vmem>>, vector<1x4x8xbf16>
    %17 = vector.shape_cast %16 : vector<1x4x8xbf16> to vector<4x8xbf16>
    %cst_12 = arith.constant dense<0.000000e+00> : vector<64x8xf32>
    %18 = tpu.matmul %15, %17, %cst_12 {dimension_numbers = #tpu.dot_dimension_numbers<[1], [0], [0], [1], [0, 0, 1, 1], [], []>} : vector<64x4xbf16>, vector<4x8xbf16>, vector<64x8xf32> -> vector<64x8xf32>
    %19 = arith.addf %10, %18 : vector<64x8xf32>
    %c0_i32_13 = arith.constant 0 : i32
    %20 = arith.addi %0, %c0_i32_13 : i32
    %c0_14 = arith.constant 0 : index
    %21 = arith.index_cast %20 : i32 to index
    %c1_15 = arith.constant 1 : index
    %c0_16 = arith.constant 0 : index
    %22 = vector.load %arg2[%c0_14, %21, %c1_15, %c0_16] : memref<4x9x9x4xbf16, #tpu.memory_space<vmem>>, vector<1x8x8x4xbf16>
    %23 = vector.shape_cast %22 : vector<1x8x8x4xbf16> to vector<8x8x4xbf16>
    %24 = vector.shape_cast %23 : vector<8x8x4xbf16> to vector<64x4xbf16>
    %c2 = arith.constant 2 : index
    %c0_17 = arith.constant 0 : index
    %c0_18 = arith.constant 0 : index
    %25 = vector.load %arg3[%c2, %c0_17, %c0_18] : memref<9x4x8xbf16, #tpu.memory_space<vmem>>, vector<1x4x8xbf16>
    %26 = vector.shape_cast %25 : vector<1x4x8xbf16> to vector<4x8xbf16>
    %cst_19 = arith.constant dense<0.000000e+00> : vector<64x8xf32>
    %27 = tpu.matmul %24, %26, %cst_19 {dimension_numbers = #tpu.dot_dimension_numbers<[1], [0], [0], [1], [0, 0, 1, 1], [], []>} : vector<64x4xbf16>, vector<4x8xbf16>, vector<64x8xf32> -> vector<64x8xf32>
    %28 = arith.addf %19, %27 : vector<64x8xf32>
    %c0_i32_20 = arith.constant 0 : i32
    %29 = arith.addi %0, %c0_i32_20 : i32
    %c2_21 = arith.constant 2 : index
    %30 = arith.index_cast %29 : i32 to index
    %c0_22 = arith.constant 0 : index
    %c0_23 = arith.constant 0 : index
    %31 = vector.load %arg2[%c2_21, %30, %c0_22, %c0_23] : memref<4x9x9x4xbf16, #tpu.memory_space<vmem>>, vector<1x8x8x4xbf16>
    %32 = vector.shape_cast %31 : vector<1x8x8x4xbf16> to vector<8x8x4xbf16>
    %33 = vector.shape_cast %32 : vector<8x8x4xbf16> to vector<64x4xbf16>
    %c3 = arith.constant 3 : index
    %c0_24 = arith.constant 0 : index
    %c0_25 = arith.constant 0 : index
    %34 = vector.load %arg3[%c3, %c0_24, %c0_25] : memref<9x4x8xbf16, #tpu.memory_space<vmem>>, vector<1x4x8xbf16>
    %35 = vector.shape_cast %34 : vector<1x4x8xbf16> to vector<4x8xbf16>
    %cst_26 = arith.constant dense<0.000000e+00> : vector<64x8xf32>
    %36 = tpu.matmul %33, %35, %cst_26 {dimension_numbers = #tpu.dot_dimension_numbers<[1], [0], [0], [1], [0, 0, 1, 1], [], []>} : vector<64x4xbf16>, vector<4x8xbf16>, vector<64x8xf32> -> vector<64x8xf32>
    %37 = arith.addf %28, %36 : vector<64x8xf32>
    %c0_i32_27 = arith.constant 0 : i32
    %38 = arith.addi %0, %c0_i32_27 : i32
    %c3_28 = arith.constant 3 : index
    %39 = arith.index_cast %38 : i32 to index
    %c0_29 = arith.constant 0 : index
    %c0_30 = arith.constant 0 : index
    %40 = vector.load %arg2[%c3_28, %39, %c0_29, %c0_30] : memref<4x9x9x4xbf16, #tpu.memory_space<vmem>>, vector<1x8x8x4xbf16>
    %41 = vector.shape_cast %40 : vector<1x8x8x4xbf16> to vector<8x8x4xbf16>
    %42 = vector.shape_cast %41 : vector<8x8x4xbf16> to vector<64x4xbf16>
    %c4 = arith.constant 4 : index
    %c0_31 = arith.constant 0 : index
    %c0_32 = arith.constant 0 : index
    %43 = vector.load %arg3[%c4, %c0_31, %c0_32] : memref<9x4x8xbf16, #tpu.memory_space<vmem>>, vector<1x4x8xbf16>
    %44 = vector.shape_cast %43 : vector<1x4x8xbf16> to vector<4x8xbf16>
    %cst_33 = arith.constant dense<0.000000e+00> : vector<64x8xf32>
    %45 = tpu.matmul %42, %44, %cst_33 {dimension_numbers = #tpu.dot_dimension_numbers<[1], [0], [0], [1], [0, 0, 1, 1], [], []>} : vector<64x4xbf16>, vector<4x8xbf16>, vector<64x8xf32> -> vector<64x8xf32>
    %46 = arith.addf %37, %45 : vector<64x8xf32>
    %c0_i32_34 = arith.constant 0 : i32
    %47 = arith.addi %0, %c0_i32_34 : i32
    %c2_35 = arith.constant 2 : index
    %48 = arith.index_cast %47 : i32 to index
    %c1_36 = arith.constant 1 : index
    %c0_37 = arith.constant 0 : index
    %49 = vector.load %arg2[%c2_35, %48, %c1_36, %c0_37] : memref<4x9x9x4xbf16, #tpu.memory_space<vmem>>, vector<1x8x8x4xbf16>
    %50 = vector.shape_cast %49 : vector<1x8x8x4xbf16> to vector<8x8x4xbf16>
    %51 = vector.shape_cast %50 : vector<8x8x4xbf16> to vector<64x4xbf16>
    %c5 = arith.constant 5 : index
    %c0_38 = arith.constant 0 : index
    %c0_39 = arith.constant 0 : index
    %52 = vector.load %arg3[%c5, %c0_38, %c0_39] : memref<9x4x8xbf16, #tpu.memory_space<vmem>>, vector<1x4x8xbf16>
    %53 = vector.shape_cast %52 : vector<1x4x8xbf16> to vector<4x8xbf16>
    %cst_40 = arith.constant dense<0.000000e+00> : vector<64x8xf32>
    %54 = tpu.matmul %51, %53, %cst_40 {dimension_numbers = #tpu.dot_dimension_numbers<[1], [0], [0], [1], [0, 0, 1, 1], [], []>} : vector<64x4xbf16>, vector<4x8xbf16>, vector<64x8xf32> -> vector<64x8xf32>
    %55 = arith.addf %46, %54 : vector<64x8xf32>
    %c1_i32 = arith.constant 1 : i32
    %56 = arith.addi %0, %c1_i32 : i32
    %c0_41 = arith.constant 0 : index
    %57 = arith.index_cast %56 : i32 to index
    %c0_42 = arith.constant 0 : index
    %c0_43 = arith.constant 0 : index
    %58 = vector.load %arg2[%c0_41, %57, %c0_42, %c0_43] : memref<4x9x9x4xbf16, #tpu.memory_space<vmem>>, vector<1x8x8x4xbf16>
    %59 = vector.shape_cast %58 : vector<1x8x8x4xbf16> to vector<8x8x4xbf16>
    %60 = vector.shape_cast %59 : vector<8x8x4xbf16> to vector<64x4xbf16>
    %c6 = arith.constant 6 : index
    %c0_44 = arith.constant 0 : index
    %c0_45 = arith.constant 0 : index
    %61 = vector.load %arg3[%c6, %c0_44, %c0_45] : memref<9x4x8xbf16, #tpu.memory_space<vmem>>, vector<1x4x8xbf16>
    %62 = vector.shape_cast %61 : vector<1x4x8xbf16> to vector<4x8xbf16>
    %cst_46 = arith.constant dense<0.000000e+00> : vector<64x8xf32>
    %63 = tpu.matmul %60, %62, %cst_46 {dimension_numbers = #tpu.dot_dimension_numbers<[1], [0], [0], [1], [0, 0, 1, 1], [], []>} : vector<64x4xbf16>, vector<4x8xbf16>, vector<64x8xf32> -> vector<64x8xf32>
    %64 = arith.addf %55, %63 : vector<64x8xf32>
    %c1_i32_47 = arith.constant 1 : i32
    %65 = arith.addi %0, %c1_i32_47 : i32
    %c1_48 = arith.constant 1 : index
    %66 = arith.index_cast %65 : i32 to index
    %c0_49 = arith.constant 0 : index
    %c0_50 = arith.constant 0 : index
    %67 = vector.load %arg2[%c1_48, %66, %c0_49, %c0_50] : memref<4x9x9x4xbf16, #tpu.memory_space<vmem>>, vector<1x8x8x4xbf16>
    %68 = vector.shape_cast %67 : vector<1x8x8x4xbf16> to vector<8x8x4xbf16>
    %69 = vector.shape_cast %68 : vector<8x8x4xbf16> to vector<64x4xbf16>
    %c7 = arith.constant 7 : index
    %c0_51 = arith.constant 0 : index
    %c0_52 = arith.constant 0 : index
    %70 = vector.load %arg3[%c7, %c0_51, %c0_52] : memref<9x4x8xbf16, #tpu.memory_space<vmem>>, vector<1x4x8xbf16>
    %71 = vector.shape_cast %70 : vector<1x4x8xbf16> to vector<4x8xbf16>
    %cst_53 = arith.constant dense<0.000000e+00> : vector<64x8xf32>
    %72 = tpu.matmul %69, %71, %cst_53 {dimension_numbers = #tpu.dot_dimension_numbers<[1], [0], [0], [1], [0, 0, 1, 1], [], []>} : vector<64x4xbf16>, vector<4x8xbf16>, vector<64x8xf32> -> vector<64x8xf32>
    %73 = arith.addf %64, %72 : vector<64x8xf32>
    %c1_i32_54 = arith.constant 1 : i32
    %74 = arith.addi %0, %c1_i32_54 : i32
    %c0_55 = arith.constant 0 : index
    %75 = arith.index_cast %74 : i32 to index
    %c1_56 = arith.constant 1 : index
    %c0_57 = arith.constant 0 : index
    %76 = vector.load %arg2[%c0_55, %75, %c1_56, %c0_57] : memref<4x9x9x4xbf16, #tpu.memory_space<vmem>>, vector<1x8x8x4xbf16>
    %77 = vector.shape_cast %76 : vector<1x8x8x4xbf16> to vector<8x8x4xbf16>
    %78 = vector.shape_cast %77 : vector<8x8x4xbf16> to vector<64x4xbf16>
    %c8 = arith.constant 8 : index
    %c0_58 = arith.constant 0 : index
    %c0_59 = arith.constant 0 : index
    %79 = vector.load %arg3[%c8, %c0_58, %c0_59] : memref<9x4x8xbf16, #tpu.memory_space<vmem>>, vector<1x4x8xbf16>
    %80 = vector.shape_cast %79 : vector<1x4x8xbf16> to vector<4x8xbf16>
    %cst_60 = arith.constant dense<0.000000e+00> : vector<64x8xf32>
    %81 = tpu.matmul %78, %80, %cst_60 {dimension_numbers = #tpu.dot_dimension_numbers<[1], [0], [0], [1], [0, 0, 1, 1], [], []>} : vector<64x4xbf16>, vector<4x8xbf16>, vector<64x8xf32> -> vector<64x8xf32>
    %82 = arith.addf %73, %81 : vector<64x8xf32>
    %c0_61 = arith.constant 0 : index
    %c0_62 = arith.constant 0 : index
    %83 = vector.load %arg4[%c0_61, %c0_62] : memref<1x8xf32, #tpu.memory_space<vmem>>, vector<1x8xf32>
    %84 = vector.broadcast %83 : vector<1x8xf32> to vector<64x8xf32>
    %85 = arith.addf %82, %84 : vector<64x8xf32>
    %cst_63 = arith.constant 0.000000e+00 : f32
    %86 = vector.broadcast %cst_63 : f32 to vector<64x8xf32>
    %87 = arith.maximumf %85, %86 : vector<64x8xf32>
    %88 = vector.shape_cast %87 : vector<64x8xf32> to vector<1x8x8x8xf32>
    %89 = arith.truncf %88 : vector<1x8x8x8xf32> to vector<1x8x8x8xbf16>
    %c0_64 = arith.constant 0 : index
    %c0_65 = arith.constant 0 : index
    %c0_66 = arith.constant 0 : index
    %c0_67 = arith.constant 0 : index
    %90 = vector.load %arg5[%c0_64, %c0_65, %c0_66, %c0_67] : memref<1x8x8x8xbf16, #tpu.memory_space<vmem>>, vector<1x8x8x8xbf16>
    tpu.vector_store %arg5[%c0_64, %c0_65, %c0_66, %c0_67], %89 {strides = array<i32>} : memref<1x8x8x8xbf16, #tpu.memory_space<vmem>>, vector<1x8x8x8xbf16>,
    return
  }
  func.func @transform_0(%arg0: i32, %arg1: i32) -> (i32, i32, i32, i32) {
    %c0_i32 = arith.constant 0 : i32
    %c0_i32_0 = arith.constant 0 : i32
    %c0_i32_1 = arith.constant 0 : i32
    %c0_i32_2 = arith.constant 0 : i32
    return %arg0, %c0_i32, %c0_i32_0, %c0_i32_1 : i32, i32, i32, i32
  }
  func.func @transform_1(%arg0: i32, %arg1: i32) -> (i32, i32, i32) {
    %c0_i32 = arith.constant 0 : i32
    %c0_i32_0 = arith.constant 0 : i32
    %c0_i32_1 = arith.constant 0 : i32
    %c0_i32_2 = arith.constant 0 : i32
    return %c0_i32, %c0_i32_0, %c0_i32_1 : i32, i32, i32
  }
  func.func @transform_2(%arg0: i32, %arg1: i32) -> (i32, i32) {
    %c0_i32 = arith.constant 0 : i32
    %c0_i32_0 = arith.constant 0 : i32
    %c0_i32_1 = arith.constant 0 : i32
    return %c0_i32, %c0_i32_0 : i32, i32
  }
  func.func @transform_3(%arg0: i32, %arg1: i32) -> (i32, i32, i32, i32) {
    %c0_i32 = arith.constant 0 : i32
    %c0_i32_0 = arith.constant 0 : i32
    %c0_i32_1 = arith.constant 0 : i32
    return %arg0, %arg1, %c0_i32, %c0_i32_0 : i32, i32, i32, i32
  }
}

module attributes {stable_mosaic.version = 11 : i64} {
  func.func @_conv_block_kernel(%arg0: i32, %arg1: i32, %arg2: memref<4x5x5x8xbf16, #tpu.memory_space<vmem>>, %arg3: memref<9x8x16xbf16, #tpu.memory_space<vmem>>, %arg4: memref<1x16xf32, #tpu.memory_space<vmem>>, %arg5: memref<1x4x4x16xbf16, #tpu.memory_space<vmem>>) attributes {dimension_semantics = [#tpu.dimension_semantics<parallel>, #tpu.dimension_semantics<parallel>], iteration_bounds = array<i64: 2, 1>, scalar_prefetch = 0 : i64, scratch_operands = 0 : i64, tpu.core_type = #tpu.core_type<tc>, window_params = [{transform_indices = @transform_0, window_bounds = array<i64: 4, 5, 5, 8>}, {pipeline_mode = #tpu.pipeline_mode<synchronous>, transform_indices = @transform_1, window_bounds = array<i64: 9, 8, 16>}, {pipeline_mode = #tpu.pipeline_mode<synchronous>, transform_indices = @transform_2, window_bounds = array<i64: 1, 16>}, {transform_indices = @transform_3, window_bounds = array<i64: 1, 4, 4, 16>}]} {
    %c4_i32 = arith.constant 4 : i32
    %0 = arith.muli %arg1, %c4_i32 : i32
    %cst = arith.constant 0.000000e+00 : f32
    %1 = vector.broadcast %cst : f32 to vector<16x16xf32>
    %c0_i32 = arith.constant 0 : i32
    %2 = arith.addi %0, %c0_i32 : i32
    %c0 = arith.constant 0 : index
    %3 = arith.index_cast %2 : i32 to index
    %c0_0 = arith.constant 0 : index
    %c0_1 = arith.constant 0 : index
    %4 = vector.load %arg2[%c0, %3, %c0_0, %c0_1] : memref<4x5x5x8xbf16, #tpu.memory_space<vmem>>, vector<1x4x4x8xbf16>
    %5 = vector.shape_cast %4 : vector<1x4x4x8xbf16> to vector<4x4x8xbf16>
    %6 = vector.shape_cast %5 : vector<4x4x8xbf16> to vector<16x8xbf16>
    %c0_2 = arith.constant 0 : index
    %c0_3 = arith.constant 0 : index
    %c0_4 = arith.constant 0 : index
    %7 = vector.load %arg3[%c0_2, %c0_3, %c0_4] : memref<9x8x16xbf16, #tpu.memory_space<vmem>>, vector<1x8x16xbf16>
    %8 = vector.shape_cast %7 : vector<1x8x16xbf16> to vector<8x16xbf16>
    %cst_5 = arith.constant dense<0.000000e+00> : vector<16x16xf32>
    %9 = tpu.matmul %6, %8, %cst_5 {dimension_numbers = #tpu.dot_dimension_numbers<[1], [0], [0], [1], [0, 0, 1, 1], [], []>} : vector<16x8xbf16>, vector<8x16xbf16>, vector<16x16xf32> -> vector<16x16xf32>
    %10 = arith.addf %1, %9 : vector<16x16xf32>
    %c0_i32_6 = arith.constant 0 : i32
    %11 = arith.addi %0, %c0_i32_6 : i32
    %c1 = arith.constant 1 : index
    %12 = arith.index_cast %11 : i32 to index
    %c0_7 = arith.constant 0 : index
    %c0_8 = arith.constant 0 : index
    %13 = vector.load %arg2[%c1, %12, %c0_7, %c0_8] : memref<4x5x5x8xbf16, #tpu.memory_space<vmem>>, vector<1x4x4x8xbf16>
    %14 = vector.shape_cast %13 : vector<1x4x4x8xbf16> to vector<4x4x8xbf16>
    %15 = vector.shape_cast %14 : vector<4x4x8xbf16> to vector<16x8xbf16>
    %c1_9 = arith.constant 1 : index
    %c0_10 = arith.constant 0 : index
    %c0_11 = arith.constant 0 : index
    %16 = vector.load %arg3[%c1_9, %c0_10, %c0_11] : memref<9x8x16xbf16, #tpu.memory_space<vmem>>, vector<1x8x16xbf16>
    %17 = vector.shape_cast %16 : vector<1x8x16xbf16> to vector<8x16xbf16>
    %cst_12 = arith.constant dense<0.000000e+00> : vector<16x16xf32>
    %18 = tpu.matmul %15, %17, %cst_12 {dimension_numbers = #tpu.dot_dimension_numbers<[1], [0], [0], [1], [0, 0, 1, 1], [], []>} : vector<16x8xbf16>, vector<8x16xbf16>, vector<16x16xf32> -> vector<16x16xf32>
    %19 = arith.addf %10, %18 : vector<16x16xf32>
    %c0_i32_13 = arith.constant 0 : i32
    %20 = arith.addi %0, %c0_i32_13 : i32
    %c0_14 = arith.constant 0 : index
    %21 = arith.index_cast %20 : i32 to index
    %c1_15 = arith.constant 1 : index
    %c0_16 = arith.constant 0 : index
    %22 = vector.load %arg2[%c0_14, %21, %c1_15, %c0_16] : memref<4x5x5x8xbf16, #tpu.memory_space<vmem>>, vector<1x4x4x8xbf16>
    %23 = vector.shape_cast %22 : vector<1x4x4x8xbf16> to vector<4x4x8xbf16>
    %24 = vector.shape_cast %23 : vector<4x4x8xbf16> to vector<16x8xbf16>
    %c2 = arith.constant 2 : index
    %c0_17 = arith.constant 0 : index
    %c0_18 = arith.constant 0 : index
    %25 = vector.load %arg3[%c2, %c0_17, %c0_18] : memref<9x8x16xbf16, #tpu.memory_space<vmem>>, vector<1x8x16xbf16>
    %26 = vector.shape_cast %25 : vector<1x8x16xbf16> to vector<8x16xbf16>
    %cst_19 = arith.constant dense<0.000000e+00> : vector<16x16xf32>
    %27 = tpu.matmul %24, %26, %cst_19 {dimension_numbers = #tpu.dot_dimension_numbers<[1], [0], [0], [1], [0, 0, 1, 1], [], []>} : vector<16x8xbf16>, vector<8x16xbf16>, vector<16x16xf32> -> vector<16x16xf32>
    %28 = arith.addf %19, %27 : vector<16x16xf32>
    %c0_i32_20 = arith.constant 0 : i32
    %29 = arith.addi %0, %c0_i32_20 : i32
    %c2_21 = arith.constant 2 : index
    %30 = arith.index_cast %29 : i32 to index
    %c0_22 = arith.constant 0 : index
    %c0_23 = arith.constant 0 : index
    %31 = vector.load %arg2[%c2_21, %30, %c0_22, %c0_23] : memref<4x5x5x8xbf16, #tpu.memory_space<vmem>>, vector<1x4x4x8xbf16>
    %32 = vector.shape_cast %31 : vector<1x4x4x8xbf16> to vector<4x4x8xbf16>
    %33 = vector.shape_cast %32 : vector<4x4x8xbf16> to vector<16x8xbf16>
    %c3 = arith.constant 3 : index
    %c0_24 = arith.constant 0 : index
    %c0_25 = arith.constant 0 : index
    %34 = vector.load %arg3[%c3, %c0_24, %c0_25] : memref<9x8x16xbf16, #tpu.memory_space<vmem>>, vector<1x8x16xbf16>
    %35 = vector.shape_cast %34 : vector<1x8x16xbf16> to vector<8x16xbf16>
    %cst_26 = arith.constant dense<0.000000e+00> : vector<16x16xf32>
    %36 = tpu.matmul %33, %35, %cst_26 {dimension_numbers = #tpu.dot_dimension_numbers<[1], [0], [0], [1], [0, 0, 1, 1], [], []>} : vector<16x8xbf16>, vector<8x16xbf16>, vector<16x16xf32> -> vector<16x16xf32>
    %37 = arith.addf %28, %36 : vector<16x16xf32>
    %c0_i32_27 = arith.constant 0 : i32
    %38 = arith.addi %0, %c0_i32_27 : i32
    %c3_28 = arith.constant 3 : index
    %39 = arith.index_cast %38 : i32 to index
    %c0_29 = arith.constant 0 : index
    %c0_30 = arith.constant 0 : index
    %40 = vector.load %arg2[%c3_28, %39, %c0_29, %c0_30] : memref<4x5x5x8xbf16, #tpu.memory_space<vmem>>, vector<1x4x4x8xbf16>
    %41 = vector.shape_cast %40 : vector<1x4x4x8xbf16> to vector<4x4x8xbf16>
    %42 = vector.shape_cast %41 : vector<4x4x8xbf16> to vector<16x8xbf16>
    %c4 = arith.constant 4 : index
    %c0_31 = arith.constant 0 : index
    %c0_32 = arith.constant 0 : index
    %43 = vector.load %arg3[%c4, %c0_31, %c0_32] : memref<9x8x16xbf16, #tpu.memory_space<vmem>>, vector<1x8x16xbf16>
    %44 = vector.shape_cast %43 : vector<1x8x16xbf16> to vector<8x16xbf16>
    %cst_33 = arith.constant dense<0.000000e+00> : vector<16x16xf32>
    %45 = tpu.matmul %42, %44, %cst_33 {dimension_numbers = #tpu.dot_dimension_numbers<[1], [0], [0], [1], [0, 0, 1, 1], [], []>} : vector<16x8xbf16>, vector<8x16xbf16>, vector<16x16xf32> -> vector<16x16xf32>
    %46 = arith.addf %37, %45 : vector<16x16xf32>
    %c0_i32_34 = arith.constant 0 : i32
    %47 = arith.addi %0, %c0_i32_34 : i32
    %c2_35 = arith.constant 2 : index
    %48 = arith.index_cast %47 : i32 to index
    %c1_36 = arith.constant 1 : index
    %c0_37 = arith.constant 0 : index
    %49 = vector.load %arg2[%c2_35, %48, %c1_36, %c0_37] : memref<4x5x5x8xbf16, #tpu.memory_space<vmem>>, vector<1x4x4x8xbf16>
    %50 = vector.shape_cast %49 : vector<1x4x4x8xbf16> to vector<4x4x8xbf16>
    %51 = vector.shape_cast %50 : vector<4x4x8xbf16> to vector<16x8xbf16>
    %c5 = arith.constant 5 : index
    %c0_38 = arith.constant 0 : index
    %c0_39 = arith.constant 0 : index
    %52 = vector.load %arg3[%c5, %c0_38, %c0_39] : memref<9x8x16xbf16, #tpu.memory_space<vmem>>, vector<1x8x16xbf16>
    %53 = vector.shape_cast %52 : vector<1x8x16xbf16> to vector<8x16xbf16>
    %cst_40 = arith.constant dense<0.000000e+00> : vector<16x16xf32>
    %54 = tpu.matmul %51, %53, %cst_40 {dimension_numbers = #tpu.dot_dimension_numbers<[1], [0], [0], [1], [0, 0, 1, 1], [], []>} : vector<16x8xbf16>, vector<8x16xbf16>, vector<16x16xf32> -> vector<16x16xf32>
    %55 = arith.addf %46, %54 : vector<16x16xf32>
    %c1_i32 = arith.constant 1 : i32
    %56 = arith.addi %0, %c1_i32 : i32
    %c0_41 = arith.constant 0 : index
    %57 = arith.index_cast %56 : i32 to index
    %c0_42 = arith.constant 0 : index
    %c0_43 = arith.constant 0 : index
    %58 = vector.load %arg2[%c0_41, %57, %c0_42, %c0_43] : memref<4x5x5x8xbf16, #tpu.memory_space<vmem>>, vector<1x4x4x8xbf16>
    %59 = vector.shape_cast %58 : vector<1x4x4x8xbf16> to vector<4x4x8xbf16>
    %60 = vector.shape_cast %59 : vector<4x4x8xbf16> to vector<16x8xbf16>
    %c6 = arith.constant 6 : index
    %c0_44 = arith.constant 0 : index
    %c0_45 = arith.constant 0 : index
    %61 = vector.load %arg3[%c6, %c0_44, %c0_45] : memref<9x8x16xbf16, #tpu.memory_space<vmem>>, vector<1x8x16xbf16>
    %62 = vector.shape_cast %61 : vector<1x8x16xbf16> to vector<8x16xbf16>
    %cst_46 = arith.constant dense<0.000000e+00> : vector<16x16xf32>
    %63 = tpu.matmul %60, %62, %cst_46 {dimension_numbers = #tpu.dot_dimension_numbers<[1], [0], [0], [1], [0, 0, 1, 1], [], []>} : vector<16x8xbf16>, vector<8x16xbf16>, vector<16x16xf32> -> vector<16x16xf32>
    %64 = arith.addf %55, %63 : vector<16x16xf32>
    %c1_i32_47 = arith.constant 1 : i32
    %65 = arith.addi %0, %c1_i32_47 : i32
    %c1_48 = arith.constant 1 : index
    %66 = arith.index_cast %65 : i32 to index
    %c0_49 = arith.constant 0 : index
    %c0_50 = arith.constant 0 : index
    %67 = vector.load %arg2[%c1_48, %66, %c0_49, %c0_50] : memref<4x5x5x8xbf16, #tpu.memory_space<vmem>>, vector<1x4x4x8xbf16>
    %68 = vector.shape_cast %67 : vector<1x4x4x8xbf16> to vector<4x4x8xbf16>
    %69 = vector.shape_cast %68 : vector<4x4x8xbf16> to vector<16x8xbf16>
    %c7 = arith.constant 7 : index
    %c0_51 = arith.constant 0 : index
    %c0_52 = arith.constant 0 : index
    %70 = vector.load %arg3[%c7, %c0_51, %c0_52] : memref<9x8x16xbf16, #tpu.memory_space<vmem>>, vector<1x8x16xbf16>
    %71 = vector.shape_cast %70 : vector<1x8x16xbf16> to vector<8x16xbf16>
    %cst_53 = arith.constant dense<0.000000e+00> : vector<16x16xf32>
    %72 = tpu.matmul %69, %71, %cst_53 {dimension_numbers = #tpu.dot_dimension_numbers<[1], [0], [0], [1], [0, 0, 1, 1], [], []>} : vector<16x8xbf16>, vector<8x16xbf16>, vector<16x16xf32> -> vector<16x16xf32>
    %73 = arith.addf %64, %72 : vector<16x16xf32>
    %c1_i32_54 = arith.constant 1 : i32
    %74 = arith.addi %0, %c1_i32_54 : i32
    %c0_55 = arith.constant 0 : index
    %75 = arith.index_cast %74 : i32 to index
    %c1_56 = arith.constant 1 : index
    %c0_57 = arith.constant 0 : index
    %76 = vector.load %arg2[%c0_55, %75, %c1_56, %c0_57] : memref<4x5x5x8xbf16, #tpu.memory_space<vmem>>, vector<1x4x4x8xbf16>
    %77 = vector.shape_cast %76 : vector<1x4x4x8xbf16> to vector<4x4x8xbf16>
    %78 = vector.shape_cast %77 : vector<4x4x8xbf16> to vector<16x8xbf16>
    %c8 = arith.constant 8 : index
    %c0_58 = arith.constant 0 : index
    %c0_59 = arith.constant 0 : index
    %79 = vector.load %arg3[%c8, %c0_58, %c0_59] : memref<9x8x16xbf16, #tpu.memory_space<vmem>>, vector<1x8x16xbf16>
    %80 = vector.shape_cast %79 : vector<1x8x16xbf16> to vector<8x16xbf16>
    %cst_60 = arith.constant dense<0.000000e+00> : vector<16x16xf32>
    %81 = tpu.matmul %78, %80, %cst_60 {dimension_numbers = #tpu.dot_dimension_numbers<[1], [0], [0], [1], [0, 0, 1, 1], [], []>} : vector<16x8xbf16>, vector<8x16xbf16>, vector<16x16xf32> -> vector<16x16xf32>
    %82 = arith.addf %73, %81 : vector<16x16xf32>
    %c0_61 = arith.constant 0 : index
    %c0_62 = arith.constant 0 : index
    %83 = vector.load %arg4[%c0_61, %c0_62] : memref<1x16xf32, #tpu.memory_space<vmem>>, vector<1x16xf32>
    %84 = vector.broadcast %83 : vector<1x16xf32> to vector<16x16xf32>
    %85 = arith.addf %82, %84 : vector<16x16xf32>
    %cst_63 = arith.constant 0.000000e+00 : f32
    %86 = vector.broadcast %cst_63 : f32 to vector<16x16xf32>
    %87 = arith.maximumf %85, %86 : vector<16x16xf32>
    %88 = vector.shape_cast %87 : vector<16x16xf32> to vector<1x4x4x16xf32>
    %89 = arith.truncf %88 : vector<1x4x4x16xf32> to vector<1x4x4x16xbf16>
    %c0_64 = arith.constant 0 : index
    %c0_65 = arith.constant 0 : index
    %c0_66 = arith.constant 0 : index
    %c0_67 = arith.constant 0 : index
    %90 = vector.load %arg5[%c0_64, %c0_65, %c0_66, %c0_67] : memref<1x4x4x16xbf16, #tpu.memory_space<vmem>>, vector<1x4x4x16xbf16>
    tpu.vector_store %arg5[%c0_64, %c0_65, %c0_66, %c0_67], %89 {strides = array<i32>} : memref<1x4x4x16xbf16, #tpu.memory_space<vmem>>, vector<1x4x4x16xbf16>,
    return
  }
  func.func @transform_0(%arg0: i32, %arg1: i32) -> (i32, i32, i32, i32) {
    %c0_i32 = arith.constant 0 : i32
    %c0_i32_0 = arith.constant 0 : i32
    %c0_i32_1 = arith.constant 0 : i32
    %c0_i32_2 = arith.constant 0 : i32
    return %arg0, %c0_i32, %c0_i32_0, %c0_i32_1 : i32, i32, i32, i32
  }
  func.func @transform_1(%arg0: i32, %arg1: i32) -> (i32, i32, i32) {
    %c0_i32 = arith.constant 0 : i32
    %c0_i32_0 = arith.constant 0 : i32
    %c0_i32_1 = arith.constant 0 : i32
    %c0_i32_2 = arith.constant 0 : i32
    return %c0_i32, %c0_i32_0, %c0_i32_1 : i32, i32, i32
  }
  func.func @transform_2(%arg0: i32, %arg1: i32) -> (i32, i32) {
    %c0_i32 = arith.constant 0 : i32
    %c0_i32_0 = arith.constant 0 : i32
    %c0_i32_1 = arith.constant 0 : i32
    return %c0_i32, %c0_i32_0 : i32, i32
  }
  func.func @transform_3(%arg0: i32, %arg1: i32) -> (i32, i32, i32, i32) {
    %c0_i32 = arith.constant 0 : i32
    %c0_i32_0 = arith.constant 0 : i32
    %c0_i32_1 = arith.constant 0 : i32
    return %arg0, %arg1, %c0_i32, %c0_i32_0 : i32, i32, i32, i32
  }
}

module attributes {stable_mosaic.version = 11 : i64} {
  func.func @_conv_block_kernel(%arg0: i32, %arg1: i32, %arg2: memref<1x10x10x8xbf16, #tpu.memory_space<vmem>>, %arg3: memref<9x8x4xbf16, #tpu.memory_space<vmem>>, %arg4: memref<1x4xf32, #tpu.memory_space<vmem>>, %arg5: memref<4x6xbf16, #tpu.memory_space<vmem>>, %arg6: memref<1x6xf32, #tpu.memory_space<vmem>>, %arg7: memref<1x8x8x6xf32, #tpu.memory_space<vmem>>) attributes {dimension_semantics = [#tpu.dimension_semantics<parallel>, #tpu.dimension_semantics<parallel>], iteration_bounds = array<i64: 2, 1>, scalar_prefetch = 0 : i64, scratch_operands = 0 : i64, tpu.core_type = #tpu.core_type<tc>, window_params = [{transform_indices = @transform_0, window_bounds = array<i64: 1, 10, 10, 8>}, {pipeline_mode = #tpu.pipeline_mode<synchronous>, transform_indices = @transform_1, window_bounds = array<i64: 9, 8, 4>}, {pipeline_mode = #tpu.pipeline_mode<synchronous>, transform_indices = @transform_2, window_bounds = array<i64: 1, 4>}, {pipeline_mode = #tpu.pipeline_mode<synchronous>, transform_indices = @transform_3, window_bounds = array<i64: 4, 6>}, {pipeline_mode = #tpu.pipeline_mode<synchronous>, transform_indices = @transform_4, window_bounds = array<i64: 1, 6>}, {transform_indices = @transform_5, window_bounds = array<i64: 1, 8, 8, 6>}]} {
    %c8_i32 = arith.constant 8 : i32
    %0 = arith.muli %arg1, %c8_i32 : i32
    %cst = arith.constant 0.000000e+00 : f32
    %1 = vector.broadcast %cst : f32 to vector<64x4xf32>
    %c0_i32 = arith.constant 0 : i32
    %2 = arith.addi %0, %c0_i32 : i32
    %c0 = arith.constant 0 : index
    %3 = arith.index_cast %2 : i32 to index
    %c0_0 = arith.constant 0 : index
    %c0_1 = arith.constant 0 : index
    %4 = vector.load %arg2[%c0, %3, %c0_0, %c0_1] : memref<1x10x10x8xbf16, #tpu.memory_space<vmem>>, vector<1x8x8x8xbf16>
    %5 = vector.shape_cast %4 : vector<1x8x8x8xbf16> to vector<8x8x8xbf16>
    %6 = vector.shape_cast %5 : vector<8x8x8xbf16> to vector<64x8xbf16>
    %c0_2 = arith.constant 0 : index
    %c0_3 = arith.constant 0 : index
    %c0_4 = arith.constant 0 : index
    %7 = vector.load %arg3[%c0_2, %c0_3, %c0_4] : memref<9x8x4xbf16, #tpu.memory_space<vmem>>, vector<1x8x4xbf16>
    %8 = vector.shape_cast %7 : vector<1x8x4xbf16> to vector<8x4xbf16>
    %cst_5 = arith.constant dense<0.000000e+00> : vector<64x4xf32>
    %9 = tpu.matmul %6, %8, %cst_5 {dimension_numbers = #tpu.dot_dimension_numbers<[1], [0], [0], [1], [0, 0, 1, 1], [], []>} : vector<64x8xbf16>, vector<8x4xbf16>, vector<64x4xf32> -> vector<64x4xf32>
    %10 = arith.addf %1, %9 : vector<64x4xf32>
    %c0_i32_6 = arith.constant 0 : i32
    %11 = arith.addi %0, %c0_i32_6 : i32
    %c0_7 = arith.constant 0 : index
    %12 = arith.index_cast %11 : i32 to index
    %c1 = arith.constant 1 : index
    %c0_8 = arith.constant 0 : index
    %13 = vector.load %arg2[%c0_7, %12, %c1, %c0_8] : memref<1x10x10x8xbf16, #tpu.memory_space<vmem>>, vector<1x8x8x8xbf16>
    %14 = vector.shape_cast %13 : vector<1x8x8x8xbf16> to vector<8x8x8xbf16>
    %15 = vector.shape_cast %14 : vector<8x8x8xbf16> to vector<64x8xbf16>
    %c1_9 = arith.constant 1 : index
    %c0_10 = arith.constant 0 : index
    %c0_11 = arith.constant 0 : index
    %16 = vector.load %arg3[%c1_9, %c0_10, %c0_11] : memref<9x8x4xbf16, #tpu.memory_space<vmem>>, vector<1x8x4xbf16>
    %17 = vector.shape_cast %16 : vector<1x8x4xbf16> to vector<8x4xbf16>
    %cst_12 = arith.constant dense<0.000000e+00> : vector<64x4xf32>
    %18 = tpu.matmul %15, %17, %cst_12 {dimension_numbers = #tpu.dot_dimension_numbers<[1], [0], [0], [1], [0, 0, 1, 1], [], []>} : vector<64x8xbf16>, vector<8x4xbf16>, vector<64x4xf32> -> vector<64x4xf32>
    %19 = arith.addf %10, %18 : vector<64x4xf32>
    %c0_i32_13 = arith.constant 0 : i32
    %20 = arith.addi %0, %c0_i32_13 : i32
    %c0_14 = arith.constant 0 : index
    %21 = arith.index_cast %20 : i32 to index
    %c2 = arith.constant 2 : index
    %c0_15 = arith.constant 0 : index
    %22 = vector.load %arg2[%c0_14, %21, %c2, %c0_15] : memref<1x10x10x8xbf16, #tpu.memory_space<vmem>>, vector<1x8x8x8xbf16>
    %23 = vector.shape_cast %22 : vector<1x8x8x8xbf16> to vector<8x8x8xbf16>
    %24 = vector.shape_cast %23 : vector<8x8x8xbf16> to vector<64x8xbf16>
    %c2_16 = arith.constant 2 : index
    %c0_17 = arith.constant 0 : index
    %c0_18 = arith.constant 0 : index
    %25 = vector.load %arg3[%c2_16, %c0_17, %c0_18] : memref<9x8x4xbf16, #tpu.memory_space<vmem>>, vector<1x8x4xbf16>
    %26 = vector.shape_cast %25 : vector<1x8x4xbf16> to vector<8x4xbf16>
    %cst_19 = arith.constant dense<0.000000e+00> : vector<64x4xf32>
    %27 = tpu.matmul %24, %26, %cst_19 {dimension_numbers = #tpu.dot_dimension_numbers<[1], [0], [0], [1], [0, 0, 1, 1], [], []>} : vector<64x8xbf16>, vector<8x4xbf16>, vector<64x4xf32> -> vector<64x4xf32>
    %28 = arith.addf %19, %27 : vector<64x4xf32>
    %c1_i32 = arith.constant 1 : i32
    %29 = arith.addi %0, %c1_i32 : i32
    %c0_20 = arith.constant 0 : index
    %30 = arith.index_cast %29 : i32 to index
    %c0_21 = arith.constant 0 : index
    %c0_22 = arith.constant 0 : index
    %31 = vector.load %arg2[%c0_20, %30, %c0_21, %c0_22] : memref<1x10x10x8xbf16, #tpu.memory_space<vmem>>, vector<1x8x8x8xbf16>
    %32 = vector.shape_cast %31 : vector<1x8x8x8xbf16> to vector<8x8x8xbf16>
    %33 = vector.shape_cast %32 : vector<8x8x8xbf16> to vector<64x8xbf16>
    %c3 = arith.constant 3 : index
    %c0_23 = arith.constant 0 : index
    %c0_24 = arith.constant 0 : index
    %34 = vector.load %arg3[%c3, %c0_23, %c0_24] : memref<9x8x4xbf16, #tpu.memory_space<vmem>>, vector<1x8x4xbf16>
    %35 = vector.shape_cast %34 : vector<1x8x4xbf16> to vector<8x4xbf16>
    %cst_25 = arith.constant dense<0.000000e+00> : vector<64x4xf32>
    %36 = tpu.matmul %33, %35, %cst_25 {dimension_numbers = #tpu.dot_dimension_numbers<[1], [0], [0], [1], [0, 0, 1, 1], [], []>} : vector<64x8xbf16>, vector<8x4xbf16>, vector<64x4xf32> -> vector<64x4xf32>
    %37 = arith.addf %28, %36 : vector<64x4xf32>
    %c1_i32_26 = arith.constant 1 : i32
    %38 = arith.addi %0, %c1_i32_26 : i32
    %c0_27 = arith.constant 0 : index
    %39 = arith.index_cast %38 : i32 to index
    %c1_28 = arith.constant 1 : index
    %c0_29 = arith.constant 0 : index
    %40 = vector.load %arg2[%c0_27, %39, %c1_28, %c0_29] : memref<1x10x10x8xbf16, #tpu.memory_space<vmem>>, vector<1x8x8x8xbf16>
    %41 = vector.shape_cast %40 : vector<1x8x8x8xbf16> to vector<8x8x8xbf16>
    %42 = vector.shape_cast %41 : vector<8x8x8xbf16> to vector<64x8xbf16>
    %c4 = arith.constant 4 : index
    %c0_30 = arith.constant 0 : index
    %c0_31 = arith.constant 0 : index
    %43 = vector.load %arg3[%c4, %c0_30, %c0_31] : memref<9x8x4xbf16, #tpu.memory_space<vmem>>, vector<1x8x4xbf16>
    %44 = vector.shape_cast %43 : vector<1x8x4xbf16> to vector<8x4xbf16>
    %cst_32 = arith.constant dense<0.000000e+00> : vector<64x4xf32>
    %45 = tpu.matmul %42, %44, %cst_32 {dimension_numbers = #tpu.dot_dimension_numbers<[1], [0], [0], [1], [0, 0, 1, 1], [], []>} : vector<64x8xbf16>, vector<8x4xbf16>, vector<64x4xf32> -> vector<64x4xf32>
    %46 = arith.addf %37, %45 : vector<64x4xf32>
    %c1_i32_33 = arith.constant 1 : i32
    %47 = arith.addi %0, %c1_i32_33 : i32
    %c0_34 = arith.constant 0 : index
    %48 = arith.index_cast %47 : i32 to index
    %c2_35 = arith.constant 2 : index
    %c0_36 = arith.constant 0 : index
    %49 = vector.load %arg2[%c0_34, %48, %c2_35, %c0_36] : memref<1x10x10x8xbf16, #tpu.memory_space<vmem>>, vector<1x8x8x8xbf16>
    %50 = vector.shape_cast %49 : vector<1x8x8x8xbf16> to vector<8x8x8xbf16>
    %51 = vector.shape_cast %50 : vector<8x8x8xbf16> to vector<64x8xbf16>
    %c5 = arith.constant 5 : index
    %c0_37 = arith.constant 0 : index
    %c0_38 = arith.constant 0 : index
    %52 = vector.load %arg3[%c5, %c0_37, %c0_38] : memref<9x8x4xbf16, #tpu.memory_space<vmem>>, vector<1x8x4xbf16>
    %53 = vector.shape_cast %52 : vector<1x8x4xbf16> to vector<8x4xbf16>
    %cst_39 = arith.constant dense<0.000000e+00> : vector<64x4xf32>
    %54 = tpu.matmul %51, %53, %cst_39 {dimension_numbers = #tpu.dot_dimension_numbers<[1], [0], [0], [1], [0, 0, 1, 1], [], []>} : vector<64x8xbf16>, vector<8x4xbf16>, vector<64x4xf32> -> vector<64x4xf32>
    %55 = arith.addf %46, %54 : vector<64x4xf32>
    %c2_i32 = arith.constant 2 : i32
    %56 = arith.addi %0, %c2_i32 : i32
    %c0_40 = arith.constant 0 : index
    %57 = arith.index_cast %56 : i32 to index
    %c0_41 = arith.constant 0 : index
    %c0_42 = arith.constant 0 : index
    %58 = vector.load %arg2[%c0_40, %57, %c0_41, %c0_42] : memref<1x10x10x8xbf16, #tpu.memory_space<vmem>>, vector<1x8x8x8xbf16>
    %59 = vector.shape_cast %58 : vector<1x8x8x8xbf16> to vector<8x8x8xbf16>
    %60 = vector.shape_cast %59 : vector<8x8x8xbf16> to vector<64x8xbf16>
    %c6 = arith.constant 6 : index
    %c0_43 = arith.constant 0 : index
    %c0_44 = arith.constant 0 : index
    %61 = vector.load %arg3[%c6, %c0_43, %c0_44] : memref<9x8x4xbf16, #tpu.memory_space<vmem>>, vector<1x8x4xbf16>
    %62 = vector.shape_cast %61 : vector<1x8x4xbf16> to vector<8x4xbf16>
    %cst_45 = arith.constant dense<0.000000e+00> : vector<64x4xf32>
    %63 = tpu.matmul %60, %62, %cst_45 {dimension_numbers = #tpu.dot_dimension_numbers<[1], [0], [0], [1], [0, 0, 1, 1], [], []>} : vector<64x8xbf16>, vector<8x4xbf16>, vector<64x4xf32> -> vector<64x4xf32>
    %64 = arith.addf %55, %63 : vector<64x4xf32>
    %c2_i32_46 = arith.constant 2 : i32
    %65 = arith.addi %0, %c2_i32_46 : i32
    %c0_47 = arith.constant 0 : index
    %66 = arith.index_cast %65 : i32 to index
    %c1_48 = arith.constant 1 : index
    %c0_49 = arith.constant 0 : index
    %67 = vector.load %arg2[%c0_47, %66, %c1_48, %c0_49] : memref<1x10x10x8xbf16, #tpu.memory_space<vmem>>, vector<1x8x8x8xbf16>
    %68 = vector.shape_cast %67 : vector<1x8x8x8xbf16> to vector<8x8x8xbf16>
    %69 = vector.shape_cast %68 : vector<8x8x8xbf16> to vector<64x8xbf16>
    %c7 = arith.constant 7 : index
    %c0_50 = arith.constant 0 : index
    %c0_51 = arith.constant 0 : index
    %70 = vector.load %arg3[%c7, %c0_50, %c0_51] : memref<9x8x4xbf16, #tpu.memory_space<vmem>>, vector<1x8x4xbf16>
    %71 = vector.shape_cast %70 : vector<1x8x4xbf16> to vector<8x4xbf16>
    %cst_52 = arith.constant dense<0.000000e+00> : vector<64x4xf32>
    %72 = tpu.matmul %69, %71, %cst_52 {dimension_numbers = #tpu.dot_dimension_numbers<[1], [0], [0], [1], [0, 0, 1, 1], [], []>} : vector<64x8xbf16>, vector<8x4xbf16>, vector<64x4xf32> -> vector<64x4xf32>
    %73 = arith.addf %64, %72 : vector<64x4xf32>
    %c2_i32_53 = arith.constant 2 : i32
    %74 = arith.addi %0, %c2_i32_53 : i32
    %c0_54 = arith.constant 0 : index
    %75 = arith.index_cast %74 : i32 to index
    %c2_55 = arith.constant 2 : index
    %c0_56 = arith.constant 0 : index
    %76 = vector.load %arg2[%c0_54, %75, %c2_55, %c0_56] : memref<1x10x10x8xbf16, #tpu.memory_space<vmem>>, vector<1x8x8x8xbf16>
    %77 = vector.shape_cast %76 : vector<1x8x8x8xbf16> to vector<8x8x8xbf16>
    %78 = vector.shape_cast %77 : vector<8x8x8xbf16> to vector<64x8xbf16>
    %c8 = arith.constant 8 : index
    %c0_57 = arith.constant 0 : index
    %c0_58 = arith.constant 0 : index
    %79 = vector.load %arg3[%c8, %c0_57, %c0_58] : memref<9x8x4xbf16, #tpu.memory_space<vmem>>, vector<1x8x4xbf16>
    %80 = vector.shape_cast %79 : vector<1x8x4xbf16> to vector<8x4xbf16>
    %cst_59 = arith.constant dense<0.000000e+00> : vector<64x4xf32>
    %81 = tpu.matmul %78, %80, %cst_59 {dimension_numbers = #tpu.dot_dimension_numbers<[1], [0], [0], [1], [0, 0, 1, 1], [], []>} : vector<64x8xbf16>, vector<8x4xbf16>, vector<64x4xf32> -> vector<64x4xf32>
    %82 = arith.addf %73, %81 : vector<64x4xf32>
    %c0_60 = arith.constant 0 : index
    %c0_61 = arith.constant 0 : index
    %83 = vector.load %arg4[%c0_60, %c0_61] : memref<1x4xf32, #tpu.memory_space<vmem>>, vector<1x4xf32>
    %84 = vector.broadcast %83 : vector<1x4xf32> to vector<64x4xf32>
    %85 = arith.addf %82, %84 : vector<64x4xf32>
    %cst_62 = arith.constant 0.000000e+00 : f32
    %86 = vector.broadcast %cst_62 : f32 to vector<64x4xf32>
    %87 = arith.maximumf %85, %86 : vector<64x4xf32>
    %88 = arith.truncf %87 : vector<64x4xf32> to vector<64x4xbf16>
    %c0_63 = arith.constant 0 : index
    %c0_64 = arith.constant 0 : index
    %89 = vector.load %arg5[%c0_63, %c0_64] : memref<4x6xbf16, #tpu.memory_space<vmem>>, vector<4x6xbf16>
    %cst_65 = arith.constant dense<0.000000e+00> : vector<64x6xf32>
    %90 = tpu.matmul %88, %89, %cst_65 {dimension_numbers = #tpu.dot_dimension_numbers<[1], [0], [0], [1], [0, 0, 1, 1], [], []>} : vector<64x4xbf16>, vector<4x6xbf16>, vector<64x6xf32> -> vector<64x6xf32>
    %c0_66 = arith.constant 0 : index
    %c0_67 = arith.constant 0 : index
    %91 = vector.load %arg6[%c0_66, %c0_67] : memref<1x6xf32, #tpu.memory_space<vmem>>, vector<1x6xf32>
    %92 = vector.broadcast %91 : vector<1x6xf32> to vector<64x6xf32>
    %93 = arith.addf %90, %92 : vector<64x6xf32>
    %94 = vector.shape_cast %93 : vector<64x6xf32> to vector<1x8x8x6xf32>
    %c0_68 = arith.constant 0 : index
    %c0_69 = arith.constant 0 : index
    %c0_70 = arith.constant 0 : index
    %c0_71 = arith.constant 0 : index
    %95 = vector.load %arg7[%c0_68, %c0_69, %c0_70, %c0_71] : memref<1x8x8x6xf32, #tpu.memory_space<vmem>>, vector<1x8x8x6xf32>
    tpu.vector_store %arg7[%c0_68, %c0_69, %c0_70, %c0_71], %94 {strides = array<i32>} : memref<1x8x8x6xf32, #tpu.memory_space<vmem>>, vector<1x8x8x6xf32>,
    return
  }
  func.func @transform_0(%arg0: i32, %arg1: i32) -> (i32, i32, i32, i32) {
    %c0_i32 = arith.constant 0 : i32
    %c0_i32_0 = arith.constant 0 : i32
    %c0_i32_1 = arith.constant 0 : i32
    %c0_i32_2 = arith.constant 0 : i32
    return %arg0, %c0_i32, %c0_i32_0, %c0_i32_1 : i32, i32, i32, i32
  }
  func.func @transform_1(%arg0: i32, %arg1: i32) -> (i32, i32, i32) {
    %c0_i32 = arith.constant 0 : i32
    %c0_i32_0 = arith.constant 0 : i32
    %c0_i32_1 = arith.constant 0 : i32
    %c0_i32_2 = arith.constant 0 : i32
    return %c0_i32, %c0_i32_0, %c0_i32_1 : i32, i32, i32
  }
  func.func @transform_2(%arg0: i32, %arg1: i32) -> (i32, i32) {
    %c0_i32 = arith.constant 0 : i32
    %c0_i32_0 = arith.constant 0 : i32
    %c0_i32_1 = arith.constant 0 : i32
    return %c0_i32, %c0_i32_0 : i32, i32
  }
  func.func @transform_3(%arg0: i32, %arg1: i32) -> (i32, i32) {
    %c0_i32 = arith.constant 0 : i32
    %c0_i32_0 = arith.constant 0 : i32
    %c0_i32_1 = arith.constant 0 : i32
    return %c0_i32, %c0_i32_0 : i32, i32
  }
  func.func @transform_4(%arg0: i32, %arg1: i32) -> (i32, i32) {
    %c0_i32 = arith.constant 0 : i32
    %c0_i32_0 = arith.constant 0 : i32
    %c0_i32_1 = arith.constant 0 : i32
    return %c0_i32, %c0_i32_0 : i32, i32
  }
  func.func @transform_5(%arg0: i32, %arg1: i32) -> (i32, i32, i32, i32) {
    %c0_i32 = arith.constant 0 : i32
    %c0_i32_0 = arith.constant 0 : i32
    %c0_i32_1 = arith.constant 0 : i32
    return %arg0, %arg1, %c0_i32, %c0_i32_0 : i32, i32, i32, i32
  }
}

module attributes {stable_mosaic.version = 11 : i64} {
  func.func @_conv_block_kernel(%arg0: i32, %arg1: i32, %arg2: memref<1x6x6x16xbf16, #tpu.memory_space<vmem>>, %arg3: memref<9x16x8xbf16, #tpu.memory_space<vmem>>, %arg4: memref<1x8xf32, #tpu.memory_space<vmem>>, %arg5: memref<8x6xbf16, #tpu.memory_space<vmem>>, %arg6: memref<1x6xf32, #tpu.memory_space<vmem>>, %arg7: memref<1x4x4x6xf32, #tpu.memory_space<vmem>>) attributes {dimension_semantics = [#tpu.dimension_semantics<parallel>, #tpu.dimension_semantics<parallel>], iteration_bounds = array<i64: 2, 1>, scalar_prefetch = 0 : i64, scratch_operands = 0 : i64, tpu.core_type = #tpu.core_type<tc>, window_params = [{transform_indices = @transform_0, window_bounds = array<i64: 1, 6, 6, 16>}, {pipeline_mode = #tpu.pipeline_mode<synchronous>, transform_indices = @transform_1, window_bounds = array<i64: 9, 16, 8>}, {pipeline_mode = #tpu.pipeline_mode<synchronous>, transform_indices = @transform_2, window_bounds = array<i64: 1, 8>}, {pipeline_mode = #tpu.pipeline_mode<synchronous>, transform_indices = @transform_3, window_bounds = array<i64: 8, 6>}, {pipeline_mode = #tpu.pipeline_mode<synchronous>, transform_indices = @transform_4, window_bounds = array<i64: 1, 6>}, {transform_indices = @transform_5, window_bounds = array<i64: 1, 4, 4, 6>}]} {
    %c4_i32 = arith.constant 4 : i32
    %0 = arith.muli %arg1, %c4_i32 : i32
    %cst = arith.constant 0.000000e+00 : f32
    %1 = vector.broadcast %cst : f32 to vector<16x8xf32>
    %c0_i32 = arith.constant 0 : i32
    %2 = arith.addi %0, %c0_i32 : i32
    %c0 = arith.constant 0 : index
    %3 = arith.index_cast %2 : i32 to index
    %c0_0 = arith.constant 0 : index
    %c0_1 = arith.constant 0 : index
    %4 = vector.load %arg2[%c0, %3, %c0_0, %c0_1] : memref<1x6x6x16xbf16, #tpu.memory_space<vmem>>, vector<1x4x4x16xbf16>
    %5 = vector.shape_cast %4 : vector<1x4x4x16xbf16> to vector<4x4x16xbf16>
    %6 = vector.shape_cast %5 : vector<4x4x16xbf16> to vector<16x16xbf16>
    %c0_2 = arith.constant 0 : index
    %c0_3 = arith.constant 0 : index
    %c0_4 = arith.constant 0 : index
    %7 = vector.load %arg3[%c0_2, %c0_3, %c0_4] : memref<9x16x8xbf16, #tpu.memory_space<vmem>>, vector<1x16x8xbf16>
    %8 = vector.shape_cast %7 : vector<1x16x8xbf16> to vector<16x8xbf16>
    %cst_5 = arith.constant dense<0.000000e+00> : vector<16x8xf32>
    %9 = tpu.matmul %6, %8, %cst_5 {dimension_numbers = #tpu.dot_dimension_numbers<[1], [0], [0], [1], [0, 0, 1, 1], [], []>} : vector<16x16xbf16>, vector<16x8xbf16>, vector<16x8xf32> -> vector<16x8xf32>
    %10 = arith.addf %1, %9 : vector<16x8xf32>
    %c0_i32_6 = arith.constant 0 : i32
    %11 = arith.addi %0, %c0_i32_6 : i32
    %c0_7 = arith.constant 0 : index
    %12 = arith.index_cast %11 : i32 to index
    %c1 = arith.constant 1 : index
    %c0_8 = arith.constant 0 : index
    %13 = vector.load %arg2[%c0_7, %12, %c1, %c0_8] : memref<1x6x6x16xbf16, #tpu.memory_space<vmem>>, vector<1x4x4x16xbf16>
    %14 = vector.shape_cast %13 : vector<1x4x4x16xbf16> to vector<4x4x16xbf16>
    %15 = vector.shape_cast %14 : vector<4x4x16xbf16> to vector<16x16xbf16>
    %c1_9 = arith.constant 1 : index
    %c0_10 = arith.constant 0 : index
    %c0_11 = arith.constant 0 : index
    %16 = vector.load %arg3[%c1_9, %c0_10, %c0_11] : memref<9x16x8xbf16, #tpu.memory_space<vmem>>, vector<1x16x8xbf16>
    %17 = vector.shape_cast %16 : vector<1x16x8xbf16> to vector<16x8xbf16>
    %cst_12 = arith.constant dense<0.000000e+00> : vector<16x8xf32>
    %18 = tpu.matmul %15, %17, %cst_12 {dimension_numbers = #tpu.dot_dimension_numbers<[1], [0], [0], [1], [0, 0, 1, 1], [], []>} : vector<16x16xbf16>, vector<16x8xbf16>, vector<16x8xf32> -> vector<16x8xf32>
    %19 = arith.addf %10, %18 : vector<16x8xf32>
    %c0_i32_13 = arith.constant 0 : i32
    %20 = arith.addi %0, %c0_i32_13 : i32
    %c0_14 = arith.constant 0 : index
    %21 = arith.index_cast %20 : i32 to index
    %c2 = arith.constant 2 : index
    %c0_15 = arith.constant 0 : index
    %22 = vector.load %arg2[%c0_14, %21, %c2, %c0_15] : memref<1x6x6x16xbf16, #tpu.memory_space<vmem>>, vector<1x4x4x16xbf16>
    %23 = vector.shape_cast %22 : vector<1x4x4x16xbf16> to vector<4x4x16xbf16>
    %24 = vector.shape_cast %23 : vector<4x4x16xbf16> to vector<16x16xbf16>
    %c2_16 = arith.constant 2 : index
    %c0_17 = arith.constant 0 : index
    %c0_18 = arith.constant 0 : index
    %25 = vector.load %arg3[%c2_16, %c0_17, %c0_18] : memref<9x16x8xbf16, #tpu.memory_space<vmem>>, vector<1x16x8xbf16>
    %26 = vector.shape_cast %25 : vector<1x16x8xbf16> to vector<16x8xbf16>
    %cst_19 = arith.constant dense<0.000000e+00> : vector<16x8xf32>
    %27 = tpu.matmul %24, %26, %cst_19 {dimension_numbers = #tpu.dot_dimension_numbers<[1], [0], [0], [1], [0, 0, 1, 1], [], []>} : vector<16x16xbf16>, vector<16x8xbf16>, vector<16x8xf32> -> vector<16x8xf32>
    %28 = arith.addf %19, %27 : vector<16x8xf32>
    %c1_i32 = arith.constant 1 : i32
    %29 = arith.addi %0, %c1_i32 : i32
    %c0_20 = arith.constant 0 : index
    %30 = arith.index_cast %29 : i32 to index
    %c0_21 = arith.constant 0 : index
    %c0_22 = arith.constant 0 : index
    %31 = vector.load %arg2[%c0_20, %30, %c0_21, %c0_22] : memref<1x6x6x16xbf16, #tpu.memory_space<vmem>>, vector<1x4x4x16xbf16>
    %32 = vector.shape_cast %31 : vector<1x4x4x16xbf16> to vector<4x4x16xbf16>
    %33 = vector.shape_cast %32 : vector<4x4x16xbf16> to vector<16x16xbf16>
    %c3 = arith.constant 3 : index
    %c0_23 = arith.constant 0 : index
    %c0_24 = arith.constant 0 : index
    %34 = vector.load %arg3[%c3, %c0_23, %c0_24] : memref<9x16x8xbf16, #tpu.memory_space<vmem>>, vector<1x16x8xbf16>
    %35 = vector.shape_cast %34 : vector<1x16x8xbf16> to vector<16x8xbf16>
    %cst_25 = arith.constant dense<0.000000e+00> : vector<16x8xf32>
    %36 = tpu.matmul %33, %35, %cst_25 {dimension_numbers = #tpu.dot_dimension_numbers<[1], [0], [0], [1], [0, 0, 1, 1], [], []>} : vector<16x16xbf16>, vector<16x8xbf16>, vector<16x8xf32> -> vector<16x8xf32>
    %37 = arith.addf %28, %36 : vector<16x8xf32>
    %c1_i32_26 = arith.constant 1 : i32
    %38 = arith.addi %0, %c1_i32_26 : i32
    %c0_27 = arith.constant 0 : index
    %39 = arith.index_cast %38 : i32 to index
    %c1_28 = arith.constant 1 : index
    %c0_29 = arith.constant 0 : index
    %40 = vector.load %arg2[%c0_27, %39, %c1_28, %c0_29] : memref<1x6x6x16xbf16, #tpu.memory_space<vmem>>, vector<1x4x4x16xbf16>
    %41 = vector.shape_cast %40 : vector<1x4x4x16xbf16> to vector<4x4x16xbf16>
    %42 = vector.shape_cast %41 : vector<4x4x16xbf16> to vector<16x16xbf16>
    %c4 = arith.constant 4 : index
    %c0_30 = arith.constant 0 : index
    %c0_31 = arith.constant 0 : index
    %43 = vector.load %arg3[%c4, %c0_30, %c0_31] : memref<9x16x8xbf16, #tpu.memory_space<vmem>>, vector<1x16x8xbf16>
    %44 = vector.shape_cast %43 : vector<1x16x8xbf16> to vector<16x8xbf16>
    %cst_32 = arith.constant dense<0.000000e+00> : vector<16x8xf32>
    %45 = tpu.matmul %42, %44, %cst_32 {dimension_numbers = #tpu.dot_dimension_numbers<[1], [0], [0], [1], [0, 0, 1, 1], [], []>} : vector<16x16xbf16>, vector<16x8xbf16>, vector<16x8xf32> -> vector<16x8xf32>
    %46 = arith.addf %37, %45 : vector<16x8xf32>
    %c1_i32_33 = arith.constant 1 : i32
    %47 = arith.addi %0, %c1_i32_33 : i32
    %c0_34 = arith.constant 0 : index
    %48 = arith.index_cast %47 : i32 to index
    %c2_35 = arith.constant 2 : index
    %c0_36 = arith.constant 0 : index
    %49 = vector.load %arg2[%c0_34, %48, %c2_35, %c0_36] : memref<1x6x6x16xbf16, #tpu.memory_space<vmem>>, vector<1x4x4x16xbf16>
    %50 = vector.shape_cast %49 : vector<1x4x4x16xbf16> to vector<4x4x16xbf16>
    %51 = vector.shape_cast %50 : vector<4x4x16xbf16> to vector<16x16xbf16>
    %c5 = arith.constant 5 : index
    %c0_37 = arith.constant 0 : index
    %c0_38 = arith.constant 0 : index
    %52 = vector.load %arg3[%c5, %c0_37, %c0_38] : memref<9x16x8xbf16, #tpu.memory_space<vmem>>, vector<1x16x8xbf16>
    %53 = vector.shape_cast %52 : vector<1x16x8xbf16> to vector<16x8xbf16>
    %cst_39 = arith.constant dense<0.000000e+00> : vector<16x8xf32>
    %54 = tpu.matmul %51, %53, %cst_39 {dimension_numbers = #tpu.dot_dimension_numbers<[1], [0], [0], [1], [0, 0, 1, 1], [], []>} : vector<16x16xbf16>, vector<16x8xbf16>, vector<16x8xf32> -> vector<16x8xf32>
    %55 = arith.addf %46, %54 : vector<16x8xf32>
    %c2_i32 = arith.constant 2 : i32
    %56 = arith.addi %0, %c2_i32 : i32
    %c0_40 = arith.constant 0 : index
    %57 = arith.index_cast %56 : i32 to index
    %c0_41 = arith.constant 0 : index
    %c0_42 = arith.constant 0 : index
    %58 = vector.load %arg2[%c0_40, %57, %c0_41, %c0_42] : memref<1x6x6x16xbf16, #tpu.memory_space<vmem>>, vector<1x4x4x16xbf16>
    %59 = vector.shape_cast %58 : vector<1x4x4x16xbf16> to vector<4x4x16xbf16>
    %60 = vector.shape_cast %59 : vector<4x4x16xbf16> to vector<16x16xbf16>
    %c6 = arith.constant 6 : index
    %c0_43 = arith.constant 0 : index
    %c0_44 = arith.constant 0 : index
    %61 = vector.load %arg3[%c6, %c0_43, %c0_44] : memref<9x16x8xbf16, #tpu.memory_space<vmem>>, vector<1x16x8xbf16>
    %62 = vector.shape_cast %61 : vector<1x16x8xbf16> to vector<16x8xbf16>
    %cst_45 = arith.constant dense<0.000000e+00> : vector<16x8xf32>
    %63 = tpu.matmul %60, %62, %cst_45 {dimension_numbers = #tpu.dot_dimension_numbers<[1], [0], [0], [1], [0, 0, 1, 1], [], []>} : vector<16x16xbf16>, vector<16x8xbf16>, vector<16x8xf32> -> vector<16x8xf32>
    %64 = arith.addf %55, %63 : vector<16x8xf32>
    %c2_i32_46 = arith.constant 2 : i32
    %65 = arith.addi %0, %c2_i32_46 : i32
    %c0_47 = arith.constant 0 : index
    %66 = arith.index_cast %65 : i32 to index
    %c1_48 = arith.constant 1 : index
    %c0_49 = arith.constant 0 : index
    %67 = vector.load %arg2[%c0_47, %66, %c1_48, %c0_49] : memref<1x6x6x16xbf16, #tpu.memory_space<vmem>>, vector<1x4x4x16xbf16>
    %68 = vector.shape_cast %67 : vector<1x4x4x16xbf16> to vector<4x4x16xbf16>
    %69 = vector.shape_cast %68 : vector<4x4x16xbf16> to vector<16x16xbf16>
    %c7 = arith.constant 7 : index
    %c0_50 = arith.constant 0 : index
    %c0_51 = arith.constant 0 : index
    %70 = vector.load %arg3[%c7, %c0_50, %c0_51] : memref<9x16x8xbf16, #tpu.memory_space<vmem>>, vector<1x16x8xbf16>
    %71 = vector.shape_cast %70 : vector<1x16x8xbf16> to vector<16x8xbf16>
    %cst_52 = arith.constant dense<0.000000e+00> : vector<16x8xf32>
    %72 = tpu.matmul %69, %71, %cst_52 {dimension_numbers = #tpu.dot_dimension_numbers<[1], [0], [0], [1], [0, 0, 1, 1], [], []>} : vector<16x16xbf16>, vector<16x8xbf16>, vector<16x8xf32> -> vector<16x8xf32>
    %73 = arith.addf %64, %72 : vector<16x8xf32>
    %c2_i32_53 = arith.constant 2 : i32
    %74 = arith.addi %0, %c2_i32_53 : i32
    %c0_54 = arith.constant 0 : index
    %75 = arith.index_cast %74 : i32 to index
    %c2_55 = arith.constant 2 : index
    %c0_56 = arith.constant 0 : index
    %76 = vector.load %arg2[%c0_54, %75, %c2_55, %c0_56] : memref<1x6x6x16xbf16, #tpu.memory_space<vmem>>, vector<1x4x4x16xbf16>
    %77 = vector.shape_cast %76 : vector<1x4x4x16xbf16> to vector<4x4x16xbf16>
    %78 = vector.shape_cast %77 : vector<4x4x16xbf16> to vector<16x16xbf16>
    %c8 = arith.constant 8 : index
    %c0_57 = arith.constant 0 : index
    %c0_58 = arith.constant 0 : index
    %79 = vector.load %arg3[%c8, %c0_57, %c0_58] : memref<9x16x8xbf16, #tpu.memory_space<vmem>>, vector<1x16x8xbf16>
    %80 = vector.shape_cast %79 : vector<1x16x8xbf16> to vector<16x8xbf16>
    %cst_59 = arith.constant dense<0.000000e+00> : vector<16x8xf32>
    %81 = tpu.matmul %78, %80, %cst_59 {dimension_numbers = #tpu.dot_dimension_numbers<[1], [0], [0], [1], [0, 0, 1, 1], [], []>} : vector<16x16xbf16>, vector<16x8xbf16>, vector<16x8xf32> -> vector<16x8xf32>
    %82 = arith.addf %73, %81 : vector<16x8xf32>
    %c0_60 = arith.constant 0 : index
    %c0_61 = arith.constant 0 : index
    %83 = vector.load %arg4[%c0_60, %c0_61] : memref<1x8xf32, #tpu.memory_space<vmem>>, vector<1x8xf32>
    %84 = vector.broadcast %83 : vector<1x8xf32> to vector<16x8xf32>
    %85 = arith.addf %82, %84 : vector<16x8xf32>
    %cst_62 = arith.constant 0.000000e+00 : f32
    %86 = vector.broadcast %cst_62 : f32 to vector<16x8xf32>
    %87 = arith.maximumf %85, %86 : vector<16x8xf32>
    %88 = arith.truncf %87 : vector<16x8xf32> to vector<16x8xbf16>
    %c0_63 = arith.constant 0 : index
    %c0_64 = arith.constant 0 : index
    %89 = vector.load %arg5[%c0_63, %c0_64] : memref<8x6xbf16, #tpu.memory_space<vmem>>, vector<8x6xbf16>
    %cst_65 = arith.constant dense<0.000000e+00> : vector<16x6xf32>
    %90 = tpu.matmul %88, %89, %cst_65 {dimension_numbers = #tpu.dot_dimension_numbers<[1], [0], [0], [1], [0, 0, 1, 1], [], []>} : vector<16x8xbf16>, vector<8x6xbf16>, vector<16x6xf32> -> vector<16x6xf32>
    %c0_66 = arith.constant 0 : index
    %c0_67 = arith.constant 0 : index
    %91 = vector.load %arg6[%c0_66, %c0_67] : memref<1x6xf32, #tpu.memory_space<vmem>>, vector<1x6xf32>
    %92 = vector.broadcast %91 : vector<1x6xf32> to vector<16x6xf32>
    %93 = arith.addf %90, %92 : vector<16x6xf32>
    %94 = vector.shape_cast %93 : vector<16x6xf32> to vector<1x4x4x6xf32>
    %c0_68 = arith.constant 0 : index
    %c0_69 = arith.constant 0 : index
    %c0_70 = arith.constant 0 : index
    %c0_71 = arith.constant 0 : index
    %95 = vector.load %arg7[%c0_68, %c0_69, %c0_70, %c0_71] : memref<1x4x4x6xf32, #tpu.memory_space<vmem>>, vector<1x4x4x6xf32>
    tpu.vector_store %arg7[%c0_68, %c0_69, %c0_70, %c0_71], %94 {strides = array<i32>} : memref<1x4x4x6xf32, #tpu.memory_space<vmem>>, vector<1x4x4x6xf32>,
    return
  }
  func.func @transform_0(%arg0: i32, %arg1: i32) -> (i32, i32, i32, i32) {
    %c0_i32 = arith.constant 0 : i32
    %c0_i32_0 = arith.constant 0 : i32
    %c0_i32_1 = arith.constant 0 : i32
    %c0_i32_2 = arith.constant 0 : i32
    return %arg0, %c0_i32, %c0_i32_0, %c0_i32_1 : i32, i32, i32, i32
  }
  func.func @transform_1(%arg0: i32, %arg1: i32) -> (i32, i32, i32) {
    %c0_i32 = arith.constant 0 : i32
    %c0_i32_0 = arith.constant 0 : i32
    %c0_i32_1 = arith.constant 0 : i32
    %c0_i32_2 = arith.constant 0 : i32
    return %c0_i32, %c0_i32_0, %c0_i32_1 : i32, i32, i32
  }
  func.func @transform_2(%arg0: i32, %arg1: i32) -> (i32, i32) {
    %c0_i32 = arith.constant 0 : i32
    %c0_i32_0 = arith.constant 0 : i32
    %c0_i32_1 = arith.constant 0 : i32
    return %c0_i32, %c0_i32_0 : i32, i32
  }
  func.func @transform_3(%arg0: i32, %arg1: i32) -> (i32, i32) {
    %c0_i32 = arith.constant 0 : i32
    %c0_i32_0 = arith.constant 0 : i32
    %c0_i32_1 = arith.constant 0 : i32
    return %c0_i32, %c0_i32_0 : i32, i32
  }
  func.func @transform_4(%arg0: i32, %arg1: i32) -> (i32, i32) {
    %c0_i32 = arith.constant 0 : i32
    %c0_i32_0 = arith.constant 0 : i32
    %c0_i32_1 = arith.constant 0 : i32
    return %c0_i32, %c0_i32_0 : i32, i32
  }
  func.func @transform_5(%arg0: i32, %arg1: i32) -> (i32, i32, i32, i32) {
    %c0_i32 = arith.constant 0 : i32
    %c0_i32_0 = arith.constant 0 : i32
    %c0_i32_1 = arith.constant 0 : i32
    return %arg0, %arg1, %c0_i32, %c0_i32_0 : i32, i32, i32, i32
  }
}

module attributes {stable_mosaic.version = 11 : i64} {
  func.func @_upsample_blend_kernel(%arg0: i32, %arg1: memref<12x4x4xf32, #tpu.memory_space<vmem>>, %arg2: memref<12x8x8xf32, #tpu.memory_space<vmem>>, %arg3: memref<16x4xf32, #tpu.memory_space<vmem>>, %arg4: memref<4x16xf32, #tpu.memory_space<vmem>>, %arg5: memref<16x8xf32, #tpu.memory_space<vmem>>, %arg6: memref<8x16xf32, #tpu.memory_space<vmem>>, %arg7: memref<12x16x16xf32, #tpu.memory_space<vmem>>) attributes {dimension_semantics = [#tpu.dimension_semantics<parallel>], iteration_bounds = array<i64: 1>, scalar_prefetch = 0 : i64, scratch_operands = 0 : i64, tpu.core_type = #tpu.core_type<tc>, window_params = [{transform_indices = @transform_0, window_bounds = array<i64: 12, 4, 4>}, {transform_indices = @transform_1, window_bounds = array<i64: 12, 8, 8>}, {pipeline_mode = #tpu.pipeline_mode<synchronous>, transform_indices = @transform_2, window_bounds = array<i64: 16, 4>}, {pipeline_mode = #tpu.pipeline_mode<synchronous>, transform_indices = @transform_3, window_bounds = array<i64: 4, 16>}, {pipeline_mode = #tpu.pipeline_mode<synchronous>, transform_indices = @transform_4, window_bounds = array<i64: 16, 8>}, {pipeline_mode = #tpu.pipeline_mode<synchronous>, transform_indices = @transform_5, window_bounds = array<i64: 8, 16>}, {transform_indices = @transform_6, window_bounds = array<i64: 12, 16, 16>}]} {
    %c0 = arith.constant 0 : index
    %c0_0 = arith.constant 0 : index
    %0 = vector.load %arg3[%c0, %c0_0] : memref<16x4xf32, #tpu.memory_space<vmem>>, vector<16x4xf32>
    %c0_1 = arith.constant 0 : index
    %c0_2 = arith.constant 0 : index
    %1 = vector.load %arg4[%c0_1, %c0_2] : memref<4x16xf32, #tpu.memory_space<vmem>>, vector<4x16xf32>
    %c0_3 = arith.constant 0 : index
    %c0_4 = arith.constant 0 : index
    %c0_5 = arith.constant 0 : index
    %2 = vector.load %arg1[%c0_3, %c0_4, %c0_5] : memref<12x4x4xf32, #tpu.memory_space<vmem>>, vector<12x4x4xf32>
    %3 = vector.shape_cast %2 : vector<12x4x4xf32> to vector<48x4xf32>
    %cst = arith.constant dense<0.000000e+00> : vector<48x16xf32>
    %4 = tpu.matmul %3, %1, %cst {dimension_numbers = #tpu.dot_dimension_numbers<[1], [0], [0], [1], [0, 0, 1, 1], [], []>} : vector<48x4xf32>, vector<4x16xf32>, vector<48x16xf32> -> vector<48x16xf32>
    %5 = vector.shape_cast %4 : vector<48x16xf32> to vector<12x4x16xf32>
    "tpu.trace_start"() <{level = 10 : i32, message = "bhw,oh->bow"}> : () -> ()
    %cst_6 = arith.constant dense<0.000000e+00> : vector<16x12x16xf32>
    %6 = tpu.matmul %0, %5, %cst_6 {dimension_numbers = #tpu.dot_dimension_numbers<[1], [1], [0], [0, 2], [0, 0, 1, 0, 1, 2], [], []>} : vector<16x4xf32>, vector<12x4x16xf32>, vector<16x12x16xf32> -> vector<16x12x16xf32>
    %7 = tpu.transpose %6, [1, 0, 2] : vector<16x12x16xf32> -> vector<12x16x16xf32>
    "tpu.trace_stop"() : () -> ()
    %c0_7 = arith.constant 0 : index
    %c0_8 = arith.constant 0 : index
    %8 = vector.load %arg5[%c0_7, %c0_8] : memref<16x8xf32, #tpu.memory_space<vmem>>, vector<16x8xf32>
    %c0_9 = arith.constant 0 : index
    %c0_10 = arith.constant 0 : index
    %9 = vector.load %arg6[%c0_9, %c0_10] : memref<8x16xf32, #tpu.memory_space<vmem>>, vector<8x16xf32>
    %c0_11 = arith.constant 0 : index
    %c0_12 = arith.constant 0 : index
    %c0_13 = arith.constant 0 : index
    %10 = vector.load %arg2[%c0_11, %c0_12, %c0_13] : memref<12x8x8xf32, #tpu.memory_space<vmem>>, vector<12x8x8xf32>
    %11 = vector.shape_cast %10 : vector<12x8x8xf32> to vector<96x8xf32>
    %cst_14 = arith.constant dense<0.000000e+00> : vector<96x16xf32>
    %12 = tpu.matmul %11, %9, %cst_14 {dimension_numbers = #tpu.dot_dimension_numbers<[1], [0], [0], [1], [0, 0, 1, 1], [], []>} : vector<96x8xf32>, vector<8x16xf32>, vector<96x16xf32> -> vector<96x16xf32>
    %13 = vector.shape_cast %12 : vector<96x16xf32> to vector<12x8x16xf32>
    "tpu.trace_start"() <{level = 10 : i32, message = "bhw,oh->bow"}> : () -> ()
    %cst_15 = arith.constant dense<0.000000e+00> : vector<16x12x16xf32>
    %14 = tpu.matmul %8, %13, %cst_15 {dimension_numbers = #tpu.dot_dimension_numbers<[1], [1], [0], [0, 2], [0, 0, 1, 0, 1, 2], [], []>} : vector<16x8xf32>, vector<12x8x16xf32>, vector<16x12x16xf32> -> vector<16x12x16xf32>
    %15 = tpu.transpose %14, [1, 0, 2] : vector<16x12x16xf32> -> vector<12x16x16xf32>
    "tpu.trace_stop"() : () -> ()
    %cst_16 = arith.constant 5.000000e-01 : f32
    %16 = vector.broadcast %cst_16 : f32 to vector<12x16x16xf32>
    %17 = arith.mulf %16, %7 : vector<12x16x16xf32>
    %cst_17 = arith.constant 5.000000e-01 : f32
    %18 = vector.broadcast %cst_17 : f32 to vector<12x16x16xf32>
    %19 = arith.mulf %18, %15 : vector<12x16x16xf32>
    %20 = arith.addf %17, %19 : vector<12x16x16xf32>
    %c0_18 = arith.constant 0 : index
    %c0_19 = arith.constant 0 : index
    %c0_20 = arith.constant 0 : index
    %21 = vector.load %arg7[%c0_18, %c0_19, %c0_20] : memref<12x16x16xf32, #tpu.memory_space<vmem>>, vector<12x16x16xf32>
    tpu.vector_store %arg7[%c0_18, %c0_19, %c0_20], %20 {strides = array<i32>} : memref<12x16x16xf32, #tpu.memory_space<vmem>>, vector<12x16x16xf32>,
    return
  }
  func.func @transform_0(%arg0: i32) -> (i32, i32, i32) {
    %c0_i32 = arith.constant 0 : i32
    %c0_i32_0 = arith.constant 0 : i32
    %c0_i32_1 = arith.constant 0 : i32
    return %arg0, %c0_i32, %c0_i32_0 : i32, i32, i32
  }
  func.func @transform_1(%arg0: i32) -> (i32, i32, i32) {
    %c0_i32 = arith.constant 0 : i32
    %c0_i32_0 = arith.constant 0 : i32
    %c0_i32_1 = arith.constant 0 : i32
    return %arg0, %c0_i32, %c0_i32_0 : i32, i32, i32
  }
  func.func @transform_2(%arg0: i32) -> (i32, i32) {
    %c0_i32 = arith.constant 0 : i32
    %c0_i32_0 = arith.constant 0 : i32
    %c0_i32_1 = arith.constant 0 : i32
    return %c0_i32, %c0_i32_0 : i32, i32
  }
  func.func @transform_3(%arg0: i32) -> (i32, i32) {
    %c0_i32 = arith.constant 0 : i32
    %c0_i32_0 = arith.constant 0 : i32
    %c0_i32_1 = arith.constant 0 : i32
    return %c0_i32, %c0_i32_0 : i32, i32
  }
  func.func @transform_4(%arg0: i32) -> (i32, i32) {
    %c0_i32 = arith.constant 0 : i32
    %c0_i32_0 = arith.constant 0 : i32
    %c0_i32_1 = arith.constant 0 : i32
    return %c0_i32, %c0_i32_0 : i32, i32
  }
  func.func @transform_5(%arg0: i32) -> (i32, i32) {
    %c0_i32 = arith.constant 0 : i32
    %c0_i32_0 = arith.constant 0 : i32
    %c0_i32_1 = arith.constant 0 : i32
    return %c0_i32, %c0_i32_0 : i32, i32
  }
  func.func @transform_6(%arg0: i32) -> (i32, i32, i32) {
    %c0_i32 = arith.constant 0 : i32
    %c0_i32_0 = arith.constant 0 : i32
    %c0_i32_1 = arith.constant 0 : i32
    return %arg0, %c0_i32, %c0_i32_0 : i32, i32, i32
  }
}

</mosaic_0001>

<llo_original>
// kernel: fcn_forward.5
$region0: #{fcn_forward.5}
  #allocation0 [shape = 'u32[]', space=smem, size = 0x4, offset = 0x4, fixed_abs, tag = 'smem constant byte address 0x4 - core index']
  #allocation1 [shape = 'u32[144,128]{1,0:T(1,128)}', space=vmem, size = 0x12000, scoped, tag = 'internal scratch']
  %s0 = inlined_call_operand.vmem [shape: bf16[8,9,9,4], index: 0, kind: input, shape index: {}]
  %s1 = inlined_call_operand.vmem [shape: bf16[9,4,8], index: 1, kind: input, shape index: {}]
  %s2 = inlined_call_operand.vmem [shape: f32[1,8], index: 2, kind: input, shape index: {}]
  %s3 = inlined_call_operand.vmem [shape: bf16[2,8,8,8], index: 3, kind: output, shape index: {}]
  %s4 = sld [smem:[#allocation0]]
  $region45: #{fcn_forward.5} parent=0
    _
  %s6 = ssub.s32 1, %s4
  %s7 = scalar_select 0, %s6, %s4
  loop: start=0, step=1, limit=4
  $region2: #{fcn_forward.5} parent=0 // loop_pre_header
    _
  $region3: #{fcn_forward.5} parent=0 // loop_header
    %s9 = sphi 0, %s13
    %p10 = scmp.ge.s32.totalorder %s9, 4
    %s16 = sphi 0, %s28
    %s17 = sphi 0, %s24
    %s18 = sphi 0, %s16
    %s19 = sphi 0, %s17
    %s20 = sphi 0, %s18
    %s21 = sphi 0, %s19
    %s31 = sphi 0, %s33
    %s34 = sphi 0, %s31
    %s35 = sphi 0, %s34
    %s51 = sphi 0, %s35
    %s55 = sphi 0, %s55
    %s57 = sphi 0, %s55
    %s58 = sphi 0, %s57
    %s72 = sphi 0, %s58
    %s76 = sphi 0, %s76
    %s78 = sphi 0, %s76
    %s79 = sphi 0, %s78
    %s93 = sphi 0, %s79
    %s101 = sphi 0, %s103
    %s104 = sphi 0, %s101
    %s105 = sphi 0, %s104
    %s121 = sphi 0, %s105
  $region4: #{fcn_forward.5} parent=0 // loop_header_branch
    %12 = sbr.rel (%p10) target = $region8
  $region5: #{fcn_forward.5} parent=0 // loop_body
    %s14 = ssub.s32 %s9, 1
    %s15 = ssub.s32 %s9, 2
    %s22 = sadd.s32 1, %s17
    %p23 = scmp.ge.s32.totalorder %s22, 1
    %s24 = scalar_select %p23, 0, %s22
    %s25 = sadd.s32 1, %s16
    %s26 = scalar_select %p23, %s25, %s16
    %p27 = scmp.ge.s32.totalorder %s26, 2
    %s28 = scalar_select %p27, 0, %s26
    %s29 = ssub.s32 %s16, %s28
    %p30 = scmp.eq.s32.totalorder %s29, 0
    %s32 = sadd.s32 %s31, 1
    %s33 = scalar_select %p30, %s31, %s32
    %p36 = pneg %p30
    %p37 = scmp.eq.s32.totalorder %s9, 1
    %p38 = por %p36, %p37
    %p39 = scmp.ne.s32.totalorder %s31, %s34
    %p40 = scmp.eq.s32.totalorder %s9, 0
    %p41 = por %p39, %p40
    %p42 = scmp.ne.s32.totalorder %s31, %s34
    %p43 = scmp.eq.s32.totalorder %s14, 1
    %p44 = por %p42, %p43
    %p45 = scmp.ne.s32.totalorder %s34, %s35
    %p46 = scmp.eq.s32.totalorder %s14, 0
    %p47 = por %p45, %p46
    %p48 = scmp.ne.s32.totalorder %s34, %s35
    %p49 = scmp.eq.s32.totalorder %s15, 1
    %p50 = por %p48, %p49
    %p52 = scmp.ne.s32.totalorder %s35, %s51
    %p53 = scmp.eq.s32.totalorder %s15, 0
    %p54 = por %p52, %p53
    %s56 = sadd.s32 %s55, 1
    %p59 = scmp.eq.s32.totalorder %s9, 1
    %p60 = scmp.ne.s32.totalorder %s55, %s57
    %p61 = scmp.eq.s32.totalorder %s9, 0
    %p62 = por %p60, %p61
    %p63 = scmp.ne.s32.totalorder %s55, %s57
    %p64 = scmp.eq.s32.totalorder %s14, 1
    %p65 = por %p63, %p64
    %p66 = scmp.ne.s32.totalorder %s57, %s58
    %p67 = scmp.eq.s32.totalorder %s14, 0
    %p68 = por %p66, %p67
    %p69 = scmp.ne.s32.totalorder %s57, %s58
    %p70 = scmp.eq.s32.totalorder %s15, 1
    %p71 = por %p69, %p70
    %p73 = scmp.ne.s32.totalorder %s58, %s72
    %p74 = scmp.eq.s32.totalorder %s15, 0
    %p75 = por %p73, %p74
    %s77 = sadd.s32 %s76, 1
    %p80 = scmp.eq.s32.totalorder %s9, 1
    %p81 = scmp.ne.s32.totalorder %s76, %s78
    %p82 = scmp.eq.s32.totalorder %s9, 0
    %p83 = por %p81, %p82
    %p84 = scmp.ne.s32.totalorder %s76, %s78
    %p85 = scmp.eq.s32.totalorder %s14, 1
    %p86 = por %p84, %p85
    %p87 = scmp.ne.s32.totalorder %s78, %s79
    %p88 = scmp.eq.s32.totalorder %s14, 0
    %p89 = por %p87, %p88
    %p90 = scmp.ne.s32.totalorder %s78, %s79
    %p91 = scmp.eq.s32.totalorder %s15, 1
    %p92 = por %p90, %p91
    %p94 = scmp.ne.s32.totalorder %s79, %s93
    %p95 = scmp.eq.s32.totalorder %s15, 0
    %p96 = por %p94, %p95
    %s97 = ssub.s32 %s16, %s28
    %s98 = ssub.s32 %s17, %s24
    %s99 = sor.u32 %s97, %s98
    %p100 = scmp.eq.s32.totalorder %s99, 0
    %s102 = sadd.s32 %s101, 1
    %s103 = scalar_select %p100, %s101, %s102
    %p106 = pneg %p100
    %p107 = scmp.eq.s32.totalorder %s9, 1
    %p108 = por %p106, %p107
    %p109 = scmp.ne.s32.totalorder %s101, %s104
    %p110 = scmp.eq.s32.totalorder %s9, 0
    %p111 = por %p109, %p110
    %p112 = scmp.ne.s32.totalorder %s101, %s104
    %p113 = scmp.eq.s32.totalorder %s14, 1
    %p114 = por %p112, %p113
    %p115 = scmp.ne.s32.totalorder %s104, %s105
    %p116 = scmp.eq.s32.totalorder %s14, 0
    %p117 = por %p115, %p116
    %p118 = scmp.ne.s32.totalorder %s104, %s105
    %p119 = scmp.eq.s32.totalorder %s15, 1
    %p120 = por %p118, %p119
    %p122 = scmp.ne.s32.totalorder %s105, %s121
    %p123 = scmp.eq.s32.totalorder %s15, 0
    %p124 = por %p122, %p123
    %p125 = scmp.le.s32.totalorder 1, %s9
    %p126 = scmp.lt.s32.totalorder %s9, 3
    %p127 = pnand %p125, %p126
    %p128 = pneg %p127
    // Predicated region
    $region9: #{fcn_forward.5} parent=5 // pred_check
      _
    $region10: #{fcn_forward.5} parent=5 // pred_check_branch
      %130 = sbr.rel (%p127) target = $region12
    $region11: #{fcn_forward.5} parent=5 // pred_region
      %s131 = ssub.s32 %s9, 1
      // Predicated region
      $region13: #{fcn_forward.5} parent=11 // pred_check
        %p132 = pneg %p68
      $region14: #{fcn_forward.5} parent=11 // pred_check_branch
        %134 = sbr.rel (%p132) target = $region16
      $region15: #{fcn_forward.5} parent=11 // pred_region
        _
      $region16: #{fcn_forward.5} parent=11 // pred_fallthru
        _
      // Predicated region
      $region17: #{fcn_forward.5} parent=11 // pred_check
        %p135 = pneg %p89
      $region18: #{fcn_forward.5} parent=11 // pred_check_branch
        %137 = sbr.rel (%p135) target = $region20
      $region19: #{fcn_forward.5} parent=11 // pred_region
        _
      $region20: #{fcn_forward.5} parent=11 // pred_fallthru
        _
    $region12: #{fcn_forward.5} parent=5 // pred_fallthru
      _
    %p138 = scmp.lt.s32.totalorder %s9, 2
    // Predicated region
    $region21: #{fcn_forward.5} parent=5 // pred_check
      %p139 = pneg %p138
    $region22: #{fcn_forward.5} parent=5 // pred_check_branch
      %141 = sbr.rel (%p139) target = $region24
    $region23: #{fcn_forward.5} parent=5 // pred_region
      // Predicated region
      $region25: #{fcn_forward.5} parent=23 // pred_check
        %p142 = pneg %p41
      $region26: #{fcn_forward.5} parent=23 // pred_check_branch
        %144 = sbr.rel (%p142) target = $region28
      $region27: #{fcn_forward.5} parent=23 // pred_region
        %s145 = smul.u32 4, %s16
        %p146 = scmp.lt.s32.totalorder %s145, 7
        %s147 = scalar_select %p146, %s145, 7
        %s148 = smul.addr %s147, 18
        %s149 = smul.addr %s148, 4
        %s150 = scalar_lea.vmem %s0, %s149
        %s151 = smul.u32 4, %s16
      $region28: #{fcn_forward.5} parent=23 // pred_fallthru
        _
    $region24: #{fcn_forward.5} parent=5 // pred_fallthru
      _
    %p152 = scmp.le.s32.totalorder 1, %s9
    %p153 = scmp.lt.s32.totalorder %s9, 3
    %p154 = pnand %p152, %p153
    %p155 = pneg %p154
    // Predicated region
    $region29: #{fcn_forward.5} parent=5 // pred_check
      _
    $region30: #{fcn_forward.5} parent=5 // pred_check_branch
      %157 = sbr.rel (%p154) target = $region32
    $region31: #{fcn_forward.5} parent=5 // pred_region
      %s158 = ssub.s32 %s9, 1
      %s159 = smul.u32 4, %s18
      %p160 = scmp.lt.s32.totalorder %s159, 7
      %s161 = scalar_select %p160, %s159, 7
      %s162 = smul.addr %s161, 18
      %s163 = smul.addr %s162, 4
      %s164 = scalar_lea.vmem %s0, %s163
      %p165 = pneg %p47
      %p166 = pneg %p44
      %p167 = pneg %p68
      %p168 = pneg %p65
      %p169 = pneg %p89
      %p170 = pneg %p86
      %p171 = pneg %p117
      %p172 = pneg %p114
      %s173 = smul.u32 8, %s19
      %p174 = scmp.lt.s32.totalorder %s18, 1
      %s175 = scalar_select %p174, %s18, 1
      %p176 = scmp.lt.s32.totalorder %s173, 7
      %s177 = scalar_select %p176, %s173, 7
      %s178 = smul.addr %s175, 8
      %s179 = sadd.s32 %s177, %s178
      %s180 = smul.addr %s179, 4
      %s181 = scalar_lea.vmem %s3, %s180
      %s182 = smul.u32 4, %s18
      %p183 = scmp.lt.s32.totalorder %s182, 7
      %s184 = scalar_select %p183, %s182, 7
      %s185 = smul.addr %s184, 18
      %s186 = smul.addr %s185, 4
      %s187 = scalar_lea.vmem %s0, %s186
      %s188 = smul.u32 4, %s18
      %s189 = smul.u32 8, %s19
      %p190 = scmp.lt.s32.totalorder %s18, 1
      %s191 = scalar_select %p190, %s18, 1
      %p192 = scmp.lt.s32.totalorder %s189, 7
      %s193 = scalar_select %p192, %s189, 7
      %s194 = smul.addr %s191, 8
      %s195 = sadd.s32 %s193, %s194
      %s196 = smul.addr %s195, 4
      %s197 = scalar_lea.vmem %s3, %s196
      %s198 = smul.u32 8, %s19
      %s200 = smul.u32 %s19, 8
      %s201 = smul.u32 %s200, 2
      %s202 = smul.addr %s201, 4
      %s203 = scalar_lea.vmem %s187, %s202
      %v204 = vld [vmem:[%s203] sm:$0xf]
      %v205 = vld [vmem:[%s203 + $0x8] sm:$0xf]
      %v206 = vld [vmem:[%s203 + $0x10] sm:$0xf]
      %v207 = vld [vmem:[%s203 + $0x18] sm:$0xf]
      %v208 = vld [vmem:[%s203 + $0x20] sm:$0xf]
      %v209 = vld [vmem:[%s203 + $0x28] sm:$0xf]
      %v210 = vld [vmem:[%s203 + $0x30] sm:$0xf]
      %v211 = vld [vmem:[%s203 + $0x38] sm:$0xf]
      %v212 = vld [vmem:[%s1] sm:$0x3]
      %s213 = sadd.s32 %s201, 18
      %s214 = smul.addr %s213, 4
      %s215 = scalar_lea.vmem %s187, %s214
      %v216 = vld [vmem:[%s215] sm:$0xf]
      %v217 = vld [vmem:[%s215 + $0x8] sm:$0xf]
      %v218 = vld [vmem:[%s215 + $0x10] sm:$0xf]
      %v219 = vld [vmem:[%s215 + $0x18] sm:$0xf]
      %v220 = vld [vmem:[%s215 + $0x20] sm:$0xf]
      %v221 = vld [vmem:[%s215 + $0x28] sm:$0xf]
      %v222 = vld [vmem:[%s215 + $0x30] sm:$0xf]
      %v223 = vld [vmem:[%s215 + $0x38] sm:$0xf]
      %s224 = scalar_lea.vmem %s1, 2
      %v225 = vld [vmem:[%s224] sm:$0x3]
      %v234 = vunpack.c.l.b16 %v216
      %v235 = vunpack.c.l.b16 %v217
      %v236 = vunpack.c.l.b16 %v218
      %v237 = vunpack.c.l.b16 %v219
      %v238 = vunpack.c.l.b16 %v220
      %v239 = vunpack.c.l.b16 %v221
      %v240 = vunpack.c.l.b16 %v222
      %v241 = vunpack.c.l.b16 %v223
      %v242 = vpack.c.b16 %v235, %v234
      %v243 = vpack.c.b16 %v237, %v236
      %v244 = vpack.c.b16 %v239, %v238
      %v245 = vpack.c.b16 %v241, %v240
      %vm246 = vcmask 31744
      %v248 = vsel %vm246, %v242, 0
      %v251 = vsel %vm246, %v243, 0
      %v254 = vsel %vm246, %v244, 0
      %v257 = vsel %vm246, %v245, 0
      %vm259 = vcmask 1041408
      %v261 = vsel %vm259, %v225, 0
      %263 = vmatprep.subr.bf16.mxu0 0
      %264 = vmatpush1.bf16.msra.mxu0 %v261
      %265 = vmatprep.subr.bf16.mxu0 0
      %266 = vmatpush1.bf16.msra.mxu0 0
      %267 = vmatprep.subr.bf16.mxu0 0
      %268 = vmatpush1.bf16.msra.mxu0 0
      %269 = vmatprep.subr.bf16.mxu0 0
      %270 = vmatpush1.bf16.msra.mxu0 0
      %271 = vmatprep.subr.bf16.mxu0 0
      %272 = vmatpush1.bf16.msra.mxu0 0
      %273 = vmatprep.subr.bf16.mxu0 0
      %274 = vmatpush1.bf16.msra.mxu0 0
      %275 = vmatprep.subr.bf16.mxu0 0
      %276 = vmatpush1.bf16.msra.mxu0 0
      %277 = vmatprep.subr.bf16.mxu0 0
      %278 = vmatpush1.bf16.msra.mxu0 0
      %279 = vmatprep.subr.bf16.mxu0 0
      %280 = vmatpush1.bf16.msra.mxu0 0
      %281 = vmatprep.subr.bf16.mxu0 0
      %282 = vmatpush1.bf16.msra.mxu0 0
      %283 = vmatprep.subr.bf16.mxu0 0
      %284 = vmatpush1.bf16.msra.mxu0 0
      %285 = vmatprep.subr.bf16.mxu0 0
      %286 = vmatpush1.bf16.msra.mxu0 0
      %287 = vmatprep.subr.bf16.mxu0 0
      %288 = vmatpush1.bf16.msra.mxu0 0
      %289 = vmatprep.subr.bf16.mxu0 0
      %290 = vmatpush1.bf16.msra.mxu0 0
      %291 = vmatprep.subr.bf16.mxu0 0
      %292 = vmatpush1.bf16.msra.mxu0 0
      %293 = vmatprep.subr.bf16.mxu0 0
      %294 = vmatpush1.bf16.msra.mxu0 0
      %295 = vmatprep.mubr.bf16.mxu0 0
      %296 = vmatmul.mubr.bf16.gmra.mrb[0].mxu0 %v248
      %v297 = vpop.f32.mrb[0].mxu0
      %v298 = vadd.f32 0.0, %v297
      %v299 = vpop.f32.mrb[0].mxu0
      %v300 = vpop.f32.mrb[0].mxu0
      %v301 = vadd.f32 0.0, %v300
      %v302 = vpop.f32.mrb[0].mxu0
      %303 = vmatprep.mubr.bf16.mxu0 0
      %304 = vmatmul.mubr.bf16.gmra.mrb[0].mxu0 %v251
      %v305 = vpop.f32.mrb[0].mxu0
      %v306 = vadd.f32 0.0, %v305
      %v307 = vpop.f32.mrb[0].mxu0
      %v308 = vpop.f32.mrb[0].mxu0
      %v309 = vadd.f32 0.0, %v308
      %v310 = vpop.f32.mrb[0].mxu0
      %311 = vmatprep.mubr.bf16.mxu0 0
      %312 = vmatmul.mubr.bf16.gmra.mrb[0].mxu0 %v254
      %v313 = vpop.f32.mrb[0].mxu0
      %v314 = vadd.f32 0.0, %v313
      %v315 = vpop.f32.mrb[0].mxu0
      %v316 = vpop.f32.mrb[0].mxu0
      %v317 = vadd.f32 0.0, %v316
      %v318 = vpop.f32.mrb[0].mxu0
      %319 = vmatprep.mubr.bf16.mxu0 0
      %320 = vmatmul.mubr.bf16.gmra.mrb[0].mxu0 %v257
      %v321 = vpop.f32.mrb[0].mxu0
      %v322 = vadd.f32 0.0, %v321
      %v323 = vpop.f32.mrb[0].mxu0
      %v324 = vpop.f32.mrb[0].mxu0
      %v325 = vadd.f32 0.0, %v324
      %v326 = vpop.f32.mrb[0].mxu0
      %327 = vdwg.mxu0
      %v336 = vunpack.c.l.b16 %v204
      %v337 = vunpack.c.l.b16 %v205
      %v338 = vunpack.c.l.b16 %v206
      %v339 = vunpack.c.l.b16 %v207
      %v340 = vunpack.c.l.b16 %v208
      %v341 = vunpack.c.l.b16 %v209
      %v342 = vunpack.c.l.b16 %v210
      %v343 = vunpack.c.l.b16 %v211
      %v344 = vpack.c.b16 %v337, %v336
      %v345 = vpack.c.b16 %v339, %v338
      %v346 = vpack.c.b16 %v341, %v340
      %v347 = vpack.c.b16 %v343, %v342
      %v349 = vsel %vm246, %v344, 0
      %v352 = vsel %vm246, %v345, 0
      %v355 = vsel %vm246, %v346, 0
      %v358 = vsel %vm246, %v347, 0
      %v361 = vsel %vm259, %v212, 0
      %363 = vmatprep.subr.bf16.mxu0 0
      %364 = vmatpush1.bf16.msra.mxu0 %v361
      %365 = vmatprep.subr.bf16.mxu0 0
      %366 = vmatpush1.bf16.msra.mxu0 0
      %367 = vmatprep.subr.bf16.mxu0 0
      %368 = vmatpush1.bf16.msra.mxu0 0
      %369 = vmatprep.subr.bf16.mxu0 0
      %370 = vmatpush1.bf16.msra.mxu0 0
      %371 = vmatprep.subr.bf16.mxu0 0
      %372 = vmatpush1.bf16.msra.mxu0 0
      %373 = vmatprep.subr.bf16.mxu0 0
      %374 = vmatpush1.bf16.msra.mxu0 0
      %375 = vmatprep.subr.bf16.mxu0 0
      %376 = vmatpush1.bf16.msra.mxu0 0
      %377 = vmatprep.subr.bf16.mxu0 0
      %378 = vmatpush1.bf16.msra.mxu0 0
      %379 = vmatprep.subr.bf16.mxu0 0
      %380 = vmatpush1.bf16.msra.mxu0 0
      %381 = vmatprep.subr.bf16.mxu0 0
      %382 = vmatpush1.bf16.msra.mxu0 0
      %383 = vmatprep.subr.bf16.mxu0 0
      %384 = vmatpush1.bf16.msra.mxu0 0
      %385 = vmatprep.subr.bf16.mxu0 0
      %386 = vmatpush1.bf16.msra.mxu0 0
      %387 = vmatprep.subr.bf16.mxu0 0
      %388 = vmatpush1.bf16.msra.mxu0 0
      %389 = vmatprep.subr.bf16.mxu0 0
      %390 = vmatpush1.bf16.msra.mxu0 0
      %391 = vmatprep.subr.bf16.mxu0 0
      %392 = vmatpush1.bf16.msra.mxu0 0
      %393 = vmatprep.subr.bf16.mxu0 0
      %394 = vmatpush1.bf16.msra.mxu0 0
      %395 = vmatprep.mubr.bf16.mxu0 0
      %396 = vmatmul.mubr.bf16.gmra.mrb[0].mxu0 %v349
      %v397 = vpop.f32.mrb[0].mxu0
      %v398 = vadd.f32 %v298, %v397
      %v399 = vpop.f32.mrb[0].mxu0
      %v400 = vpop.f32.mrb[0].mxu0
      %v401 = vadd.f32 %v301, %v400
      %v402 = vpop.f32.mrb[0].mxu0
      %403 = vmatprep.mubr.bf16.mxu0 0
      %404 = vmatmul.mubr.bf16.gmra.mrb[0].mxu0 %v352
      %v405 = vpop.f32.mrb[0].mxu0
      %v406 = vadd.f32 %v306, %v405
      %v407 = vpop.f32.mrb[0].mxu0
      %v408 = vpop.f32.mrb[0].mxu0
      %v409 = vadd.f32 %v309, %v408
      %v410 = vpop.f32.mrb[0].mxu0
      %411 = vmatprep.mubr.bf16.mxu0 0
      %412 = vmatmul.mubr.bf16.gmra.mrb[0].mxu0 %v355
      %v413 = vpop.f32.mrb[0].mxu0
      %v414 = vadd.f32 %v314, %v413
      %v415 = vpop.f32.mrb[0].mxu0
      %v416 = vpop.f32.mrb[0].mxu0
      %v417 = vadd.f32 %v317, %v416
      %v418 = vpop.f32.mrb[0].mxu0
      %419 = vmatprep.mubr.bf16.mxu0 0
      %420 = vmatmul.mubr.bf16.gmra.mrb[0].mxu0 %v358
      %v421 = vpop.f32.mrb[0].mxu0
      %v422 = vadd.f32 %v322, %v421
      %v423 = vpop.f32.mrb[0].mxu0
      %v424 = vpop.f32.mrb[0].mxu0
      %v425 = vadd.f32 %v325, %v424
      %v426 = vpop.f32.mrb[0].mxu0
      %427 = vdwg.mxu0
      %v428 = vld [vmem:[%s203] sm:$0xf]
      %v429 = vld [vmem:[%s203 + $0x4] sm:$0x1]
      %v430 = vld [vmem:[%s203 + $0x8] sm:$0xf]
      %v431 = vld [vmem:[%s203 + $0xc] sm:$0x1]
      %v432 = vld [vmem:[%s203 + $0x10] sm:$0xf]
      %v433 = vld [vmem:[%s203 + $0x14] sm:$0x1]
      %v434 = vld [vmem:[%s203 + $0x18] sm:$0xf]
      %v435 = vld [vmem:[%s203 + $0x1c] sm:$0x1]
      %v436 = vld [vmem:[%s203 + $0x20] sm:$0xf]
      %v437 = vld [vmem:[%s203 + $0x24] sm:$0x1]
      %v438 = vld [vmem:[%s203 + $0x28] sm:$0xf]
      %v439 = vld [vmem:[%s203 + $0x2c] sm:$0x1]
      %v440 = vld [vmem:[%s203 + $0x30] sm:$0xf]
      %v441 = vld [vmem:[%s203 + $0x34] sm:$0x1]
      %v442 = vld [vmem:[%s203 + $0x38] sm:$0xf]
      %v443 = vld [vmem:[%s203 + $0x3c] sm:$0x1]
      %vm444 = vsmask.f32 3328
      %vm445 = vsmask.f32 7440
      %vm446 = vmor %vm444, %vm445
      %v448 = vshrl.u32 %v428, 16
      %v450 = vrot.slane %v448, 4
      %v451 = vshll.u32 %v428, 16
      %v453 = vrot.slane %v451, 5
      %v454 = vor.u32 %v450, %v453
      %v455 = vrot.slane %v454, 4
      %v457 = vshll.u32 %v429, 16
      %v459 = vrot.slane %v457, 5
      %v460 = vsel %vm446, %v455, %v459
      %v462 = vshrl.u32 %v430, 16
      %v464 = vrot.slane %v462, 4
      %v465 = vshll.u32 %v430, 16
      %v467 = vrot.slane %v465, 5
      %v468 = vor.u32 %v464, %v467
      %v469 = vrot.slane %v468, 4
      %v471 = vshll.u32 %v431, 16
      %v473 = vrot.slane %v471, 5
      %v474 = vsel %vm446, %v469, %v473
      %v476 = vshrl.u32 %v432, 16
      %v478 = vrot.slane %v476, 4
      %v479 = vshll.u32 %v432, 16
      %v481 = vrot.slane %v479, 5
      %v482 = vor.u32 %v478, %v481
      %v483 = vrot.slane %v482, 4
      %v485 = vshll.u32 %v433, 16
      %v487 = vrot.slane %v485, 5
      %v488 = vsel %vm446, %v483, %v487
      %v490 = vshrl.u32 %v434, 16
      %v492 = vrot.slane %v490, 4
      %v493 = vshll.u32 %v434, 16
      %v495 = vrot.slane %v493, 5
      %v496 = vor.u32 %v492, %v495
      %v497 = vrot.slane %v496, 4
      %v499 = vshll.u32 %v435, 16
      %v501 = vrot.slane %v499, 5
      %v502 = vsel %vm446, %v497, %v501
      %v504 = vshrl.u32 %v436, 16
      %v506 = vrot.slane %v504, 4
      %v507 = vshll.u32 %v436, 16
      %v509 = vrot.slane %v507, 5
      %v510 = vor.u32 %v506, %v509
      %v511 = vrot.slane %v510, 4
      %v513 = vshll.u32 %v437, 16
      %v515 = vrot.slane %v513, 5
      %v516 = vsel %vm446, %v511, %v515
      %v518 = vshrl.u32 %v438, 16
      %v520 = vrot.slane %v518, 4
      %v521 = vshll.u32 %v438, 16
      %v523 = vrot.slane %v521, 5
      %v524 = vor.u32 %v520, %v523
      %v525 = vrot.slane %v524, 4
      %v527 = vshll.u32 %v439, 16
      %v529 = vrot.slane %v527, 5
      %v530 = vsel %vm446, %v525, %v529
      %v532 = vshrl.u32 %v440, 16
      %v534 = vrot.slane %v532, 4
      %v535 = vshll.u32 %v440, 16
      %v537 = vrot.slane %v535, 5
      %v538 = vor.u32 %v534, %v537
      %v539 = vrot.slane %v538, 4
      %v541 = vshll.u32 %v441, 16
      %v543 = vrot.slane %v541, 5
      %v544 = vsel %vm446, %v539, %v543
      %v546 = vshrl.u32 %v442, 16
      %v548 = vrot.slane %v546, 4
      %v549 = vshll.u32 %v442, 16
      %v551 = vrot.slane %v549, 5
      %v552 = vor.u32 %v548, %v551
      %v553 = vrot.slane %v552, 4
      %v555 = vshll.u32 %v443, 16
      %v557 = vrot.slane %v555, 5
      %v558 = vsel %vm446, %v553, %v557
      %s559 = scalar_lea.vmem %s1, 4
      %v560 = vld [vmem:[%s559] sm:$0x3]
      %v561 = vunpack.c.l.b16 %v460
      %v562 = vunpack.c.l.b16 %v474
      %v563 = vunpack.c.l.b16 %v488
      %v564 = vunpack.c.l.b16 %v502
      %v565 = vunpack.c.l.b16 %v516
      %v566 = vunpack.c.l.b16 %v530
      %v567 = vunpack.c.l.b16 %v544
      %v568 = vunpack.c.l.b16 %v558
      %v569 = vpack.c.b16 %v562, %v561
      %v570 = vpack.c.b16 %v564, %v563
      %v571 = vpack.c.b16 %v566, %v565
      %v572 = vpack.c.b16 %v568, %v567
      %v574 = vsel %vm246, %v569, 0
      %v577 = vsel %vm246, %v570, 0
      %v580 = vsel %vm246, %v571, 0
      %v583 = vsel %vm246, %v572, 0
      %v586 = vsel %vm259, %v560, 0
      %588 = vmatprep.subr.bf16.mxu0 0
      %589 = vmatpush1.bf16.msra.mxu0 %v586
      %590 = vmatprep.subr.bf16.mxu0 0
      %591 = vmatpush1.bf16.msra.mxu0 0
      %592 = vmatprep.subr.bf16.mxu0 0
      %593 = vmatpush1.bf16.msra.mxu0 0
      %594 = vmatprep.subr.bf16.mxu0 0
      %595 = vmatpush1.bf16.msra.mxu0 0
      %596 = vmatprep.subr.bf16.mxu0 0
      %597 = vmatpush1.bf16.msra.mxu0 0
      %598 = vmatprep.subr.bf16.mxu0 0
      %599 = vmatpush1.bf16.msra.mxu0 0
      %600 = vmatprep.subr.bf16.mxu0 0
      %601 = vmatpush1.bf16.msra.mxu0 0
      %602 = vmatprep.subr.bf16.mxu0 0
      %603 = vmatpush1.bf16.msra.mxu0 0
      %604 = vmatprep.subr.bf16.mxu0 0
      %605 = vmatpush1.bf16.msra.mxu0 0
      %606 = vmatprep.subr.bf16.mxu0 0
      %607 = vmatpush1.bf16.msra.mxu0 0
      %608 = vmatprep.subr.bf16.mxu0 0
      %609 = vmatpush1.bf16.msra.mxu0 0
      %610 = vmatprep.subr.bf16.mxu0 0
      %611 = vmatpush1.bf16.msra.mxu0 0
      %612 = vmatprep.subr.bf16.mxu0 0
      %613 = vmatpush1.bf16.msra.mxu0 0
      %614 = vmatprep.subr.bf16.mxu0 0
      %615 = vmatpush1.bf16.msra.mxu0 0
      %616 = vmatprep.subr.bf16.mxu0 0
      %617 = vmatpush1.bf16.msra.mxu0 0
      %618 = vmatprep.subr.bf16.mxu0 0
      %619 = vmatpush1.bf16.msra.mxu0 0
      %620 = vmatprep.mubr.bf16.mxu0 0
      %621 = vmatmul.mubr.bf16.gmra.mrb[0].mxu0 %v574
      %v622 = vpop.f32.mrb[0].mxu0
      %v623 = vadd.f32 0.0, %v622
      %v624 = vpop.f32.mrb[0].mxu0
      %v625 = vpop.f32.mrb[0].mxu0
      %v626 = vadd.f32 0.0, %v625
      %v627 = vpop.f32.mrb[0].mxu0
      %628 = vmatprep.mubr.bf16.mxu0 0
      %629 = vmatmul.mubr.bf16.gmra.mrb[0].mxu0 %v577
      %v630 = vpop.f32.mrb[0].mxu0
      %v631 = vadd.f32 0.0, %v630
      %v632 = vpop.f32.mrb[0].mxu0
      %v633 = vpop.f32.mrb[0].mxu0
      %v634 = vadd.f32 0.0, %v633
      %v635 = vpop.f32.mrb[0].mxu0
      %636 = vmatprep.mubr.bf16.mxu0 0
      %637 = vmatmul.mubr.bf16.gmra.mrb[0].mxu0 %v580
      %v638 = vpop.f32.mrb[0].mxu0
      %v639 = vadd.f32 0.0, %v638
      %v640 = vpop.f32.mrb[0].mxu0
      %v641 = vpop.f32.mrb[0].mxu0
      %v642 = vadd.f32 0.0, %v641
      %v643 = vpop.f32.mrb[0].mxu0
      %644 = vmatprep.mubr.bf16.mxu0 0
      %645 = vmatmul.mubr.bf16.gmra.mrb[0].mxu0 %v583
      %v646 = vpop.f32.mrb[0].mxu0
      %v647 = vadd.f32 0.0, %v646
      %v648 = vpop.f32.mrb[0].mxu0
      %v649 = vpop.f32.mrb[0].mxu0
      %v650 = vadd.f32 0.0, %v649
      %v651 = vpop.f32.mrb[0].mxu0
      %652 = vdwg.mxu0
      %v653 = vadd.f32 %v398, %v623
      %v654 = vadd.f32 %v401, %v626
      %v655 = vadd.f32 %v406, %v631
      %v656 = vadd.f32 %v409, %v634
      %v657 = vadd.f32 %v414, %v639
      %v658 = vadd.f32 %v417, %v642
      %v659 = vadd.f32 %v422, %v647
      %v660 = vadd.f32 %v425, %v650
      %s661 = sadd.s32 %s201, 36
      %s662 = smul.addr %s661, 4
      %s663 = scalar_lea.vmem %s187, %s662
      %v664 = vld [vmem:[%s663] sm:$0xf]
      %v665 = vld [vmem:[%s663 + $0x8] sm:$0xf]
      %v666 = vld [vmem:[%s663 + $0x10] sm:$0xf]
      %v667 = vld [vmem:[%s663 + $0x18] sm:$0xf]
      %v668 = vld [vmem:[%s663 + $0x20] sm:$0xf]
      %v669 = vld [vmem:[%s663 + $0x28] sm:$0xf]
      %v670 = vld [vmem:[%s663 + $0x30] sm:$0xf]
      %v671 = vld [vmem:[%s663 + $0x38] sm:$0xf]
      %s672 = scalar_lea.vmem %s1, 6
      %v673 = vld [vmem:[%s672] sm:$0x3]
      %v682 = vunpack.c.l.b16 %v664
      %v683 = vunpack.c.l.b16 %v665
      %v684 = vunpack.c.l.b16 %v666
      %v685 = vunpack.c.l.b16 %v667
      %v686 = vunpack.c.l.b16 %v668
      %v687 = vunpack.c.l.b16 %v669
      %v688 = vunpack.c.l.b16 %v670
      %v689 = vunpack.c.l.b16 %v671
      %v690 = vpack.c.b16 %v683, %v682
      %v691 = vpack.c.b16 %v685, %v684
      %v692 = vpack.c.b16 %v687, %v686
      %v693 = vpack.c.b16 %v689, %v688
      %v695 = vsel %vm246, %v690, 0
      %v698 = vsel %vm246, %v691, 0
      %v701 = vsel %vm246, %v692, 0
      %v704 = vsel %vm246, %v693, 0
      %v707 = vsel %vm259, %v673, 0
      %709 = vmatprep.subr.bf16.mxu0 0
      %710 = vmatpush1.bf16.msra.mxu0 %v707
      %711 = vmatprep.subr.bf16.mxu0 0
      %712 = vmatpush1.bf16.msra.mxu0 0
      %713 = vmatprep.subr.bf16.mxu0 0
      %714 = vmatpush1.bf16.msra.mxu0 0
      %715 = vmatprep.subr.bf16.mxu0 0
      %716 = vmatpush1.bf16.msra.mxu0 0
      %717 = vmatprep.subr.bf16.mxu0 0
      %718 = vmatpush1.bf16.msra.mxu0 0
      %719 = vmatprep.subr.bf16.mxu0 0
      %720 = vmatpush1.bf16.msra.mxu0 0
      %721 = vmatprep.subr.bf16.mxu0 0
      %722 = vmatpush1.bf16.msra.mxu0 0
      %723 = vmatprep.subr.bf16.mxu0 0
      %724 = vmatpush1.bf16.msra.mxu0 0
      %725 = vmatprep.subr.bf16.mxu0 0
      %726 = vmatpush1.bf16.msra.mxu0 0
      %727 = vmatprep.subr.bf16.mxu0 0
      %728 = vmatpush1.bf16.msra.mxu0 0
      %729 = vmatprep.subr.bf16.mxu0 0
      %730 = vmatpush1.bf16.msra.mxu0 0
      %731 = vmatprep.subr.bf16.mxu0 0
      %732 = vmatpush1.bf16.msra.mxu0 0
      %733 = vmatprep.subr.bf16.mxu0 0
      %734 = vmatpush1.bf16.msra.mxu0 0
      %735 = vmatprep.subr.bf16.mxu0 0
      %736 = vmatpush1.bf16.msra.mxu0 0
      %737 = vmatprep.subr.bf16.mxu0 0
      %738 = vmatpush1.bf16.msra.mxu0 0
      %739 = vmatprep.subr.bf16.mxu0 0
      %740 = vmatpush1.bf16.msra.mxu0 0
      %741 = vmatprep.mubr.bf16.mxu0 0
      %742 = vmatmul.mubr.bf16.gmra.mrb[0].mxu0 %v695
      %v743 = vpop.f32.mrb[0].mxu0
      %v744 = vadd.f32 0.0, %v743
      %v745 = vpop.f32.mrb[0].mxu0
      %v746 = vpop.f32.mrb[0].mxu0
      %v747 = vadd.f32 0.0, %v746
      %v748 = vpop.f32.mrb[0].mxu0
      %749 = vmatprep.mubr.bf16.mxu0 0
      %750 = vmatmul.mubr.bf16.gmra.mrb[0].mxu0 %v698
      %v751 = vpop.f32.mrb[0].mxu0
      %v752 = vadd.f32 0.0, %v751
      %v753 = vpop.f32.mrb[0].mxu0
      %v754 = vpop.f32.mrb[0].mxu0
      %v755 = vadd.f32 0.0, %v754
      %v756 = vpop.f32.mrb[0].mxu0
      %757 = vmatprep.mubr.bf16.mxu0 0
      %758 = vmatmul.mubr.bf16.gmra.mrb[0].mxu0 %v701
      %v759 = vpop.f32.mrb[0].mxu0
      %v760 = vadd.f32 0.0, %v759
      %v761 = vpop.f32.mrb[0].mxu0
      %v762 = vpop.f32.mrb[0].mxu0
      %v763 = vadd.f32 0.0, %v762
      %v764 = vpop.f32.mrb[0].mxu0
      %765 = vmatprep.mubr.bf16.mxu0 0
      %766 = vmatmul.mubr.bf16.gmra.mrb[0].mxu0 %v704
      %v767 = vpop.f32.mrb[0].mxu0
      %v768 = vadd.f32 0.0, %v767
      %v769 = vpop.f32.mrb[0].mxu0
      %v770 = vpop.f32.mrb[0].mxu0
      %v771 = vadd.f32 0.0, %v770
      %v772 = vpop.f32.mrb[0].mxu0
      %773 = vdwg.mxu0
      %v774 = vadd.f32 %v653, %v744
      %v775 = vadd.f32 %v654, %v747
      %v776 = vadd.f32 %v655, %v752
      %v777 = vadd.f32 %v656, %v755
      %v778 = vadd.f32 %v657, %v760
      %v779 = vadd.f32 %v658, %v763
      %v780 = vadd.f32 %v659, %v768
      %v781 = vadd.f32 %v660, %v771
      %s782 = sadd.s32 %s201, 54
      %s783 = smul.addr %s782, 4
      %s784 = scalar_lea.vmem %s187, %s783
      %v785 = vld [vmem:[%s784] sm:$0xf]
      %v786 = vld [vmem:[%s784 + $0x8] sm:$0xf]
      %v787 = vld [vmem:[%s784 + $0x10] sm:$0xf]
      %v788 = vld [vmem:[%s784 + $0x18] sm:$0xf]
      %v789 = vld [vmem:[%s784 + $0x20] sm:$0xf]
      %v790 = vld [vmem:[%s784 + $0x28] sm:$0xf]
      %v791 = vld [vmem:[%s784 + $0x30] sm:$0xf]
      %v792 = vld [vmem:[%s784 + $0x38] sm:$0xf]
      %s793 = scalar_lea.vmem %s1, 8
      %v794 = vld [vmem:[%s793] sm:$0x3]
      %v803 = vunpack.c.l.b16 %v785
      %v804 = vunpack.c.l.b16 %v786
      %v805 = vunpack.c.l.b16 %v787
      %v806 = vunpack.c.l.b16 %v788
      %v807 = vunpack.c.l.b16 %v789
      %v808 = vunpack.c.l.b16 %v790
      %v809 = vunpack.c.l.b16 %v791
      %v810 = vunpack.c.l.b16 %v792
      %v811 = vpack.c.b16 %v804, %v803
      %v812 = vpack.c.b16 %v806, %v805
      %v813 = vpack.c.b16 %v808, %v807
      %v814 = vpack.c.b16 %v810, %v809
      %v816 = vsel %vm246, %v811, 0
      %v819 = vsel %vm246, %v812, 0
      %v822 = vsel %vm246, %v813, 0
      %v825 = vsel %vm246, %v814, 0
      %v828 = vsel %vm259, %v794, 0
      %830 = vmatprep.subr.bf16.mxu0 0
      %831 = vmatpush1.bf16.msra.mxu0 %v828
      %832 = vmatprep.subr.bf16.mxu0 0
      %833 = vmatpush1.bf16.msra.mxu0 0
      %834 = vmatprep.subr.bf16.mxu0 0
      %835 = vmatpush1.bf16.msra.mxu0 0
      %836 = vmatprep.subr.bf16.mxu0 0
      %837 = vmatpush1.bf16.msra.mxu0 0
      %838 = vmatprep.subr.bf16.mxu0 0
      %839 = vmatpush1.bf16.msra.mxu0 0
      %840 = vmatprep.subr.bf16.mxu0 0
      %841 = vmatpush1.bf16.msra.mxu0 0
      %842 = vmatprep.subr.bf16.mxu0 0
      %843 = vmatpush1.bf16.msra.mxu0 0
      %844 = vmatprep.subr.bf16.mxu0 0
      %845 = vmatpush1.bf16.msra.mxu0 0
      %846 = vmatprep.subr.bf16.mxu0 0
      %847 = vmatpush1.bf16.msra.mxu0 0
      %848 = vmatprep.subr.bf16.mxu0 0
      %849 = vmatpush1.bf16.msra.mxu0 0
      %850 = vmatprep.subr.bf16.mxu0 0
      %851 = vmatpush1.bf16.msra.mxu0 0
      %852 = vmatprep.subr.bf16.mxu0 0
      %853 = vmatpush1.bf16.msra.mxu0 0
      %854 = vmatprep.subr.bf16.mxu0 0
      %855 = vmatpush1.bf16.msra.mxu0 0
      %856 = vmatprep.subr.bf16.mxu0 0
      %857 = vmatpush1.bf16.msra.mxu0 0
      %858 = vmatprep.subr.bf16.mxu0 0
      %859 = vmatpush1.bf16.msra.mxu0 0
      %860 = vmatprep.subr.bf16.mxu0 0
      %861 = vmatpush1.bf16.msra.mxu0 0
      %862 = vmatprep.mubr.bf16.mxu0 0
      %863 = vmatmul.mubr.bf16.gmra.mrb[0].mxu0 %v816
      %v864 = vpop.f32.mrb[0].mxu0
      %v865 = vadd.f32 0.0, %v864
      %v866 = vpop.f32.mrb[0].mxu0
      %v867 = vpop.f32.mrb[0].mxu0
      %v868 = vadd.f32 0.0, %v867
      %v869 = vpop.f32.mrb[0].mxu0
      %870 = vmatprep.mubr.bf16.mxu0 0
      %871 = vmatmul.mubr.bf16.gmra.mrb[0].mxu0 %v819
      %v872 = vpop.f32.mrb[0].mxu0
      %v873 = vadd.f32 0.0, %v872
      %v874 = vpop.f32.mrb[0].mxu0
      %v875 = vpop.f32.mrb[0].mxu0
      %v876 = vadd.f32 0.0, %v875
      %v877 = vpop.f32.mrb[0].mxu0
      %878 = vmatprep.mubr.bf16.mxu0 0
      %879 = vmatmul.mubr.bf16.gmra.mrb[0].mxu0 %v822
      %v880 = vpop.f32.mrb[0].mxu0
      %v881 = vadd.f32 0.0, %v880
      %v882 = vpop.f32.mrb[0].mxu0
      %v883 = vpop.f32.mrb[0].mxu0
      %v884 = vadd.f32 0.0, %v883
      %v885 = vpop.f32.mrb[0].mxu0
      %886 = vmatprep.mubr.bf16.mxu0 0
      %887 = vmatmul.mubr.bf16.gmra.mrb[0].mxu0 %v825
      %v888 = vpop.f32.mrb[0].mxu0
      %v889 = vadd.f32 0.0, %v888
      %v890 = vpop.f32.mrb[0].mxu0
      %v891 = vpop.f32.mrb[0].mxu0
      %v892 = vadd.f32 0.0, %v891
      %v893 = vpop.f32.mrb[0].mxu0
      %894 = vdwg.mxu0
      %v895 = vadd.f32 %v774, %v865
      %v896 = vadd.f32 %v775, %v868
      %v897 = vadd.f32 %v776, %v873
      %v898 = vadd.f32 %v777, %v876
      %v899 = vadd.f32 %v778, %v881
      %v900 = vadd.f32 %v779, %v884
      %v901 = vadd.f32 %v780, %v889
      %v902 = vadd.f32 %v781, %v892
      %v903 = vld [vmem:[%s663] sm:$0xf]
      %v904 = vld [vmem:[%s663 + $0x4] sm:$0x1]
      %v905 = vld [vmem:[%s663 + $0x8] sm:$0xf]
      %v906 = vld [vmem:[%s663 + $0xc] sm:$0x1]
      %v907 = vld [vmem:[%s663 + $0x10] sm:$0xf]
      %v908 = vld [vmem:[%s663 + $0x14] sm:$0x1]
      %v909 = vld [vmem:[%s663 + $0x18] sm:$0xf]
      %v910 = vld [vmem:[%s663 + $0x1c] sm:$0x1]
      %v911 = vld [vmem:[%s663 + $0x20] sm:$0xf]
      %v912 = vld [vmem:[%s663 + $0x24] sm:$0x1]
      %v913 = vld [vmem:[%s663 + $0x28] sm:$0xf]
      %v914 = vld [vmem:[%s663 + $0x2c] sm:$0x1]
      %v915 = vld [vmem:[%s663 + $0x30] sm:$0xf]
      %v916 = vld [vmem:[%s663 + $0x34] sm:$0x1]
      %v917 = vld [vmem:[%s663 + $0x38] sm:$0xf]
      %v918 = vld [vmem:[%s663 + $0x3c] sm:$0x1]
      %v920 = vshrl.u32 %v903, 16
      %v922 = vrot.slane %v920, 4
      %v923 = vshll.u32 %v903, 16
      %v925 = vrot.slane %v923, 5
      %v926 = vor.u32 %v922, %v925
      %v927 = vrot.slane %v926, 4
      %v929 = vshll.u32 %v904, 16
      %v931 = vrot.slane %v929, 5
      %v932 = vsel %vm446, %v927, %v931
      %v934 = vshrl.u32 %v905, 16
      %v936 = vrot.slane %v934, 4
      %v937 = vshll.u32 %v905, 16
      %v939 = vrot.slane %v937, 5
      %v940 = vor.u32 %v936, %v939
      %v941 = vrot.slane %v940, 4
      %v943 = vshll.u32 %v906, 16
      %v945 = vrot.slane %v943, 5
      %v946 = vsel %vm446, %v941, %v945
      %v948 = vshrl.u32 %v907, 16
      %v950 = vrot.slane %v948, 4
      %v951 = vshll.u32 %v907, 16
      %v953 = vrot.slane %v951, 5
      %v954 = vor.u32 %v950, %v953
      %v955 = vrot.slane %v954, 4
      %v957 = vshll.u32 %v908, 16
      %v959 = vrot.slane %v957, 5
      %v960 = vsel %vm446, %v955, %v959
      %v962 = vshrl.u32 %v909, 16
      %v964 = vrot.slane %v962, 4
      %v965 = vshll.u32 %v909, 16
      %v967 = vrot.slane %v965, 5
      %v968 = vor.u32 %v964, %v967
      %v969 = vrot.slane %v968, 4
      %v971 = vshll.u32 %v910, 16
      %v973 = vrot.slane %v971, 5
      %v974 = vsel %vm446, %v969, %v973
      %v976 = vshrl.u32 %v911, 16
      %v978 = vrot.slane %v976, 4
      %v979 = vshll.u32 %v911, 16
      %v981 = vrot.slane %v979, 5
      %v982 = vor.u32 %v978, %v981
      %v983 = vrot.slane %v982, 4
      %v985 = vshll.u32 %v912, 16
      %v987 = vrot.slane %v985, 5
      %v988 = vsel %vm446, %v983, %v987
      %v990 = vshrl.u32 %v913, 16
      %v992 = vrot.slane %v990, 4
      %v993 = vshll.u32 %v913, 16
      %v995 = vrot.slane %v993, 5
      %v996 = vor.u32 %v992, %v995
      %v997 = vrot.slane %v996, 4
      %v999 = vshll.u32 %v914, 16
      %v1001 = vrot.slane %v999, 5
      %v1002 = vsel %vm446, %v997, %v1001
      %v1004 = vshrl.u32 %v915, 16
      %v1006 = vrot.slane %v1004, 4
      %v1007 = vshll.u32 %v915, 16
      %v1009 = vrot.slane %v1007, 5
      %v1010 = vor.u32 %v1006, %v1009
      %v1011 = vrot.slane %v1010, 4
      %v1013 = vshll.u32 %v916, 16
      %v1015 = vrot.slane %v1013, 5
      %v1016 = vsel %vm446, %v1011, %v1015
      %v1018 = vshrl.u32 %v917, 16
      %v1020 = vrot.slane %v1018, 4
      %v1021 = vshll.u32 %v917, 16
      %v1023 = vrot.slane %v1021, 5
      %v1024 = vor.u32 %v1020, %v1023
      %v1025 = vrot.slane %v1024, 4
      %v1027 = vshll.u32 %v918, 16
      %v1029 = vrot.slane %v1027, 5
      %v1030 = vsel %vm446, %v1025, %v1029
      %s1031 = scalar_lea.vmem %s1, 10
      %v1032 = vld [vmem:[%s1031] sm:$0x3]
      %v1033 = vunpack.c.l.b16 %v932
      %v1034 = vunpack.c.l.b16 %v946
      %v1035 = vunpack.c.l.b16 %v960
      %v1036 = vunpack.c.l.b16 %v974
      %v1037 = vunpack.c.l.b16 %v988
      %v1038 = vunpack.c.l.b16 %v1002
      %v1039 = vunpack.c.l.b16 %v1016
      %v1040 = vunpack.c.l.b16 %v1030
      %v1041 = vpack.c.b16 %v1034, %v1033
      %v1042 = vpack.c.b16 %v1036, %v1035
      %v1043 = vpack.c.b16 %v1038, %v1037
      %v1044 = vpack.c.b16 %v1040, %v1039
      %v1046 = vsel %vm246, %v1041, 0
      %v1049 = vsel %vm246, %v1042, 0
      %v1052 = vsel %vm246, %v1043, 0
      %v1055 = vsel %vm246, %v1044, 0
      %v1058 = vsel %vm259, %v1032, 0
      %1060 = vmatprep.subr.bf16.mxu0 0
      %1061 = vmatpush1.bf16.msra.mxu0 %v1058
      %1062 = vmatprep.subr.bf16.mxu0 0
      %1063 = vmatpush1.bf16.msra.mxu0 0
      %1064 = vmatprep.subr.bf16.mxu0 0
      %1065 = vmatpush1.bf16.msra.mxu0 0
      %1066 = vmatprep.subr.bf16.mxu0 0
      %1067 = vmatpush1.bf16.msra.mxu0 0
      %1068 = vmatprep.subr.bf16.mxu0 0
      %1069 = vmatpush1.bf16.msra.mxu0 0
      %1070 = vmatprep.subr.bf16.mxu0 0
      %1071 = vmatpush1.bf16.msra.mxu0 0
      %1072 = vmatprep.subr.bf16.mxu0 0
      %1073 = vmatpush1.bf16.msra.mxu0 0
      %1074 = vmatprep.subr.bf16.mxu0 0
      %1075 = vmatpush1.bf16.msra.mxu0 0
      %1076 = vmatprep.subr.bf16.mxu0 0
      %1077 = vmatpush1.bf16.msra.mxu0 0
      %1078 = vmatprep.subr.bf16.mxu0 0
      %1079 = vmatpush1.bf16.msra.mxu0 0
      %1080 = vmatprep.subr.bf16.mxu0 0
      %1081 = vmatpush1.bf16.msra.mxu0 0
      %1082 = vmatprep.subr.bf16.mxu0 0
      %1083 = vmatpush1.bf16.msra.mxu0 0
      %1084 = vmatprep.subr.bf16.mxu0 0
      %1085 = vmatpush1.bf16.msra.mxu0 0
      %1086 = vmatprep.subr.bf16.mxu0 0
      %1087 = vmatpush1.bf16.msra.mxu0 0
      %1088 = vmatprep.subr.bf16.mxu0 0
      %1089 = vmatpush1.bf16.msra.mxu0 0
      %1090 = vmatprep.subr.bf16.mxu0 0
      %1091 = vmatpush1.bf16.msra.mxu0 0
      %1092 = vmatprep.mubr.bf16.mxu0 0
      %1093 = vmatmul.mubr.bf16.gmra.mrb[0].mxu0 %v1046
      %v1094 = vpop.f32.mrb[0].mxu0
      %v1095 = vadd.f32 0.0, %v1094
      %v1096 = vpop.f32.mrb[0].mxu0
      %v1097 = vpop.f32.mrb[0].mxu0
      %v1098 = vadd.f32 0.0, %v1097
      %v1099 = vpop.f32.mrb[0].mxu0
      %1100 = vmatprep.mubr.bf16.mxu0 0
      %1101 = vmatmul.mubr.bf16.gmra.mrb[0].mxu0 %v1049
      %v1102 = vpop.f32.mrb[0].mxu0
      %v1103 = vadd.f32 0.0, %v1102
      %v1104 = vpop.f32.mrb[0].mxu0
      %v1105 = vpop.f32.mrb[0].mxu0
      %v1106 = vadd.f32 0.0, %v1105
      %v1107 = vpop.f32.mrb[0].mxu0
      %1108 = vmatprep.mubr.bf16.mxu0 0
      %1109 = vmatmul.mubr.bf16.gmra.mrb[0].mxu0 %v1052
      %v1110 = vpop.f32.mrb[0].mxu0
      %v1111 = vadd.f32 0.0, %v1110
      %v1112 = vpop.f32.mrb[0].mxu0
      %v1113 = vpop.f32.mrb[0].mxu0
      %v1114 = vadd.f32 0.0, %v1113
      %v1115 = vpop.f32.mrb[0].mxu0
      %1116 = vmatprep.mubr.bf16.mxu0 0
      %1117 = vmatmul.mubr.bf16.gmra.mrb[0].mxu0 %v1055
      %v1118 = vpop.f32.mrb[0].mxu0
      %v1119 = vadd.f32 0.0, %v1118
      %v1120 = vpop.f32.mrb[0].mxu0
      %v1121 = vpop.f32.mrb[0].mxu0
      %v1122 = vadd.f32 0.0, %v1121
      %v1123 = vpop.f32.mrb[0].mxu0
      %1124 = vdwg.mxu0
      %v1125 = vadd.f32 %v895, %v1095
      %v1126 = vadd.f32 %v896, %v1098
      %v1127 = vadd.f32 %v897, %v1103
      %v1128 = vadd.f32 %v898, %v1106
      %v1129 = vadd.f32 %v899, %v1111
      %v1130 = vadd.f32 %v900, %v1114
      %v1131 = vadd.f32 %v901, %v1119
      %v1132 = vadd.f32 %v902, %v1122
      %s1133 = sadd.s32 %s200, 1
      %s1134 = smul.u32 %s1133, 2
      %s1135 = smul.addr %s1134, 4
      %s1136 = scalar_lea.vmem %s187, %s1135
      %v1137 = vld [vmem:[%s1136] sm:$0xf]
      %v1138 = vld [vmem:[%s1136 + $0x8] sm:$0xf]
      %v1139 = vld [vmem:[%s1136 + $0x10] sm:$0xf]
      %v1140 = vld [vmem:[%s1136 + $0x18] sm:$0xf]
      %v1141 = vld [vmem:[%s1136 + $0x20] sm:$0xf]
      %v1142 = vld [vmem:[%s1136 + $0x28] sm:$0xf]
      %v1143 = vld [vmem:[%s1136 + $0x30] sm:$0xf]
      %v1144 = vld [vmem:[%s1136 + $0x38] sm:$0xf]
      %s1145 = scalar_lea.vmem %s1, 12
      %v1146 = vld [vmem:[%s1145] sm:$0x3]
      %v1155 = vunpack.c.l.b16 %v1137
      %v1156 = vunpack.c.l.b16 %v1138
      %v1157 = vunpack.c.l.b16 %v1139
      %v1158 = vunpack.c.l.b16 %v1140
      %v1159 = vunpack.c.l.b16 %v1141
      %v1160 = vunpack.c.l.b16 %v1142
      %v1161 = vunpack.c.l.b16 %v1143
      %v1162 = vunpack.c.l.b16 %v1144
      %v1163 = vpack.c.b16 %v1156, %v1155
      %v1164 = vpack.c.b16 %v1158, %v1157
      %v1165 = vpack.c.b16 %v1160, %v1159
      %v1166 = vpack.c.b16 %v1162, %v1161
      %v1168 = vsel %vm246, %v1163, 0
      %v1171 = vsel %vm246, %v1164, 0
      %v1174 = vsel %vm246, %v1165, 0
      %v1177 = vsel %vm246, %v1166, 0
      %v1180 = vsel %vm259, %v1146, 0
      %1182 = vmatprep.subr.bf16.mxu0 0
      %1183 = vmatpush1.bf16.msra.mxu0 %v1180
      %1184 = vmatprep.subr.bf16.mxu0 0
      %1185 = vmatpush1.bf16.msra.mxu0 0
      %1186 = vmatprep.subr.bf16.mxu0 0
      %1187 = vmatpush1.bf16.msra.mxu0 0
      %1188 = vmatprep.subr.bf16.mxu0 0
      %1189 = vmatpush1.bf16.msra.mxu0 0
      %1190 = vmatprep.subr.bf16.mxu0 0
      %1191 = vmatpush1.bf16.msra.mxu0 0
      %1192 = vmatprep.subr.bf16.mxu0 0
      %1193 = vmatpush1.bf16.msra.mxu0 0
      %1194 = vmatprep.subr.bf16.mxu0 0
      %1195 = vmatpush1.bf16.msra.mxu0 0
      %1196 = vmatprep.subr.bf16.mxu0 0
      %1197 = vmatpush1.bf16.msra.mxu0 0
      %1198 = vmatprep.subr.bf16.mxu0 0
      %1199 = vmatpush1.bf16.msra.mxu0 0
      %1200 = vmatprep.subr.bf16.mxu0 0
      %1201 = vmatpush1.bf16.msra.mxu0 0
      %1202 = vmatprep.subr.bf16.mxu0 0
      %1203 = vmatpush1.bf16.msra.mxu0 0
      %1204 = vmatprep.subr.bf16.mxu0 0
      %1205 = vmatpush1.bf16.msra.mxu0 0
      %1206 = vmatprep.subr.bf16.mxu0 0
      %1207 = vmatpush1.bf16.msra.mxu0 0
      %1208 = vmatprep.subr.bf16.mxu0 0
      %1209 = vmatpush1.bf16.msra.mxu0 0
      %1210 = vmatprep.subr.bf16.mxu0 0
      %1211 = vmatpush1.bf16.msra.mxu0 0
      %1212 = vmatprep.subr.bf16.mxu0 0
      %1213 = vmatpush1.bf16.msra.mxu0 0
      %1214 = vmatprep.mubr.bf16.mxu0 0
      %1215 = vmatmul.mubr.bf16.gmra.mrb[0].mxu0 %v1168
      %v1216 = vpop.f32.mrb[0].mxu0
      %v1217 = vadd.f32 0.0, %v1216
      %v1218 = vpop.f32.mrb[0].mxu0
      %v1219 = vpop.f32.mrb[0].mxu0
      %v1220 = vadd.f32 0.0, %v1219
      %v1221 = vpop.f32.mrb[0].mxu0
      %1222 = vmatprep.mubr.bf16.mxu0 0
      %1223 = vmatmul.mubr.bf16.gmra.mrb[0].mxu0 %v1171
      %v1224 = vpop.f32.mrb[0].mxu0
      %v1225 = vadd.f32 0.0, %v1224
      %v1226 = vpop.f32.mrb[0].mxu0
      %v1227 = vpop.f32.mrb[0].mxu0
      %v1228 = vadd.f32 0.0, %v1227
      %v1229 = vpop.f32.mrb[0].mxu0
      %1230 = vmatprep.mubr.bf16.mxu0 0
      %1231 = vmatmul.mubr.bf16.gmra.mrb[0].mxu0 %v1174
      %v1232 = vpop.f32.mrb[0].mxu0
      %v1233 = vadd.f32 0.0, %v1232
      %v1234 = vpop.f32.mrb[0].mxu0
      %v1235 = vpop.f32.mrb[0].mxu0
      %v1236 = vadd.f32 0.0, %v1235
      %v1237 = vpop.f32.mrb[0].mxu0
      %1238 = vmatprep.mubr.bf16.mxu0 0
      %1239 = vmatmul.mubr.bf16.gmra.mrb[0].mxu0 %v1177
      %v1240 = vpop.f32.mrb[0].mxu0
      %v1241 = vadd.f32 0.0, %v1240
      %v1242 = vpop.f32.mrb[0].mxu0
      %v1243 = vpop.f32.mrb[0].mxu0
      %v1244 = vadd.f32 0.0, %v1243
      %v1245 = vpop.f32.mrb[0].mxu0
      %1246 = vdwg.mxu0
      %v1247 = vadd.f32 %v1125, %v1217
      %v1248 = vadd.f32 %v1126, %v1220
      %v1249 = vadd.f32 %v1127, %v1225
      %v1250 = vadd.f32 %v1128, %v1228
      %v1251 = vadd.f32 %v1129, %v1233
      %v1252 = vadd.f32 %v1130, %v1236
      %v1253 = vadd.f32 %v1131, %v1241
      %v1254 = vadd.f32 %v1132, %v1244
      %s1255 = sadd.s32 %s1134, 18
      %s1256 = smul.addr %s1255, 4
      %s1257 = scalar_lea.vmem %s187, %s1256
      %v1258 = vld [vmem:[%s1257] sm:$0xf]
      %v1259 = vld [vmem:[%s1257 + $0x8] sm:$0xf]
      %v1260 = vld [vmem:[%s1257 + $0x10] sm:$0xf]
      %v1261 = vld [vmem:[%s1257 + $0x18] sm:$0xf]
      %v1262 = vld [vmem:[%s1257 + $0x20] sm:$0xf]
      %v1263 = vld [vmem:[%s1257 + $0x28] sm:$0xf]
      %v1264 = vld [vmem:[%s1257 + $0x30] sm:$0xf]
      %v1265 = vld [vmem:[%s1257 + $0x38] sm:$0xf]
      %s1266 = scalar_lea.vmem %s1, 14
      %v1267 = vld [vmem:[%s1266] sm:$0x3]
      %v1276 = vunpack.c.l.b16 %v1258
      %v1277 = vunpack.c.l.b16 %v1259
      %v1278 = vunpack.c.l.b16 %v1260
      %v1279 = vunpack.c.l.b16 %v1261
      %v1280 = vunpack.c.l.b16 %v1262
      %v1281 = vunpack.c.l.b16 %v1263
      %v1282 = vunpack.c.l.b16 %v1264
      %v1283 = vunpack.c.l.b16 %v1265
      %v1284 = vpack.c.b16 %v1277, %v1276
      %v1285 = vpack.c.b16 %v1279, %v1278
      %v1286 = vpack.c.b16 %v1281, %v1280
      %v1287 = vpack.c.b16 %v1283, %v1282
      %v1289 = vsel %vm246, %v1284, 0
      %v1292 = vsel %vm246, %v1285, 0
      %v1295 = vsel %vm246, %v1286, 0
      %v1298 = vsel %vm246, %v1287, 0
      %v1301 = vsel %vm259, %v1267, 0
      %1303 = vmatprep.subr.bf16.mxu0 0
      %1304 = vmatpush1.bf16.msra.mxu0 %v1301
      %1305 = vmatprep.subr.bf16.mxu0 0
      %1306 = vmatpush1.bf16.msra.mxu0 0
      %1307 = vmatprep.subr.bf16.mxu0 0
      %1308 = vmatpush1.bf16.msra.mxu0 0
      %1309 = vmatprep.subr.bf16.mxu0 0
      %1310 = vmatpush1.bf16.msra.mxu0 0
      %1311 = vmatprep.subr.bf16.mxu0 0
      %1312 = vmatpush1.bf16.msra.mxu0 0
      %1313 = vmatprep.subr.bf16.mxu0 0
      %1314 = vmatpush1.bf16.msra.mxu0 0
      %1315 = vmatprep.subr.bf16.mxu0 0
      %1316 = vmatpush1.bf16.msra.mxu0 0
      %1317 = vmatprep.subr.bf16.mxu0 0
      %1318 = vmatpush1.bf16.msra.mxu0 0
      %1319 = vmatprep.subr.bf16.mxu0 0
      %1320 = vmatpush1.bf16.msra.mxu0 0
      %1321 = vmatprep.subr.bf16.mxu0 0
      %1322 = vmatpush1.bf16.msra.mxu0 0
      %1323 = vmatprep.subr.bf16.mxu0 0
      %1324 = vmatpush1.bf16.msra.mxu0 0
      %1325 = vmatprep.subr.bf16.mxu0 0
      %1326 = vmatpush1.bf16.msra.mxu0 0
      %1327 = vmatprep.subr.bf16.mxu0 0
      %1328 = vmatpush1.bf16.msra.mxu0 0
      %1329 = vmatprep.subr.bf16.mxu0 0
      %1330 = vmatpush1.bf16.msra.mxu0 0
      %1331 = vmatprep.subr.bf16.mxu0 0
      %1332 = vmatpush1.bf16.msra.mxu0 0
      %1333 = vmatprep.subr.bf16.mxu0 0
      %1334 = vmatpush1.bf16.msra.mxu0 0
      %1335 = vmatprep.mubr.bf16.mxu0 0
      %1336 = vmatmul.mubr.bf16.gmra.mrb[0].mxu0 %v1289
      %v1337 = vpop.f32.mrb[0].mxu0
      %v1338 = vadd.f32 0.0, %v1337
      %v1339 = vpop.f32.mrb[0].mxu0
      %v1340 = vpop.f32.mrb[0].mxu0
      %v1341 = vadd.f32 0.0, %v1340
      %v1342 = vpop.f32.mrb[0].mxu0
      %1343 = vmatprep.mubr.bf16.mxu0 0
      %1344 = vmatmul.mubr.bf16.gmra.mrb[0].mxu0 %v1292
      %v1345 = vpop.f32.mrb[0].mxu0
      %v1346 = vadd.f32 0.0, %v1345
      %v1347 = vpop.f32.mrb[0].mxu0
      %v1348 = vpop.f32.mrb[0].mxu0
      %v1349 = vadd.f32 0.0, %v1348
      %v1350 = vpop.f32.mrb[0].mxu0
      %1351 = vmatprep.mubr.bf16.mxu0 0
      %1352 = vmatmul.mubr.bf16.gmra.mrb[0].mxu0 %v1295
      %v1353 = vpop.f32.mrb[0].mxu0
      %v1354 = vadd.f32 0.0, %v1353
      %v1355 = vpop.f32.mrb[0].mxu0
      %v1356 = vpop.f32.mrb[0].mxu0
      %v1357 = vadd.f32 0.0, %v1356
      %v1358 = vpop.f32.mrb[0].mxu0
      %1359 = vmatprep.mubr.bf16.mxu0 0
      %1360 = vmatmul.mubr.bf16.gmra.mrb[0].mxu0 %v1298
      %v1361 = vpop.f32.mrb[0].mxu0
      %v1362 = vadd.f32 0.0, %v1361
      %v1363 = vpop.f32.mrb[0].mxu0
      %v1364 = vpop.f32.mrb[0].mxu0
      %v1365 = vadd.f32 0.0, %v1364
      %v1366 = vpop.f32.mrb[0].mxu0
      %1367 = vdwg.mxu0
      %v1368 = vadd.f32 %v1247, %v1338
      %v1369 = vadd.f32 %v1248, %v1341
      %v1370 = vadd.f32 %v1249, %v1346
      %v1371 = vadd.f32 %v1250, %v1349
      %v1372 = vadd.f32 %v1251, %v1354
      %v1373 = vadd.f32 %v1252, %v1357
      %v1374 = vadd.f32 %v1253, %v1362
      %v1375 = vadd.f32 %v1254, %v1365
      %v1376 = vld [vmem:[%s1136] sm:$0xf]
      %v1377 = vld [vmem:[%s1136 + $0x4] sm:$0x1]
      %v1378 = vld [vmem:[%s1136 + $0x8] sm:$0xf]
      %v1379 = vld [vmem:[%s1136 + $0xc] sm:$0x1]
      %v1380 = vld [vmem:[%s1136 + $0x10] sm:$0xf]
      %v1381 = vld [vmem:[%s1136 + $0x14] sm:$0x1]
      %v1382 = vld [vmem:[%s1136 + $0x18] sm:$0xf]
      %v1383 = vld [vmem:[%s1136 + $0x1c] sm:$0x1]
      %v1384 = vld [vmem:[%s1136 + $0x20] sm:$0xf]
      %v1385 = vld [vmem:[%s1136 + $0x24] sm:$0x1]
      %v1386 = vld [vmem:[%s1136 + $0x28] sm:$0xf]
      %v1387 = vld [vmem:[%s1136 + $0x2c] sm:$0x1]
      %v1388 = vld [vmem:[%s1136 + $0x30] sm:$0xf]
      %v1389 = vld [vmem:[%s1136 + $0x34] sm:$0x1]
      %v1390 = vld [vmem:[%s1136 + $0x38] sm:$0xf]
      %v1391 = vld [vmem:[%s1136 + $0x3c] sm:$0x1]
      %v1393 = vshrl.u32 %v1376, 16
      %v1395 = vrot.slane %v1393, 4
      %v1396 = vshll.u32 %v1376, 16
      %v1398 = vrot.slane %v1396, 5
      %v1399 = vor.u32 %v1395, %v1398
      %v1400 = vrot.slane %v1399, 4
      %v1402 = vshll.u32 %v1377, 16
      %v1404 = vrot.slane %v1402, 5
      %v1405 = vsel %vm446, %v1400, %v1404
      %v1407 = vshrl.u32 %v1378, 16
      %v1409 = vrot.slane %v1407, 4
      %v1410 = vshll.u32 %v1378, 16
      %v1412 = vrot.slane %v1410, 5
      %v1413 = vor.u32 %v1409, %v1412
      %v1414 = vrot.slane %v1413, 4
      %v1416 = vshll.u32 %v1379, 16
      %v1418 = vrot.slane %v1416, 5
      %v1419 = vsel %vm446, %v1414, %v1418
      %v1421 = vshrl.u32 %v1380, 16
      %v1423 = vrot.slane %v1421, 4
      %v1424 = vshll.u32 %v1380, 16
      %v1426 = vrot.slane %v1424, 5
      %v1427 = vor.u32 %v1423, %v1426
      %v1428 = vrot.slane %v1427, 4
      %v1430 = vshll.u32 %v1381, 16
      %v1432 = vrot.slane %v1430, 5
      %v1433 = vsel %vm446, %v1428, %v1432
      %v1435 = vshrl.u32 %v1382, 16
      %v1437 = vrot.slane %v1435, 4
      %v1438 = vshll.u32 %v1382, 16
      %v1440 = vrot.slane %v1438, 5
      %v1441 = vor.u32 %v1437, %v1440
      %v1442 = vrot.slane %v1441, 4
      %v1444 = vshll.u32 %v1383, 16
      %v1446 = vrot.slane %v1444, 5
      %v1447 = vsel %vm446, %v1442, %v1446
      %v1449 = vshrl.u32 %v1384, 16
      %v1451 = vrot.slane %v1449, 4
      %v1452 = vshll.u32 %v1384, 16
      %v1454 = vrot.slane %v1452, 5
      %v1455 = vor.u32 %v1451, %v1454
      %v1456 = vrot.slane %v1455, 4
      %v1458 = vshll.u32 %v1385, 16
      %v1460 = vrot.slane %v1458, 5
      %v1461 = vsel %vm446, %v1456, %v1460
      %v1463 = vshrl.u32 %v1386, 16
      %v1465 = vrot.slane %v1463, 4
      %v1466 = vshll.u32 %v1386, 16
      %v1468 = vrot.slane %v1466, 5
      %v1469 = vor.u32 %v1465, %v1468
      %v1470 = vrot.slane %v1469, 4
      %v1472 = vshll.u32 %v1387, 16
      %v1474 = vrot.slane %v1472, 5
      %v1475 = vsel %vm446, %v1470, %v1474
      %v1477 = vshrl.u32 %v1388, 16
      %v1479 = vrot.slane %v1477, 4
      %v1480 = vshll.u32 %v1388, 16
      %v1482 = vrot.slane %v1480, 5
      %v1483 = vor.u32 %v1479, %v1482
      %v1484 = vrot.slane %v1483, 4
      %v1486 = vshll.u32 %v1389, 16
      %v1488 = vrot.slane %v1486, 5
      %v1489 = vsel %vm446, %v1484, %v1488
      %v1491 = vshrl.u32 %v1390, 16
      %v1493 = vrot.slane %v1491, 4
      %v1494 = vshll.u32 %v1390, 16
      %v1496 = vrot.slane %v1494, 5
      %v1497 = vor.u32 %v1493, %v1496
      %v1498 = vrot.slane %v1497, 4
      %v1500 = vshll.u32 %v1391, 16
      %v1502 = vrot.slane %v1500, 5
      %v1503 = vsel %vm446, %v1498, %v1502
      %s1504 = scalar_lea.vmem %s1, 16
      %v1505 = vld [vmem:[%s1504] sm:$0x3]
      %v1506 = vunpack.c.l.b16 %v1405
      %v1507 = vunpack.c.l.b16 %v1419
      %v1508 = vunpack.c.l.b16 %v1433
      %v1509 = vunpack.c.l.b16 %v1447
      %v1510 = vunpack.c.l.b16 %v1461
      %v1511 = vunpack.c.l.b16 %v1475
      %v1512 = vunpack.c.l.b16 %v1489
      %v1513 = vunpack.c.l.b16 %v1503
      %v1514 = vpack.c.b16 %v1507, %v1506
      %v1515 = vpack.c.b16 %v1509, %v1508
      %v1516 = vpack.c.b16 %v1511, %v1510
      %v1517 = vpack.c.b16 %v1513, %v1512
      %v1519 = vsel %vm246, %v1514, 0
      %v1522 = vsel %vm246, %v1515, 0
      %v1525 = vsel %vm246, %v1516, 0
      %v1528 = vsel %vm246, %v1517, 0
      %v1531 = vsel %vm259, %v1505, 0
      %1533 = vmatprep.subr.bf16.mxu0 0
      %1534 = vmatpush1.bf16.msra.mxu0 %v1531
      %1535 = vmatprep.subr.bf16.mxu0 0
      %1536 = vmatpush1.bf16.msra.mxu0 0
      %1537 = vmatprep.subr.bf16.mxu0 0
      %1538 = vmatpush1.bf16.msra.mxu0 0
      %1539 = vmatprep.subr.bf16.mxu0 0
      %1540 = vmatpush1.bf16.msra.mxu0 0
      %1541 = vmatprep.subr.bf16.mxu0 0
      %1542 = vmatpush1.bf16.msra.mxu0 0
      %1543 = vmatprep.subr.bf16.mxu0 0
      %1544 = vmatpush1.bf16.msra.mxu0 0
      %1545 = vmatprep.subr.bf16.mxu0 0
      %1546 = vmatpush1.bf16.msra.mxu0 0
      %1547 = vmatprep.subr.bf16.mxu0 0
      %1548 = vmatpush1.bf16.msra.mxu0 0
      %1549 = vmatprep.subr.bf16.mxu0 0
      %1550 = vmatpush1.bf16.msra.mxu0 0
      %1551 = vmatprep.subr.bf16.mxu0 0
      %1552 = vmatpush1.bf16.msra.mxu0 0
      %1553 = vmatprep.subr.bf16.mxu0 0
      %1554 = vmatpush1.bf16.msra.mxu0 0
      %1555 = vmatprep.subr.bf16.mxu0 0
      %1556 = vmatpush1.bf16.msra.mxu0 0
      %1557 = vmatprep.subr.bf16.mxu0 0
      %1558 = vmatpush1.bf16.msra.mxu0 0
      %1559 = vmatprep.subr.bf16.mxu0 0
      %1560 = vmatpush1.bf16.msra.mxu0 0
      %1561 = vmatprep.subr.bf16.mxu0 0
      %1562 = vmatpush1.bf16.msra.mxu0 0
      %1563 = vmatprep.subr.bf16.mxu0 0
      %1564 = vmatpush1.bf16.msra.mxu0 0
      %1565 = vmatprep.mubr.bf16.mxu0 0
      %1566 = vmatmul.mubr.bf16.gmra.mrb[0].mxu0 %v1519
      %v1567 = vpop.f32.mrb[0].mxu0
      %v1568 = vadd.f32 0.0, %v1567
      %v1569 = vpop.f32.mrb[0].mxu0
      %v1570 = vpop.f32.mrb[0].mxu0
      %v1571 = vadd.f32 0.0, %v1570
      %v1572 = vpop.f32.mrb[0].mxu0
      %1573 = vmatprep.mubr.bf16.mxu0 0
      %1574 = vmatmul.mubr.bf16.gmra.mrb[0].mxu0 %v1522
      %v1575 = vpop.f32.mrb[0].mxu0
      %v1576 = vadd.f32 0.0, %v1575
      %v1577 = vpop.f32.mrb[0].mxu0
      %v1578 = vpop.f32.mrb[0].mxu0
      %v1579 = vadd.f32 0.0, %v1578
      %v1580 = vpop.f32.mrb[0].mxu0
      %1581 = vmatprep.mubr.bf16.mxu0 0
      %1582 = vmatmul.mubr.bf16.gmra.mrb[0].mxu0 %v1525
      %v1583 = vpop.f32.mrb[0].mxu0
      %v1584 = vadd.f32 0.0, %v1583
      %v1585 = vpop.f32.mrb[0].mxu0
      %v1586 = vpop.f32.mrb[0].mxu0
      %v1587 = vadd.f32 0.0, %v1586
      %v1588 = vpop.f32.mrb[0].mxu0
      %1589 = vmatprep.mubr.bf16.mxu0 0
      %1590 = vmatmul.mubr.bf16.gmra.mrb[0].mxu0 %v1528
      %v1591 = vpop.f32.mrb[0].mxu0
      %v1592 = vadd.f32 0.0, %v1591
      %v1593 = vpop.f32.mrb[0].mxu0
      %v1594 = vpop.f32.mrb[0].mxu0
      %v1595 = vadd.f32 0.0, %v1594
      %v1596 = vpop.f32.mrb[0].mxu0
      %1597 = vdwg.mxu0
      %v1598 = vadd.f32 %v1368, %v1568
      %v1599 = vadd.f32 %v1369, %v1571
      %v1600 = vadd.f32 %v1370, %v1576
      %v1601 = vadd.f32 %v1371, %v1579
      %v1602 = vadd.f32 %v1372, %v1584
      %v1603 = vadd.f32 %v1373, %v1587
      %v1604 = vadd.f32 %v1374, %v1592
      %v1605 = vadd.f32 %v1375, %v1595
      %v1606 = vld [vmem:[%s2] sm:$0x1]
      %v1608 = vlaneseq
      %v1609 = vshrl.u32 %v1608, 7
      %v1610 = vsub.s32 0, %v1609
      %v1611 = vrot.slane %v1606, %v1610
      %v1613 = vadd.f32 %v1598, %v1611
      %v1614 = vadd.f32 %v1599, %v1611
      %v1615 = vadd.f32 %v1600, %v1611
      %v1616 = vadd.f32 %v1601, %v1611
      %v1617 = vadd.f32 %v1602, %v1611
      %v1618 = vadd.f32 %v1603, %v1611
      %v1619 = vadd.f32 %v1604, %v1611
      %v1620 = vadd.f32 %v1605, %v1611
      %v1621 = vmax.f32 %v1613, 0.0
      %v1622 = vmax.f32 %v1614, 0.0
      %v1623 = vmax.f32 %v1615, 0.0
      %v1624 = vmax.f32 %v1616, 0.0
      %v1625 = vmax.f32 %v1617, 0.0
      %v1626 = vmax.f32 %v1618, 0.0
      %v1627 = vmax.f32 %v1619, 0.0
      %v1628 = vmax.f32 %v1620, 0.0
      %v1629 = vpack.c.bf16 %v1621, %v1621
      %v1630 = vpack.c.bf16 %v1622, %v1622
      %v1631 = vpack.c.bf16 %v1623, %v1623
      %v1632 = vpack.c.bf16 %v1624, %v1624
      %v1633 = vpack.c.bf16 %v1625, %v1625
      %v1634 = vpack.c.bf16 %v1626, %v1626
      %v1635 = vpack.c.bf16 %v1627, %v1627
      %v1636 = vpack.c.bf16 %v1628, %v1628
      %vm1637 = vcmask 60416
      %1638 = vst.msk [vmem:[%s197] sm:$0xf] %vm1637, %v1629
      %1639 = vst.msk [vmem:[%s197 + $0x4] sm:$0xf] %vm1637, %v1630
      %1640 = vst.msk [vmem:[%s197 + $0x8] sm:$0xf] %vm1637, %v1631
      %1641 = vst.msk [vmem:[%s197 + $0xc] sm:$0xf] %vm1637, %v1632
      %1642 = vst.msk [vmem:[%s197 + $0x10] sm:$0xf] %vm1637, %v1633
      %1643 = vst.msk [vmem:[%s197 + $0x14] sm:$0xf] %vm1637, %v1634
      %1644 = vst.msk [vmem:[%s197 + $0x18] sm:$0xf] %vm1637, %v1635
      %1645 = vst.msk [vmem:[%s197 + $0x1c] sm:$0xf] %vm1637, %v1636
      %s1646 = smul.u32 8, %s19
      %p1647 = scmp.lt.s32.totalorder %s18, 1
      %s1648 = scalar_select %p1647, %s18, 1
      %p1649 = scmp.lt.s32.totalorder %s1646, 7
      %s1650 = scalar_select %p1649, %s1646, 7
      %s1651 = smul.addr %s1648, 8
      %s1652 = sadd.s32 %s1650, %s1651
      %s1653 = smul.addr %s1652, 4
      %s1654 = scalar_lea.vmem %s3, %s1653
      // Predicated region
      $region33: #{fcn_forward.5} parent=31 // pred_check
        %p1655 = pneg %p114
      $region34: #{fcn_forward.5} parent=31 // pred_check_branch
        %1657 = sbr.rel (%p1655) target = $region36
      $region35: #{fcn_forward.5} parent=31 // pred_region
        %s1658 = smul.u32 8, %s19
      $region36: #{fcn_forward.5} parent=31 // pred_fallthru
        _
    $region32: #{fcn_forward.5} parent=5 // pred_fallthru
      _
    %p1659 = scmp.le.s32.totalorder 2, %s9
    // Predicated region
    $region37: #{fcn_forward.5} parent=5 // pred_check
      %p1660 = pneg %p1659
    $region38: #{fcn_forward.5} parent=5 // pred_check_branch
      %1662 = sbr.rel (%p1660) target = $region40
    $region39: #{fcn_forward.5} parent=5 // pred_region
      %s1663 = ssub.s32 %s9, 2
      // Predicated region
      $region41: #{fcn_forward.5} parent=39 // pred_check
        %p1664 = pneg %p120
      $region42: #{fcn_forward.5} parent=39 // pred_check_branch
        %1666 = sbr.rel (%p1664) target = $region44
      $region43: #{fcn_forward.5} parent=39 // pred_region
        %s1667 = smul.u32 8, %s21
        %p1668 = scmp.lt.s32.totalorder %s20, 1
        %s1669 = scalar_select %p1668, %s20, 1
        %p1670 = scmp.lt.s32.totalorder %s1667, 7
        %s1671 = scalar_select %p1670, %s1667, 7
        %s1672 = smul.addr %s1669, 8
        %s1673 = sadd.s32 %s1671, %s1672
        %s1674 = smul.addr %s1673, 4
        %s1675 = scalar_lea.vmem %s3, %s1674
      $region44: #{fcn_forward.5} parent=39 // pred_fallthru
        _
    $region40: #{fcn_forward.5} parent=5 // pred_fallthru
      _
  $region6: #{fcn_forward.5} parent=0 // loop_footer
    %s13 = sadd.s32 1, %s9
  $region7: #{fcn_forward.5} parent=0 // loop_footer_branch
    %8 = sbr.rel target = $region3
  $region8: #{fcn_forward.5} parent=0 // loop_exit
    _

// kernel: fcn_forward.6
$region0: #{fcn_forward.6}
  #allocation0 [shape = 'u32[]', space=smem, size = 0x4, offset = 0x4, fixed_abs, tag = 'smem constant byte address 0x4 - core index']
  #allocation1 [shape = 'u32[144,128]{1,0:T(1,128)}', space=vmem, size = 0x12000, scoped, tag = 'internal scratch']
  %s0 = inlined_call_operand.vmem [shape: bf16[8,5,5,8], index: 0, kind: input, shape index: {}]
  %s1 = inlined_call_operand.vmem [shape: bf16[9,8,16], index: 1, kind: input, shape index: {}]
  %s2 = inlined_call_operand.vmem [shape: f32[1,16], index: 2, kind: input, shape index: {}]
  %s3 = inlined_call_operand.vmem [shape: bf16[2,4,4,16], index: 3, kind: output, shape index: {}]
  %s4 = sld [smem:[#allocation0]]
  $region45: #{fcn_forward.6} parent=0
    _
  %s6 = ssub.s32 1, %s4
  %s7 = scalar_select 0, %s6, %s4
  loop: start=0, step=1, limit=4
  $region2: #{fcn_forward.6} parent=0 // loop_pre_header
    _
  $region3: #{fcn_forward.6} parent=0 // loop_header
    %s9 = sphi 0, %s13
    %p10 = scmp.ge.s32.totalorder %s9, 4
    %s16 = sphi 0, %s28
    %s17 = sphi 0, %s24
    %s18 = sphi 0, %s16
    %s19 = sphi 0, %s17
    %s20 = sphi 0, %s18
    %s21 = sphi 0, %s19
    %s31 = sphi 0, %s33
    %s34 = sphi 0, %s31
    %s35 = sphi 0, %s34
    %s51 = sphi 0, %s35
    %s55 = sphi 0, %s55
    %s57 = sphi 0, %s55
    %s58 = sphi 0, %s57
    %s72 = sphi 0, %s58
    %s76 = sphi 0, %s76
    %s78 = sphi 0, %s76
    %s79 = sphi 0, %s78
    %s93 = sphi 0, %s79
    %s101 = sphi 0, %s103
    %s104 = sphi 0, %s101
    %s105 = sphi 0, %s104
    %s121 = sphi 0, %s105
  $region4: #{fcn_forward.6} parent=0 // loop_header_branch
    %12 = sbr.rel (%p10) target = $region8
  $region5: #{fcn_forward.6} parent=0 // loop_body
    %s14 = ssub.s32 %s9, 1
    %s15 = ssub.s32 %s9, 2
    %s22 = sadd.s32 1, %s17
    %p23 = scmp.ge.s32.totalorder %s22, 1
    %s24 = scalar_select %p23, 0, %s22
    %s25 = sadd.s32 1, %s16
    %s26 = scalar_select %p23, %s25, %s16
    %p27 = scmp.ge.s32.totalorder %s26, 2
    %s28 = scalar_select %p27, 0, %s26
    %s29 = ssub.s32 %s16, %s28
    %p30 = scmp.eq.s32.totalorder %s29, 0
    %s32 = sadd.s32 %s31, 1
    %s33 = scalar_select %p30, %s31, %s32
    %p36 = pneg %p30
    %p37 = scmp.eq.s32.totalorder %s9, 1
    %p38 = por %p36, %p37
    %p39 = scmp.ne.s32.totalorder %s31, %s34
    %p40 = scmp.eq.s32.totalorder %s9, 0
    %p41 = por %p39, %p40
    %p42 = scmp.ne.s32.totalorder %s31, %s34
    %p43 = scmp.eq.s32.totalorder %s14, 1
    %p44 = por %p42, %p43
    %p45 = scmp.ne.s32.totalorder %s34, %s35
    %p46 = scmp.eq.s32.totalorder %s14, 0
    %p47 = por %p45, %p46
    %p48 = scmp.ne.s32.totalorder %s34, %s35
    %p49 = scmp.eq.s32.totalorder %s15, 1
    %p50 = por %p48, %p49
    %p52 = scmp.ne.s32.totalorder %s35, %s51
    %p53 = scmp.eq.s32.totalorder %s15, 0
    %p54 = por %p52, %p53
    %s56 = sadd.s32 %s55, 1
    %p59 = scmp.eq.s32.totalorder %s9, 1
    %p60 = scmp.ne.s32.totalorder %s55, %s57
    %p61 = scmp.eq.s32.totalorder %s9, 0
    %p62 = por %p60, %p61
    %p63 = scmp.ne.s32.totalorder %s55, %s57
    %p64 = scmp.eq.s32.totalorder %s14, 1
    %p65 = por %p63, %p64
    %p66 = scmp.ne.s32.totalorder %s57, %s58
    %p67 = scmp.eq.s32.totalorder %s14, 0
    %p68 = por %p66, %p67
    %p69 = scmp.ne.s32.totalorder %s57, %s58
    %p70 = scmp.eq.s32.totalorder %s15, 1
    %p71 = por %p69, %p70
    %p73 = scmp.ne.s32.totalorder %s58, %s72
    %p74 = scmp.eq.s32.totalorder %s15, 0
    %p75 = por %p73, %p74
    %s77 = sadd.s32 %s76, 1
    %p80 = scmp.eq.s32.totalorder %s9, 1
    %p81 = scmp.ne.s32.totalorder %s76, %s78
    %p82 = scmp.eq.s32.totalorder %s9, 0
    %p83 = por %p81, %p82
    %p84 = scmp.ne.s32.totalorder %s76, %s78
    %p85 = scmp.eq.s32.totalorder %s14, 1
    %p86 = por %p84, %p85
    %p87 = scmp.ne.s32.totalorder %s78, %s79
    %p88 = scmp.eq.s32.totalorder %s14, 0
    %p89 = por %p87, %p88
    %p90 = scmp.ne.s32.totalorder %s78, %s79
    %p91 = scmp.eq.s32.totalorder %s15, 1
    %p92 = por %p90, %p91
    %p94 = scmp.ne.s32.totalorder %s79, %s93
    %p95 = scmp.eq.s32.totalorder %s15, 0
    %p96 = por %p94, %p95
    %s97 = ssub.s32 %s16, %s28
    %s98 = ssub.s32 %s17, %s24
    %s99 = sor.u32 %s97, %s98
    %p100 = scmp.eq.s32.totalorder %s99, 0
    %s102 = sadd.s32 %s101, 1
    %s103 = scalar_select %p100, %s101, %s102
    %p106 = pneg %p100
    %p107 = scmp.eq.s32.totalorder %s9, 1
    %p108 = por %p106, %p107
    %p109 = scmp.ne.s32.totalorder %s101, %s104
    %p110 = scmp.eq.s32.totalorder %s9, 0
    %p111 = por %p109, %p110
    %p112 = scmp.ne.s32.totalorder %s101, %s104
    %p113 = scmp.eq.s32.totalorder %s14, 1
    %p114 = por %p112, %p113
    %p115 = scmp.ne.s32.totalorder %s104, %s105
    %p116 = scmp.eq.s32.totalorder %s14, 0
    %p117 = por %p115, %p116
    %p118 = scmp.ne.s32.totalorder %s104, %s105
    %p119 = scmp.eq.s32.totalorder %s15, 1
    %p120 = por %p118, %p119
    %p122 = scmp.ne.s32.totalorder %s105, %s121
    %p123 = scmp.eq.s32.totalorder %s15, 0
    %p124 = por %p122, %p123
    %p125 = scmp.le.s32.totalorder 1, %s9
    %p126 = scmp.lt.s32.totalorder %s9, 3
    %p127 = pnand %p125, %p126
    %p128 = pneg %p127
    // Predicated region
    $region9: #{fcn_forward.6} parent=5 // pred_check
      _
    $region10: #{fcn_forward.6} parent=5 // pred_check_branch
      %130 = sbr.rel (%p127) target = $region12
    $region11: #{fcn_forward.6} parent=5 // pred_region
      %s131 = ssub.s32 %s9, 1
      // Predicated region
      $region13: #{fcn_forward.6} parent=11 // pred_check
        %p132 = pneg %p68
      $region14: #{fcn_forward.6} parent=11 // pred_check_branch
        %134 = sbr.rel (%p132) target = $region16
      $region15: #{fcn_forward.6} parent=11 // pred_region
        _
      $region16: #{fcn_forward.6} parent=11 // pred_fallthru
        _
      // Predicated region
      $region17: #{fcn_forward.6} parent=11 // pred_check
        %p135 = pneg %p89
      $region18: #{fcn_forward.6} parent=11 // pred_check_branch
        %137 = sbr.rel (%p135) target = $region20
      $region19: #{fcn_forward.6} parent=11 // pred_region
        _
      $region20: #{fcn_forward.6} parent=11 // pred_fallthru
        _
    $region12: #{fcn_forward.6} parent=5 // pred_fallthru
      _
    %p138 = scmp.lt.s32.totalorder %s9, 2
    // Predicated region
    $region21: #{fcn_forward.6} parent=5 // pred_check
      %p139 = pneg %p138
    $region22: #{fcn_forward.6} parent=5 // pred_check_branch
      %141 = sbr.rel (%p139) target = $region24
    $region23: #{fcn_forward.6} parent=5 // pred_region
      // Predicated region
      $region25: #{fcn_forward.6} parent=23 // pred_check
        %p142 = pneg %p41
      $region26: #{fcn_forward.6} parent=23 // pred_check_branch
        %144 = sbr.rel (%p142) target = $region28
      $region27: #{fcn_forward.6} parent=23 // pred_region
        %s145 = smul.u32 4, %s16
        %p146 = scmp.lt.s32.totalorder %s145, 7
        %s147 = scalar_select %p146, %s145, 7
        %s148 = smul.addr %s147, 5
        %s149 = smul.addr %s148, 4
        %s150 = scalar_lea.vmem %s0, %s149
        %s151 = smul.u32 4, %s16
      $region28: #{fcn_forward.6} parent=23 // pred_fallthru
        _
    $region24: #{fcn_forward.6} parent=5 // pred_fallthru
      _
    %p152 = scmp.le.s32.totalorder 1, %s9
    %p153 = scmp.lt.s32.totalorder %s9, 3
    %p154 = pnand %p152, %p153
    %p155 = pneg %p154
    // Predicated region
    $region29: #{fcn_forward.6} parent=5 // pred_check
      _
    $region30: #{fcn_forward.6} parent=5 // pred_check_branch
      %157 = sbr.rel (%p154) target = $region32
    $region31: #{fcn_forward.6} parent=5 // pred_region
      %s158 = ssub.s32 %s9, 1
      %s159 = smul.u32 4, %s18
      %p160 = scmp.lt.s32.totalorder %s159, 7
      %s161 = scalar_select %p160, %s159, 7
      %s162 = smul.addr %s161, 5
      %s163 = smul.addr %s162, 4
      %s164 = scalar_lea.vmem %s0, %s163
      %p165 = pneg %p47
      %p166 = pneg %p44
      %p167 = pneg %p68
      %p168 = pneg %p65
      %p169 = pneg %p89
      %p170 = pneg %p86
      %p171 = pneg %p117
      %p172 = pneg %p114
      %s173 = smul.u32 4, %s19
      %p174 = scmp.lt.s32.totalorder %s18, 1
      %s175 = scalar_select %p174, %s18, 1
      %p176 = scmp.lt.s32.totalorder %s173, 3
      %s177 = scalar_select %p176, %s173, 3
      %s178 = smul.addr %s175, 4
      %s179 = sadd.s32 %s177, %s178
      %s180 = smul.addr %s179, 2
      %s181 = scalar_lea.vmem %s3, %s180
      %s182 = smul.u32 4, %s18
      %p183 = scmp.lt.s32.totalorder %s182, 7
      %s184 = scalar_select %p183, %s182, 7
      %s185 = smul.addr %s184, 5
      %s186 = smul.addr %s185, 4
      %s187 = scalar_lea.vmem %s0, %s186
      %s188 = smul.u32 4, %s18
      %s189 = smul.u32 4, %s19
      %p190 = scmp.lt.s32.totalorder %s18, 1
      %s191 = scalar_select %p190, %s18, 1
      %p192 = scmp.lt.s32.totalorder %s189, 3
      %s193 = scalar_select %p192, %s189, 3
      %s194 = smul.addr %s191, 4
      %s195 = sadd.s32 %s193, %s194
      %s196 = smul.addr %s195, 2
      %s197 = scalar_lea.vmem %s3, %s196
      %s198 = smul.u32 4, %s19
      %s200 = smul.u32 %s19, 4
      %s201 = smul.addr %s200, 4
      %s202 = scalar_lea.vmem %s187, %s201
      %v203 = vld [vmem:[%s202] sm:$0x3]
      %v204 = vld [vmem:[%s202 + $0x4] sm:$0x3]
      %v205 = vld [vmem:[%s202 + $0x8] sm:$0x3]
      %v206 = vld [vmem:[%s202 + $0xc] sm:$0x3]
      %v207 = vld [vmem:[%s1] sm:$0xf]
      %s208 = sadd.s32 %s200, 5
      %s209 = smul.addr %s208, 4
      %s210 = scalar_lea.vmem %s187, %s209
      %v211 = vld [vmem:[%s210] sm:$0x3]
      %v212 = vld [vmem:[%s210 + $0x4] sm:$0x3]
      %v213 = vld [vmem:[%s210 + $0x8] sm:$0x3]
      %v214 = vld [vmem:[%s210 + $0xc] sm:$0x3]
      %s215 = scalar_lea.vmem %s1, 4
      %v216 = vld [vmem:[%s215] sm:$0xf]
      %v221 = vcombine.low %v211, %v212
      %v222 = vcombine.low %v213, %v214
      %v224 = vunpack.c.l.s4 1983009808
      %v225 = vunpack.c.0.s8 %v224
      %v226 = vlaneseq
      %v227 = vshrl.u32 %v226, 7
      %v228 = vsub.s32 %v225, %v227
      %v229 = vrot.slane %v221, %v228
      %v231 = vunpack.c.l.s4 1983009808
      %v232 = vunpack.c.0.s8 %v231
      %v233 = vlaneseq
      %v234 = vshrl.u32 %v233, 7
      %v235 = vsub.s32 %v232, %v234
      %v236 = vrot.slane %v222, %v235
      %v237 = vcombine.low %v229, %v236
      %vm238 = vcmask 64512
      %v240 = vsel %vm238, %v237, 0
      %vm242 = vcmask 1043456
      %v244 = vsel %vm242, %v216, 0
      %246 = vmatprep.subr.bf16.mxu0 0
      %247 = vmatpush1.bf16.msra.mxu0 %v244
      %248 = vmatprep.subr.bf16.mxu0 0
      %249 = vmatpush1.bf16.msra.mxu0 0
      %250 = vmatprep.subr.bf16.mxu0 0
      %251 = vmatpush1.bf16.msra.mxu0 0
      %252 = vmatprep.subr.bf16.mxu0 0
      %253 = vmatpush1.bf16.msra.mxu0 0
      %254 = vmatprep.subr.bf16.mxu0 0
      %255 = vmatpush1.bf16.msra.mxu0 0
      %256 = vmatprep.subr.bf16.mxu0 0
      %257 = vmatpush1.bf16.msra.mxu0 0
      %258 = vmatprep.subr.bf16.mxu0 0
      %259 = vmatpush1.bf16.msra.mxu0 0
      %260 = vmatprep.subr.bf16.mxu0 0
      %261 = vmatpush1.bf16.msra.mxu0 0
      %262 = vmatprep.subr.bf16.mxu0 0
      %263 = vmatpush1.bf16.msra.mxu0 0
      %264 = vmatprep.subr.bf16.mxu0 0
      %265 = vmatpush1.bf16.msra.mxu0 0
      %266 = vmatprep.subr.bf16.mxu0 0
      %267 = vmatpush1.bf16.msra.mxu0 0
      %268 = vmatprep.subr.bf16.mxu0 0
      %269 = vmatpush1.bf16.msra.mxu0 0
      %270 = vmatprep.subr.bf16.mxu0 0
      %271 = vmatpush1.bf16.msra.mxu0 0
      %272 = vmatprep.subr.bf16.mxu0 0
      %273 = vmatpush1.bf16.msra.mxu0 0
      %274 = vmatprep.subr.bf16.mxu0 0
      %275 = vmatpush1.bf16.msra.mxu0 0
      %276 = vmatprep.subr.bf16.mxu0 0
      %277 = vmatpush1.bf16.msra.mxu0 0
      %278 = vmatprep.mubr.bf16.mxu0 0
      %279 = vmatmul.mubr.bf16.gmra.mrb[0].mxu0 %v240
      %v280 = vpop.f32.mrb[0].mxu0
      %v281 = vadd.f32 0.0, %v280
      %v282 = vpop.f32.mrb[0].mxu0
      %v283 = vpop.f32.mrb[0].mxu0
      %v284 = vadd.f32 0.0, %v283
      %v285 = vpop.f32.mrb[0].mxu0
      %286 = vdwg.mxu0
      %v291 = vcombine.low %v203, %v204
      %v292 = vcombine.low %v205, %v206
      %v294 = vunpack.c.l.s4 1983009808
      %v295 = vunpack.c.0.s8 %v294
      %v296 = vlaneseq
      %v297 = vshrl.u32 %v296, 7
      %v298 = vsub.s32 %v295, %v297
      %v299 = vrot.slane %v291, %v298
      %v301 = vunpack.c.l.s4 1983009808
      %v302 = vunpack.c.0.s8 %v301
      %v303 = vlaneseq
      %v304 = vshrl.u32 %v303, 7
      %v305 = vsub.s32 %v302, %v304
      %v306 = vrot.slane %v292, %v305
      %v307 = vcombine.low %v299, %v306
      %v309 = vsel %vm238, %v307, 0
      %v312 = vsel %vm242, %v207, 0
      %314 = vmatprep.subr.bf16.mxu0 0
      %315 = vmatpush1.bf16.msra.mxu0 %v312
      %316 = vmatprep.subr.bf16.mxu0 0
      %317 = vmatpush1.bf16.msra.mxu0 0
      %318 = vmatprep.subr.bf16.mxu0 0
      %319 = vmatpush1.bf16.msra.mxu0 0
      %320 = vmatprep.subr.bf16.mxu0 0
      %321 = vmatpush1.bf16.msra.mxu0 0
      %322 = vmatprep.subr.bf16.mxu0 0
      %323 = vmatpush1.bf16.msra.mxu0 0
      %324 = vmatprep.subr.bf16.mxu0 0
      %325 = vmatpush1.bf16.msra.mxu0 0
      %326 = vmatprep.subr.bf16.mxu0 0
      %327 = vmatpush1.bf16.msra.mxu0 0
      %328 = vmatprep.subr.bf16.mxu0 0
      %329 = vmatpush1.bf16.msra.mxu0 0
      %330 = vmatprep.subr.bf16.mxu0 0
      %331 = vmatpush1.bf16.msra.mxu0 0
      %332 = vmatprep.subr.bf16.mxu0 0
      %333 = vmatpush1.bf16.msra.mxu0 0
      %334 = vmatprep.subr.bf16.mxu0 0
      %335 = vmatpush1.bf16.msra.mxu0 0
      %336 = vmatprep.subr.bf16.mxu0 0
      %337 = vmatpush1.bf16.msra.mxu0 0
      %338 = vmatprep.subr.bf16.mxu0 0
      %339 = vmatpush1.bf16.msra.mxu0 0
      %340 = vmatprep.subr.bf16.mxu0 0
      %341 = vmatpush1.bf16.msra.mxu0 0
      %342 = vmatprep.subr.bf16.mxu0 0
      %343 = vmatpush1.bf16.msra.mxu0 0
      %344 = vmatprep.subr.bf16.mxu0 0
      %345 = vmatpush1.bf16.msra.mxu0 0
      %346 = vmatprep.mubr.bf16.mxu0 0
      %347 = vmatmul.mubr.bf16.gmra.mrb[0].mxu0 %v309
      %v348 = vpop.f32.mrb[0].mxu0
      %v349 = vadd.f32 %v281, %v348
      %v350 = vpop.f32.mrb[0].mxu0
      %v351 = vpop.f32.mrb[0].mxu0
      %v352 = vadd.f32 %v284, %v351
      %v353 = vpop.f32.mrb[0].mxu0
      %354 = vdwg.mxu0
      %v355 = vld [vmem:[%s202] sm:$0x7]
      %v356 = vld [vmem:[%s202 + $0x4] sm:$0x7]
      %v357 = vld [vmem:[%s202 + $0x8] sm:$0x7]
      %v358 = vld [vmem:[%s202 + $0xc] sm:$0x7]
      %v364 = vunpack.c.l.s4 1983009808
      %v365 = vunpack.c.0.s8 %v364
      %v366 = vlaneseq
      %v367 = vshrl.u32 %v366, 7
      %v368 = vsub.s32 %v365, %v367
      %v369 = vrot.slane %v355, %v368
      %v370 = vcombine.high %v369, %v369
      %v372 = vunpack.c.l.s4 1983009808
      %v373 = vunpack.c.0.s8 %v372
      %v374 = vlaneseq
      %v375 = vshrl.u32 %v374, 7
      %v376 = vsub.s32 %v373, %v375
      %v377 = vrot.slane %v356, %v376
      %v378 = vcombine.high %v377, %v377
      %v380 = vunpack.c.l.s4 1983009808
      %v381 = vunpack.c.0.s8 %v380
      %v382 = vlaneseq
      %v383 = vshrl.u32 %v382, 7
      %v384 = vsub.s32 %v381, %v383
      %v385 = vrot.slane %v357, %v384
      %v386 = vcombine.high %v385, %v385
      %v388 = vunpack.c.l.s4 1983009808
      %v389 = vunpack.c.0.s8 %v388
      %v390 = vlaneseq
      %v391 = vshrl.u32 %v390, 7
      %v392 = vsub.s32 %v389, %v391
      %v393 = vrot.slane %v358, %v392
      %v394 = vcombine.high %v393, %v393
      %vm395 = vsmask.f32 1280
      %vm396 = vsmask.f32 3336
      %vm397 = vmor %vm395, %vm396
      %vm398 = vsmask.f32 5392
      %vm399 = vmor %vm397, %vm398
      %vm400 = vsmask.f32 7448
      %vm401 = vmor %vm399, %vm400
      %v403 = vshrl.u32 %v369, 16
      %v405 = vrot.slane %v403, 6
      %v406 = vshll.u32 %v369, 16
      %v408 = vrot.slane %v406, 7
      %v409 = vor.u32 %v405, %v408
      %v410 = vrot.slane %v409, 2
      %v412 = vshll.u32 %v370, 16
      %v414 = vrot.slane %v412, 7
      %v415 = vsel %vm401, %v410, %v414
      %v417 = vshrl.u32 %v377, 16
      %v419 = vrot.slane %v417, 6
      %v420 = vshll.u32 %v377, 16
      %v422 = vrot.slane %v420, 7
      %v423 = vor.u32 %v419, %v422
      %v424 = vrot.slane %v423, 2
      %v426 = vshll.u32 %v378, 16
      %v428 = vrot.slane %v426, 7
      %v429 = vsel %vm401, %v424, %v428
      %v431 = vshrl.u32 %v385, 16
      %v433 = vrot.slane %v431, 6
      %v434 = vshll.u32 %v385, 16
      %v436 = vrot.slane %v434, 7
      %v437 = vor.u32 %v433, %v436
      %v438 = vrot.slane %v437, 2
      %v440 = vshll.u32 %v386, 16
      %v442 = vrot.slane %v440, 7
      %v443 = vsel %vm401, %v438, %v442
      %v445 = vshrl.u32 %v393, 16
      %v447 = vrot.slane %v445, 6
      %v448 = vshll.u32 %v393, 16
      %v450 = vrot.slane %v448, 7
      %v451 = vor.u32 %v447, %v450
      %v452 = vrot.slane %v451, 2
      %v454 = vshll.u32 %v394, 16
      %v456 = vrot.slane %v454, 7
      %v457 = vsel %vm401, %v452, %v456
      %s458 = scalar_lea.vmem %s1, 8
      %v459 = vld [vmem:[%s458] sm:$0xf]
      %v460 = vcombine.low %v415, %v429
      %v461 = vcombine.low %v443, %v457
      %v463 = vunpack.c.l.s4 1983009808
      %v464 = vunpack.c.0.s8 %v463
      %v465 = vlaneseq
      %v466 = vshrl.u32 %v465, 7
      %v467 = vsub.s32 %v464, %v466
      %v468 = vrot.slane %v460, %v467
      %v470 = vunpack.c.l.s4 1983009808
      %v471 = vunpack.c.0.s8 %v470
      %v472 = vlaneseq
      %v473 = vshrl.u32 %v472, 7
      %v474 = vsub.s32 %v471, %v473
      %v475 = vrot.slane %v461, %v474
      %v476 = vcombine.low %v468, %v475
      %v478 = vsel %vm238, %v476, 0
      %v481 = vsel %vm242, %v459, 0
      %483 = vmatprep.subr.bf16.mxu0 0
      %484 = vmatpush1.bf16.msra.mxu0 %v481
      %485 = vmatprep.subr.bf16.mxu0 0
      %486 = vmatpush1.bf16.msra.mxu0 0
      %487 = vmatprep.subr.bf16.mxu0 0
      %488 = vmatpush1.bf16.msra.mxu0 0
      %489 = vmatprep.subr.bf16.mxu0 0
      %490 = vmatpush1.bf16.msra.mxu0 0
      %491 = vmatprep.subr.bf16.mxu0 0
      %492 = vmatpush1.bf16.msra.mxu0 0
      %493 = vmatprep.subr.bf16.mxu0 0
      %494 = vmatpush1.bf16.msra.mxu0 0
      %495 = vmatprep.subr.bf16.mxu0 0
      %496 = vmatpush1.bf16.msra.mxu0 0
      %497 = vmatprep.subr.bf16.mxu0 0
      %498 = vmatpush1.bf16.msra.mxu0 0
      %499 = vmatprep.subr.bf16.mxu0 0
      %500 = vmatpush1.bf16.msra.mxu0 0
      %501 = vmatprep.subr.bf16.mxu0 0
      %502 = vmatpush1.bf16.msra.mxu0 0
      %503 = vmatprep.subr.bf16.mxu0 0
      %504 = vmatpush1.bf16.msra.mxu0 0
      %505 = vmatprep.subr.bf16.mxu0 0
      %506 = vmatpush1.bf16.msra.mxu0 0
      %507 = vmatprep.subr.bf16.mxu0 0
      %508 = vmatpush1.bf16.msra.mxu0 0
      %509 = vmatprep.subr.bf16.mxu0 0
      %510 = vmatpush1.bf16.msra.mxu0 0
      %511 = vmatprep.subr.bf16.mxu0 0
      %512 = vmatpush1.bf16.msra.mxu0 0
      %513 = vmatprep.subr.bf16.mxu0 0
      %514 = vmatpush1.bf16.msra.mxu0 0
      %515 = vmatprep.mubr.bf16.mxu0 0
      %516 = vmatmul.mubr.bf16.gmra.mrb[0].mxu0 %v478
      %v517 = vpop.f32.mrb[0].mxu0
      %v518 = vadd.f32 0.0, %v517
      %v519 = vpop.f32.mrb[0].mxu0
      %v520 = vpop.f32.mrb[0].mxu0
      %v521 = vadd.f32 0.0, %v520
      %v522 = vpop.f32.mrb[0].mxu0
      %523 = vdwg.mxu0
      %v524 = vadd.f32 %v349, %v518
      %v525 = vadd.f32 %v352, %v521
      %s526 = sadd.s32 %s200, 10
      %s527 = smul.addr %s526, 4
      %s528 = scalar_lea.vmem %s187, %s527
      %v529 = vld [vmem:[%s528] sm:$0x3]
      %v530 = vld [vmem:[%s528 + $0x4] sm:$0x3]
      %v531 = vld [vmem:[%s528 + $0x8] sm:$0x3]
      %v532 = vld [vmem:[%s528 + $0xc] sm:$0x3]
      %s533 = scalar_lea.vmem %s1, 12
      %v534 = vld [vmem:[%s533] sm:$0xf]
      %v539 = vcombine.low %v529, %v530
      %v540 = vcombine.low %v531, %v532
      %v542 = vunpack.c.l.s4 1983009808
      %v543 = vunpack.c.0.s8 %v542
      %v544 = vlaneseq
      %v545 = vshrl.u32 %v544, 7
      %v546 = vsub.s32 %v543, %v545
      %v547 = vrot.slane %v539, %v546
      %v549 = vunpack.c.l.s4 1983009808
      %v550 = vunpack.c.0.s8 %v549
      %v551 = vlaneseq
      %v552 = vshrl.u32 %v551, 7
      %v553 = vsub.s32 %v550, %v552
      %v554 = vrot.slane %v540, %v553
      %v555 = vcombine.low %v547, %v554
      %v557 = vsel %vm238, %v555, 0
      %v560 = vsel %vm242, %v534, 0
      %562 = vmatprep.subr.bf16.mxu0 0
      %563 = vmatpush1.bf16.msra.mxu0 %v560
      %564 = vmatprep.subr.bf16.mxu0 0
      %565 = vmatpush1.bf16.msra.mxu0 0
      %566 = vmatprep.subr.bf16.mxu0 0
      %567 = vmatpush1.bf16.msra.mxu0 0
      %568 = vmatprep.subr.bf16.mxu0 0
      %569 = vmatpush1.bf16.msra.mxu0 0
      %570 = vmatprep.subr.bf16.mxu0 0
      %571 = vmatpush1.bf16.msra.mxu0 0
      %572 = vmatprep.subr.bf16.mxu0 0
      %573 = vmatpush1.bf16.msra.mxu0 0
      %574 = vmatprep.subr.bf16.mxu0 0
      %575 = vmatpush1.bf16.msra.mxu0 0
      %576 = vmatprep.subr.bf16.mxu0 0
      %577 = vmatpush1.bf16.msra.mxu0 0
      %578 = vmatprep.subr.bf16.mxu0 0
      %579 = vmatpush1.bf16.msra.mxu0 0
      %580 = vmatprep.subr.bf16.mxu0 0
      %581 = vmatpush1.bf16.msra.mxu0 0
      %582 = vmatprep.subr.bf16.mxu0 0
      %583 = vmatpush1.bf16.msra.mxu0 0
      %584 = vmatprep.subr.bf16.mxu0 0
      %585 = vmatpush1.bf16.msra.mxu0 0
      %586 = vmatprep.subr.bf16.mxu0 0
      %587 = vmatpush1.bf16.msra.mxu0 0
      %588 = vmatprep.subr.bf16.mxu0 0
      %589 = vmatpush1.bf16.msra.mxu0 0
      %590 = vmatprep.subr.bf16.mxu0 0
      %591 = vmatpush1.bf16.msra.mxu0 0
      %592 = vmatprep.subr.bf16.mxu0 0
      %593 = vmatpush1.bf16.msra.mxu0 0
      %594 = vmatprep.mubr.bf16.mxu0 0
      %595 = vmatmul.mubr.bf16.gmra.mrb[0].mxu0 %v557
      %v596 = vpop.f32.mrb[0].mxu0
      %v597 = vadd.f32 0.0, %v596
      %v598 = vpop.f32.mrb[0].mxu0
      %v599 = vpop.f32.mrb[0].mxu0
      %v600 = vadd.f32 0.0, %v599
      %v601 = vpop.f32.mrb[0].mxu0
      %602 = vdwg.mxu0
      %v603 = vadd.f32 %v524, %v597
      %v604 = vadd.f32 %v525, %v600
      %s605 = sadd.s32 %s200, 15
      %s606 = smul.addr %s605, 4
      %s607 = scalar_lea.vmem %s187, %s606
      %v608 = vld [vmem:[%s607] sm:$0x3]
      %v609 = vld [vmem:[%s607 + $0x4] sm:$0x3]
      %v610 = vld [vmem:[%s607 + $0x8] sm:$0x3]
      %v611 = vld [vmem:[%s607 + $0xc] sm:$0x3]
      %s612 = scalar_lea.vmem %s1, 16
      %v613 = vld [vmem:[%s612] sm:$0xf]
      %v618 = vcombine.low %v608, %v609
      %v619 = vcombine.low %v610, %v611
      %v621 = vunpack.c.l.s4 1983009808
      %v622 = vunpack.c.0.s8 %v621
      %v623 = vlaneseq
      %v624 = vshrl.u32 %v623, 7
      %v625 = vsub.s32 %v622, %v624
      %v626 = vrot.slane %v618, %v625
      %v628 = vunpack.c.l.s4 1983009808
      %v629 = vunpack.c.0.s8 %v628
      %v630 = vlaneseq
      %v631 = vshrl.u32 %v630, 7
      %v632 = vsub.s32 %v629, %v631
      %v633 = vrot.slane %v619, %v632
      %v634 = vcombine.low %v626, %v633
      %v636 = vsel %vm238, %v634, 0
      %v639 = vsel %vm242, %v613, 0
      %641 = vmatprep.subr.bf16.mxu0 0
      %642 = vmatpush1.bf16.msra.mxu0 %v639
      %643 = vmatprep.subr.bf16.mxu0 0
      %644 = vmatpush1.bf16.msra.mxu0 0
      %645 = vmatprep.subr.bf16.mxu0 0
      %646 = vmatpush1.bf16.msra.mxu0 0
      %647 = vmatprep.subr.bf16.mxu0 0
      %648 = vmatpush1.bf16.msra.mxu0 0
      %649 = vmatprep.subr.bf16.mxu0 0
      %650 = vmatpush1.bf16.msra.mxu0 0
      %651 = vmatprep.subr.bf16.mxu0 0
      %652 = vmatpush1.bf16.msra.mxu0 0
      %653 = vmatprep.subr.bf16.mxu0 0
      %654 = vmatpush1.bf16.msra.mxu0 0
      %655 = vmatprep.subr.bf16.mxu0 0
      %656 = vmatpush1.bf16.msra.mxu0 0
      %657 = vmatprep.subr.bf16.mxu0 0
      %658 = vmatpush1.bf16.msra.mxu0 0
      %659 = vmatprep.subr.bf16.mxu0 0
      %660 = vmatpush1.bf16.msra.mxu0 0
      %661 = vmatprep.subr.bf16.mxu0 0
      %662 = vmatpush1.bf16.msra.mxu0 0
      %663 = vmatprep.subr.bf16.mxu0 0
      %664 = vmatpush1.bf16.msra.mxu0 0
      %665 = vmatprep.subr.bf16.mxu0 0
      %666 = vmatpush1.bf16.msra.mxu0 0
      %667 = vmatprep.subr.bf16.mxu0 0
      %668 = vmatpush1.bf16.msra.mxu0 0
      %669 = vmatprep.subr.bf16.mxu0 0
      %670 = vmatpush1.bf16.msra.mxu0 0
      %671 = vmatprep.subr.bf16.mxu0 0
      %672 = vmatpush1.bf16.msra.mxu0 0
      %673 = vmatprep.mubr.bf16.mxu0 0
      %674 = vmatmul.mubr.bf16.gmra.mrb[0].mxu0 %v636
      %v675 = vpop.f32.mrb[0].mxu0
      %v676 = vadd.f32 0.0, %v675
      %v677 = vpop.f32.mrb[0].mxu0
      %v678 = vpop.f32.mrb[0].mxu0
      %v679 = vadd.f32 0.0, %v678
      %v680 = vpop.f32.mrb[0].mxu0
      %681 = vdwg.mxu0
      %v682 = vadd.f32 %v603, %v676
      %v683 = vadd.f32 %v604, %v679
      %v684 = vld [vmem:[%s528] sm:$0x7]
      %v685 = vld [vmem:[%s528 + $0x4] sm:$0x7]
      %v686 = vld [vmem:[%s528 + $0x8] sm:$0x7]
      %v687 = vld [vmem:[%s528 + $0xc] sm:$0x7]
      %v693 = vunpack.c.l.s4 1983009808
      %v694 = vunpack.c.0.s8 %v693
      %v695 = vlaneseq
      %v696 = vshrl.u32 %v695, 7
      %v697 = vsub.s32 %v694, %v696
      %v698 = vrot.slane %v684, %v697
      %v699 = vcombine.high %v698, %v698
      %v701 = vunpack.c.l.s4 1983009808
      %v702 = vunpack.c.0.s8 %v701
      %v703 = vlaneseq
      %v704 = vshrl.u32 %v703, 7
      %v705 = vsub.s32 %v702, %v704
      %v706 = vrot.slane %v685, %v705
      %v707 = vcombine.high %v706, %v706
      %v709 = vunpack.c.l.s4 1983009808
      %v710 = vunpack.c.0.s8 %v709
      %v711 = vlaneseq
      %v712 = vshrl.u32 %v711, 7
      %v713 = vsub.s32 %v710, %v712
      %v714 = vrot.slane %v686, %v713
      %v715 = vcombine.high %v714, %v714
      %v717 = vunpack.c.l.s4 1983009808
      %v718 = vunpack.c.0.s8 %v717
      %v719 = vlaneseq
      %v720 = vshrl.u32 %v719, 7
      %v721 = vsub.s32 %v718, %v720
      %v722 = vrot.slane %v687, %v721
      %v723 = vcombine.high %v722, %v722
      %v725 = vshrl.u32 %v698, 16
      %v727 = vrot.slane %v725, 6
      %v728 = vshll.u32 %v698, 16
      %v730 = vrot.slane %v728, 7
      %v731 = vor.u32 %v727, %v730
      %v732 = vrot.slane %v731, 2
      %v734 = vshll.u32 %v699, 16
      %v736 = vrot.slane %v734, 7
      %v737 = vsel %vm401, %v732, %v736
      %v739 = vshrl.u32 %v706, 16
      %v741 = vrot.slane %v739, 6
      %v742 = vshll.u32 %v706, 16
      %v744 = vrot.slane %v742, 7
      %v745 = vor.u32 %v741, %v744
      %v746 = vrot.slane %v745, 2
      %v748 = vshll.u32 %v707, 16
      %v750 = vrot.slane %v748, 7
      %v751 = vsel %vm401, %v746, %v750
      %v753 = vshrl.u32 %v714, 16
      %v755 = vrot.slane %v753, 6
      %v756 = vshll.u32 %v714, 16
      %v758 = vrot.slane %v756, 7
      %v759 = vor.u32 %v755, %v758
      %v760 = vrot.slane %v759, 2
      %v762 = vshll.u32 %v715, 16
      %v764 = vrot.slane %v762, 7
      %v765 = vsel %vm401, %v760, %v764
      %v767 = vshrl.u32 %v722, 16
      %v769 = vrot.slane %v767, 6
      %v770 = vshll.u32 %v722, 16
      %v772 = vrot.slane %v770, 7
      %v773 = vor.u32 %v769, %v772
      %v774 = vrot.slane %v773, 2
      %v776 = vshll.u32 %v723, 16
      %v778 = vrot.slane %v776, 7
      %v779 = vsel %vm401, %v774, %v778
      %s780 = scalar_lea.vmem %s1, 20
      %v781 = vld [vmem:[%s780] sm:$0xf]
      %v782 = vcombine.low %v737, %v751
      %v783 = vcombine.low %v765, %v779
      %v785 = vunpack.c.l.s4 1983009808
      %v786 = vunpack.c.0.s8 %v785
      %v787 = vlaneseq
      %v788 = vshrl.u32 %v787, 7
      %v789 = vsub.s32 %v786, %v788
      %v790 = vrot.slane %v782, %v789
      %v792 = vunpack.c.l.s4 1983009808
      %v793 = vunpack.c.0.s8 %v792
      %v794 = vlaneseq
      %v795 = vshrl.u32 %v794, 7
      %v796 = vsub.s32 %v793, %v795
      %v797 = vrot.slane %v783, %v796
      %v798 = vcombine.low %v790, %v797
      %v800 = vsel %vm238, %v798, 0
      %v803 = vsel %vm242, %v781, 0
      %805 = vmatprep.subr.bf16.mxu0 0
      %806 = vmatpush1.bf16.msra.mxu0 %v803
      %807 = vmatprep.subr.bf16.mxu0 0
      %808 = vmatpush1.bf16.msra.mxu0 0
      %809 = vmatprep.subr.bf16.mxu0 0
      %810 = vmatpush1.bf16.msra.mxu0 0
      %811 = vmatprep.subr.bf16.mxu0 0
      %812 = vmatpush1.bf16.msra.mxu0 0
      %813 = vmatprep.subr.bf16.mxu0 0
      %814 = vmatpush1.bf16.msra.mxu0 0
      %815 = vmatprep.subr.bf16.mxu0 0
      %816 = vmatpush1.bf16.msra.mxu0 0
      %817 = vmatprep.subr.bf16.mxu0 0
      %818 = vmatpush1.bf16.msra.mxu0 0
      %819 = vmatprep.subr.bf16.mxu0 0
      %820 = vmatpush1.bf16.msra.mxu0 0
      %821 = vmatprep.subr.bf16.mxu0 0
      %822 = vmatpush1.bf16.msra.mxu0 0
      %823 = vmatprep.subr.bf16.mxu0 0
      %824 = vmatpush1.bf16.msra.mxu0 0
      %825 = vmatprep.subr.bf16.mxu0 0
      %826 = vmatpush1.bf16.msra.mxu0 0
      %827 = vmatprep.subr.bf16.mxu0 0
      %828 = vmatpush1.bf16.msra.mxu0 0
      %829 = vmatprep.subr.bf16.mxu0 0
      %830 = vmatpush1.bf16.msra.mxu0 0
      %831 = vmatprep.subr.bf16.mxu0 0
      %832 = vmatpush1.bf16.msra.mxu0 0
      %833 = vmatprep.subr.bf16.mxu0 0
      %834 = vmatpush1.bf16.msra.mxu0 0
      %835 = vmatprep.subr.bf16.mxu0 0
      %836 = vmatpush1.bf16.msra.mxu0 0
      %837 = vmatprep.mubr.bf16.mxu0 0
      %838 = vmatmul.mubr.bf16.gmra.mrb[0].mxu0 %v800
      %v839 = vpop.f32.mrb[0].mxu0
      %v840 = vadd.f32 0.0, %v839
      %v841 = vpop.f32.mrb[0].mxu0
      %v842 = vpop.f32.mrb[0].mxu0
      %v843 = vadd.f32 0.0, %v842
      %v844 = vpop.f32.mrb[0].mxu0
      %845 = vdwg.mxu0
      %v846 = vadd.f32 %v682, %v840
      %v847 = vadd.f32 %v683, %v843
      %s848 = sadd.s32 %s200, 1
      %s849 = smul.addr %s848, 4
      %s850 = scalar_lea.vmem %s187, %s849
      %v851 = vld [vmem:[%s850] sm:$0x3]
      %v852 = vld [vmem:[%s850 + $0x4] sm:$0x3]
      %v853 = vld [vmem:[%s850 + $0x8] sm:$0x3]
      %v854 = vld [vmem:[%s850 + $0xc] sm:$0x3]
      %s855 = scalar_lea.vmem %s1, 24
      %v856 = vld [vmem:[%s855] sm:$0xf]
      %v861 = vcombine.low %v851, %v852
      %v862 = vcombine.low %v853, %v854
      %v864 = vunpack.c.l.s4 1983009808
      %v865 = vunpack.c.0.s8 %v864
      %v866 = vlaneseq
      %v867 = vshrl.u32 %v866, 7
      %v868 = vsub.s32 %v865, %v867
      %v869 = vrot.slane %v861, %v868
      %v871 = vunpack.c.l.s4 1983009808
      %v872 = vunpack.c.0.s8 %v871
      %v873 = vlaneseq
      %v874 = vshrl.u32 %v873, 7
      %v875 = vsub.s32 %v872, %v874
      %v876 = vrot.slane %v862, %v875
      %v877 = vcombine.low %v869, %v876
      %v879 = vsel %vm238, %v877, 0
      %v882 = vsel %vm242, %v856, 0
      %884 = vmatprep.subr.bf16.mxu0 0
      %885 = vmatpush1.bf16.msra.mxu0 %v882
      %886 = vmatprep.subr.bf16.mxu0 0
      %887 = vmatpush1.bf16.msra.mxu0 0
      %888 = vmatprep.subr.bf16.mxu0 0
      %889 = vmatpush1.bf16.msra.mxu0 0
      %890 = vmatprep.subr.bf16.mxu0 0
      %891 = vmatpush1.bf16.msra.mxu0 0
      %892 = vmatprep.subr.bf16.mxu0 0
      %893 = vmatpush1.bf16.msra.mxu0 0
      %894 = vmatprep.subr.bf16.mxu0 0
      %895 = vmatpush1.bf16.msra.mxu0 0
      %896 = vmatprep.subr.bf16.mxu0 0
      %897 = vmatpush1.bf16.msra.mxu0 0
      %898 = vmatprep.subr.bf16.mxu0 0
      %899 = vmatpush1.bf16.msra.mxu0 0
      %900 = vmatprep.subr.bf16.mxu0 0
      %901 = vmatpush1.bf16.msra.mxu0 0
      %902 = vmatprep.subr.bf16.mxu0 0
      %903 = vmatpush1.bf16.msra.mxu0 0
      %904 = vmatprep.subr.bf16.mxu0 0
      %905 = vmatpush1.bf16.msra.mxu0 0
      %906 = vmatprep.subr.bf16.mxu0 0
      %907 = vmatpush1.bf16.msra.mxu0 0
      %908 = vmatprep.subr.bf16.mxu0 0
      %909 = vmatpush1.bf16.msra.mxu0 0
      %910 = vmatprep.subr.bf16.mxu0 0
      %911 = vmatpush1.bf16.msra.mxu0 0
      %912 = vmatprep.subr.bf16.mxu0 0
      %913 = vmatpush1.bf16.msra.mxu0 0
      %914 = vmatprep.subr.bf16.mxu0 0
      %915 = vmatpush1.bf16.msra.mxu0 0
      %916 = vmatprep.mubr.bf16.mxu0 0
      %917 = vmatmul.mubr.bf16.gmra.mrb[0].mxu0 %v879
      %v918 = vpop.f32.mrb[0].mxu0
      %v919 = vadd.f32 0.0, %v918
      %v920 = vpop.f32.mrb[0].mxu0
      %v921 = vpop.f32.mrb[0].mxu0
      %v922 = vadd.f32 0.0, %v921
      %v923 = vpop.f32.mrb[0].mxu0
      %924 = vdwg.mxu0
      %v925 = vadd.f32 %v846, %v919
      %v926 = vadd.f32 %v847, %v922
      %s927 = sadd.s32 %s848, 5
      %s928 = smul.addr %s927, 4
      %s929 = scalar_lea.vmem %s187, %s928
      %v930 = vld [vmem:[%s929] sm:$0x3]
      %v931 = vld [vmem:[%s929 + $0x4] sm:$0x3]
      %v932 = vld [vmem:[%s929 + $0x8] sm:$0x3]
      %v933 = vld [vmem:[%s929 + $0xc] sm:$0x3]
      %s934 = scalar_lea.vmem %s1, 28
      %v935 = vld [vmem:[%s934] sm:$0xf]
      %v940 = vcombine.low %v930, %v931
      %v941 = vcombine.low %v932, %v933
      %v943 = vunpack.c.l.s4 1983009808
      %v944 = vunpack.c.0.s8 %v943
      %v945 = vlaneseq
      %v946 = vshrl.u32 %v945, 7
      %v947 = vsub.s32 %v944, %v946
      %v948 = vrot.slane %v940, %v947
      %v950 = vunpack.c.l.s4 1983009808
      %v951 = vunpack.c.0.s8 %v950
      %v952 = vlaneseq
      %v953 = vshrl.u32 %v952, 7
      %v954 = vsub.s32 %v951, %v953
      %v955 = vrot.slane %v941, %v954
      %v956 = vcombine.low %v948, %v955
      %v958 = vsel %vm238, %v956, 0
      %v961 = vsel %vm242, %v935, 0
      %963 = vmatprep.subr.bf16.mxu0 0
      %964 = vmatpush1.bf16.msra.mxu0 %v961
      %965 = vmatprep.subr.bf16.mxu0 0
      %966 = vmatpush1.bf16.msra.mxu0 0
      %967 = vmatprep.subr.bf16.mxu0 0
      %968 = vmatpush1.bf16.msra.mxu0 0
      %969 = vmatprep.subr.bf16.mxu0 0
      %970 = vmatpush1.bf16.msra.mxu0 0
      %971 = vmatprep.subr.bf16.mxu0 0
      %972 = vmatpush1.bf16.msra.mxu0 0
      %973 = vmatprep.subr.bf16.mxu0 0
      %974 = vmatpush1.bf16.msra.mxu0 0
      %975 = vmatprep.subr.bf16.mxu0 0
      %976 = vmatpush1.bf16.msra.mxu0 0
      %977 = vmatprep.subr.bf16.mxu0 0
      %978 = vmatpush1.bf16.msra.mxu0 0
      %979 = vmatprep.subr.bf16.mxu0 0
      %980 = vmatpush1.bf16.msra.mxu0 0
      %981 = vmatprep.subr.bf16.mxu0 0
      %982 = vmatpush1.bf16.msra.mxu0 0
      %983 = vmatprep.subr.bf16.mxu0 0
      %984 = vmatpush1.bf16.msra.mxu0 0
      %985 = vmatprep.subr.bf16.mxu0 0
      %986 = vmatpush1.bf16.msra.mxu0 0
      %987 = vmatprep.subr.bf16.mxu0 0
      %988 = vmatpush1.bf16.msra.mxu0 0
      %989 = vmatprep.subr.bf16.mxu0 0
      %990 = vmatpush1.bf16.msra.mxu0 0
      %991 = vmatprep.subr.bf16.mxu0 0
      %992 = vmatpush1.bf16.msra.mxu0 0
      %993 = vmatprep.subr.bf16.mxu0 0
      %994 = vmatpush1.bf16.msra.mxu0 0
      %995 = vmatprep.mubr.bf16.mxu0 0
      %996 = vmatmul.mubr.bf16.gmra.mrb[0].mxu0 %v958
      %v997 = vpop.f32.mrb[0].mxu0
      %v998 = vadd.f32 0.0, %v997
      %v999 = vpop.f32.mrb[0].mxu0
      %v1000 = vpop.f32.mrb[0].mxu0
      %v1001 = vadd.f32 0.0, %v1000
      %v1002 = vpop.f32.mrb[0].mxu0
      %1003 = vdwg.mxu0
      %v1004 = vadd.f32 %v925, %v998
      %v1005 = vadd.f32 %v926, %v1001
      %v1006 = vld [vmem:[%s850] sm:$0x7]
      %v1007 = vld [vmem:[%s850 + $0x4] sm:$0x7]
      %v1008 = vld [vmem:[%s850 + $0x8] sm:$0x7]
      %v1009 = vld [vmem:[%s850 + $0xc] sm:$0x7]
      %v1015 = vunpack.c.l.s4 1983009808
      %v1016 = vunpack.c.0.s8 %v1015
      %v1017 = vlaneseq
      %v1018 = vshrl.u32 %v1017, 7
      %v1019 = vsub.s32 %v1016, %v1018
      %v1020 = vrot.slane %v1006, %v1019
      %v1021 = vcombine.high %v1020, %v1020
      %v1023 = vunpack.c.l.s4 1983009808
      %v1024 = vunpack.c.0.s8 %v1023
      %v1025 = vlaneseq
      %v1026 = vshrl.u32 %v1025, 7
      %v1027 = vsub.s32 %v1024, %v1026
      %v1028 = vrot.slane %v1007, %v1027
      %v1029 = vcombine.high %v1028, %v1028
      %v1031 = vunpack.c.l.s4 1983009808
      %v1032 = vunpack.c.0.s8 %v1031
      %v1033 = vlaneseq
      %v1034 = vshrl.u32 %v1033, 7
      %v1035 = vsub.s32 %v1032, %v1034
      %v1036 = vrot.slane %v1008, %v1035
      %v1037 = vcombine.high %v1036, %v1036
      %v1039 = vunpack.c.l.s4 1983009808
      %v1040 = vunpack.c.0.s8 %v1039
      %v1041 = vlaneseq
      %v1042 = vshrl.u32 %v1041, 7
      %v1043 = vsub.s32 %v1040, %v1042
      %v1044 = vrot.slane %v1009, %v1043
      %v1045 = vcombine.high %v1044, %v1044
      %v1047 = vshrl.u32 %v1020, 16
      %v1049 = vrot.slane %v1047, 6
      %v1050 = vshll.u32 %v1020, 16
      %v1052 = vrot.slane %v1050, 7
      %v1053 = vor.u32 %v1049, %v1052
      %v1054 = vrot.slane %v1053, 2
      %v1056 = vshll.u32 %v1021, 16
      %v1058 = vrot.slane %v1056, 7
      %v1059 = vsel %vm401, %v1054, %v1058
      %v1061 = vshrl.u32 %v1028, 16
      %v1063 = vrot.slane %v1061, 6
      %v1064 = vshll.u32 %v1028, 16
      %v1066 = vrot.slane %v1064, 7
      %v1067 = vor.u32 %v1063, %v1066
      %v1068 = vrot.slane %v1067, 2
      %v1070 = vshll.u32 %v1029, 16
      %v1072 = vrot.slane %v1070, 7
      %v1073 = vsel %vm401, %v1068, %v1072
      %v1075 = vshrl.u32 %v1036, 16
      %v1077 = vrot.slane %v1075, 6
      %v1078 = vshll.u32 %v1036, 16
      %v1080 = vrot.slane %v1078, 7
      %v1081 = vor.u32 %v1077, %v1080
      %v1082 = vrot.slane %v1081, 2
      %v1084 = vshll.u32 %v1037, 16
      %v1086 = vrot.slane %v1084, 7
      %v1087 = vsel %vm401, %v1082, %v1086
      %v1089 = vshrl.u32 %v1044, 16
      %v1091 = vrot.slane %v1089, 6
      %v1092 = vshll.u32 %v1044, 16
      %v1094 = vrot.slane %v1092, 7
      %v1095 = vor.u32 %v1091, %v1094
      %v1096 = vrot.slane %v1095, 2
      %v1098 = vshll.u32 %v1045, 16
      %v1100 = vrot.slane %v1098, 7
      %v1101 = vsel %vm401, %v1096, %v1100
      %s1102 = scalar_lea.vmem %s1, 32
      %v1103 = vld [vmem:[%s1102] sm:$0xf]
      %v1104 = vcombine.low %v1059, %v1073
      %v1105 = vcombine.low %v1087, %v1101
      %v1107 = vunpack.c.l.s4 1983009808
      %v1108 = vunpack.c.0.s8 %v1107
      %v1109 = vlaneseq
      %v1110 = vshrl.u32 %v1109, 7
      %v1111 = vsub.s32 %v1108, %v1110
      %v1112 = vrot.slane %v1104, %v1111
      %v1114 = vunpack.c.l.s4 1983009808
      %v1115 = vunpack.c.0.s8 %v1114
      %v1116 = vlaneseq
      %v1117 = vshrl.u32 %v1116, 7
      %v1118 = vsub.s32 %v1115, %v1117
      %v1119 = vrot.slane %v1105, %v1118
      %v1120 = vcombine.low %v1112, %v1119
      %v1122 = vsel %vm238, %v1120, 0
      %v1125 = vsel %vm242, %v1103, 0
      %1127 = vmatprep.subr.bf16.mxu0 0
      %1128 = vmatpush1.bf16.msra.mxu0 %v1125
      %1129 = vmatprep.subr.bf16.mxu0 0
      %1130 = vmatpush1.bf16.msra.mxu0 0
      %1131 = vmatprep.subr.bf16.mxu0 0
      %1132 = vmatpush1.bf16.msra.mxu0 0
      %1133 = vmatprep.subr.bf16.mxu0 0
      %1134 = vmatpush1.bf16.msra.mxu0 0
      %1135 = vmatprep.subr.bf16.mxu0 0
      %1136 = vmatpush1.bf16.msra.mxu0 0
      %1137 = vmatprep.subr.bf16.mxu0 0
      %1138 = vmatpush1.bf16.msra.mxu0 0
      %1139 = vmatprep.subr.bf16.mxu0 0
      %1140 = vmatpush1.bf16.msra.mxu0 0
      %1141 = vmatprep.subr.bf16.mxu0 0
      %1142 = vmatpush1.bf16.msra.mxu0 0
      %1143 = vmatprep.subr.bf16.mxu0 0
      %1144 = vmatpush1.bf16.msra.mxu0 0
      %1145 = vmatprep.subr.bf16.mxu0 0
      %1146 = vmatpush1.bf16.msra.mxu0 0
      %1147 = vmatprep.subr.bf16.mxu0 0
      %1148 = vmatpush1.bf16.msra.mxu0 0
      %1149 = vmatprep.subr.bf16.mxu0 0
      %1150 = vmatpush1.bf16.msra.mxu0 0
      %1151 = vmatprep.subr.bf16.mxu0 0
      %1152 = vmatpush1.bf16.msra.mxu0 0
      %1153 = vmatprep.subr.bf16.mxu0 0
      %1154 = vmatpush1.bf16.msra.mxu0 0
      %1155 = vmatprep.subr.bf16.mxu0 0
      %1156 = vmatpush1.bf16.msra.mxu0 0
      %1157 = vmatprep.subr.bf16.mxu0 0
      %1158 = vmatpush1.bf16.msra.mxu0 0
      %1159 = vmatprep.mubr.bf16.mxu0 0
      %1160 = vmatmul.mubr.bf16.gmra.mrb[0].mxu0 %v1122
      %v1161 = vpop.f32.mrb[0].mxu0
      %v1162 = vadd.f32 0.0, %v1161
      %v1163 = vpop.f32.mrb[0].mxu0
      %v1164 = vpop.f32.mrb[0].mxu0
      %v1165 = vadd.f32 0.0, %v1164
      %v1166 = vpop.f32.mrb[0].mxu0
      %1167 = vdwg.mxu0
      %v1168 = vadd.f32 %v1004, %v1162
      %v1169 = vadd.f32 %v1005, %v1165
      %v1170 = vld [vmem:[%s2] sm:$0x1]
      %v1172 = vlaneseq
      %v1173 = vshrl.u32 %v1172, 7
      %v1174 = vsub.s32 0, %v1173
      %v1175 = vrot.slane %v1170, %v1174
      %v1177 = vadd.f32 %v1168, %v1175
      %v1178 = vadd.f32 %v1169, %v1175
      %v1179 = vmax.f32 %v1177, 0.0
      %v1180 = vmax.f32 %v1178, 0.0
      %v1183 = vcombine.high %v1179, %v1179
      %v1184 = vcombine.high %v1180, %v1180
      %v1187 = vpack.c.bf16 %v1179, %v1179
      %v1188 = vpack.c.bf16 %v1183, %v1183
      %v1189 = vpack.c.bf16 %v1180, %v1180
      %v1190 = vpack.c.bf16 %v1184, %v1184
      %vm1191 = vcmask 123904
      %1192 = vst.msk [vmem:[%s197] sm:$0x3] %vm1191, %v1187
      %1193 = vst.msk [vmem:[%s197 + $0x2] sm:$0x3] %vm1191, %v1188
      %1194 = vst.msk [vmem:[%s197 + $0x4] sm:$0x3] %vm1191, %v1189
      %1195 = vst.msk [vmem:[%s197 + $0x6] sm:$0x3] %vm1191, %v1190
      %s1196 = smul.u32 4, %s19
      %p1197 = scmp.lt.s32.totalorder %s18, 1
      %s1198 = scalar_select %p1197, %s18, 1
      %p1199 = scmp.lt.s32.totalorder %s1196, 3
      %s1200 = scalar_select %p1199, %s1196, 3
      %s1201 = smul.addr %s1198, 4
      %s1202 = sadd.s32 %s1200, %s1201
      %s1203 = smul.addr %s1202, 2
      %s1204 = scalar_lea.vmem %s3, %s1203
      // Predicated region
      $region33: #{fcn_forward.6} parent=31 // pred_check
        %p1205 = pneg %p114
      $region34: #{fcn_forward.6} parent=31 // pred_check_branch
        %1207 = sbr.rel (%p1205) target = $region36
      $region35: #{fcn_forward.6} parent=31 // pred_region
        %s1208 = smul.u32 4, %s19
      $region36: #{fcn_forward.6} parent=31 // pred_fallthru
        _
    $region32: #{fcn_forward.6} parent=5 // pred_fallthru
      _
    %p1209 = scmp.le.s32.totalorder 2, %s9
    // Predicated region
    $region37: #{fcn_forward.6} parent=5 // pred_check
      %p1210 = pneg %p1209
    $region38: #{fcn_forward.6} parent=5 // pred_check_branch
      %1212 = sbr.rel (%p1210) target = $region40
    $region39: #{fcn_forward.6} parent=5 // pred_region
      %s1213 = ssub.s32 %s9, 2
      // Predicated region
      $region41: #{fcn_forward.6} parent=39 // pred_check
        %p1214 = pneg %p120
      $region42: #{fcn_forward.6} parent=39 // pred_check_branch
        %1216 = sbr.rel (%p1214) target = $region44
      $region43: #{fcn_forward.6} parent=39 // pred_region
        %s1217 = smul.u32 4, %s21
        %p1218 = scmp.lt.s32.totalorder %s20, 1
        %s1219 = scalar_select %p1218, %s20, 1
        %p1220 = scmp.lt.s32.totalorder %s1217, 3
        %s1221 = scalar_select %p1220, %s1217, 3
        %s1222 = smul.addr %s1219, 4
        %s1223 = sadd.s32 %s1221, %s1222
        %s1224 = smul.addr %s1223, 2
        %s1225 = scalar_lea.vmem %s3, %s1224
      $region44: #{fcn_forward.6} parent=39 // pred_fallthru
        _
    $region40: #{fcn_forward.6} parent=5 // pred_fallthru
      _
  $region6: #{fcn_forward.6} parent=0 // loop_footer
    %s13 = sadd.s32 1, %s9
  $region7: #{fcn_forward.6} parent=0 // loop_footer_branch
    %8 = sbr.rel target = $region3
  $region8: #{fcn_forward.6} parent=0 // loop_exit
    _

// kernel: fcn_forward.7
$region0: #{fcn_forward.7}
  #allocation0 [shape = 'u32[]', space=smem, size = 0x4, offset = 0x4, fixed_abs, tag = 'smem constant byte address 0x4 - core index']
  #allocation1 [shape = 'u32[144,128]{1,0:T(1,128)}', space=vmem, size = 0x12000, scoped, tag = 'internal scratch']
  %s0 = inlined_call_operand.vmem [shape: bf16[2,6,6,16], index: 0, kind: input, shape index: {}]
  %s1 = inlined_call_operand.vmem [shape: bf16[9,16,8], index: 1, kind: input, shape index: {}]
  %s2 = inlined_call_operand.vmem [shape: f32[1,8], index: 2, kind: input, shape index: {}]
  %s3 = inlined_call_operand.vmem [shape: bf16[8,6], index: 3, kind: input, shape index: {}]
  %s4 = inlined_call_operand.vmem [shape: f32[1,6], index: 4, kind: input, shape index: {}]
  %s5 = inlined_call_operand.vmem [shape: f32[2,4,4,6], index: 5, kind: output, shape index: {}]
  %s6 = sld [smem:[#allocation0]]
  $region53: #{fcn_forward.7} parent=0
    _
  %s8 = ssub.s32 1, %s6
  %s9 = scalar_select 0, %s8, %s6
  loop: start=0, step=1, limit=4
  $region2: #{fcn_forward.7} parent=0 // loop_pre_header
    _
  $region3: #{fcn_forward.7} parent=0 // loop_header
    %s11 = sphi 0, %s15
    %p12 = scmp.ge.s32.totalorder %s11, 4
    %s18 = sphi 0, %s30
    %s19 = sphi 0, %s26
    %s20 = sphi 0, %s18
    %s21 = sphi 0, %s19
    %s22 = sphi 0, %s20
    %s23 = sphi 0, %s21
    %s33 = sphi 0, %s35
    %s36 = sphi 0, %s33
    %s37 = sphi 0, %s36
    %s53 = sphi 0, %s37
    %s57 = sphi 0, %s57
    %s59 = sphi 0, %s57
    %s60 = sphi 0, %s59
    %s74 = sphi 0, %s60
    %s78 = sphi 0, %s78
    %s80 = sphi 0, %s78
    %s81 = sphi 0, %s80
    %s95 = sphi 0, %s81
    %s99 = sphi 0, %s99
    %s101 = sphi 0, %s99
    %s102 = sphi 0, %s101
    %s116 = sphi 0, %s102
    %s120 = sphi 0, %s120
    %s122 = sphi 0, %s120
    %s123 = sphi 0, %s122
    %s137 = sphi 0, %s123
    %s145 = sphi 0, %s147
    %s148 = sphi 0, %s145
    %s149 = sphi 0, %s148
    %s165 = sphi 0, %s149
  $region4: #{fcn_forward.7} parent=0 // loop_header_branch
    %14 = sbr.rel (%p12) target = $region8
  $region5: #{fcn_forward.7} parent=0 // loop_body
    %s16 = ssub.s32 %s11, 1
    %s17 = ssub.s32 %s11, 2
    %s24 = sadd.s32 1, %s19
    %p25 = scmp.ge.s32.totalorder %s24, 1
    %s26 = scalar_select %p25, 0, %s24
    %s27 = sadd.s32 1, %s18
    %s28 = scalar_select %p25, %s27, %s18
    %p29 = scmp.ge.s32.totalorder %s28, 2
    %s30 = scalar_select %p29, 0, %s28
    %s31 = ssub.s32 %s18, %s30
    %p32 = scmp.eq.s32.totalorder %s31, 0
    %s34 = sadd.s32 %s33, 1
    %s35 = scalar_select %p32, %s33, %s34
    %p38 = pneg %p32
    %p39 = scmp.eq.s32.totalorder %s11, 1
    %p40 = por %p38, %p39
    %p41 = scmp.ne.s32.totalorder %s33, %s36
    %p42 = scmp.eq.s32.totalorder %s11, 0
    %p43 = por %p41, %p42
    %p44 = scmp.ne.s32.totalorder %s33, %s36
    %p45 = scmp.eq.s32.totalorder %s16, 1
    %p46 = por %p44, %p45
    %p47 = scmp.ne.s32.totalorder %s36, %s37
    %p48 = scmp.eq.s32.totalorder %s16, 0
    %p49 = por %p47, %p48
    %p50 = scmp.ne.s32.totalorder %s36, %s37
    %p51 = scmp.eq.s32.totalorder %s17, 1
    %p52 = por %p50, %p51
    %p54 = scmp.ne.s32.totalorder %s37, %s53
    %p55 = scmp.eq.s32.totalorder %s17, 0
    %p56 = por %p54, %p55
    %s58 = sadd.s32 %s57, 1
    %p61 = scmp.eq.s32.totalorder %s11, 1
    %p62 = scmp.ne.s32.totalorder %s57, %s59
    %p63 = scmp.eq.s32.totalorder %s11, 0
    %p64 = por %p62, %p63
    %p65 = scmp.ne.s32.totalorder %s57, %s59
    %p66 = scmp.eq.s32.totalorder %s16, 1
    %p67 = por %p65, %p66
    %p68 = scmp.ne.s32.totalorder %s59, %s60
    %p69 = scmp.eq.s32.totalorder %s16, 0
    %p70 = por %p68, %p69
    %p71 = scmp.ne.s32.totalorder %s59, %s60
    %p72 = scmp.eq.s32.totalorder %s17, 1
    %p73 = por %p71, %p72
    %p75 = scmp.ne.s32.totalorder %s60, %s74
    %p76 = scmp.eq.s32.totalorder %s17, 0
    %p77 = por %p75, %p76
    %s79 = sadd.s32 %s78, 1
    %p82 = scmp.eq.s32.totalorder %s11, 1
    %p83 = scmp.ne.s32.totalorder %s78, %s80
    %p84 = scmp.eq.s32.totalorder %s11, 0
    %p85 = por %p83, %p84
    %p86 = scmp.ne.s32.totalorder %s78, %s80
    %p87 = scmp.eq.s32.totalorder %s16, 1
    %p88 = por %p86, %p87
    %p89 = scmp.ne.s32.totalorder %s80, %s81
    %p90 = scmp.eq.s32.totalorder %s16, 0
    %p91 = por %p89, %p90
    %p92 = scmp.ne.s32.totalorder %s80, %s81
    %p93 = scmp.eq.s32.totalorder %s17, 1
    %p94 = por %p92, %p93
    %p96 = scmp.ne.s32.totalorder %s81, %s95
    %p97 = scmp.eq.s32.totalorder %s17, 0
    %p98 = por %p96, %p97
    %s100 = sadd.s32 %s99, 1
    %p103 = scmp.eq.s32.totalorder %s11, 1
    %p104 = scmp.ne.s32.totalorder %s99, %s101
    %p105 = scmp.eq.s32.totalorder %s11, 0
    %p106 = por %p104, %p105
    %p107 = scmp.ne.s32.totalorder %s99, %s101
    %p108 = scmp.eq.s32.totalorder %s16, 1
    %p109 = por %p107, %p108
    %p110 = scmp.ne.s32.totalorder %s101, %s102
    %p111 = scmp.eq.s32.totalorder %s16, 0
    %p112 = por %p110, %p111
    %p113 = scmp.ne.s32.totalorder %s101, %s102
    %p114 = scmp.eq.s32.totalorder %s17, 1
    %p115 = por %p113, %p114
    %p117 = scmp.ne.s32.totalorder %s102, %s116
    %p118 = scmp.eq.s32.totalorder %s17, 0
    %p119 = por %p117, %p118
    %s121 = sadd.s32 %s120, 1
    %p124 = scmp.eq.s32.totalorder %s11, 1
    %p125 = scmp.ne.s32.totalorder %s120, %s122
    %p126 = scmp.eq.s32.totalorder %s11, 0
    %p127 = por %p125, %p126
    %p128 = scmp.ne.s32.totalorder %s120, %s122
    %p129 = scmp.eq.s32.totalorder %s16, 1
    %p130 = por %p128, %p129
    %p131 = scmp.ne.s32.totalorder %s122, %s123
    %p132 = scmp.eq.s32.totalorder %s16, 0
    %p133 = por %p131, %p132
    %p134 = scmp.ne.s32.totalorder %s122, %s123
    %p135 = scmp.eq.s32.totalorder %s17, 1
    %p136 = por %p134, %p135
    %p138 = scmp.ne.s32.totalorder %s123, %s137
    %p139 = scmp.eq.s32.totalorder %s17, 0
    %p140 = por %p138, %p139
    %s141 = ssub.s32 %s18, %s30
    %s142 = ssub.s32 %s19, %s26
    %s143 = sor.u32 %s141, %s142
    %p144 = scmp.eq.s32.totalorder %s143, 0
    %s146 = sadd.s32 %s145, 1
    %s147 = scalar_select %p144, %s145, %s146
    %p150 = pneg %p144
    %p151 = scmp.eq.s32.totalorder %s11, 1
    %p152 = por %p150, %p151
    %p153 = scmp.ne.s32.totalorder %s145, %s148
    %p154 = scmp.eq.s32.totalorder %s11, 0
    %p155 = por %p153, %p154
    %p156 = scmp.ne.s32.totalorder %s145, %s148
    %p157 = scmp.eq.s32.totalorder %s16, 1
    %p158 = por %p156, %p157
    %p159 = scmp.ne.s32.totalorder %s148, %s149
    %p160 = scmp.eq.s32.totalorder %s16, 0
    %p161 = por %p159, %p160
    %p162 = scmp.ne.s32.totalorder %s148, %s149
    %p163 = scmp.eq.s32.totalorder %s17, 1
    %p164 = por %p162, %p163
    %p166 = scmp.ne.s32.totalorder %s149, %s165
    %p167 = scmp.eq.s32.totalorder %s17, 0
    %p168 = por %p166, %p167
    %p169 = scmp.le.s32.totalorder 1, %s11
    %p170 = scmp.lt.s32.totalorder %s11, 3
    %p171 = pnand %p169, %p170
    %p172 = pneg %p171
    // Predicated region
    $region9: #{fcn_forward.7} parent=5 // pred_check
      _
    $region10: #{fcn_forward.7} parent=5 // pred_check_branch
      %174 = sbr.rel (%p171) target = $region12
    $region11: #{fcn_forward.7} parent=5 // pred_region
      %s175 = ssub.s32 %s11, 1
      // Predicated region
      $region13: #{fcn_forward.7} parent=11 // pred_check
        %p176 = pneg %p70
      $region14: #{fcn_forward.7} parent=11 // pred_check_branch
        %178 = sbr.rel (%p176) target = $region16
      $region15: #{fcn_forward.7} parent=11 // pred_region
        _
      $region16: #{fcn_forward.7} parent=11 // pred_fallthru
        _
      // Predicated region
      $region17: #{fcn_forward.7} parent=11 // pred_check
        %p179 = pneg %p91
      $region18: #{fcn_forward.7} parent=11 // pred_check_branch
        %181 = sbr.rel (%p179) target = $region20
      $region19: #{fcn_forward.7} parent=11 // pred_region
        _
      $region20: #{fcn_forward.7} parent=11 // pred_fallthru
        _
      // Predicated region
      $region21: #{fcn_forward.7} parent=11 // pred_check
        %p182 = pneg %p112
      $region22: #{fcn_forward.7} parent=11 // pred_check_branch
        %184 = sbr.rel (%p182) target = $region24
      $region23: #{fcn_forward.7} parent=11 // pred_region
        _
      $region24: #{fcn_forward.7} parent=11 // pred_fallthru
        _
      // Predicated region
      $region25: #{fcn_forward.7} parent=11 // pred_check
        %p185 = pneg %p133
      $region26: #{fcn_forward.7} parent=11 // pred_check_branch
        %187 = sbr.rel (%p185) target = $region28
      $region27: #{fcn_forward.7} parent=11 // pred_region
        _
      $region28: #{fcn_forward.7} parent=11 // pred_fallthru
        _
    $region12: #{fcn_forward.7} parent=5 // pred_fallthru
      _
    %p188 = scmp.lt.s32.totalorder %s11, 2
    // Predicated region
    $region29: #{fcn_forward.7} parent=5 // pred_check
      %p189 = pneg %p188
    $region30: #{fcn_forward.7} parent=5 // pred_check_branch
      %191 = sbr.rel (%p189) target = $region32
    $region31: #{fcn_forward.7} parent=5 // pred_region
      // Predicated region
      $region33: #{fcn_forward.7} parent=31 // pred_check
        %p192 = pneg %p43
      $region34: #{fcn_forward.7} parent=31 // pred_check_branch
        %194 = sbr.rel (%p192) target = $region36
      $region35: #{fcn_forward.7} parent=31 // pred_region
        %p195 = scmp.lt.s32.totalorder %s18, 1
        %s196 = scalar_select %p195, %s18, 1
        %s197 = smul.addr %s196, 6
        %s198 = smul.addr %s197, 4
        %s199 = scalar_lea.vmem %s0, %s198
      $region36: #{fcn_forward.7} parent=31 // pred_fallthru
        _
    $region32: #{fcn_forward.7} parent=5 // pred_fallthru
      _
    %p200 = scmp.le.s32.totalorder 1, %s11
    %p201 = scmp.lt.s32.totalorder %s11, 3
    %p202 = pnand %p200, %p201
    %p203 = pneg %p202
    // Predicated region
    $region37: #{fcn_forward.7} parent=5 // pred_check
      _
    $region38: #{fcn_forward.7} parent=5 // pred_check_branch
      %205 = sbr.rel (%p202) target = $region40
    $region39: #{fcn_forward.7} parent=5 // pred_region
      %s206 = ssub.s32 %s11, 1
      %p207 = scmp.lt.s32.totalorder %s20, 1
      %s208 = scalar_select %p207, %s20, 1
      %s209 = smul.addr %s208, 6
      %s210 = smul.addr %s209, 4
      %s211 = scalar_lea.vmem %s0, %s210
      %p212 = pneg %p49
      %p213 = pneg %p46
      %p214 = pneg %p70
      %p215 = pneg %p67
      %p216 = pneg %p91
      %p217 = pneg %p88
      %p218 = pneg %p112
      %p219 = pneg %p109
      %p220 = pneg %p133
      %p221 = pneg %p130
      %p222 = pneg %p161
      %p223 = pneg %p158
      %s224 = smul.u32 4, %s21
      %p225 = scmp.lt.s32.totalorder %s20, 1
      %s226 = scalar_select %p225, %s20, 1
      %p227 = scmp.lt.s32.totalorder %s224, 3
      %s228 = scalar_select %p227, %s224, 3
      %s229 = smul.addr %s226, 4
      %s230 = sadd.s32 %s228, %s229
      %s231 = smul.addr %s230, 4
      %s232 = scalar_lea.vmem %s5, %s231
      %p233 = scmp.lt.s32.totalorder %s20, 1
      %s234 = scalar_select %p233, %s20, 1
      %s235 = smul.addr %s234, 6
      %s236 = smul.addr %s235, 4
      %s237 = scalar_lea.vmem %s0, %s236
      %s238 = smul.u32 4, %s21
      %p239 = scmp.lt.s32.totalorder %s20, 1
      %s240 = scalar_select %p239, %s20, 1
      %p241 = scmp.lt.s32.totalorder %s238, 3
      %s242 = scalar_select %p241, %s238, 3
      %s243 = smul.addr %s240, 4
      %s244 = sadd.s32 %s242, %s243
      %s245 = smul.addr %s244, 4
      %s246 = scalar_lea.vmem %s5, %s245
      %s247 = smul.u32 4, %s21
      %s249 = smul.u32 %s21, 4
      %s250 = smul.addr %s249, 4
      %s251 = scalar_lea.vmem %s237, %s250
      %v252 = vld [vmem:[%s251] sm:$0x3]
      %v253 = vld [vmem:[%s251 + $0x4] sm:$0x3]
      %v254 = vld [vmem:[%s251 + $0x8] sm:$0x3]
      %v255 = vld [vmem:[%s251 + $0xc] sm:$0x3]
      %v256 = vld [vmem:[%s1] sm:$0xf]
      %v257 = vld [vmem:[%s1 + $0x4] sm:$0xf]
      %v258 = vld [vmem:[%s251] sm:$0x7]
      %v259 = vld [vmem:[%s251 + $0x4] sm:$0x7]
      %v260 = vld [vmem:[%s251 + $0x8] sm:$0x7]
      %v261 = vld [vmem:[%s251 + $0xc] sm:$0x7]
      %v267 = vunpack.c.l.s4 1983009808
      %v268 = vunpack.c.0.s8 %v267
      %v269 = vlaneseq
      %v270 = vshrl.u32 %v269, 7
      %v271 = vsub.s32 %v268, %v270
      %v272 = vrot.slane %v258, %v271
      %v273 = vcombine.high %v272, %v272
      %v275 = vunpack.c.l.s4 1983009808
      %v276 = vunpack.c.0.s8 %v275
      %v277 = vlaneseq
      %v278 = vshrl.u32 %v277, 7
      %v279 = vsub.s32 %v276, %v278
      %v280 = vrot.slane %v259, %v279
      %v281 = vcombine.high %v280, %v280
      %v283 = vunpack.c.l.s4 1983009808
      %v284 = vunpack.c.0.s8 %v283
      %v285 = vlaneseq
      %v286 = vshrl.u32 %v285, 7
      %v287 = vsub.s32 %v284, %v286
      %v288 = vrot.slane %v260, %v287
      %v289 = vcombine.high %v288, %v288
      %v291 = vunpack.c.l.s4 1983009808
      %v292 = vunpack.c.0.s8 %v291
      %v293 = vlaneseq
      %v294 = vshrl.u32 %v293, 7
      %v295 = vsub.s32 %v292, %v294
      %v296 = vrot.slane %v261, %v295
      %v297 = vcombine.high %v296, %v296
      %vm298 = vsmask.f32 1280
      %vm299 = vsmask.f32 3336
      %vm300 = vmor %vm298, %vm299
      %vm301 = vsmask.f32 5392
      %vm302 = vmor %vm300, %vm301
      %vm303 = vsmask.f32 7448
      %vm304 = vmor %vm302, %vm303
      %v306 = vshrl.u32 %v272, 16
      %v308 = vrot.slane %v306, 6
      %v309 = vshll.u32 %v272, 16
      %v311 = vrot.slane %v309, 7
      %v312 = vor.u32 %v308, %v311
      %v313 = vrot.slane %v312, 2
      %v315 = vshll.u32 %v273, 16
      %v317 = vrot.slane %v315, 7
      %v318 = vsel %vm304, %v313, %v317
      %v320 = vshrl.u32 %v280, 16
      %v322 = vrot.slane %v320, 6
      %v323 = vshll.u32 %v280, 16
      %v325 = vrot.slane %v323, 7
      %v326 = vor.u32 %v322, %v325
      %v327 = vrot.slane %v326, 2
      %v329 = vshll.u32 %v281, 16
      %v331 = vrot.slane %v329, 7
      %v332 = vsel %vm304, %v327, %v331
      %v334 = vshrl.u32 %v288, 16
      %v336 = vrot.slane %v334, 6
      %v337 = vshll.u32 %v288, 16
      %v339 = vrot.slane %v337, 7
      %v340 = vor.u32 %v336, %v339
      %v341 = vrot.slane %v340, 2
      %v343 = vshll.u32 %v289, 16
      %v345 = vrot.slane %v343, 7
      %v346 = vsel %vm304, %v341, %v345
      %v348 = vshrl.u32 %v296, 16
      %v350 = vrot.slane %v348, 6
      %v351 = vshll.u32 %v296, 16
      %v353 = vrot.slane %v351, 7
      %v354 = vor.u32 %v350, %v353
      %v355 = vrot.slane %v354, 2
      %v357 = vshll.u32 %v297, 16
      %v359 = vrot.slane %v357, 7
      %v360 = vsel %vm304, %v355, %v359
      %s361 = scalar_lea.vmem %s1, 8
      %v362 = vld [vmem:[%s361] sm:$0xf]
      %v363 = vld [vmem:[%s361 + $0x4] sm:$0xf]
      %v364 = vcombine.low %v318, %v332
      %v365 = vcombine.low %v346, %v360
      %v367 = vunpack.c.l.s4 1983009808
      %v368 = vunpack.c.0.s8 %v367
      %v369 = vlaneseq
      %v370 = vshrl.u32 %v369, 7
      %v371 = vsub.s32 %v368, %v370
      %v372 = vrot.slane %v364, %v371
      %v374 = vunpack.c.l.s4 1983009808
      %v375 = vunpack.c.0.s8 %v374
      %v376 = vlaneseq
      %v377 = vshrl.u32 %v376, 7
      %v378 = vsub.s32 %v375, %v377
      %v379 = vrot.slane %v365, %v378
      %v380 = vcombine.low %v372, %v379
      %v383 = vunpack.c.l.b16 %v362
      %v384 = vunpack.c.l.b16 %v363
      %v385 = vpack.c.b16 %v384, %v383
      %vm387 = vcmask 130048
      %v389 = vsel %vm387, %v380, 0
      %391 = vmatprep.subr.bf16.mxu0 0
      %392 = vmatpush1.bf16.msra.mxu0 %v385
      %393 = vmatprep.subr.bf16.mxu0 0
      %394 = vmatpush1.bf16.msra.mxu0 0
      %395 = vmatprep.subr.bf16.mxu0 0
      %396 = vmatpush1.bf16.msra.mxu0 0
      %397 = vmatprep.subr.bf16.mxu0 0
      %398 = vmatpush1.bf16.msra.mxu0 0
      %399 = vmatprep.subr.bf16.mxu0 0
      %400 = vmatpush1.bf16.msra.mxu0 0
      %401 = vmatprep.subr.bf16.mxu0 0
      %402 = vmatpush1.bf16.msra.mxu0 0
      %403 = vmatprep.subr.bf16.mxu0 0
      %404 = vmatpush1.bf16.msra.mxu0 0
      %405 = vmatprep.subr.bf16.mxu0 0
      %406 = vmatpush1.bf16.msra.mxu0 0
      %407 = vmatprep.subr.bf16.mxu0 0
      %408 = vmatpush1.bf16.msra.mxu0 0
      %409 = vmatprep.subr.bf16.mxu0 0
      %410 = vmatpush1.bf16.msra.mxu0 0
      %411 = vmatprep.subr.bf16.mxu0 0
      %412 = vmatpush1.bf16.msra.mxu0 0
      %413 = vmatprep.subr.bf16.mxu0 0
      %414 = vmatpush1.bf16.msra.mxu0 0
      %415 = vmatprep.subr.bf16.mxu0 0
      %416 = vmatpush1.bf16.msra.mxu0 0
      %417 = vmatprep.subr.bf16.mxu0 0
      %418 = vmatpush1.bf16.msra.mxu0 0
      %419 = vmatprep.subr.bf16.mxu0 0
      %420 = vmatpush1.bf16.msra.mxu0 0
      %421 = vmatprep.subr.bf16.mxu0 0
      %422 = vmatpush1.bf16.msra.mxu0 0
      %423 = vmatprep.mubr.bf16.mxu0 0
      %424 = vmatmul.mubr.bf16.gmra.mrb[0].mxu0 %v389
      %v425 = vpop.f32.mrb[0].mxu0
      %v426 = vadd.f32 0.0, %v425
      %v427 = vpop.f32.mrb[0].mxu0
      %v428 = vpop.f32.mrb[0].mxu0
      %v429 = vadd.f32 0.0, %v428
      %v430 = vpop.f32.mrb[0].mxu0
      %431 = vdwg.mxu0
      %v436 = vcombine.low %v252, %v253
      %v437 = vcombine.low %v254, %v255
      %v439 = vunpack.c.l.s4 1983009808
      %v440 = vunpack.c.0.s8 %v439
      %v441 = vlaneseq
      %v442 = vshrl.u32 %v441, 7
      %v443 = vsub.s32 %v440, %v442
      %v444 = vrot.slane %v436, %v443
      %v446 = vunpack.c.l.s4 1983009808
      %v447 = vunpack.c.0.s8 %v446
      %v448 = vlaneseq
      %v449 = vshrl.u32 %v448, 7
      %v450 = vsub.s32 %v447, %v449
      %v451 = vrot.slane %v437, %v450
      %v452 = vcombine.low %v444, %v451
      %v455 = vunpack.c.l.b16 %v256
      %v456 = vunpack.c.l.b16 %v257
      %v457 = vpack.c.b16 %v456, %v455
      %v460 = vsel %vm387, %v452, 0
      %462 = vmatprep.subr.bf16.mxu0 0
      %463 = vmatpush1.bf16.msra.mxu0 %v457
      %464 = vmatprep.subr.bf16.mxu0 0
      %465 = vmatpush1.bf16.msra.mxu0 0
      %466 = vmatprep.subr.bf16.mxu0 0
      %467 = vmatpush1.bf16.msra.mxu0 0
      %468 = vmatprep.subr.bf16.mxu0 0
      %469 = vmatpush1.bf16.msra.mxu0 0
      %470 = vmatprep.subr.bf16.mxu0 0
      %471 = vmatpush1.bf16.msra.mxu0 0
      %472 = vmatprep.subr.bf16.mxu0 0
      %473 = vmatpush1.bf16.msra.mxu0 0
      %474 = vmatprep.subr.bf16.mxu0 0
      %475 = vmatpush1.bf16.msra.mxu0 0
      %476 = vmatprep.subr.bf16.mxu0 0
      %477 = vmatpush1.bf16.msra.mxu0 0
      %478 = vmatprep.subr.bf16.mxu0 0
      %479 = vmatpush1.bf16.msra.mxu0 0
      %480 = vmatprep.subr.bf16.mxu0 0
      %481 = vmatpush1.bf16.msra.mxu0 0
      %482 = vmatprep.subr.bf16.mxu0 0
      %483 = vmatpush1.bf16.msra.mxu0 0
      %484 = vmatprep.subr.bf16.mxu0 0
      %485 = vmatpush1.bf16.msra.mxu0 0
      %486 = vmatprep.subr.bf16.mxu0 0
      %487 = vmatpush1.bf16.msra.mxu0 0
      %488 = vmatprep.subr.bf16.mxu0 0
      %489 = vmatpush1.bf16.msra.mxu0 0
      %490 = vmatprep.subr.bf16.mxu0 0
      %491 = vmatpush1.bf16.msra.mxu0 0
      %492 = vmatprep.subr.bf16.mxu0 0
      %493 = vmatpush1.bf16.msra.mxu0 0
      %494 = vmatprep.mubr.bf16.mxu0 0
      %495 = vmatmul.mubr.bf16.gmra.mrb[0].mxu0 %v460
      %v496 = vpop.f32.mrb[0].mxu0
      %v497 = vadd.f32 %v426, %v496
      %v498 = vpop.f32.mrb[0].mxu0
      %v499 = vpop.f32.mrb[0].mxu0
      %v500 = vadd.f32 %v429, %v499
      %v501 = vpop.f32.mrb[0].mxu0
      %502 = vdwg.mxu0
      %v503 = vld [vmem:[%s251] sm:$0x6]
      %v504 = vld [vmem:[%s251 + $0x4] sm:$0x6]
      %v505 = vld [vmem:[%s251 + $0x8] sm:$0x6]
      %v506 = vld [vmem:[%s251 + $0xc] sm:$0x6]
      %v512 = vunpack.c.l.s4 1983009808
      %v513 = vunpack.c.0.s8 %v512
      %v514 = vlaneseq
      %v515 = vshrl.u32 %v514, 7
      %v516 = vsub.s32 %v513, %v515
      %v517 = vrot.slane %v503, %v516
      %v518 = vcombine.high %v517, %v517
      %v520 = vunpack.c.l.s4 1983009808
      %v521 = vunpack.c.0.s8 %v520
      %v522 = vlaneseq
      %v523 = vshrl.u32 %v522, 7
      %v524 = vsub.s32 %v521, %v523
      %v525 = vrot.slane %v504, %v524
      %v526 = vcombine.high %v525, %v525
      %v528 = vunpack.c.l.s4 1983009808
      %v529 = vunpack.c.0.s8 %v528
      %v530 = vlaneseq
      %v531 = vshrl.u32 %v530, 7
      %v532 = vsub.s32 %v529, %v531
      %v533 = vrot.slane %v505, %v532
      %v534 = vcombine.high %v533, %v533
      %v536 = vunpack.c.l.s4 1983009808
      %v537 = vunpack.c.0.s8 %v536
      %v538 = vlaneseq
      %v539 = vshrl.u32 %v538, 7
      %v540 = vsub.s32 %v537, %v539
      %v541 = vrot.slane %v506, %v540
      %v542 = vcombine.high %v541, %v541
      %vm543 = vcmask 1040384
      %vm544 = vcmask 1042434
      %vm545 = vmor %vm543, %vm544
      %vm546 = vcmask 1044484
      %vm547 = vmor %vm545, %vm546
      %vm548 = vcmask 1046534
      %vm549 = vmor %vm547, %vm548
      %v550 = vrot.slane %v517, 7
      %v551 = vrot.slane %v550, 2
      %v552 = vrot.slane %v518, 7
      %v553 = vsel %vm549, %v551, %v552
      %v554 = vrot.slane %v525, 7
      %v555 = vrot.slane %v554, 2
      %v556 = vrot.slane %v526, 7
      %v557 = vsel %vm549, %v555, %v556
      %v558 = vrot.slane %v533, 7
      %v559 = vrot.slane %v558, 2
      %v560 = vrot.slane %v534, 7
      %v561 = vsel %vm549, %v559, %v560
      %v562 = vrot.slane %v541, 7
      %v563 = vrot.slane %v562, 2
      %v564 = vrot.slane %v542, 7
      %v565 = vsel %vm549, %v563, %v564
      %s566 = scalar_lea.vmem %s1, 16
      %v567 = vld [vmem:[%s566] sm:$0xf]
      %v568 = vld [vmem:[%s566 + $0x4] sm:$0xf]
      %v569 = vcombine.low %v553, %v557
      %v570 = vcombine.low %v561, %v565
      %v572 = vunpack.c.l.s4 1983009808
      %v573 = vunpack.c.0.s8 %v572
      %v574 = vlaneseq
      %v575 = vshrl.u32 %v574, 7
      %v576 = vsub.s32 %v573, %v575
      %v577 = vrot.slane %v569, %v576
      %v579 = vunpack.c.l.s4 1983009808
      %v580 = vunpack.c.0.s8 %v579
      %v581 = vlaneseq
      %v582 = vshrl.u32 %v581, 7
      %v583 = vsub.s32 %v580, %v582
      %v584 = vrot.slane %v570, %v583
      %v585 = vcombine.low %v577, %v584
      %v588 = vunpack.c.l.b16 %v567
      %v589 = vunpack.c.l.b16 %v568
      %v590 = vpack.c.b16 %v589, %v588
      %v593 = vsel %vm387, %v585, 0
      %595 = vmatprep.subr.bf16.mxu0 0
      %596 = vmatpush1.bf16.msra.mxu0 %v590
      %597 = vmatprep.subr.bf16.mxu0 0
      %598 = vmatpush1.bf16.msra.mxu0 0
      %599 = vmatprep.subr.bf16.mxu0 0
      %600 = vmatpush1.bf16.msra.mxu0 0
      %601 = vmatprep.subr.bf16.mxu0 0
      %602 = vmatpush1.bf16.msra.mxu0 0
      %603 = vmatprep.subr.bf16.mxu0 0
      %604 = vmatpush1.bf16.msra.mxu0 0
      %605 = vmatprep.subr.bf16.mxu0 0
      %606 = vmatpush1.bf16.msra.mxu0 0
      %607 = vmatprep.subr.bf16.mxu0 0
      %608 = vmatpush1.bf16.msra.mxu0 0
      %609 = vmatprep.subr.bf16.mxu0 0
      %610 = vmatpush1.bf16.msra.mxu0 0
      %611 = vmatprep.subr.bf16.mxu0 0
      %612 = vmatpush1.bf16.msra.mxu0 0
      %613 = vmatprep.subr.bf16.mxu0 0
      %614 = vmatpush1.bf16.msra.mxu0 0
      %615 = vmatprep.subr.bf16.mxu0 0
      %616 = vmatpush1.bf16.msra.mxu0 0
      %617 = vmatprep.subr.bf16.mxu0 0
      %618 = vmatpush1.bf16.msra.mxu0 0
      %619 = vmatprep.subr.bf16.mxu0 0
      %620 = vmatpush1.bf16.msra.mxu0 0
      %621 = vmatprep.subr.bf16.mxu0 0
      %622 = vmatpush1.bf16.msra.mxu0 0
      %623 = vmatprep.subr.bf16.mxu0 0
      %624 = vmatpush1.bf16.msra.mxu0 0
      %625 = vmatprep.subr.bf16.mxu0 0
      %626 = vmatpush1.bf16.msra.mxu0 0
      %627 = vmatprep.mubr.bf16.mxu0 0
      %628 = vmatmul.mubr.bf16.gmra.mrb[0].mxu0 %v593
      %v629 = vpop.f32.mrb[0].mxu0
      %v630 = vadd.f32 0.0, %v629
      %v631 = vpop.f32.mrb[0].mxu0
      %v632 = vpop.f32.mrb[0].mxu0
      %v633 = vadd.f32 0.0, %v632
      %v634 = vpop.f32.mrb[0].mxu0
      %635 = vdwg.mxu0
      %v636 = vadd.f32 %v497, %v630
      %v637 = vadd.f32 %v500, %v633
      %s638 = sadd.s32 %s249, 1
      %s639 = smul.addr %s638, 4
      %s640 = scalar_lea.vmem %s237, %s639
      %v641 = vld [vmem:[%s640] sm:$0x3]
      %v642 = vld [vmem:[%s640 + $0x4] sm:$0x3]
      %v643 = vld [vmem:[%s640 + $0x8] sm:$0x3]
      %v644 = vld [vmem:[%s640 + $0xc] sm:$0x3]
      %s645 = scalar_lea.vmem %s1, 24
      %v646 = vld [vmem:[%s645] sm:$0xf]
      %v647 = vld [vmem:[%s645 + $0x4] sm:$0xf]
      %v652 = vcombine.low %v641, %v642
      %v653 = vcombine.low %v643, %v644
      %v655 = vunpack.c.l.s4 1983009808
      %v656 = vunpack.c.0.s8 %v655
      %v657 = vlaneseq
      %v658 = vshrl.u32 %v657, 7
      %v659 = vsub.s32 %v656, %v658
      %v660 = vrot.slane %v652, %v659
      %v662 = vunpack.c.l.s4 1983009808
      %v663 = vunpack.c.0.s8 %v662
      %v664 = vlaneseq
      %v665 = vshrl.u32 %v664, 7
      %v666 = vsub.s32 %v663, %v665
      %v667 = vrot.slane %v653, %v666
      %v668 = vcombine.low %v660, %v667
      %v671 = vunpack.c.l.b16 %v646
      %v672 = vunpack.c.l.b16 %v647
      %v673 = vpack.c.b16 %v672, %v671
      %v676 = vsel %vm387, %v668, 0
      %678 = vmatprep.subr.bf16.mxu0 0
      %679 = vmatpush1.bf16.msra.mxu0 %v673
      %680 = vmatprep.subr.bf16.mxu0 0
      %681 = vmatpush1.bf16.msra.mxu0 0
      %682 = vmatprep.subr.bf16.mxu0 0
      %683 = vmatpush1.bf16.msra.mxu0 0
      %684 = vmatprep.subr.bf16.mxu0 0
      %685 = vmatpush1.bf16.msra.mxu0 0
      %686 = vmatprep.subr.bf16.mxu0 0
      %687 = vmatpush1.bf16.msra.mxu0 0
      %688 = vmatprep.subr.bf16.mxu0 0
      %689 = vmatpush1.bf16.msra.mxu0 0
      %690 = vmatprep.subr.bf16.mxu0 0
      %691 = vmatpush1.bf16.msra.mxu0 0
      %692 = vmatprep.subr.bf16.mxu0 0
      %693 = vmatpush1.bf16.msra.mxu0 0
      %694 = vmatprep.subr.bf16.mxu0 0
      %695 = vmatpush1.bf16.msra.mxu0 0
      %696 = vmatprep.subr.bf16.mxu0 0
      %697 = vmatpush1.bf16.msra.mxu0 0
      %698 = vmatprep.subr.bf16.mxu0 0
      %699 = vmatpush1.bf16.msra.mxu0 0
      %700 = vmatprep.subr.bf16.mxu0 0
      %701 = vmatpush1.bf16.msra.mxu0 0
      %702 = vmatprep.subr.bf16.mxu0 0
      %703 = vmatpush1.bf16.msra.mxu0 0
      %704 = vmatprep.subr.bf16.mxu0 0
      %705 = vmatpush1.bf16.msra.mxu0 0
      %706 = vmatprep.subr.bf16.mxu0 0
      %707 = vmatpush1.bf16.msra.mxu0 0
      %708 = vmatprep.subr.bf16.mxu0 0
      %709 = vmatpush1.bf16.msra.mxu0 0
      %710 = vmatprep.mubr.bf16.mxu0 0
      %711 = vmatmul.mubr.bf16.gmra.mrb[0].mxu0 %v676
      %v712 = vpop.f32.mrb[0].mxu0
      %v713 = vadd.f32 0.0, %v712
      %v714 = vpop.f32.mrb[0].mxu0
      %v715 = vpop.f32.mrb[0].mxu0
      %v716 = vadd.f32 0.0, %v715
      %v717 = vpop.f32.mrb[0].mxu0
      %718 = vdwg.mxu0
      %v719 = vadd.f32 %v636, %v713
      %v720 = vadd.f32 %v637, %v716
      %v721 = vld [vmem:[%s640] sm:$0x7]
      %v722 = vld [vmem:[%s640 + $0x4] sm:$0x7]
      %v723 = vld [vmem:[%s640 + $0x8] sm:$0x7]
      %v724 = vld [vmem:[%s640 + $0xc] sm:$0x7]
      %v730 = vunpack.c.l.s4 1983009808
      %v731 = vunpack.c.0.s8 %v730
      %v732 = vlaneseq
      %v733 = vshrl.u32 %v732, 7
      %v734 = vsub.s32 %v731, %v733
      %v735 = vrot.slane %v721, %v734
      %v736 = vcombine.high %v735, %v735
      %v738 = vunpack.c.l.s4 1983009808
      %v739 = vunpack.c.0.s8 %v738
      %v740 = vlaneseq
      %v741 = vshrl.u32 %v740, 7
      %v742 = vsub.s32 %v739, %v741
      %v743 = vrot.slane %v722, %v742
      %v744 = vcombine.high %v743, %v743
      %v746 = vunpack.c.l.s4 1983009808
      %v747 = vunpack.c.0.s8 %v746
      %v748 = vlaneseq
      %v749 = vshrl.u32 %v748, 7
      %v750 = vsub.s32 %v747, %v749
      %v751 = vrot.slane %v723, %v750
      %v752 = vcombine.high %v751, %v751
      %v754 = vunpack.c.l.s4 1983009808
      %v755 = vunpack.c.0.s8 %v754
      %v756 = vlaneseq
      %v757 = vshrl.u32 %v756, 7
      %v758 = vsub.s32 %v755, %v757
      %v759 = vrot.slane %v724, %v758
      %v760 = vcombine.high %v759, %v759
      %v762 = vshrl.u32 %v735, 16
      %v764 = vrot.slane %v762, 6
      %v765 = vshll.u32 %v735, 16
      %v767 = vrot.slane %v765, 7
      %v768 = vor.u32 %v764, %v767
      %v769 = vrot.slane %v768, 2
      %v771 = vshll.u32 %v736, 16
      %v773 = vrot.slane %v771, 7
      %v774 = vsel %vm304, %v769, %v773
      %v776 = vshrl.u32 %v743, 16
      %v778 = vrot.slane %v776, 6
      %v779 = vshll.u32 %v743, 16
      %v781 = vrot.slane %v779, 7
      %v782 = vor.u32 %v778, %v781
      %v783 = vrot.slane %v782, 2
      %v785 = vshll.u32 %v744, 16
      %v787 = vrot.slane %v785, 7
      %v788 = vsel %vm304, %v783, %v787
      %v790 = vshrl.u32 %v751, 16
      %v792 = vrot.slane %v790, 6
      %v793 = vshll.u32 %v751, 16
      %v795 = vrot.slane %v793, 7
      %v796 = vor.u32 %v792, %v795
      %v797 = vrot.slane %v796, 2
      %v799 = vshll.u32 %v752, 16
      %v801 = vrot.slane %v799, 7
      %v802 = vsel %vm304, %v797, %v801
      %v804 = vshrl.u32 %v759, 16
      %v806 = vrot.slane %v804, 6
      %v807 = vshll.u32 %v759, 16
      %v809 = vrot.slane %v807, 7
      %v810 = vor.u32 %v806, %v809
      %v811 = vrot.slane %v810, 2
      %v813 = vshll.u32 %v760, 16
      %v815 = vrot.slane %v813, 7
      %v816 = vsel %vm304, %v811, %v815
      %s817 = scalar_lea.vmem %s1, 32
      %v818 = vld [vmem:[%s817] sm:$0xf]
      %v819 = vld [vmem:[%s817 + $0x4] sm:$0xf]
      %v820 = vcombine.low %v774, %v788
      %v821 = vcombine.low %v802, %v816
      %v823 = vunpack.c.l.s4 1983009808
      %v824 = vunpack.c.0.s8 %v823
      %v825 = vlaneseq
      %v826 = vshrl.u32 %v825, 7
      %v827 = vsub.s32 %v824, %v826
      %v828 = vrot.slane %v820, %v827
      %v830 = vunpack.c.l.s4 1983009808
      %v831 = vunpack.c.0.s8 %v830
      %v832 = vlaneseq
      %v833 = vshrl.u32 %v832, 7
      %v834 = vsub.s32 %v831, %v833
      %v835 = vrot.slane %v821, %v834
      %v836 = vcombine.low %v828, %v835
      %v839 = vunpack.c.l.b16 %v818
      %v840 = vunpack.c.l.b16 %v819
      %v841 = vpack.c.b16 %v840, %v839
      %v844 = vsel %vm387, %v836, 0
      %846 = vmatprep.subr.bf16.mxu0 0
      %847 = vmatpush1.bf16.msra.mxu0 %v841
      %848 = vmatprep.subr.bf16.mxu0 0
      %849 = vmatpush1.bf16.msra.mxu0 0
      %850 = vmatprep.subr.bf16.mxu0 0
      %851 = vmatpush1.bf16.msra.mxu0 0
      %852 = vmatprep.subr.bf16.mxu0 0
      %853 = vmatpush1.bf16.msra.mxu0 0
      %854 = vmatprep.subr.bf16.mxu0 0
      %855 = vmatpush1.bf16.msra.mxu0 0
      %856 = vmatprep.subr.bf16.mxu0 0
      %857 = vmatpush1.bf16.msra.mxu0 0
      %858 = vmatprep.subr.bf16.mxu0 0
      %859 = vmatpush1.bf16.msra.mxu0 0
      %860 = vmatprep.subr.bf16.mxu0 0
      %861 = vmatpush1.bf16.msra.mxu0 0
      %862 = vmatprep.subr.bf16.mxu0 0
      %863 = vmatpush1.bf16.msra.mxu0 0
      %864 = vmatprep.subr.bf16.mxu0 0
      %865 = vmatpush1.bf16.msra.mxu0 0
      %866 = vmatprep.subr.bf16.mxu0 0
      %867 = vmatpush1.bf16.msra.mxu0 0
      %868 = vmatprep.subr.bf16.mxu0 0
      %869 = vmatpush1.bf16.msra.mxu0 0
      %870 = vmatprep.subr.bf16.mxu0 0
      %871 = vmatpush1.bf16.msra.mxu0 0
      %872 = vmatprep.subr.bf16.mxu0 0
      %873 = vmatpush1.bf16.msra.mxu0 0
      %874 = vmatprep.subr.bf16.mxu0 0
      %875 = vmatpush1.bf16.msra.mxu0 0
      %876 = vmatprep.subr.bf16.mxu0 0
      %877 = vmatpush1.bf16.msra.mxu0 0
      %878 = vmatprep.mubr.bf16.mxu0 0
      %879 = vmatmul.mubr.bf16.gmra.mrb[0].mxu0 %v844
      %v880 = vpop.f32.mrb[0].mxu0
      %v881 = vadd.f32 0.0, %v880
      %v882 = vpop.f32.mrb[0].mxu0
      %v883 = vpop.f32.mrb[0].mxu0
      %v884 = vadd.f32 0.0, %v883
      %v885 = vpop.f32.mrb[0].mxu0
      %886 = vdwg.mxu0
      %v887 = vadd.f32 %v719, %v881
      %v888 = vadd.f32 %v720, %v884
      %v889 = vld [vmem:[%s640] sm:$0x6]
      %v890 = vld [vmem:[%s640 + $0x4] sm:$0x6]
      %v891 = vld [vmem:[%s640 + $0x8] sm:$0x6]
      %v892 = vld [vmem:[%s640 + $0xc] sm:$0x6]
      %v898 = vunpack.c.l.s4 1983009808
      %v899 = vunpack.c.0.s8 %v898
      %v900 = vlaneseq
      %v901 = vshrl.u32 %v900, 7
      %v902 = vsub.s32 %v899, %v901
      %v903 = vrot.slane %v889, %v902
      %v904 = vcombine.high %v903, %v903
      %v906 = vunpack.c.l.s4 1983009808
      %v907 = vunpack.c.0.s8 %v906
      %v908 = vlaneseq
      %v909 = vshrl.u32 %v908, 7
      %v910 = vsub.s32 %v907, %v909
      %v911 = vrot.slane %v890, %v910
      %v912 = vcombine.high %v911, %v911
      %v914 = vunpack.c.l.s4 1983009808
      %v915 = vunpack.c.0.s8 %v914
      %v916 = vlaneseq
      %v917 = vshrl.u32 %v916, 7
      %v918 = vsub.s32 %v915, %v917
      %v919 = vrot.slane %v891, %v918
      %v920 = vcombine.high %v919, %v919
      %v922 = vunpack.c.l.s4 1983009808
      %v923 = vunpack.c.0.s8 %v922
      %v924 = vlaneseq
      %v925 = vshrl.u32 %v924, 7
      %v926 = vsub.s32 %v923, %v925
      %v927 = vrot.slane %v892, %v926
      %v928 = vcombine.high %v927, %v927
      %v929 = vrot.slane %v903, 7
      %v930 = vrot.slane %v929, 2
      %v931 = vrot.slane %v904, 7
      %v932 = vsel %vm549, %v930, %v931
      %v933 = vrot.slane %v911, 7
      %v934 = vrot.slane %v933, 2
      %v935 = vrot.slane %v912, 7
      %v936 = vsel %vm549, %v934, %v935
      %v937 = vrot.slane %v919, 7
      %v938 = vrot.slane %v937, 2
      %v939 = vrot.slane %v920, 7
      %v940 = vsel %vm549, %v938, %v939
      %v941 = vrot.slane %v927, 7
      %v942 = vrot.slane %v941, 2
      %v943 = vrot.slane %v928, 7
      %v944 = vsel %vm549, %v942, %v943
      %s945 = scalar_lea.vmem %s1, 40
      %v946 = vld [vmem:[%s945] sm:$0xf]
      %v947 = vld [vmem:[%s945 + $0x4] sm:$0xf]
      %v948 = vcombine.low %v932, %v936
      %v949 = vcombine.low %v940, %v944
      %v951 = vunpack.c.l.s4 1983009808
      %v952 = vunpack.c.0.s8 %v951
      %v953 = vlaneseq
      %v954 = vshrl.u32 %v953, 7
      %v955 = vsub.s32 %v952, %v954
      %v956 = vrot.slane %v948, %v955
      %v958 = vunpack.c.l.s4 1983009808
      %v959 = vunpack.c.0.s8 %v958
      %v960 = vlaneseq
      %v961 = vshrl.u32 %v960, 7
      %v962 = vsub.s32 %v959, %v961
      %v963 = vrot.slane %v949, %v962
      %v964 = vcombine.low %v956, %v963
      %v967 = vunpack.c.l.b16 %v946
      %v968 = vunpack.c.l.b16 %v947
      %v969 = vpack.c.b16 %v968, %v967
      %v972 = vsel %vm387, %v964, 0
      %974 = vmatprep.subr.bf16.mxu0 0
      %975 = vmatpush1.bf16.msra.mxu0 %v969
      %976 = vmatprep.subr.bf16.mxu0 0
      %977 = vmatpush1.bf16.msra.mxu0 0
      %978 = vmatprep.subr.bf16.mxu0 0
      %979 = vmatpush1.bf16.msra.mxu0 0
      %980 = vmatprep.subr.bf16.mxu0 0
      %981 = vmatpush1.bf16.msra.mxu0 0
      %982 = vmatprep.subr.bf16.mxu0 0
      %983 = vmatpush1.bf16.msra.mxu0 0
      %984 = vmatprep.subr.bf16.mxu0 0
      %985 = vmatpush1.bf16.msra.mxu0 0
      %986 = vmatprep.subr.bf16.mxu0 0
      %987 = vmatpush1.bf16.msra.mxu0 0
      %988 = vmatprep.subr.bf16.mxu0 0
      %989 = vmatpush1.bf16.msra.mxu0 0
      %990 = vmatprep.subr.bf16.mxu0 0
      %991 = vmatpush1.bf16.msra.mxu0 0
      %992 = vmatprep.subr.bf16.mxu0 0
      %993 = vmatpush1.bf16.msra.mxu0 0
      %994 = vmatprep.subr.bf16.mxu0 0
      %995 = vmatpush1.bf16.msra.mxu0 0
      %996 = vmatprep.subr.bf16.mxu0 0
      %997 = vmatpush1.bf16.msra.mxu0 0
      %998 = vmatprep.subr.bf16.mxu0 0
      %999 = vmatpush1.bf16.msra.mxu0 0
      %1000 = vmatprep.subr.bf16.mxu0 0
      %1001 = vmatpush1.bf16.msra.mxu0 0
      %1002 = vmatprep.subr.bf16.mxu0 0
      %1003 = vmatpush1.bf16.msra.mxu0 0
      %1004 = vmatprep.subr.bf16.mxu0 0
      %1005 = vmatpush1.bf16.msra.mxu0 0
      %1006 = vmatprep.mubr.bf16.mxu0 0
      %1007 = vmatmul.mubr.bf16.gmra.mrb[0].mxu0 %v972
      %v1008 = vpop.f32.mrb[0].mxu0
      %v1009 = vadd.f32 0.0, %v1008
      %v1010 = vpop.f32.mrb[0].mxu0
      %v1011 = vpop.f32.mrb[0].mxu0
      %v1012 = vadd.f32 0.0, %v1011
      %v1013 = vpop.f32.mrb[0].mxu0
      %1014 = vdwg.mxu0
      %v1015 = vadd.f32 %v887, %v1009
      %v1016 = vadd.f32 %v888, %v1012
      %s1017 = sadd.s32 %s249, 2
      %s1018 = smul.addr %s1017, 4
      %s1019 = scalar_lea.vmem %s237, %s1018
      %v1020 = vld [vmem:[%s1019] sm:$0x3]
      %v1021 = vld [vmem:[%s1019 + $0x4] sm:$0x3]
      %v1022 = vld [vmem:[%s1019 + $0x8] sm:$0x3]
      %v1023 = vld [vmem:[%s1019 + $0xc] sm:$0x3]
      %s1024 = scalar_lea.vmem %s1, 48
      %v1025 = vld [vmem:[%s1024] sm:$0xf]
      %v1026 = vld [vmem:[%s1024 + $0x4] sm:$0xf]
      %v1031 = vcombine.low %v1020, %v1021
      %v1032 = vcombine.low %v1022, %v1023
      %v1034 = vunpack.c.l.s4 1983009808
      %v1035 = vunpack.c.0.s8 %v1034
      %v1036 = vlaneseq
      %v1037 = vshrl.u32 %v1036, 7
      %v1038 = vsub.s32 %v1035, %v1037
      %v1039 = vrot.slane %v1031, %v1038
      %v1041 = vunpack.c.l.s4 1983009808
      %v1042 = vunpack.c.0.s8 %v1041
      %v1043 = vlaneseq
      %v1044 = vshrl.u32 %v1043, 7
      %v1045 = vsub.s32 %v1042, %v1044
      %v1046 = vrot.slane %v1032, %v1045
      %v1047 = vcombine.low %v1039, %v1046
      %v1050 = vunpack.c.l.b16 %v1025
      %v1051 = vunpack.c.l.b16 %v1026
      %v1052 = vpack.c.b16 %v1051, %v1050
      %v1055 = vsel %vm387, %v1047, 0
      %1057 = vmatprep.subr.bf16.mxu0 0
      %1058 = vmatpush1.bf16.msra.mxu0 %v1052
      %1059 = vmatprep.subr.bf16.mxu0 0
      %1060 = vmatpush1.bf16.msra.mxu0 0
      %1061 = vmatprep.subr.bf16.mxu0 0
      %1062 = vmatpush1.bf16.msra.mxu0 0
      %1063 = vmatprep.subr.bf16.mxu0 0
      %1064 = vmatpush1.bf16.msra.mxu0 0
      %1065 = vmatprep.subr.bf16.mxu0 0
      %1066 = vmatpush1.bf16.msra.mxu0 0
      %1067 = vmatprep.subr.bf16.mxu0 0
      %1068 = vmatpush1.bf16.msra.mxu0 0
      %1069 = vmatprep.subr.bf16.mxu0 0
      %1070 = vmatpush1.bf16.msra.mxu0 0
      %1071 = vmatprep.subr.bf16.mxu0 0
      %1072 = vmatpush1.bf16.msra.mxu0 0
      %1073 = vmatprep.subr.bf16.mxu0 0
      %1074 = vmatpush1.bf16.msra.mxu0 0
      %1075 = vmatprep.subr.bf16.mxu0 0
      %1076 = vmatpush1.bf16.msra.mxu0 0
      %1077 = vmatprep.subr.bf16.mxu0 0
      %1078 = vmatpush1.bf16.msra.mxu0 0
      %1079 = vmatprep.subr.bf16.mxu0 0
      %1080 = vmatpush1.bf16.msra.mxu0 0
      %1081 = vmatprep.subr.bf16.mxu0 0
      %1082 = vmatpush1.bf16.msra.mxu0 0
      %1083 = vmatprep.subr.bf16.mxu0 0
      %1084 = vmatpush1.bf16.msra.mxu0 0
      %1085 = vmatprep.subr.bf16.mxu0 0
      %1086 = vmatpush1.bf16.msra.mxu0 0
      %1087 = vmatprep.subr.bf16.mxu0 0
      %1088 = vmatpush1.bf16.msra.mxu0 0
      %1089 = vmatprep.mubr.bf16.mxu0 0
      %1090 = vmatmul.mubr.bf16.gmra.mrb[0].mxu0 %v1055
      %v1091 = vpop.f32.mrb[0].mxu0
      %v1092 = vadd.f32 0.0, %v1091
      %v1093 = vpop.f32.mrb[0].mxu0
      %v1094 = vpop.f32.mrb[0].mxu0
      %v1095 = vadd.f32 0.0, %v1094
      %v1096 = vpop.f32.mrb[0].mxu0
      %1097 = vdwg.mxu0
      %v1098 = vadd.f32 %v1015, %v1092
      %v1099 = vadd.f32 %v1016, %v1095
      %v1100 = vld [vmem:[%s1019] sm:$0x7]
      %v1101 = vld [vmem:[%s1019 + $0x4] sm:$0x7]
      %v1102 = vld [vmem:[%s1019 + $0x8] sm:$0x7]
      %v1103 = vld [vmem:[%s1019 + $0xc] sm:$0x7]
      %v1109 = vunpack.c.l.s4 1983009808
      %v1110 = vunpack.c.0.s8 %v1109
      %v1111 = vlaneseq
      %v1112 = vshrl.u32 %v1111, 7
      %v1113 = vsub.s32 %v1110, %v1112
      %v1114 = vrot.slane %v1100, %v1113
      %v1115 = vcombine.high %v1114, %v1114
      %v1117 = vunpack.c.l.s4 1983009808
      %v1118 = vunpack.c.0.s8 %v1117
      %v1119 = vlaneseq
      %v1120 = vshrl.u32 %v1119, 7
      %v1121 = vsub.s32 %v1118, %v1120
      %v1122 = vrot.slane %v1101, %v1121
      %v1123 = vcombine.high %v1122, %v1122
      %v1125 = vunpack.c.l.s4 1983009808
      %v1126 = vunpack.c.0.s8 %v1125
      %v1127 = vlaneseq
      %v1128 = vshrl.u32 %v1127, 7
      %v1129 = vsub.s32 %v1126, %v1128
      %v1130 = vrot.slane %v1102, %v1129
      %v1131 = vcombine.high %v1130, %v1130
      %v1133 = vunpack.c.l.s4 1983009808
      %v1134 = vunpack.c.0.s8 %v1133
      %v1135 = vlaneseq
      %v1136 = vshrl.u32 %v1135, 7
      %v1137 = vsub.s32 %v1134, %v1136
      %v1138 = vrot.slane %v1103, %v1137
      %v1139 = vcombine.high %v1138, %v1138
      %v1141 = vshrl.u32 %v1114, 16
      %v1143 = vrot.slane %v1141, 6
      %v1144 = vshll.u32 %v1114, 16
      %v1146 = vrot.slane %v1144, 7
      %v1147 = vor.u32 %v1143, %v1146
      %v1148 = vrot.slane %v1147, 2
      %v1150 = vshll.u32 %v1115, 16
      %v1152 = vrot.slane %v1150, 7
      %v1153 = vsel %vm304, %v1148, %v1152
      %v1155 = vshrl.u32 %v1122, 16
      %v1157 = vrot.slane %v1155, 6
      %v1158 = vshll.u32 %v1122, 16
      %v1160 = vrot.slane %v1158, 7
      %v1161 = vor.u32 %v1157, %v1160
      %v1162 = vrot.slane %v1161, 2
      %v1164 = vshll.u32 %v1123, 16
      %v1166 = vrot.slane %v1164, 7
      %v1167 = vsel %vm304, %v1162, %v1166
      %v1169 = vshrl.u32 %v1130, 16
      %v1171 = vrot.slane %v1169, 6
      %v1172 = vshll.u32 %v1130, 16
      %v1174 = vrot.slane %v1172, 7
      %v1175 = vor.u32 %v1171, %v1174
      %v1176 = vrot.slane %v1175, 2
      %v1178 = vshll.u32 %v1131, 16
      %v1180 = vrot.slane %v1178, 7
      %v1181 = vsel %vm304, %v1176, %v1180
      %v1183 = vshrl.u32 %v1138, 16
      %v1185 = vrot.slane %v1183, 6
      %v1186 = vshll.u32 %v1138, 16
      %v1188 = vrot.slane %v1186, 7
      %v1189 = vor.u32 %v1185, %v1188
      %v1190 = vrot.slane %v1189, 2
      %v1192 = vshll.u32 %v1139, 16
      %v1194 = vrot.slane %v1192, 7
      %v1195 = vsel %vm304, %v1190, %v1194
      %s1196 = scalar_lea.vmem %s1, 56
      %v1197 = vld [vmem:[%s1196] sm:$0xf]
      %v1198 = vld [vmem:[%s1196 + $0x4] sm:$0xf]
      %v1199 = vcombine.low %v1153, %v1167
      %v1200 = vcombine.low %v1181, %v1195
      %v1202 = vunpack.c.l.s4 1983009808
      %v1203 = vunpack.c.0.s8 %v1202
      %v1204 = vlaneseq
      %v1205 = vshrl.u32 %v1204, 7
      %v1206 = vsub.s32 %v1203, %v1205
      %v1207 = vrot.slane %v1199, %v1206
      %v1209 = vunpack.c.l.s4 1983009808
      %v1210 = vunpack.c.0.s8 %v1209
      %v1211 = vlaneseq
      %v1212 = vshrl.u32 %v1211, 7
      %v1213 = vsub.s32 %v1210, %v1212
      %v1214 = vrot.slane %v1200, %v1213
      %v1215 = vcombine.low %v1207, %v1214
      %v1218 = vunpack.c.l.b16 %v1197
      %v1219 = vunpack.c.l.b16 %v1198
      %v1220 = vpack.c.b16 %v1219, %v1218
      %v1223 = vsel %vm387, %v1215, 0
      %1225 = vmatprep.subr.bf16.mxu0 0
      %1226 = vmatpush1.bf16.msra.mxu0 %v1220
      %1227 = vmatprep.subr.bf16.mxu0 0
      %1228 = vmatpush1.bf16.msra.mxu0 0
      %1229 = vmatprep.subr.bf16.mxu0 0
      %1230 = vmatpush1.bf16.msra.mxu0 0
      %1231 = vmatprep.subr.bf16.mxu0 0
      %1232 = vmatpush1.bf16.msra.mxu0 0
      %1233 = vmatprep.subr.bf16.mxu0 0
      %1234 = vmatpush1.bf16.msra.mxu0 0
      %1235 = vmatprep.subr.bf16.mxu0 0
      %1236 = vmatpush1.bf16.msra.mxu0 0
      %1237 = vmatprep.subr.bf16.mxu0 0
      %1238 = vmatpush1.bf16.msra.mxu0 0
      %1239 = vmatprep.subr.bf16.mxu0 0
      %1240 = vmatpush1.bf16.msra.mxu0 0
      %1241 = vmatprep.subr.bf16.mxu0 0
      %1242 = vmatpush1.bf16.msra.mxu0 0
      %1243 = vmatprep.subr.bf16.mxu0 0
      %1244 = vmatpush1.bf16.msra.mxu0 0
      %1245 = vmatprep.subr.bf16.mxu0 0
      %1246 = vmatpush1.bf16.msra.mxu0 0
      %1247 = vmatprep.subr.bf16.mxu0 0
      %1248 = vmatpush1.bf16.msra.mxu0 0
      %1249 = vmatprep.subr.bf16.mxu0 0
      %1250 = vmatpush1.bf16.msra.mxu0 0
      %1251 = vmatprep.subr.bf16.mxu0 0
      %1252 = vmatpush1.bf16.msra.mxu0 0
      %1253 = vmatprep.subr.bf16.mxu0 0
      %1254 = vmatpush1.bf16.msra.mxu0 0
      %1255 = vmatprep.subr.bf16.mxu0 0
      %1256 = vmatpush1.bf16.msra.mxu0 0
      %1257 = vmatprep.mubr.bf16.mxu0 0
      %1258 = vmatmul.mubr.bf16.gmra.mrb[0].mxu0 %v1223
      %v1259 = vpop.f32.mrb[0].mxu0
      %v1260 = vadd.f32 0.0, %v1259
      %v1261 = vpop.f32.mrb[0].mxu0
      %v1262 = vpop.f32.mrb[0].mxu0
      %v1263 = vadd.f32 0.0, %v1262
      %v1264 = vpop.f32.mrb[0].mxu0
      %1265 = vdwg.mxu0
      %v1266 = vadd.f32 %v1098, %v1260
      %v1267 = vadd.f32 %v1099, %v1263
      %v1268 = vld [vmem:[%s1019] sm:$0x6]
      %v1269 = vld [vmem:[%s1019 + $0x4] sm:$0x6]
      %v1270 = vld [vmem:[%s1019 + $0x8] sm:$0x6]
      %v1271 = vld [vmem:[%s1019 + $0xc] sm:$0x6]
      %v1277 = vunpack.c.l.s4 1983009808
      %v1278 = vunpack.c.0.s8 %v1277
      %v1279 = vlaneseq
      %v1280 = vshrl.u32 %v1279, 7
      %v1281 = vsub.s32 %v1278, %v1280
      %v1282 = vrot.slane %v1268, %v1281
      %v1283 = vcombine.high %v1282, %v1282
      %v1285 = vunpack.c.l.s4 1983009808
      %v1286 = vunpack.c.0.s8 %v1285
      %v1287 = vlaneseq
      %v1288 = vshrl.u32 %v1287, 7
      %v1289 = vsub.s32 %v1286, %v1288
      %v1290 = vrot.slane %v1269, %v1289
      %v1291 = vcombine.high %v1290, %v1290
      %v1293 = vunpack.c.l.s4 1983009808
      %v1294 = vunpack.c.0.s8 %v1293
      %v1295 = vlaneseq
      %v1296 = vshrl.u32 %v1295, 7
      %v1297 = vsub.s32 %v1294, %v1296
      %v1298 = vrot.slane %v1270, %v1297
      %v1299 = vcombine.high %v1298, %v1298
      %v1301 = vunpack.c.l.s4 1983009808
      %v1302 = vunpack.c.0.s8 %v1301
      %v1303 = vlaneseq
      %v1304 = vshrl.u32 %v1303, 7
      %v1305 = vsub.s32 %v1302, %v1304
      %v1306 = vrot.slane %v1271, %v1305
      %v1307 = vcombine.high %v1306, %v1306
      %v1308 = vrot.slane %v1282, 7
      %v1309 = vrot.slane %v1308, 2
      %v1310 = vrot.slane %v1283, 7
      %v1311 = vsel %vm549, %v1309, %v1310
      %v1312 = vrot.slane %v1290, 7
      %v1313 = vrot.slane %v1312, 2
      %v1314 = vrot.slane %v1291, 7
      %v1315 = vsel %vm549, %v1313, %v1314
      %v1316 = vrot.slane %v1298, 7
      %v1317 = vrot.slane %v1316, 2
      %v1318 = vrot.slane %v1299, 7
      %v1319 = vsel %vm549, %v1317, %v1318
      %v1320 = vrot.slane %v1306, 7
      %v1321 = vrot.slane %v1320, 2
      %v1322 = vrot.slane %v1307, 7
      %v1323 = vsel %vm549, %v1321, %v1322
      %s1324 = scalar_lea.vmem %s1, 64
      %v1325 = vld [vmem:[%s1324] sm:$0xf]
      %v1326 = vld [vmem:[%s1324 + $0x4] sm:$0xf]
      %v1327 = vcombine.low %v1311, %v1315
      %v1328 = vcombine.low %v1319, %v1323
      %v1330 = vunpack.c.l.s4 1983009808
      %v1331 = vunpack.c.0.s8 %v1330
      %v1332 = vlaneseq
      %v1333 = vshrl.u32 %v1332, 7
      %v1334 = vsub.s32 %v1331, %v1333
      %v1335 = vrot.slane %v1327, %v1334
      %v1337 = vunpack.c.l.s4 1983009808
      %v1338 = vunpack.c.0.s8 %v1337
      %v1339 = vlaneseq
      %v1340 = vshrl.u32 %v1339, 7
      %v1341 = vsub.s32 %v1338, %v1340
      %v1342 = vrot.slane %v1328, %v1341
      %v1343 = vcombine.low %v1335, %v1342
      %v1346 = vunpack.c.l.b16 %v1325
      %v1347 = vunpack.c.l.b16 %v1326
      %v1348 = vpack.c.b16 %v1347, %v1346
      %v1351 = vsel %vm387, %v1343, 0
      %1353 = vmatprep.subr.bf16.mxu0 0
      %1354 = vmatpush1.bf16.msra.mxu0 %v1348
      %1355 = vmatprep.subr.bf16.mxu0 0
      %1356 = vmatpush1.bf16.msra.mxu0 0
      %1357 = vmatprep.subr.bf16.mxu0 0
      %1358 = vmatpush1.bf16.msra.mxu0 0
      %1359 = vmatprep.subr.bf16.mxu0 0
      %1360 = vmatpush1.bf16.msra.mxu0 0
      %1361 = vmatprep.subr.bf16.mxu0 0
      %1362 = vmatpush1.bf16.msra.mxu0 0
      %1363 = vmatprep.subr.bf16.mxu0 0
      %1364 = vmatpush1.bf16.msra.mxu0 0
      %1365 = vmatprep.subr.bf16.mxu0 0
      %1366 = vmatpush1.bf16.msra.mxu0 0
      %1367 = vmatprep.subr.bf16.mxu0 0
      %1368 = vmatpush1.bf16.msra.mxu0 0
      %1369 = vmatprep.subr.bf16.mxu0 0
      %1370 = vmatpush1.bf16.msra.mxu0 0
      %1371 = vmatprep.subr.bf16.mxu0 0
      %1372 = vmatpush1.bf16.msra.mxu0 0
      %1373 = vmatprep.subr.bf16.mxu0 0
      %1374 = vmatpush1.bf16.msra.mxu0 0
      %1375 = vmatprep.subr.bf16.mxu0 0
      %1376 = vmatpush1.bf16.msra.mxu0 0
      %1377 = vmatprep.subr.bf16.mxu0 0
      %1378 = vmatpush1.bf16.msra.mxu0 0
      %1379 = vmatprep.subr.bf16.mxu0 0
      %1380 = vmatpush1.bf16.msra.mxu0 0
      %1381 = vmatprep.subr.bf16.mxu0 0
      %1382 = vmatpush1.bf16.msra.mxu0 0
      %1383 = vmatprep.subr.bf16.mxu0 0
      %1384 = vmatpush1.bf16.msra.mxu0 0
      %1385 = vmatprep.mubr.bf16.mxu0 0
      %1386 = vmatmul.mubr.bf16.gmra.mrb[0].mxu0 %v1351
      %v1387 = vpop.f32.mrb[0].mxu0
      %v1388 = vadd.f32 0.0, %v1387
      %v1389 = vpop.f32.mrb[0].mxu0
      %v1390 = vpop.f32.mrb[0].mxu0
      %v1391 = vadd.f32 0.0, %v1390
      %v1392 = vpop.f32.mrb[0].mxu0
      %1393 = vdwg.mxu0
      %v1394 = vadd.f32 %v1266, %v1388
      %v1395 = vadd.f32 %v1267, %v1391
      %v1396 = vld [vmem:[%s2] sm:$0x1]
      %v1398 = vlaneseq
      %v1399 = vshrl.u32 %v1398, 7
      %v1400 = vsub.s32 0, %v1399
      %v1401 = vrot.slane %v1396, %v1400
      %v1403 = vadd.f32 %v1394, %v1401
      %v1404 = vadd.f32 %v1395, %v1401
      %v1405 = vmax.f32 %v1403, 0.0
      %v1406 = vmax.f32 %v1404, 0.0
      %v1407 = vpack.c.bf16 %v1406, %v1405
      %v1408 = vld [vmem:[%s3] sm:$0xf]
      %v1409 = vld [vmem:[%s4] sm:$0x1]
      %v1411 = vlaneseq
      %v1412 = vshrl.u32 %v1411, 7
      %v1413 = vsub.s32 0, %v1412
      %v1414 = vrot.slane %v1409, %v1413
      %vm1416 = vcmask 64512
      %v1418 = vsel %vm1416, %v1407, 0
      %vm1420 = vcmask 1043456
      %v1422 = vsel %vm1420, %v1408, 0
      %1424 = vmatprep.subr.bf16.mxu0 0
      %1425 = vmatpush1.bf16.msra.mxu0 %v1422
      %1426 = vmatprep.subr.bf16.mxu0 0
      %1427 = vmatpush1.bf16.msra.mxu0 0
      %1428 = vmatprep.subr.bf16.mxu0 0
      %1429 = vmatpush1.bf16.msra.mxu0 0
      %1430 = vmatprep.subr.bf16.mxu0 0
      %1431 = vmatpush1.bf16.msra.mxu0 0
      %1432 = vmatprep.subr.bf16.mxu0 0
      %1433 = vmatpush1.bf16.msra.mxu0 0
      %1434 = vmatprep.subr.bf16.mxu0 0
      %1435 = vmatpush1.bf16.msra.mxu0 0
      %1436 = vmatprep.subr.bf16.mxu0 0
      %1437 = vmatpush1.bf16.msra.mxu0 0
      %1438 = vmatprep.subr.bf16.mxu0 0
      %1439 = vmatpush1.bf16.msra.mxu0 0
      %1440 = vmatprep.subr.bf16.mxu0 0
      %1441 = vmatpush1.bf16.msra.mxu0 0
      %1442 = vmatprep.subr.bf16.mxu0 0
      %1443 = vmatpush1.bf16.msra.mxu0 0
      %1444 = vmatprep.subr.bf16.mxu0 0
      %1445 = vmatpush1.bf16.msra.mxu0 0
      %1446 = vmatprep.subr.bf16.mxu0 0
      %1447 = vmatpush1.bf16.msra.mxu0 0
      %1448 = vmatprep.subr.bf16.mxu0 0
      %1449 = vmatpush1.bf16.msra.mxu0 0
      %1450 = vmatprep.subr.bf16.mxu0 0
      %1451 = vmatpush1.bf16.msra.mxu0 0
      %1452 = vmatprep.subr.bf16.mxu0 0
      %1453 = vmatpush1.bf16.msra.mxu0 0
      %1454 = vmatprep.subr.bf16.mxu0 0
      %1455 = vmatpush1.bf16.msra.mxu0 0
      %1456 = vmatprep.mubr.bf16.mxu0 0
      %1457 = vmatmul.mubr.bf16.gmra.mrb[0].mxu0 %v1418
      %v1458 = vpop.f32.mrb[0].mxu0
      %v1459 = vadd.f32 %v1414, %v1458
      %v1460 = vpop.f32.mrb[0].mxu0
      %v1461 = vpop.f32.mrb[0].mxu0
      %v1462 = vadd.f32 %v1414, %v1461
      %v1463 = vpop.f32.mrb[0].mxu0
      %1464 = vdwg.mxu0
      %v1467 = vcombine.high %v1459, %v1459
      %v1468 = vcombine.high %v1462, %v1462
      %vm1471 = vcmask 44032
      %1472 = vst.msk [vmem:[%s246] sm:$0xf] %vm1471, %v1459
      %1473 = vst.msk [vmem:[%s246 + $0x4] sm:$0xf] %vm1471, %v1467
      %1474 = vst.msk [vmem:[%s246 + $0x8] sm:$0xf] %vm1471, %v1462
      %1475 = vst.msk [vmem:[%s246 + $0xc] sm:$0xf] %vm1471, %v1468
      %s1476 = smul.u32 4, %s21
      %p1477 = scmp.lt.s32.totalorder %s20, 1
      %s1478 = scalar_select %p1477, %s20, 1
      %p1479 = scmp.lt.s32.totalorder %s1476, 3
      %s1480 = scalar_select %p1479, %s1476, 3
      %s1481 = smul.addr %s1478, 4
      %s1482 = sadd.s32 %s1480, %s1481
      %s1483 = smul.addr %s1482, 4
      %s1484 = scalar_lea.vmem %s5, %s1483
      // Predicated region
      $region41: #{fcn_forward.7} parent=39 // pred_check
        %p1485 = pneg %p158
      $region42: #{fcn_forward.7} parent=39 // pred_check_branch
        %1487 = sbr.rel (%p1485) target = $region44
      $region43: #{fcn_forward.7} parent=39 // pred_region
        %s1488 = smul.u32 4, %s21
      $region44: #{fcn_forward.7} parent=39 // pred_fallthru
        _
    $region40: #{fcn_forward.7} parent=5 // pred_fallthru
      _
    %p1489 = scmp.le.s32.totalorder 2, %s11
    // Predicated region
    $region45: #{fcn_forward.7} parent=5 // pred_check
      %p1490 = pneg %p1489
    $region46: #{fcn_forward.7} parent=5 // pred_check_branch
      %1492 = sbr.rel (%p1490) target = $region48
    $region47: #{fcn_forward.7} parent=5 // pred_region
      %s1493 = ssub.s32 %s11, 2
      // Predicated region
      $region49: #{fcn_forward.7} parent=47 // pred_check
        %p1494 = pneg %p164
      $region50: #{fcn_forward.7} parent=47 // pred_check_branch
        %1496 = sbr.rel (%p1494) target = $region52
      $region51: #{fcn_forward.7} parent=47 // pred_region
        %s1497 = smul.u32 4, %s23
        %p1498 = scmp.lt.s32.totalorder %s22, 1
        %s1499 = scalar_select %p1498, %s22, 1
        %p1500 = scmp.lt.s32.totalorder %s1497, 3
        %s1501 = scalar_select %p1500, %s1497, 3
        %s1502 = smul.addr %s1499, 4
        %s1503 = sadd.s32 %s1501, %s1502
        %s1504 = smul.addr %s1503, 4
        %s1505 = scalar_lea.vmem %s5, %s1504
      $region52: #{fcn_forward.7} parent=47 // pred_fallthru
        _
    $region48: #{fcn_forward.7} parent=5 // pred_fallthru
      _
  $region6: #{fcn_forward.7} parent=0 // loop_footer
    %s15 = sadd.s32 1, %s11
  $region7: #{fcn_forward.7} parent=0 // loop_footer_branch
    %10 = sbr.rel target = $region3
  $region8: #{fcn_forward.7} parent=0 // loop_exit
    _

// kernel: fcn_forward.8
$region0: #{fcn_forward.8}
  #allocation0 [shape = 'u32[]', space=smem, size = 0x4, offset = 0x4, fixed_abs, tag = 'smem constant byte address 0x4 - core index']
  #allocation1 [shape = 'u32[144,128]{1,0:T(1,128)}', space=vmem, size = 0x12000, scoped, tag = 'internal scratch']
  %s0 = inlined_call_operand.vmem [shape: bf16[2,10,10,8], index: 0, kind: input, shape index: {}]
  %s1 = inlined_call_operand.vmem [shape: bf16[9,8,4], index: 1, kind: input, shape index: {}]
  %s2 = inlined_call_operand.vmem [shape: f32[1,4], index: 2, kind: input, shape index: {}]
  %s3 = inlined_call_operand.vmem [shape: bf16[4,6], index: 3, kind: input, shape index: {}]
  %s4 = inlined_call_operand.vmem [shape: f32[1,6], index: 4, kind: input, shape index: {}]
  %s5 = inlined_call_operand.vmem [shape: f32[2,8,8,6], index: 5, kind: output, shape index: {}]
  %s6 = sld [smem:[#allocation0]]
  $region53: #{fcn_forward.8} parent=0
    _
  %s8 = ssub.s32 1, %s6
  %s9 = scalar_select 0, %s8, %s6
  loop: start=0, step=1, limit=4
  $region2: #{fcn_forward.8} parent=0 // loop_pre_header
    _
  $region3: #{fcn_forward.8} parent=0 // loop_header
    %s11 = sphi 0, %s15
    %p12 = scmp.ge.s32.totalorder %s11, 4
    %s18 = sphi 0, %s30
    %s19 = sphi 0, %s26
    %s20 = sphi 0, %s18
    %s21 = sphi 0, %s19
    %s22 = sphi 0, %s20
    %s23 = sphi 0, %s21
    %s33 = sphi 0, %s35
    %s36 = sphi 0, %s33
    %s37 = sphi 0, %s36
    %s53 = sphi 0, %s37
    %s57 = sphi 0, %s57
    %s59 = sphi 0, %s57
    %s60 = sphi 0, %s59
    %s74 = sphi 0, %s60
    %s78 = sphi 0, %s78
    %s80 = sphi 0, %s78
    %s81 = sphi 0, %s80
    %s95 = sphi 0, %s81
    %s99 = sphi 0, %s99
    %s101 = sphi 0, %s99
    %s102 = sphi 0, %s101
    %s116 = sphi 0, %s102
    %s120 = sphi 0, %s120
    %s122 = sphi 0, %s120
    %s123 = sphi 0, %s122
    %s137 = sphi 0, %s123
    %s145 = sphi 0, %s147
    %s148 = sphi 0, %s145
    %s149 = sphi 0, %s148
    %s165 = sphi 0, %s149
  $region4: #{fcn_forward.8} parent=0 // loop_header_branch
    %14 = sbr.rel (%p12) target = $region8
  $region5: #{fcn_forward.8} parent=0 // loop_body
    %s16 = ssub.s32 %s11, 1
    %s17 = ssub.s32 %s11, 2
    %s24 = sadd.s32 1, %s19
    %p25 = scmp.ge.s32.totalorder %s24, 1
    %s26 = scalar_select %p25, 0, %s24
    %s27 = sadd.s32 1, %s18
    %s28 = scalar_select %p25, %s27, %s18
    %p29 = scmp.ge.s32.totalorder %s28, 2
    %s30 = scalar_select %p29, 0, %s28
    %s31 = ssub.s32 %s18, %s30
    %p32 = scmp.eq.s32.totalorder %s31, 0
    %s34 = sadd.s32 %s33, 1
    %s35 = scalar_select %p32, %s33, %s34
    %p38 = pneg %p32
    %p39 = scmp.eq.s32.totalorder %s11, 1
    %p40 = por %p38, %p39
    %p41 = scmp.ne.s32.totalorder %s33, %s36
    %p42 = scmp.eq.s32.totalorder %s11, 0
    %p43 = por %p41, %p42
    %p44 = scmp.ne.s32.totalorder %s33, %s36
    %p45 = scmp.eq.s32.totalorder %s16, 1
    %p46 = por %p44, %p45
    %p47 = scmp.ne.s32.totalorder %s36, %s37
    %p48 = scmp.eq.s32.totalorder %s16, 0
    %p49 = por %p47, %p48
    %p50 = scmp.ne.s32.totalorder %s36, %s37
    %p51 = scmp.eq.s32.totalorder %s17, 1
    %p52 = por %p50, %p51
    %p54 = scmp.ne.s32.totalorder %s37, %s53
    %p55 = scmp.eq.s32.totalorder %s17, 0
    %p56 = por %p54, %p55
    %s58 = sadd.s32 %s57, 1
    %p61 = scmp.eq.s32.totalorder %s11, 1
    %p62 = scmp.ne.s32.totalorder %s57, %s59
    %p63 = scmp.eq.s32.totalorder %s11, 0
    %p64 = por %p62, %p63
    %p65 = scmp.ne.s32.totalorder %s57, %s59
    %p66 = scmp.eq.s32.totalorder %s16, 1
    %p67 = por %p65, %p66
    %p68 = scmp.ne.s32.totalorder %s59, %s60
    %p69 = scmp.eq.s32.totalorder %s16, 0
    %p70 = por %p68, %p69
    %p71 = scmp.ne.s32.totalorder %s59, %s60
    %p72 = scmp.eq.s32.totalorder %s17, 1
    %p73 = por %p71, %p72
    %p75 = scmp.ne.s32.totalorder %s60, %s74
    %p76 = scmp.eq.s32.totalorder %s17, 0
    %p77 = por %p75, %p76
    %s79 = sadd.s32 %s78, 1
    %p82 = scmp.eq.s32.totalorder %s11, 1
    %p83 = scmp.ne.s32.totalorder %s78, %s80
    %p84 = scmp.eq.s32.totalorder %s11, 0
    %p85 = por %p83, %p84
    %p86 = scmp.ne.s32.totalorder %s78, %s80
    %p87 = scmp.eq.s32.totalorder %s16, 1
    %p88 = por %p86, %p87
    %p89 = scmp.ne.s32.totalorder %s80, %s81
    %p90 = scmp.eq.s32.totalorder %s16, 0
    %p91 = por %p89, %p90
    %p92 = scmp.ne.s32.totalorder %s80, %s81
    %p93 = scmp.eq.s32.totalorder %s17, 1
    %p94 = por %p92, %p93
    %p96 = scmp.ne.s32.totalorder %s81, %s95
    %p97 = scmp.eq.s32.totalorder %s17, 0
    %p98 = por %p96, %p97
    %s100 = sadd.s32 %s99, 1
    %p103 = scmp.eq.s32.totalorder %s11, 1
    %p104 = scmp.ne.s32.totalorder %s99, %s101
    %p105 = scmp.eq.s32.totalorder %s11, 0
    %p106 = por %p104, %p105
    %p107 = scmp.ne.s32.totalorder %s99, %s101
    %p108 = scmp.eq.s32.totalorder %s16, 1
    %p109 = por %p107, %p108
    %p110 = scmp.ne.s32.totalorder %s101, %s102
    %p111 = scmp.eq.s32.totalorder %s16, 0
    %p112 = por %p110, %p111
    %p113 = scmp.ne.s32.totalorder %s101, %s102
    %p114 = scmp.eq.s32.totalorder %s17, 1
    %p115 = por %p113, %p114
    %p117 = scmp.ne.s32.totalorder %s102, %s116
    %p118 = scmp.eq.s32.totalorder %s17, 0
    %p119 = por %p117, %p118
    %s121 = sadd.s32 %s120, 1
    %p124 = scmp.eq.s32.totalorder %s11, 1
    %p125 = scmp.ne.s32.totalorder %s120, %s122
    %p126 = scmp.eq.s32.totalorder %s11, 0
    %p127 = por %p125, %p126
    %p128 = scmp.ne.s32.totalorder %s120, %s122
    %p129 = scmp.eq.s32.totalorder %s16, 1
    %p130 = por %p128, %p129
    %p131 = scmp.ne.s32.totalorder %s122, %s123
    %p132 = scmp.eq.s32.totalorder %s16, 0
    %p133 = por %p131, %p132
    %p134 = scmp.ne.s32.totalorder %s122, %s123
    %p135 = scmp.eq.s32.totalorder %s17, 1
    %p136 = por %p134, %p135
    %p138 = scmp.ne.s32.totalorder %s123, %s137
    %p139 = scmp.eq.s32.totalorder %s17, 0
    %p140 = por %p138, %p139
    %s141 = ssub.s32 %s18, %s30
    %s142 = ssub.s32 %s19, %s26
    %s143 = sor.u32 %s141, %s142
    %p144 = scmp.eq.s32.totalorder %s143, 0
    %s146 = sadd.s32 %s145, 1
    %s147 = scalar_select %p144, %s145, %s146
    %p150 = pneg %p144
    %p151 = scmp.eq.s32.totalorder %s11, 1
    %p152 = por %p150, %p151
    %p153 = scmp.ne.s32.totalorder %s145, %s148
    %p154 = scmp.eq.s32.totalorder %s11, 0
    %p155 = por %p153, %p154
    %p156 = scmp.ne.s32.totalorder %s145, %s148
    %p157 = scmp.eq.s32.totalorder %s16, 1
    %p158 = por %p156, %p157
    %p159 = scmp.ne.s32.totalorder %s148, %s149
    %p160 = scmp.eq.s32.totalorder %s16, 0
    %p161 = por %p159, %p160
    %p162 = scmp.ne.s32.totalorder %s148, %s149
    %p163 = scmp.eq.s32.totalorder %s17, 1
    %p164 = por %p162, %p163
    %p166 = scmp.ne.s32.totalorder %s149, %s165
    %p167 = scmp.eq.s32.totalorder %s17, 0
    %p168 = por %p166, %p167
    %p169 = scmp.le.s32.totalorder 1, %s11
    %p170 = scmp.lt.s32.totalorder %s11, 3
    %p171 = pnand %p169, %p170
    %p172 = pneg %p171
    // Predicated region
    $region9: #{fcn_forward.8} parent=5 // pred_check
      _
    $region10: #{fcn_forward.8} parent=5 // pred_check_branch
      %174 = sbr.rel (%p171) target = $region12
    $region11: #{fcn_forward.8} parent=5 // pred_region
      %s175 = ssub.s32 %s11, 1
      // Predicated region
      $region13: #{fcn_forward.8} parent=11 // pred_check
        %p176 = pneg %p70
      $region14: #{fcn_forward.8} parent=11 // pred_check_branch
        %178 = sbr.rel (%p176) target = $region16
      $region15: #{fcn_forward.8} parent=11 // pred_region
        _
      $region16: #{fcn_forward.8} parent=11 // pred_fallthru
        _
      // Predicated region
      $region17: #{fcn_forward.8} parent=11 // pred_check
        %p179 = pneg %p91
      $region18: #{fcn_forward.8} parent=11 // pred_check_branch
        %181 = sbr.rel (%p179) target = $region20
      $region19: #{fcn_forward.8} parent=11 // pred_region
        _
      $region20: #{fcn_forward.8} parent=11 // pred_fallthru
        _
      // Predicated region
      $region21: #{fcn_forward.8} parent=11 // pred_check
        %p182 = pneg %p112
      $region22: #{fcn_forward.8} parent=11 // pred_check_branch
        %184 = sbr.rel (%p182) target = $region24
      $region23: #{fcn_forward.8} parent=11 // pred_region
        _
      $region24: #{fcn_forward.8} parent=11 // pred_fallthru
        _
      // Predicated region
      $region25: #{fcn_forward.8} parent=11 // pred_check
        %p185 = pneg %p133
      $region26: #{fcn_forward.8} parent=11 // pred_check_branch
        %187 = sbr.rel (%p185) target = $region28
      $region27: #{fcn_forward.8} parent=11 // pred_region
        _
      $region28: #{fcn_forward.8} parent=11 // pred_fallthru
        _
    $region12: #{fcn_forward.8} parent=5 // pred_fallthru
      _
    %p188 = scmp.lt.s32.totalorder %s11, 2
    // Predicated region
    $region29: #{fcn_forward.8} parent=5 // pred_check
      %p189 = pneg %p188
    $region30: #{fcn_forward.8} parent=5 // pred_check_branch
      %191 = sbr.rel (%p189) target = $region32
    $region31: #{fcn_forward.8} parent=5 // pred_region
      // Predicated region
      $region33: #{fcn_forward.8} parent=31 // pred_check
        %p192 = pneg %p43
      $region34: #{fcn_forward.8} parent=31 // pred_check_branch
        %194 = sbr.rel (%p192) target = $region36
      $region35: #{fcn_forward.8} parent=31 // pred_region
        %p195 = scmp.lt.s32.totalorder %s18, 1
        %s196 = scalar_select %p195, %s18, 1
        %s197 = smul.addr %s196, 20
        %s198 = smul.addr %s197, 4
        %s199 = scalar_lea.vmem %s0, %s198
      $region36: #{fcn_forward.8} parent=31 // pred_fallthru
        _
    $region32: #{fcn_forward.8} parent=5 // pred_fallthru
      _
    %p200 = scmp.le.s32.totalorder 1, %s11
    %p201 = scmp.lt.s32.totalorder %s11, 3
    %p202 = pnand %p200, %p201
    %p203 = pneg %p202
    // Predicated region
    $region37: #{fcn_forward.8} parent=5 // pred_check
      _
    $region38: #{fcn_forward.8} parent=5 // pred_check_branch
      %205 = sbr.rel (%p202) target = $region40
    $region39: #{fcn_forward.8} parent=5 // pred_region
      %s206 = ssub.s32 %s11, 1
      %p207 = scmp.lt.s32.totalorder %s20, 1
      %s208 = scalar_select %p207, %s20, 1
      %s209 = smul.addr %s208, 20
      %s210 = smul.addr %s209, 4
      %s211 = scalar_lea.vmem %s0, %s210
      %p212 = pneg %p49
      %p213 = pneg %p46
      %p214 = pneg %p70
      %p215 = pneg %p67
      %p216 = pneg %p91
      %p217 = pneg %p88
      %p218 = pneg %p112
      %p219 = pneg %p109
      %p220 = pneg %p133
      %p221 = pneg %p130
      %p222 = pneg %p161
      %p223 = pneg %p158
      %s224 = smul.u32 8, %s21
      %p225 = scmp.lt.s32.totalorder %s20, 1
      %s226 = scalar_select %p225, %s20, 1
      %p227 = scmp.lt.s32.totalorder %s224, 7
      %s228 = scalar_select %p227, %s224, 7
      %s229 = smul.addr %s226, 8
      %s230 = sadd.s32 %s228, %s229
      %s231 = smul.addr %s230, 8
      %s232 = scalar_lea.vmem %s5, %s231
      %p233 = scmp.lt.s32.totalorder %s20, 1
      %s234 = scalar_select %p233, %s20, 1
      %s235 = smul.addr %s234, 20
      %s236 = smul.addr %s235, 4
      %s237 = scalar_lea.vmem %s0, %s236
      %s238 = smul.u32 8, %s21
      %p239 = scmp.lt.s32.totalorder %s20, 1
      %s240 = scalar_select %p239, %s20, 1
      %p241 = scmp.lt.s32.totalorder %s238, 7
      %s242 = scalar_select %p241, %s238, 7
      %s243 = smul.addr %s240, 8
      %s244 = sadd.s32 %s242, %s243
      %s245 = smul.addr %s244, 8
      %s246 = scalar_lea.vmem %s5, %s245
      %s247 = smul.u32 8, %s21
      %s249 = smul.u32 %s21, 8
      %s250 = smul.u32 %s249, 2
      %s251 = smul.addr %s250, 4
      %s252 = scalar_lea.vmem %s237, %s251
      %v253 = vld [vmem:[%s252] sm:$0xf]
      %v254 = vld [vmem:[%s252 + $0x8] sm:$0xf]
      %v255 = vld [vmem:[%s252 + $0x10] sm:$0xf]
      %v256 = vld [vmem:[%s252 + $0x18] sm:$0xf]
      %v257 = vld [vmem:[%s252 + $0x20] sm:$0xf]
      %v258 = vld [vmem:[%s252 + $0x28] sm:$0xf]
      %v259 = vld [vmem:[%s252 + $0x30] sm:$0xf]
      %v260 = vld [vmem:[%s252 + $0x38] sm:$0xf]
      %v261 = vld [vmem:[%s1] sm:$0xf]
      %v262 = vld [vmem:[%s252 + $0x4] sm:$0x1]
      %v263 = vld [vmem:[%s252 + $0xc] sm:$0x1]
      %v264 = vld [vmem:[%s252 + $0x14] sm:$0x1]
      %v265 = vld [vmem:[%s252 + $0x1c] sm:$0x1]
      %v266 = vld [vmem:[%s252 + $0x24] sm:$0x1]
      %v267 = vld [vmem:[%s252 + $0x2c] sm:$0x1]
      %v268 = vld [vmem:[%s252 + $0x34] sm:$0x1]
      %v269 = vld [vmem:[%s252 + $0x3c] sm:$0x1]
      %vm270 = vsmask.f32 3328
      %vm271 = vsmask.f32 7440
      %vm272 = vmor %vm270, %vm271
      %v274 = vshrl.u32 %v253, 16
      %v276 = vrot.slane %v274, 4
      %v277 = vshll.u32 %v253, 16
      %v279 = vrot.slane %v277, 5
      %v280 = vor.u32 %v276, %v279
      %v281 = vrot.slane %v280, 4
      %v283 = vshll.u32 %v262, 16
      %v285 = vrot.slane %v283, 5
      %v286 = vsel %vm272, %v281, %v285
      %v288 = vshrl.u32 %v254, 16
      %v290 = vrot.slane %v288, 4
      %v291 = vshll.u32 %v254, 16
      %v293 = vrot.slane %v291, 5
      %v294 = vor.u32 %v290, %v293
      %v295 = vrot.slane %v294, 4
      %v297 = vshll.u32 %v263, 16
      %v299 = vrot.slane %v297, 5
      %v300 = vsel %vm272, %v295, %v299
      %v302 = vshrl.u32 %v255, 16
      %v304 = vrot.slane %v302, 4
      %v305 = vshll.u32 %v255, 16
      %v307 = vrot.slane %v305, 5
      %v308 = vor.u32 %v304, %v307
      %v309 = vrot.slane %v308, 4
      %v311 = vshll.u32 %v264, 16
      %v313 = vrot.slane %v311, 5
      %v314 = vsel %vm272, %v309, %v313
      %v316 = vshrl.u32 %v256, 16
      %v318 = vrot.slane %v316, 4
      %v319 = vshll.u32 %v256, 16
      %v321 = vrot.slane %v319, 5
      %v322 = vor.u32 %v318, %v321
      %v323 = vrot.slane %v322, 4
      %v325 = vshll.u32 %v265, 16
      %v327 = vrot.slane %v325, 5
      %v328 = vsel %vm272, %v323, %v327
      %v330 = vshrl.u32 %v257, 16
      %v332 = vrot.slane %v330, 4
      %v333 = vshll.u32 %v257, 16
      %v335 = vrot.slane %v333, 5
      %v336 = vor.u32 %v332, %v335
      %v337 = vrot.slane %v336, 4
      %v339 = vshll.u32 %v266, 16
      %v341 = vrot.slane %v339, 5
      %v342 = vsel %vm272, %v337, %v341
      %v344 = vshrl.u32 %v258, 16
      %v346 = vrot.slane %v344, 4
      %v347 = vshll.u32 %v258, 16
      %v349 = vrot.slane %v347, 5
      %v350 = vor.u32 %v346, %v349
      %v351 = vrot.slane %v350, 4
      %v353 = vshll.u32 %v267, 16
      %v355 = vrot.slane %v353, 5
      %v356 = vsel %vm272, %v351, %v355
      %v358 = vshrl.u32 %v259, 16
      %v360 = vrot.slane %v358, 4
      %v361 = vshll.u32 %v259, 16
      %v363 = vrot.slane %v361, 5
      %v364 = vor.u32 %v360, %v363
      %v365 = vrot.slane %v364, 4
      %v367 = vshll.u32 %v268, 16
      %v369 = vrot.slane %v367, 5
      %v370 = vsel %vm272, %v365, %v369
      %v372 = vshrl.u32 %v260, 16
      %v374 = vrot.slane %v372, 4
      %v375 = vshll.u32 %v260, 16
      %v377 = vrot.slane %v375, 5
      %v378 = vor.u32 %v374, %v377
      %v379 = vrot.slane %v378, 4
      %v381 = vshll.u32 %v269, 16
      %v383 = vrot.slane %v381, 5
      %v384 = vsel %vm272, %v379, %v383
      %s385 = scalar_lea.vmem %s1, 4
      %v386 = vld [vmem:[%s385] sm:$0xf]
      %v387 = vunpack.c.l.b16 %v286
      %v388 = vunpack.c.l.b16 %v300
      %v389 = vunpack.c.l.b16 %v314
      %v390 = vunpack.c.l.b16 %v328
      %v391 = vunpack.c.l.b16 %v342
      %v392 = vunpack.c.l.b16 %v356
      %v393 = vunpack.c.l.b16 %v370
      %v394 = vunpack.c.l.b16 %v384
      %v395 = vpack.c.b16 %v388, %v387
      %v396 = vpack.c.b16 %v390, %v389
      %v397 = vpack.c.b16 %v392, %v391
      %v398 = vpack.c.b16 %v394, %v393
      %vm399 = vcmask 64512
      %v401 = vsel %vm399, %v395, 0
      %v404 = vsel %vm399, %v396, 0
      %v407 = vsel %vm399, %v397, 0
      %v410 = vsel %vm399, %v398, 0
      %vm412 = vcmask 1043456
      %v414 = vsel %vm412, %v386, 0
      %416 = vmatprep.subr.bf16.mxu0 0
      %417 = vmatpush1.bf16.msra.mxu0 %v414
      %418 = vmatprep.subr.bf16.mxu0 0
      %419 = vmatpush1.bf16.msra.mxu0 0
      %420 = vmatprep.subr.bf16.mxu0 0
      %421 = vmatpush1.bf16.msra.mxu0 0
      %422 = vmatprep.subr.bf16.mxu0 0
      %423 = vmatpush1.bf16.msra.mxu0 0
      %424 = vmatprep.subr.bf16.mxu0 0
      %425 = vmatpush1.bf16.msra.mxu0 0
      %426 = vmatprep.subr.bf16.mxu0 0
      %427 = vmatpush1.bf16.msra.mxu0 0
      %428 = vmatprep.subr.bf16.mxu0 0
      %429 = vmatpush1.bf16.msra.mxu0 0
      %430 = vmatprep.subr.bf16.mxu0 0
      %431 = vmatpush1.bf16.msra.mxu0 0
      %432 = vmatprep.subr.bf16.mxu0 0
      %433 = vmatpush1.bf16.msra.mxu0 0
      %434 = vmatprep.subr.bf16.mxu0 0
      %435 = vmatpush1.bf16.msra.mxu0 0
      %436 = vmatprep.subr.bf16.mxu0 0
      %437 = vmatpush1.bf16.msra.mxu0 0
      %438 = vmatprep.subr.bf16.mxu0 0
      %439 = vmatpush1.bf16.msra.mxu0 0
      %440 = vmatprep.subr.bf16.mxu0 0
      %441 = vmatpush1.bf16.msra.mxu0 0
      %442 = vmatprep.subr.bf16.mxu0 0
      %443 = vmatpush1.bf16.msra.mxu0 0
      %444 = vmatprep.subr.bf16.mxu0 0
      %445 = vmatpush1.bf16.msra.mxu0 0
      %446 = vmatprep.subr.bf16.mxu0 0
      %447 = vmatpush1.bf16.msra.mxu0 0
      %448 = vmatprep.mubr.bf16.mxu0 0
      %449 = vmatmul.mubr.bf16.gmra.mrb[0].mxu0 %v401
      %v450 = vpop.f32.mrb[0].mxu0
      %v451 = vadd.f32 0.0, %v450
      %v452 = vpop.f32.mrb[0].mxu0
      %v453 = vpop.f32.mrb[0].mxu0
      %v454 = vadd.f32 0.0, %v453
      %v455 = vpop.f32.mrb[0].mxu0
      %456 = vmatprep.mubr.bf16.mxu0 0
      %457 = vmatmul.mubr.bf16.gmra.mrb[0].mxu0 %v404
      %v458 = vpop.f32.mrb[0].mxu0
      %v459 = vadd.f32 0.0, %v458
      %v460 = vpop.f32.mrb[0].mxu0
      %v461 = vpop.f32.mrb[0].mxu0
      %v462 = vadd.f32 0.0, %v461
      %v463 = vpop.f32.mrb[0].mxu0
      %464 = vmatprep.mubr.bf16.mxu0 0
      %465 = vmatmul.mubr.bf16.gmra.mrb[0].mxu0 %v407
      %v466 = vpop.f32.mrb[0].mxu0
      %v467 = vadd.f32 0.0, %v466
      %v468 = vpop.f32.mrb[0].mxu0
      %v469 = vpop.f32.mrb[0].mxu0
      %v470 = vadd.f32 0.0, %v469
      %v471 = vpop.f32.mrb[0].mxu0
      %472 = vmatprep.mubr.bf16.mxu0 0
      %473 = vmatmul.mubr.bf16.gmra.mrb[0].mxu0 %v410
      %v474 = vpop.f32.mrb[0].mxu0
      %v475 = vadd.f32 0.0, %v474
      %v476 = vpop.f32.mrb[0].mxu0
      %v477 = vpop.f32.mrb[0].mxu0
      %v478 = vadd.f32 0.0, %v477
      %v479 = vpop.f32.mrb[0].mxu0
      %480 = vdwg.mxu0
      %v489 = vunpack.c.l.b16 %v253
      %v490 = vunpack.c.l.b16 %v254
      %v491 = vunpack.c.l.b16 %v255
      %v492 = vunpack.c.l.b16 %v256
      %v493 = vunpack.c.l.b16 %v257
      %v494 = vunpack.c.l.b16 %v258
      %v495 = vunpack.c.l.b16 %v259
      %v496 = vunpack.c.l.b16 %v260
      %v497 = vpack.c.b16 %v490, %v489
      %v498 = vpack.c.b16 %v492, %v491
      %v499 = vpack.c.b16 %v494, %v493
      %v500 = vpack.c.b16 %v496, %v495
      %v502 = vsel %vm399, %v497, 0
      %v505 = vsel %vm399, %v498, 0
      %v508 = vsel %vm399, %v499, 0
      %v511 = vsel %vm399, %v500, 0
      %v514 = vsel %vm412, %v261, 0
      %516 = vmatprep.subr.bf16.mxu0 0
      %517 = vmatpush1.bf16.msra.mxu0 %v514
      %518 = vmatprep.subr.bf16.mxu0 0
      %519 = vmatpush1.bf16.msra.mxu0 0
      %520 = vmatprep.subr.bf16.mxu0 0
      %521 = vmatpush1.bf16.msra.mxu0 0
      %522 = vmatprep.subr.bf16.mxu0 0
      %523 = vmatpush1.bf16.msra.mxu0 0
      %524 = vmatprep.subr.bf16.mxu0 0
      %525 = vmatpush1.bf16.msra.mxu0 0
      %526 = vmatprep.subr.bf16.mxu0 0
      %527 = vmatpush1.bf16.msra.mxu0 0
      %528 = vmatprep.subr.bf16.mxu0 0
      %529 = vmatpush1.bf16.msra.mxu0 0
      %530 = vmatprep.subr.bf16.mxu0 0
      %531 = vmatpush1.bf16.msra.mxu0 0
      %532 = vmatprep.subr.bf16.mxu0 0
      %533 = vmatpush1.bf16.msra.mxu0 0
      %534 = vmatprep.subr.bf16.mxu0 0
      %535 = vmatpush1.bf16.msra.mxu0 0
      %536 = vmatprep.subr.bf16.mxu0 0
      %537 = vmatpush1.bf16.msra.mxu0 0
      %538 = vmatprep.subr.bf16.mxu0 0
      %539 = vmatpush1.bf16.msra.mxu0 0
      %540 = vmatprep.subr.bf16.mxu0 0
      %541 = vmatpush1.bf16.msra.mxu0 0
      %542 = vmatprep.subr.bf16.mxu0 0
      %543 = vmatpush1.bf16.msra.mxu0 0
      %544 = vmatprep.subr.bf16.mxu0 0
      %545 = vmatpush1.bf16.msra.mxu0 0
      %546 = vmatprep.subr.bf16.mxu0 0
      %547 = vmatpush1.bf16.msra.mxu0 0
      %548 = vmatprep.mubr.bf16.mxu0 0
      %549 = vmatmul.mubr.bf16.gmra.mrb[0].mxu0 %v502
      %v550 = vpop.f32.mrb[0].mxu0
      %v551 = vadd.f32 %v451, %v550
      %v552 = vpop.f32.mrb[0].mxu0
      %v553 = vpop.f32.mrb[0].mxu0
      %v554 = vadd.f32 %v454, %v553
      %v555 = vpop.f32.mrb[0].mxu0
      %556 = vmatprep.mubr.bf16.mxu0 0
      %557 = vmatmul.mubr.bf16.gmra.mrb[0].mxu0 %v505
      %v558 = vpop.f32.mrb[0].mxu0
      %v559 = vadd.f32 %v459, %v558
      %v560 = vpop.f32.mrb[0].mxu0
      %v561 = vpop.f32.mrb[0].mxu0
      %v562 = vadd.f32 %v462, %v561
      %v563 = vpop.f32.mrb[0].mxu0
      %564 = vmatprep.mubr.bf16.mxu0 0
      %565 = vmatmul.mubr.bf16.gmra.mrb[0].mxu0 %v508
      %v566 = vpop.f32.mrb[0].mxu0
      %v567 = vadd.f32 %v467, %v566
      %v568 = vpop.f32.mrb[0].mxu0
      %v569 = vpop.f32.mrb[0].mxu0
      %v570 = vadd.f32 %v470, %v569
      %v571 = vpop.f32.mrb[0].mxu0
      %572 = vmatprep.mubr.bf16.mxu0 0
      %573 = vmatmul.mubr.bf16.gmra.mrb[0].mxu0 %v511
      %v574 = vpop.f32.mrb[0].mxu0
      %v575 = vadd.f32 %v475, %v574
      %v576 = vpop.f32.mrb[0].mxu0
      %v577 = vpop.f32.mrb[0].mxu0
      %v578 = vadd.f32 %v478, %v577
      %v579 = vpop.f32.mrb[0].mxu0
      %580 = vdwg.mxu0
      %v581 = vld [vmem:[%s252] sm:$0xe]
      %v582 = vld [vmem:[%s252 + $0x8] sm:$0xe]
      %v583 = vld [vmem:[%s252 + $0x10] sm:$0xe]
      %v584 = vld [vmem:[%s252 + $0x18] sm:$0xe]
      %v585 = vld [vmem:[%s252 + $0x20] sm:$0xe]
      %v586 = vld [vmem:[%s252 + $0x28] sm:$0xe]
      %v587 = vld [vmem:[%s252 + $0x30] sm:$0xe]
      %v588 = vld [vmem:[%s252 + $0x38] sm:$0xe]
      %vm605 = vcmask 1042432
      %vm606 = vcmask 1046532
      %vm607 = vmor %vm605, %vm606
      %v608 = vrot.slane %v581, 5
      %v609 = vrot.slane %v608, 4
      %v610 = vrot.slane %v262, 5
      %v611 = vsel %vm607, %v609, %v610
      %v612 = vrot.slane %v582, 5
      %v613 = vrot.slane %v612, 4
      %v614 = vrot.slane %v263, 5
      %v615 = vsel %vm607, %v613, %v614
      %v616 = vrot.slane %v583, 5
      %v617 = vrot.slane %v616, 4
      %v618 = vrot.slane %v264, 5
      %v619 = vsel %vm607, %v617, %v618
      %v620 = vrot.slane %v584, 5
      %v621 = vrot.slane %v620, 4
      %v622 = vrot.slane %v265, 5
      %v623 = vsel %vm607, %v621, %v622
      %v624 = vrot.slane %v585, 5
      %v625 = vrot.slane %v624, 4
      %v626 = vrot.slane %v266, 5
      %v627 = vsel %vm607, %v625, %v626
      %v628 = vrot.slane %v586, 5
      %v629 = vrot.slane %v628, 4
      %v630 = vrot.slane %v267, 5
      %v631 = vsel %vm607, %v629, %v630
      %v632 = vrot.slane %v587, 5
      %v633 = vrot.slane %v632, 4
      %v634 = vrot.slane %v268, 5
      %v635 = vsel %vm607, %v633, %v634
      %v636 = vrot.slane %v588, 5
      %v637 = vrot.slane %v636, 4
      %v638 = vrot.slane %v269, 5
      %v639 = vsel %vm607, %v637, %v638
      %s640 = scalar_lea.vmem %s1, 8
      %v641 = vld [vmem:[%s640] sm:$0xf]
      %v642 = vunpack.c.l.b16 %v611
      %v643 = vunpack.c.l.b16 %v615
      %v644 = vunpack.c.l.b16 %v619
      %v645 = vunpack.c.l.b16 %v623
      %v646 = vunpack.c.l.b16 %v627
      %v647 = vunpack.c.l.b16 %v631
      %v648 = vunpack.c.l.b16 %v635
      %v649 = vunpack.c.l.b16 %v639
      %v650 = vpack.c.b16 %v643, %v642
      %v651 = vpack.c.b16 %v645, %v644
      %v652 = vpack.c.b16 %v647, %v646
      %v653 = vpack.c.b16 %v649, %v648
      %v655 = vsel %vm399, %v650, 0
      %v658 = vsel %vm399, %v651, 0
      %v661 = vsel %vm399, %v652, 0
      %v664 = vsel %vm399, %v653, 0
      %v667 = vsel %vm412, %v641, 0
      %669 = vmatprep.subr.bf16.mxu0 0
      %670 = vmatpush1.bf16.msra.mxu0 %v667
      %671 = vmatprep.subr.bf16.mxu0 0
      %672 = vmatpush1.bf16.msra.mxu0 0
      %673 = vmatprep.subr.bf16.mxu0 0
      %674 = vmatpush1.bf16.msra.mxu0 0
      %675 = vmatprep.subr.bf16.mxu0 0
      %676 = vmatpush1.bf16.msra.mxu0 0
      %677 = vmatprep.subr.bf16.mxu0 0
      %678 = vmatpush1.bf16.msra.mxu0 0
      %679 = vmatprep.subr.bf16.mxu0 0
      %680 = vmatpush1.bf16.msra.mxu0 0
      %681 = vmatprep.subr.bf16.mxu0 0
      %682 = vmatpush1.bf16.msra.mxu0 0
      %683 = vmatprep.subr.bf16.mxu0 0
      %684 = vmatpush1.bf16.msra.mxu0 0
      %685 = vmatprep.subr.bf16.mxu0 0
      %686 = vmatpush1.bf16.msra.mxu0 0
      %687 = vmatprep.subr.bf16.mxu0 0
      %688 = vmatpush1.bf16.msra.mxu0 0
      %689 = vmatprep.subr.bf16.mxu0 0
      %690 = vmatpush1.bf16.msra.mxu0 0
      %691 = vmatprep.subr.bf16.mxu0 0
      %692 = vmatpush1.bf16.msra.mxu0 0
      %693 = vmatprep.subr.bf16.mxu0 0
      %694 = vmatpush1.bf16.msra.mxu0 0
      %695 = vmatprep.subr.bf16.mxu0 0
      %696 = vmatpush1.bf16.msra.mxu0 0
      %697 = vmatprep.subr.bf16.mxu0 0
      %698 = vmatpush1.bf16.msra.mxu0 0
      %699 = vmatprep.subr.bf16.mxu0 0
      %700 = vmatpush1.bf16.msra.mxu0 0
      %701 = vmatprep.mubr.bf16.mxu0 0
      %702 = vmatmul.mubr.bf16.gmra.mrb[0].mxu0 %v655
      %v703 = vpop.f32.mrb[0].mxu0
      %v704 = vadd.f32 0.0, %v703
      %v705 = vpop.f32.mrb[0].mxu0
      %v706 = vpop.f32.mrb[0].mxu0
      %v707 = vadd.f32 0.0, %v706
      %v708 = vpop.f32.mrb[0].mxu0
      %709 = vmatprep.mubr.bf16.mxu0 0
      %710 = vmatmul.mubr.bf16.gmra.mrb[0].mxu0 %v658
      %v711 = vpop.f32.mrb[0].mxu0
      %v712 = vadd.f32 0.0, %v711
      %v713 = vpop.f32.mrb[0].mxu0
      %v714 = vpop.f32.mrb[0].mxu0
      %v715 = vadd.f32 0.0, %v714
      %v716 = vpop.f32.mrb[0].mxu0
      %717 = vmatprep.mubr.bf16.mxu0 0
      %718 = vmatmul.mubr.bf16.gmra.mrb[0].mxu0 %v661
      %v719 = vpop.f32.mrb[0].mxu0
      %v720 = vadd.f32 0.0, %v719
      %v721 = vpop.f32.mrb[0].mxu0
      %v722 = vpop.f32.mrb[0].mxu0
      %v723 = vadd.f32 0.0, %v722
      %v724 = vpop.f32.mrb[0].mxu0
      %725 = vmatprep.mubr.bf16.mxu0 0
      %726 = vmatmul.mubr.bf16.gmra.mrb[0].mxu0 %v664
      %v727 = vpop.f32.mrb[0].mxu0
      %v728 = vadd.f32 0.0, %v727
      %v729 = vpop.f32.mrb[0].mxu0
      %v730 = vpop.f32.mrb[0].mxu0
      %v731 = vadd.f32 0.0, %v730
      %v732 = vpop.f32.mrb[0].mxu0
      %733 = vdwg.mxu0
      %v734 = vadd.f32 %v551, %v704
      %v735 = vadd.f32 %v554, %v707
      %v736 = vadd.f32 %v559, %v712
      %v737 = vadd.f32 %v562, %v715
      %v738 = vadd.f32 %v567, %v720
      %v739 = vadd.f32 %v570, %v723
      %v740 = vadd.f32 %v575, %v728
      %v741 = vadd.f32 %v578, %v731
      %s742 = sadd.s32 %s249, 1
      %s743 = smul.u32 %s742, 2
      %s744 = smul.addr %s743, 4
      %s745 = scalar_lea.vmem %s237, %s744
      %v746 = vld [vmem:[%s745] sm:$0xf]
      %v747 = vld [vmem:[%s745 + $0x8] sm:$0xf]
      %v748 = vld [vmem:[%s745 + $0x10] sm:$0xf]
      %v749 = vld [vmem:[%s745 + $0x18] sm:$0xf]
      %v750 = vld [vmem:[%s745 + $0x20] sm:$0xf]
      %v751 = vld [vmem:[%s745 + $0x28] sm:$0xf]
      %v752 = vld [vmem:[%s745 + $0x30] sm:$0xf]
      %v753 = vld [vmem:[%s745 + $0x38] sm:$0xf]
      %s754 = scalar_lea.vmem %s1, 12
      %v755 = vld [vmem:[%s754] sm:$0xf]
      %v764 = vunpack.c.l.b16 %v746
      %v765 = vunpack.c.l.b16 %v747
      %v766 = vunpack.c.l.b16 %v748
      %v767 = vunpack.c.l.b16 %v749
      %v768 = vunpack.c.l.b16 %v750
      %v769 = vunpack.c.l.b16 %v751
      %v770 = vunpack.c.l.b16 %v752
      %v771 = vunpack.c.l.b16 %v753
      %v772 = vpack.c.b16 %v765, %v764
      %v773 = vpack.c.b16 %v767, %v766
      %v774 = vpack.c.b16 %v769, %v768
      %v775 = vpack.c.b16 %v771, %v770
      %v777 = vsel %vm399, %v772, 0
      %v780 = vsel %vm399, %v773, 0
      %v783 = vsel %vm399, %v774, 0
      %v786 = vsel %vm399, %v775, 0
      %v789 = vsel %vm412, %v755, 0
      %791 = vmatprep.subr.bf16.mxu0 0
      %792 = vmatpush1.bf16.msra.mxu0 %v789
      %793 = vmatprep.subr.bf16.mxu0 0
      %794 = vmatpush1.bf16.msra.mxu0 0
      %795 = vmatprep.subr.bf16.mxu0 0
      %796 = vmatpush1.bf16.msra.mxu0 0
      %797 = vmatprep.subr.bf16.mxu0 0
      %798 = vmatpush1.bf16.msra.mxu0 0
      %799 = vmatprep.subr.bf16.mxu0 0
      %800 = vmatpush1.bf16.msra.mxu0 0
      %801 = vmatprep.subr.bf16.mxu0 0
      %802 = vmatpush1.bf16.msra.mxu0 0
      %803 = vmatprep.subr.bf16.mxu0 0
      %804 = vmatpush1.bf16.msra.mxu0 0
      %805 = vmatprep.subr.bf16.mxu0 0
      %806 = vmatpush1.bf16.msra.mxu0 0
      %807 = vmatprep.subr.bf16.mxu0 0
      %808 = vmatpush1.bf16.msra.mxu0 0
      %809 = vmatprep.subr.bf16.mxu0 0
      %810 = vmatpush1.bf16.msra.mxu0 0
      %811 = vmatprep.subr.bf16.mxu0 0
      %812 = vmatpush1.bf16.msra.mxu0 0
      %813 = vmatprep.subr.bf16.mxu0 0
      %814 = vmatpush1.bf16.msra.mxu0 0
      %815 = vmatprep.subr.bf16.mxu0 0
      %816 = vmatpush1.bf16.msra.mxu0 0
      %817 = vmatprep.subr.bf16.mxu0 0
      %818 = vmatpush1.bf16.msra.mxu0 0
      %819 = vmatprep.subr.bf16.mxu0 0
      %820 = vmatpush1.bf16.msra.mxu0 0
      %821 = vmatprep.subr.bf16.mxu0 0
      %822 = vmatpush1.bf16.msra.mxu0 0
      %823 = vmatprep.mubr.bf16.mxu0 0
      %824 = vmatmul.mubr.bf16.gmra.mrb[0].mxu0 %v777
      %v825 = vpop.f32.mrb[0].mxu0
      %v826 = vadd.f32 0.0, %v825
      %v827 = vpop.f32.mrb[0].mxu0
      %v828 = vpop.f32.mrb[0].mxu0
      %v829 = vadd.f32 0.0, %v828
      %v830 = vpop.f32.mrb[0].mxu0
      %831 = vmatprep.mubr.bf16.mxu0 0
      %832 = vmatmul.mubr.bf16.gmra.mrb[0].mxu0 %v780
      %v833 = vpop.f32.mrb[0].mxu0
      %v834 = vadd.f32 0.0, %v833
      %v835 = vpop.f32.mrb[0].mxu0
      %v836 = vpop.f32.mrb[0].mxu0
      %v837 = vadd.f32 0.0, %v836
      %v838 = vpop.f32.mrb[0].mxu0
      %839 = vmatprep.mubr.bf16.mxu0 0
      %840 = vmatmul.mubr.bf16.gmra.mrb[0].mxu0 %v783
      %v841 = vpop.f32.mrb[0].mxu0
      %v842 = vadd.f32 0.0, %v841
      %v843 = vpop.f32.mrb[0].mxu0
      %v844 = vpop.f32.mrb[0].mxu0
      %v845 = vadd.f32 0.0, %v844
      %v846 = vpop.f32.mrb[0].mxu0
      %847 = vmatprep.mubr.bf16.mxu0 0
      %848 = vmatmul.mubr.bf16.gmra.mrb[0].mxu0 %v786
      %v849 = vpop.f32.mrb[0].mxu0
      %v850 = vadd.f32 0.0, %v849
      %v851 = vpop.f32.mrb[0].mxu0
      %v852 = vpop.f32.mrb[0].mxu0
      %v853 = vadd.f32 0.0, %v852
      %v854 = vpop.f32.mrb[0].mxu0
      %855 = vdwg.mxu0
      %v856 = vadd.f32 %v734, %v826
      %v857 = vadd.f32 %v735, %v829
      %v858 = vadd.f32 %v736, %v834
      %v859 = vadd.f32 %v737, %v837
      %v860 = vadd.f32 %v738, %v842
      %v861 = vadd.f32 %v739, %v845
      %v862 = vadd.f32 %v740, %v850
      %v863 = vadd.f32 %v741, %v853
      %v864 = vld [vmem:[%s745] sm:$0xf]
      %v865 = vld [vmem:[%s745 + $0x4] sm:$0x1]
      %v866 = vld [vmem:[%s745 + $0x8] sm:$0xf]
      %v867 = vld [vmem:[%s745 + $0xc] sm:$0x1]
      %v868 = vld [vmem:[%s745 + $0x10] sm:$0xf]
      %v869 = vld [vmem:[%s745 + $0x14] sm:$0x1]
      %v870 = vld [vmem:[%s745 + $0x18] sm:$0xf]
      %v871 = vld [vmem:[%s745 + $0x1c] sm:$0x1]
      %v872 = vld [vmem:[%s745 + $0x20] sm:$0xf]
      %v873 = vld [vmem:[%s745 + $0x24] sm:$0x1]
      %v874 = vld [vmem:[%s745 + $0x28] sm:$0xf]
      %v875 = vld [vmem:[%s745 + $0x2c] sm:$0x1]
      %v876 = vld [vmem:[%s745 + $0x30] sm:$0xf]
      %v877 = vld [vmem:[%s745 + $0x34] sm:$0x1]
      %v878 = vld [vmem:[%s745 + $0x38] sm:$0xf]
      %v879 = vld [vmem:[%s745 + $0x3c] sm:$0x1]
      %v881 = vshrl.u32 %v864, 16
      %v883 = vrot.slane %v881, 4
      %v884 = vshll.u32 %v864, 16
      %v886 = vrot.slane %v884, 5
      %v887 = vor.u32 %v883, %v886
      %v888 = vrot.slane %v887, 4
      %v890 = vshll.u32 %v865, 16
      %v892 = vrot.slane %v890, 5
      %v893 = vsel %vm272, %v888, %v892
      %v895 = vshrl.u32 %v866, 16
      %v897 = vrot.slane %v895, 4
      %v898 = vshll.u32 %v866, 16
      %v900 = vrot.slane %v898, 5
      %v901 = vor.u32 %v897, %v900
      %v902 = vrot.slane %v901, 4
      %v904 = vshll.u32 %v867, 16
      %v906 = vrot.slane %v904, 5
      %v907 = vsel %vm272, %v902, %v906
      %v909 = vshrl.u32 %v868, 16
      %v911 = vrot.slane %v909, 4
      %v912 = vshll.u32 %v868, 16
      %v914 = vrot.slane %v912, 5
      %v915 = vor.u32 %v911, %v914
      %v916 = vrot.slane %v915, 4
      %v918 = vshll.u32 %v869, 16
      %v920 = vrot.slane %v918, 5
      %v921 = vsel %vm272, %v916, %v920
      %v923 = vshrl.u32 %v870, 16
      %v925 = vrot.slane %v923, 4
      %v926 = vshll.u32 %v870, 16
      %v928 = vrot.slane %v926, 5
      %v929 = vor.u32 %v925, %v928
      %v930 = vrot.slane %v929, 4
      %v932 = vshll.u32 %v871, 16
      %v934 = vrot.slane %v932, 5
      %v935 = vsel %vm272, %v930, %v934
      %v937 = vshrl.u32 %v872, 16
      %v939 = vrot.slane %v937, 4
      %v940 = vshll.u32 %v872, 16
      %v942 = vrot.slane %v940, 5
      %v943 = vor.u32 %v939, %v942
      %v944 = vrot.slane %v943, 4
      %v946 = vshll.u32 %v873, 16
      %v948 = vrot.slane %v946, 5
      %v949 = vsel %vm272, %v944, %v948
      %v951 = vshrl.u32 %v874, 16
      %v953 = vrot.slane %v951, 4
      %v954 = vshll.u32 %v874, 16
      %v956 = vrot.slane %v954, 5
      %v957 = vor.u32 %v953, %v956
      %v958 = vrot.slane %v957, 4
      %v960 = vshll.u32 %v875, 16
      %v962 = vrot.slane %v960, 5
      %v963 = vsel %vm272, %v958, %v962
      %v965 = vshrl.u32 %v876, 16
      %v967 = vrot.slane %v965, 4
      %v968 = vshll.u32 %v876, 16
      %v970 = vrot.slane %v968, 5
      %v971 = vor.u32 %v967, %v970
      %v972 = vrot.slane %v971, 4
      %v974 = vshll.u32 %v877, 16
      %v976 = vrot.slane %v974, 5
      %v977 = vsel %vm272, %v972, %v976
      %v979 = vshrl.u32 %v878, 16
      %v981 = vrot.slane %v979, 4
      %v982 = vshll.u32 %v878, 16
      %v984 = vrot.slane %v982, 5
      %v985 = vor.u32 %v981, %v984
      %v986 = vrot.slane %v985, 4
      %v988 = vshll.u32 %v879, 16
      %v990 = vrot.slane %v988, 5
      %v991 = vsel %vm272, %v986, %v990
      %s992 = scalar_lea.vmem %s1, 16
      %v993 = vld [vmem:[%s992] sm:$0xf]
      %v994 = vunpack.c.l.b16 %v893
      %v995 = vunpack.c.l.b16 %v907
      %v996 = vunpack.c.l.b16 %v921
      %v997 = vunpack.c.l.b16 %v935
      %v998 = vunpack.c.l.b16 %v949
      %v999 = vunpack.c.l.b16 %v963
      %v1000 = vunpack.c.l.b16 %v977
      %v1001 = vunpack.c.l.b16 %v991
      %v1002 = vpack.c.b16 %v995, %v994
      %v1003 = vpack.c.b16 %v997, %v996
      %v1004 = vpack.c.b16 %v999, %v998
      %v1005 = vpack.c.b16 %v1001, %v1000
      %v1007 = vsel %vm399, %v1002, 0
      %v1010 = vsel %vm399, %v1003, 0
      %v1013 = vsel %vm399, %v1004, 0
      %v1016 = vsel %vm399, %v1005, 0
      %v1019 = vsel %vm412, %v993, 0
      %1021 = vmatprep.subr.bf16.mxu0 0
      %1022 = vmatpush1.bf16.msra.mxu0 %v1019
      %1023 = vmatprep.subr.bf16.mxu0 0
      %1024 = vmatpush1.bf16.msra.mxu0 0
      %1025 = vmatprep.subr.bf16.mxu0 0
      %1026 = vmatpush1.bf16.msra.mxu0 0
      %1027 = vmatprep.subr.bf16.mxu0 0
      %1028 = vmatpush1.bf16.msra.mxu0 0
      %1029 = vmatprep.subr.bf16.mxu0 0
      %1030 = vmatpush1.bf16.msra.mxu0 0
      %1031 = vmatprep.subr.bf16.mxu0 0
      %1032 = vmatpush1.bf16.msra.mxu0 0
      %1033 = vmatprep.subr.bf16.mxu0 0
      %1034 = vmatpush1.bf16.msra.mxu0 0
      %1035 = vmatprep.subr.bf16.mxu0 0
      %1036 = vmatpush1.bf16.msra.mxu0 0
      %1037 = vmatprep.subr.bf16.mxu0 0
      %1038 = vmatpush1.bf16.msra.mxu0 0
      %1039 = vmatprep.subr.bf16.mxu0 0
      %1040 = vmatpush1.bf16.msra.mxu0 0
      %1041 = vmatprep.subr.bf16.mxu0 0
      %1042 = vmatpush1.bf16.msra.mxu0 0
      %1043 = vmatprep.subr.bf16.mxu0 0
      %1044 = vmatpush1.bf16.msra.mxu0 0
      %1045 = vmatprep.subr.bf16.mxu0 0
      %1046 = vmatpush1.bf16.msra.mxu0 0
      %1047 = vmatprep.subr.bf16.mxu0 0
      %1048 = vmatpush1.bf16.msra.mxu0 0
      %1049 = vmatprep.subr.bf16.mxu0 0
      %1050 = vmatpush1.bf16.msra.mxu0 0
      %1051 = vmatprep.subr.bf16.mxu0 0
      %1052 = vmatpush1.bf16.msra.mxu0 0
      %1053 = vmatprep.mubr.bf16.mxu0 0
      %1054 = vmatmul.mubr.bf16.gmra.mrb[0].mxu0 %v1007
      %v1055 = vpop.f32.mrb[0].mxu0
      %v1056 = vadd.f32 0.0, %v1055
      %v1057 = vpop.f32.mrb[0].mxu0
      %v1058 = vpop.f32.mrb[0].mxu0
      %v1059 = vadd.f32 0.0, %v1058
      %v1060 = vpop.f32.mrb[0].mxu0
      %1061 = vmatprep.mubr.bf16.mxu0 0
      %1062 = vmatmul.mubr.bf16.gmra.mrb[0].mxu0 %v1010
      %v1063 = vpop.f32.mrb[0].mxu0
      %v1064 = vadd.f32 0.0, %v1063
      %v1065 = vpop.f32.mrb[0].mxu0
      %v1066 = vpop.f32.mrb[0].mxu0
      %v1067 = vadd.f32 0.0, %v1066
      %v1068 = vpop.f32.mrb[0].mxu0
      %1069 = vmatprep.mubr.bf16.mxu0 0
      %1070 = vmatmul.mubr.bf16.gmra.mrb[0].mxu0 %v1013
      %v1071 = vpop.f32.mrb[0].mxu0
      %v1072 = vadd.f32 0.0, %v1071
      %v1073 = vpop.f32.mrb[0].mxu0
      %v1074 = vpop.f32.mrb[0].mxu0
      %v1075 = vadd.f32 0.0, %v1074
      %v1076 = vpop.f32.mrb[0].mxu0
      %1077 = vmatprep.mubr.bf16.mxu0 0
      %1078 = vmatmul.mubr.bf16.gmra.mrb[0].mxu0 %v1016
      %v1079 = vpop.f32.mrb[0].mxu0
      %v1080 = vadd.f32 0.0, %v1079
      %v1081 = vpop.f32.mrb[0].mxu0
      %v1082 = vpop.f32.mrb[0].mxu0
      %v1083 = vadd.f32 0.0, %v1082
      %v1084 = vpop.f32.mrb[0].mxu0
      %1085 = vdwg.mxu0
      %v1086 = vadd.f32 %v856, %v1056
      %v1087 = vadd.f32 %v857, %v1059
      %v1088 = vadd.f32 %v858, %v1064
      %v1089 = vadd.f32 %v859, %v1067
      %v1090 = vadd.f32 %v860, %v1072
      %v1091 = vadd.f32 %v861, %v1075
      %v1092 = vadd.f32 %v862, %v1080
      %v1093 = vadd.f32 %v863, %v1083
      %v1094 = vld [vmem:[%s745] sm:$0xe]
      %v1095 = vld [vmem:[%s745 + $0x8] sm:$0xe]
      %v1096 = vld [vmem:[%s745 + $0x10] sm:$0xe]
      %v1097 = vld [vmem:[%s745 + $0x18] sm:$0xe]
      %v1098 = vld [vmem:[%s745 + $0x20] sm:$0xe]
      %v1099 = vld [vmem:[%s745 + $0x28] sm:$0xe]
      %v1100 = vld [vmem:[%s745 + $0x30] sm:$0xe]
      %v1101 = vld [vmem:[%s745 + $0x38] sm:$0xe]
      %v1118 = vrot.slane %v1094, 5
      %v1119 = vrot.slane %v1118, 4
      %v1120 = vrot.slane %v865, 5
      %v1121 = vsel %vm607, %v1119, %v1120
      %v1122 = vrot.slane %v1095, 5
      %v1123 = vrot.slane %v1122, 4
      %v1124 = vrot.slane %v867, 5
      %v1125 = vsel %vm607, %v1123, %v1124
      %v1126 = vrot.slane %v1096, 5
      %v1127 = vrot.slane %v1126, 4
      %v1128 = vrot.slane %v869, 5
      %v1129 = vsel %vm607, %v1127, %v1128
      %v1130 = vrot.slane %v1097, 5
      %v1131 = vrot.slane %v1130, 4
      %v1132 = vrot.slane %v871, 5
      %v1133 = vsel %vm607, %v1131, %v1132
      %v1134 = vrot.slane %v1098, 5
      %v1135 = vrot.slane %v1134, 4
      %v1136 = vrot.slane %v873, 5
      %v1137 = vsel %vm607, %v1135, %v1136
      %v1138 = vrot.slane %v1099, 5
      %v1139 = vrot.slane %v1138, 4
      %v1140 = vrot.slane %v875, 5
      %v1141 = vsel %vm607, %v1139, %v1140
      %v1142 = vrot.slane %v1100, 5
      %v1143 = vrot.slane %v1142, 4
      %v1144 = vrot.slane %v877, 5
      %v1145 = vsel %vm607, %v1143, %v1144
      %v1146 = vrot.slane %v1101, 5
      %v1147 = vrot.slane %v1146, 4
      %v1148 = vrot.slane %v879, 5
      %v1149 = vsel %vm607, %v1147, %v1148
      %s1150 = scalar_lea.vmem %s1, 20
      %v1151 = vld [vmem:[%s1150] sm:$0xf]
      %v1152 = vunpack.c.l.b16 %v1121
      %v1153 = vunpack.c.l.b16 %v1125
      %v1154 = vunpack.c.l.b16 %v1129
      %v1155 = vunpack.c.l.b16 %v1133
      %v1156 = vunpack.c.l.b16 %v1137
      %v1157 = vunpack.c.l.b16 %v1141
      %v1158 = vunpack.c.l.b16 %v1145
      %v1159 = vunpack.c.l.b16 %v1149
      %v1160 = vpack.c.b16 %v1153, %v1152
      %v1161 = vpack.c.b16 %v1155, %v1154
      %v1162 = vpack.c.b16 %v1157, %v1156
      %v1163 = vpack.c.b16 %v1159, %v1158
      %v1165 = vsel %vm399, %v1160, 0
      %v1168 = vsel %vm399, %v1161, 0
      %v1171 = vsel %vm399, %v1162, 0
      %v1174 = vsel %vm399, %v1163, 0
      %v1177 = vsel %vm412, %v1151, 0
      %1179 = vmatprep.subr.bf16.mxu0 0
      %1180 = vmatpush1.bf16.msra.mxu0 %v1177
      %1181 = vmatprep.subr.bf16.mxu0 0
      %1182 = vmatpush1.bf16.msra.mxu0 0
      %1183 = vmatprep.subr.bf16.mxu0 0
      %1184 = vmatpush1.bf16.msra.mxu0 0
      %1185 = vmatprep.subr.bf16.mxu0 0
      %1186 = vmatpush1.bf16.msra.mxu0 0
      %1187 = vmatprep.subr.bf16.mxu0 0
      %1188 = vmatpush1.bf16.msra.mxu0 0
      %1189 = vmatprep.subr.bf16.mxu0 0
      %1190 = vmatpush1.bf16.msra.mxu0 0
      %1191 = vmatprep.subr.bf16.mxu0 0
      %1192 = vmatpush1.bf16.msra.mxu0 0
      %1193 = vmatprep.subr.bf16.mxu0 0
      %1194 = vmatpush1.bf16.msra.mxu0 0
      %1195 = vmatprep.subr.bf16.mxu0 0
      %1196 = vmatpush1.bf16.msra.mxu0 0
      %1197 = vmatprep.subr.bf16.mxu0 0
      %1198 = vmatpush1.bf16.msra.mxu0 0
      %1199 = vmatprep.subr.bf16.mxu0 0
      %1200 = vmatpush1.bf16.msra.mxu0 0
      %1201 = vmatprep.subr.bf16.mxu0 0
      %1202 = vmatpush1.bf16.msra.mxu0 0
      %1203 = vmatprep.subr.bf16.mxu0 0
      %1204 = vmatpush1.bf16.msra.mxu0 0
      %1205 = vmatprep.subr.bf16.mxu0 0
      %1206 = vmatpush1.bf16.msra.mxu0 0
      %1207 = vmatprep.subr.bf16.mxu0 0
      %1208 = vmatpush1.bf16.msra.mxu0 0
      %1209 = vmatprep.subr.bf16.mxu0 0
      %1210 = vmatpush1.bf16.msra.mxu0 0
      %1211 = vmatprep.mubr.bf16.mxu0 0
      %1212 = vmatmul.mubr.bf16.gmra.mrb[0].mxu0 %v1165
      %v1213 = vpop.f32.mrb[0].mxu0
      %v1214 = vadd.f32 0.0, %v1213
      %v1215 = vpop.f32.mrb[0].mxu0
      %v1216 = vpop.f32.mrb[0].mxu0
      %v1217 = vadd.f32 0.0, %v1216
      %v1218 = vpop.f32.mrb[0].mxu0
      %1219 = vmatprep.mubr.bf16.mxu0 0
      %1220 = vmatmul.mubr.bf16.gmra.mrb[0].mxu0 %v1168
      %v1221 = vpop.f32.mrb[0].mxu0
      %v1222 = vadd.f32 0.0, %v1221
      %v1223 = vpop.f32.mrb[0].mxu0
      %v1224 = vpop.f32.mrb[0].mxu0
      %v1225 = vadd.f32 0.0, %v1224
      %v1226 = vpop.f32.mrb[0].mxu0
      %1227 = vmatprep.mubr.bf16.mxu0 0
      %1228 = vmatmul.mubr.bf16.gmra.mrb[0].mxu0 %v1171
      %v1229 = vpop.f32.mrb[0].mxu0
      %v1230 = vadd.f32 0.0, %v1229
      %v1231 = vpop.f32.mrb[0].mxu0
      %v1232 = vpop.f32.mrb[0].mxu0
      %v1233 = vadd.f32 0.0, %v1232
      %v1234 = vpop.f32.mrb[0].mxu0
      %1235 = vmatprep.mubr.bf16.mxu0 0
      %1236 = vmatmul.mubr.bf16.gmra.mrb[0].mxu0 %v1174
      %v1237 = vpop.f32.mrb[0].mxu0
      %v1238 = vadd.f32 0.0, %v1237
      %v1239 = vpop.f32.mrb[0].mxu0
      %v1240 = vpop.f32.mrb[0].mxu0
      %v1241 = vadd.f32 0.0, %v1240
      %v1242 = vpop.f32.mrb[0].mxu0
      %1243 = vdwg.mxu0
      %v1244 = vadd.f32 %v1086, %v1214
      %v1245 = vadd.f32 %v1087, %v1217
      %v1246 = vadd.f32 %v1088, %v1222
      %v1247 = vadd.f32 %v1089, %v1225
      %v1248 = vadd.f32 %v1090, %v1230
      %v1249 = vadd.f32 %v1091, %v1233
      %v1250 = vadd.f32 %v1092, %v1238
      %v1251 = vadd.f32 %v1093, %v1241
      %s1252 = sadd.s32 %s249, 2
      %s1253 = smul.u32 %s1252, 2
      %s1254 = smul.addr %s1253, 4
      %s1255 = scalar_lea.vmem %s237, %s1254
      %v1256 = vld [vmem:[%s1255] sm:$0xf]
      %v1257 = vld [vmem:[%s1255 + $0x8] sm:$0xf]
      %v1258 = vld [vmem:[%s1255 + $0x10] sm:$0xf]
      %v1259 = vld [vmem:[%s1255 + $0x18] sm:$0xf]
      %v1260 = vld [vmem:[%s1255 + $0x20] sm:$0xf]
      %v1261 = vld [vmem:[%s1255 + $0x28] sm:$0xf]
      %v1262 = vld [vmem:[%s1255 + $0x30] sm:$0xf]
      %v1263 = vld [vmem:[%s1255 + $0x38] sm:$0xf]
      %s1264 = scalar_lea.vmem %s1, 24
      %v1265 = vld [vmem:[%s1264] sm:$0xf]
      %v1274 = vunpack.c.l.b16 %v1256
      %v1275 = vunpack.c.l.b16 %v1257
      %v1276 = vunpack.c.l.b16 %v1258
      %v1277 = vunpack.c.l.b16 %v1259
      %v1278 = vunpack.c.l.b16 %v1260
      %v1279 = vunpack.c.l.b16 %v1261
      %v1280 = vunpack.c.l.b16 %v1262
      %v1281 = vunpack.c.l.b16 %v1263
      %v1282 = vpack.c.b16 %v1275, %v1274
      %v1283 = vpack.c.b16 %v1277, %v1276
      %v1284 = vpack.c.b16 %v1279, %v1278
      %v1285 = vpack.c.b16 %v1281, %v1280
      %v1287 = vsel %vm399, %v1282, 0
      %v1290 = vsel %vm399, %v1283, 0
      %v1293 = vsel %vm399, %v1284, 0
      %v1296 = vsel %vm399, %v1285, 0
      %v1299 = vsel %vm412, %v1265, 0
      %1301 = vmatprep.subr.bf16.mxu0 0
      %1302 = vmatpush1.bf16.msra.mxu0 %v1299
      %1303 = vmatprep.subr.bf16.mxu0 0
      %1304 = vmatpush1.bf16.msra.mxu0 0
      %1305 = vmatprep.subr.bf16.mxu0 0
      %1306 = vmatpush1.bf16.msra.mxu0 0
      %1307 = vmatprep.subr.bf16.mxu0 0
      %1308 = vmatpush1.bf16.msra.mxu0 0
      %1309 = vmatprep.subr.bf16.mxu0 0
      %1310 = vmatpush1.bf16.msra.mxu0 0
      %1311 = vmatprep.subr.bf16.mxu0 0
      %1312 = vmatpush1.bf16.msra.mxu0 0
      %1313 = vmatprep.subr.bf16.mxu0 0
      %1314 = vmatpush1.bf16.msra.mxu0 0
      %1315 = vmatprep.subr.bf16.mxu0 0
      %1316 = vmatpush1.bf16.msra.mxu0 0
      %1317 = vmatprep.subr.bf16.mxu0 0
      %1318 = vmatpush1.bf16.msra.mxu0 0
      %1319 = vmatprep.subr.bf16.mxu0 0
      %1320 = vmatpush1.bf16.msra.mxu0 0
      %1321 = vmatprep.subr.bf16.mxu0 0
      %1322 = vmatpush1.bf16.msra.mxu0 0
      %1323 = vmatprep.subr.bf16.mxu0 0
      %1324 = vmatpush1.bf16.msra.mxu0 0
      %1325 = vmatprep.subr.bf16.mxu0 0
      %1326 = vmatpush1.bf16.msra.mxu0 0
      %1327 = vmatprep.subr.bf16.mxu0 0
      %1328 = vmatpush1.bf16.msra.mxu0 0
      %1329 = vmatprep.subr.bf16.mxu0 0
      %1330 = vmatpush1.bf16.msra.mxu0 0
      %1331 = vmatprep.subr.bf16.mxu0 0
      %1332 = vmatpush1.bf16.msra.mxu0 0
      %1333 = vmatprep.mubr.bf16.mxu0 0
      %1334 = vmatmul.mubr.bf16.gmra.mrb[0].mxu0 %v1287
      %v1335 = vpop.f32.mrb[0].mxu0
      %v1336 = vadd.f32 0.0, %v1335
      %v1337 = vpop.f32.mrb[0].mxu0
      %v1338 = vpop.f32.mrb[0].mxu0
      %v1339 = vadd.f32 0.0, %v1338
      %v1340 = vpop.f32.mrb[0].mxu0
      %1341 = vmatprep.mubr.bf16.mxu0 0
      %1342 = vmatmul.mubr.bf16.gmra.mrb[0].mxu0 %v1290
      %v1343 = vpop.f32.mrb[0].mxu0
      %v1344 = vadd.f32 0.0, %v1343
      %v1345 = vpop.f32.mrb[0].mxu0
      %v1346 = vpop.f32.mrb[0].mxu0
      %v1347 = vadd.f32 0.0, %v1346
      %v1348 = vpop.f32.mrb[0].mxu0
      %1349 = vmatprep.mubr.bf16.mxu0 0
      %1350 = vmatmul.mubr.bf16.gmra.mrb[0].mxu0 %v1293
      %v1351 = vpop.f32.mrb[0].mxu0
      %v1352 = vadd.f32 0.0, %v1351
      %v1353 = vpop.f32.mrb[0].mxu0
      %v1354 = vpop.f32.mrb[0].mxu0
      %v1355 = vadd.f32 0.0, %v1354
      %v1356 = vpop.f32.mrb[0].mxu0
      %1357 = vmatprep.mubr.bf16.mxu0 0
      %1358 = vmatmul.mubr.bf16.gmra.mrb[0].mxu0 %v1296
      %v1359 = vpop.f32.mrb[0].mxu0
      %v1360 = vadd.f32 0.0, %v1359
      %v1361 = vpop.f32.mrb[0].mxu0
      %v1362 = vpop.f32.mrb[0].mxu0
      %v1363 = vadd.f32 0.0, %v1362
      %v1364 = vpop.f32.mrb[0].mxu0
      %1365 = vdwg.mxu0
      %v1366 = vadd.f32 %v1244, %v1336
      %v1367 = vadd.f32 %v1245, %v1339
      %v1368 = vadd.f32 %v1246, %v1344
      %v1369 = vadd.f32 %v1247, %v1347
      %v1370 = vadd.f32 %v1248, %v1352
      %v1371 = vadd.f32 %v1249, %v1355
      %v1372 = vadd.f32 %v1250, %v1360
      %v1373 = vadd.f32 %v1251, %v1363
      %v1374 = vld [vmem:[%s1255] sm:$0xf]
      %v1375 = vld [vmem:[%s1255 + $0x4] sm:$0x1]
      %v1376 = vld [vmem:[%s1255 + $0x8] sm:$0xf]
      %v1377 = vld [vmem:[%s1255 + $0xc] sm:$0x1]
      %v1378 = vld [vmem:[%s1255 + $0x10] sm:$0xf]
      %v1379 = vld [vmem:[%s1255 + $0x14] sm:$0x1]
      %v1380 = vld [vmem:[%s1255 + $0x18] sm:$0xf]
      %v1381 = vld [vmem:[%s1255 + $0x1c] sm:$0x1]
      %v1382 = vld [vmem:[%s1255 + $0x20] sm:$0xf]
      %v1383 = vld [vmem:[%s1255 + $0x24] sm:$0x1]
      %v1384 = vld [vmem:[%s1255 + $0x28] sm:$0xf]
      %v1385 = vld [vmem:[%s1255 + $0x2c] sm:$0x1]
      %v1386 = vld [vmem:[%s1255 + $0x30] sm:$0xf]
      %v1387 = vld [vmem:[%s1255 + $0x34] sm:$0x1]
      %v1388 = vld [vmem:[%s1255 + $0x38] sm:$0xf]
      %v1389 = vld [vmem:[%s1255 + $0x3c] sm:$0x1]
      %v1391 = vshrl.u32 %v1374, 16
      %v1393 = vrot.slane %v1391, 4
      %v1394 = vshll.u32 %v1374, 16
      %v1396 = vrot.slane %v1394, 5
      %v1397 = vor.u32 %v1393, %v1396
      %v1398 = vrot.slane %v1397, 4
      %v1400 = vshll.u32 %v1375, 16
      %v1402 = vrot.slane %v1400, 5
      %v1403 = vsel %vm272, %v1398, %v1402
      %v1405 = vshrl.u32 %v1376, 16
      %v1407 = vrot.slane %v1405, 4
      %v1408 = vshll.u32 %v1376, 16
      %v1410 = vrot.slane %v1408, 5
      %v1411 = vor.u32 %v1407, %v1410
      %v1412 = vrot.slane %v1411, 4
      %v1414 = vshll.u32 %v1377, 16
      %v1416 = vrot.slane %v1414, 5
      %v1417 = vsel %vm272, %v1412, %v1416
      %v1419 = vshrl.u32 %v1378, 16
      %v1421 = vrot.slane %v1419, 4
      %v1422 = vshll.u32 %v1378, 16
      %v1424 = vrot.slane %v1422, 5
      %v1425 = vor.u32 %v1421, %v1424
      %v1426 = vrot.slane %v1425, 4
      %v1428 = vshll.u32 %v1379, 16
      %v1430 = vrot.slane %v1428, 5
      %v1431 = vsel %vm272, %v1426, %v1430
      %v1433 = vshrl.u32 %v1380, 16
      %v1435 = vrot.slane %v1433, 4
      %v1436 = vshll.u32 %v1380, 16
      %v1438 = vrot.slane %v1436, 5
      %v1439 = vor.u32 %v1435, %v1438
      %v1440 = vrot.slane %v1439, 4
      %v1442 = vshll.u32 %v1381, 16
      %v1444 = vrot.slane %v1442, 5
      %v1445 = vsel %vm272, %v1440, %v1444
      %v1447 = vshrl.u32 %v1382, 16
      %v1449 = vrot.slane %v1447, 4
      %v1450 = vshll.u32 %v1382, 16
      %v1452 = vrot.slane %v1450, 5
      %v1453 = vor.u32 %v1449, %v1452
      %v1454 = vrot.slane %v1453, 4
      %v1456 = vshll.u32 %v1383, 16
      %v1458 = vrot.slane %v1456, 5
      %v1459 = vsel %vm272, %v1454, %v1458
      %v1461 = vshrl.u32 %v1384, 16
      %v1463 = vrot.slane %v1461, 4
      %v1464 = vshll.u32 %v1384, 16
      %v1466 = vrot.slane %v1464, 5
      %v1467 = vor.u32 %v1463, %v1466
      %v1468 = vrot.slane %v1467, 4
      %v1470 = vshll.u32 %v1385, 16
      %v1472 = vrot.slane %v1470, 5
      %v1473 = vsel %vm272, %v1468, %v1472
      %v1475 = vshrl.u32 %v1386, 16
      %v1477 = vrot.slane %v1475, 4
      %v1478 = vshll.u32 %v1386, 16
      %v1480 = vrot.slane %v1478, 5
      %v1481 = vor.u32 %v1477, %v1480
      %v1482 = vrot.slane %v1481, 4
      %v1484 = vshll.u32 %v1387, 16
      %v1486 = vrot.slane %v1484, 5
      %v1487 = vsel %vm272, %v1482, %v1486
      %v1489 = vshrl.u32 %v1388, 16
      %v1491 = vrot.slane %v1489, 4
      %v1492 = vshll.u32 %v1388, 16
      %v1494 = vrot.slane %v1492, 5
      %v1495 = vor.u32 %v1491, %v1494
      %v1496 = vrot.slane %v1495, 4
      %v1498 = vshll.u32 %v1389, 16
      %v1500 = vrot.slane %v1498, 5
      %v1501 = vsel %vm272, %v1496, %v1500
      %s1502 = scalar_lea.vmem %s1, 28
      %v1503 = vld [vmem:[%s1502] sm:$0xf]
      %v1504 = vunpack.c.l.b16 %v1403
      %v1505 = vunpack.c.l.b16 %v1417
      %v1506 = vunpack.c.l.b16 %v1431
      %v1507 = vunpack.c.l.b16 %v1445
      %v1508 = vunpack.c.l.b16 %v1459
      %v1509 = vunpack.c.l.b16 %v1473
      %v1510 = vunpack.c.l.b16 %v1487
      %v1511 = vunpack.c.l.b16 %v1501
      %v1512 = vpack.c.b16 %v1505, %v1504
      %v1513 = vpack.c.b16 %v1507, %v1506
      %v1514 = vpack.c.b16 %v1509, %v1508
      %v1515 = vpack.c.b16 %v1511, %v1510
      %v1517 = vsel %vm399, %v1512, 0
      %v1520 = vsel %vm399, %v1513, 0
      %v1523 = vsel %vm399, %v1514, 0
      %v1526 = vsel %vm399, %v1515, 0
      %v1529 = vsel %vm412, %v1503, 0
      %1531 = vmatprep.subr.bf16.mxu0 0
      %1532 = vmatpush1.bf16.msra.mxu0 %v1529
      %1533 = vmatprep.subr.bf16.mxu0 0
      %1534 = vmatpush1.bf16.msra.mxu0 0
      %1535 = vmatprep.subr.bf16.mxu0 0
      %1536 = vmatpush1.bf16.msra.mxu0 0
      %1537 = vmatprep.subr.bf16.mxu0 0
      %1538 = vmatpush1.bf16.msra.mxu0 0
      %1539 = vmatprep.subr.bf16.mxu0 0
      %1540 = vmatpush1.bf16.msra.mxu0 0
      %1541 = vmatprep.subr.bf16.mxu0 0
      %1542 = vmatpush1.bf16.msra.mxu0 0
      %1543 = vmatprep.subr.bf16.mxu0 0
      %1544 = vmatpush1.bf16.msra.mxu0 0
      %1545 = vmatprep.subr.bf16.mxu0 0
      %1546 = vmatpush1.bf16.msra.mxu0 0
      %1547 = vmatprep.subr.bf16.mxu0 0
      %1548 = vmatpush1.bf16.msra.mxu0 0
      %1549 = vmatprep.subr.bf16.mxu0 0
      %1550 = vmatpush1.bf16.msra.mxu0 0
      %1551 = vmatprep.subr.bf16.mxu0 0
      %1552 = vmatpush1.bf16.msra.mxu0 0
      %1553 = vmatprep.subr.bf16.mxu0 0
      %1554 = vmatpush1.bf16.msra.mxu0 0
      %1555 = vmatprep.subr.bf16.mxu0 0
      %1556 = vmatpush1.bf16.msra.mxu0 0
      %1557 = vmatprep.subr.bf16.mxu0 0
      %1558 = vmatpush1.bf16.msra.mxu0 0
      %1559 = vmatprep.subr.bf16.mxu0 0
      %1560 = vmatpush1.bf16.msra.mxu0 0
      %1561 = vmatprep.subr.bf16.mxu0 0
      %1562 = vmatpush1.bf16.msra.mxu0 0
      %1563 = vmatprep.mubr.bf16.mxu0 0
      %1564 = vmatmul.mubr.bf16.gmra.mrb[0].mxu0 %v1517
      %v1565 = vpop.f32.mrb[0].mxu0
      %v1566 = vadd.f32 0.0, %v1565
      %v1567 = vpop.f32.mrb[0].mxu0
      %v1568 = vpop.f32.mrb[0].mxu0
      %v1569 = vadd.f32 0.0, %v1568
      %v1570 = vpop.f32.mrb[0].mxu0
      %1571 = vmatprep.mubr.bf16.mxu0 0
      %1572 = vmatmul.mubr.bf16.gmra.mrb[0].mxu0 %v1520
      %v1573 = vpop.f32.mrb[0].mxu0
      %v1574 = vadd.f32 0.0, %v1573
      %v1575 = vpop.f32.mrb[0].mxu0
      %v1576 = vpop.f32.mrb[0].mxu0
      %v1577 = vadd.f32 0.0, %v1576
      %v1578 = vpop.f32.mrb[0].mxu0
      %1579 = vmatprep.mubr.bf16.mxu0 0
      %1580 = vmatmul.mubr.bf16.gmra.mrb[0].mxu0 %v1523
      %v1581 = vpop.f32.mrb[0].mxu0
      %v1582 = vadd.f32 0.0, %v1581
      %v1583 = vpop.f32.mrb[0].mxu0
      %v1584 = vpop.f32.mrb[0].mxu0
      %v1585 = vadd.f32 0.0, %v1584
      %v1586 = vpop.f32.mrb[0].mxu0
      %1587 = vmatprep.mubr.bf16.mxu0 0
      %1588 = vmatmul.mubr.bf16.gmra.mrb[0].mxu0 %v1526
      %v1589 = vpop.f32.mrb[0].mxu0
      %v1590 = vadd.f32 0.0, %v1589
      %v1591 = vpop.f32.mrb[0].mxu0
      %v1592 = vpop.f32.mrb[0].mxu0
      %v1593 = vadd.f32 0.0, %v1592
      %v1594 = vpop.f32.mrb[0].mxu0
      %1595 = vdwg.mxu0
      %v1596 = vadd.f32 %v1366, %v1566
      %v1597 = vadd.f32 %v1367, %v1569
      %v1598 = vadd.f32 %v1368, %v1574
      %v1599 = vadd.f32 %v1369, %v1577
      %v1600 = vadd.f32 %v1370, %v1582
      %v1601 = vadd.f32 %v1371, %v1585
      %v1602 = vadd.f32 %v1372, %v1590
      %v1603 = vadd.f32 %v1373, %v1593
      %v1604 = vld [vmem:[%s1255] sm:$0xe]
      %v1605 = vld [vmem:[%s1255 + $0x8] sm:$0xe]
      %v1606 = vld [vmem:[%s1255 + $0x10] sm:$0xe]
      %v1607 = vld [vmem:[%s1255 + $0x18] sm:$0xe]
      %v1608 = vld [vmem:[%s1255 + $0x20] sm:$0xe]
      %v1609 = vld [vmem:[%s1255 + $0x28] sm:$0xe]
      %v1610 = vld [vmem:[%s1255 + $0x30] sm:$0xe]
      %v1611 = vld [vmem:[%s1255 + $0x38] sm:$0xe]
      %v1628 = vrot.slane %v1604, 5
      %v1629 = vrot.slane %v1628, 4
      %v1630 = vrot.slane %v1375, 5
      %v1631 = vsel %vm607, %v1629, %v1630
      %v1632 = vrot.slane %v1605, 5
      %v1633 = vrot.slane %v1632, 4
      %v1634 = vrot.slane %v1377, 5
      %v1635 = vsel %vm607, %v1633, %v1634
      %v1636 = vrot.slane %v1606, 5
      %v1637 = vrot.slane %v1636, 4
      %v1638 = vrot.slane %v1379, 5
      %v1639 = vsel %vm607, %v1637, %v1638
      %v1640 = vrot.slane %v1607, 5
      %v1641 = vrot.slane %v1640, 4
      %v1642 = vrot.slane %v1381, 5
      %v1643 = vsel %vm607, %v1641, %v1642
      %v1644 = vrot.slane %v1608, 5
      %v1645 = vrot.slane %v1644, 4
      %v1646 = vrot.slane %v1383, 5
      %v1647 = vsel %vm607, %v1645, %v1646
      %v1648 = vrot.slane %v1609, 5
      %v1649 = vrot.slane %v1648, 4
      %v1650 = vrot.slane %v1385, 5
      %v1651 = vsel %vm607, %v1649, %v1650
      %v1652 = vrot.slane %v1610, 5
      %v1653 = vrot.slane %v1652, 4
      %v1654 = vrot.slane %v1387, 5
      %v1655 = vsel %vm607, %v1653, %v1654
      %v1656 = vrot.slane %v1611, 5
      %v1657 = vrot.slane %v1656, 4
      %v1658 = vrot.slane %v1389, 5
      %v1659 = vsel %vm607, %v1657, %v1658
      %s1660 = scalar_lea.vmem %s1, 32
      %v1661 = vld [vmem:[%s1660] sm:$0xf]
      %v1662 = vunpack.c.l.b16 %v1631
      %v1663 = vunpack.c.l.b16 %v1635
      %v1664 = vunpack.c.l.b16 %v1639
      %v1665 = vunpack.c.l.b16 %v1643
      %v1666 = vunpack.c.l.b16 %v1647
      %v1667 = vunpack.c.l.b16 %v1651
      %v1668 = vunpack.c.l.b16 %v1655
      %v1669 = vunpack.c.l.b16 %v1659
      %v1670 = vpack.c.b16 %v1663, %v1662
      %v1671 = vpack.c.b16 %v1665, %v1664
      %v1672 = vpack.c.b16 %v1667, %v1666
      %v1673 = vpack.c.b16 %v1669, %v1668
      %v1675 = vsel %vm399, %v1670, 0
      %v1678 = vsel %vm399, %v1671, 0
      %v1681 = vsel %vm399, %v1672, 0
      %v1684 = vsel %vm399, %v1673, 0
      %v1687 = vsel %vm412, %v1661, 0
      %1689 = vmatprep.subr.bf16.mxu0 0
      %1690 = vmatpush1.bf16.msra.mxu0 %v1687
      %1691 = vmatprep.subr.bf16.mxu0 0
      %1692 = vmatpush1.bf16.msra.mxu0 0
      %1693 = vmatprep.subr.bf16.mxu0 0
      %1694 = vmatpush1.bf16.msra.mxu0 0
      %1695 = vmatprep.subr.bf16.mxu0 0
      %1696 = vmatpush1.bf16.msra.mxu0 0
      %1697 = vmatprep.subr.bf16.mxu0 0
      %1698 = vmatpush1.bf16.msra.mxu0 0
      %1699 = vmatprep.subr.bf16.mxu0 0
      %1700 = vmatpush1.bf16.msra.mxu0 0
      %1701 = vmatprep.subr.bf16.mxu0 0
      %1702 = vmatpush1.bf16.msra.mxu0 0
      %1703 = vmatprep.subr.bf16.mxu0 0
      %1704 = vmatpush1.bf16.msra.mxu0 0
      %1705 = vmatprep.subr.bf16.mxu0 0
      %1706 = vmatpush1.bf16.msra.mxu0 0
      %1707 = vmatprep.subr.bf16.mxu0 0
      %1708 = vmatpush1.bf16.msra.mxu0 0
      %1709 = vmatprep.subr.bf16.mxu0 0
      %1710 = vmatpush1.bf16.msra.mxu0 0
      %1711 = vmatprep.subr.bf16.mxu0 0
      %1712 = vmatpush1.bf16.msra.mxu0 0
      %1713 = vmatprep.subr.bf16.mxu0 0
      %1714 = vmatpush1.bf16.msra.mxu0 0
      %1715 = vmatprep.subr.bf16.mxu0 0
      %1716 = vmatpush1.bf16.msra.mxu0 0
      %1717 = vmatprep.subr.bf16.mxu0 0
      %1718 = vmatpush1.bf16.msra.mxu0 0
      %1719 = vmatprep.subr.bf16.mxu0 0
      %1720 = vmatpush1.bf16.msra.mxu0 0
      %1721 = vmatprep.mubr.bf16.mxu0 0
      %1722 = vmatmul.mubr.bf16.gmra.mrb[0].mxu0 %v1675
      %v1723 = vpop.f32.mrb[0].mxu0
      %v1724 = vadd.f32 0.0, %v1723
      %v1725 = vpop.f32.mrb[0].mxu0
      %v1726 = vpop.f32.mrb[0].mxu0
      %v1727 = vadd.f32 0.0, %v1726
      %v1728 = vpop.f32.mrb[0].mxu0
      %1729 = vmatprep.mubr.bf16.mxu0 0
      %1730 = vmatmul.mubr.bf16.gmra.mrb[0].mxu0 %v1678
      %v1731 = vpop.f32.mrb[0].mxu0
      %v1732 = vadd.f32 0.0, %v1731
      %v1733 = vpop.f32.mrb[0].mxu0
      %v1734 = vpop.f32.mrb[0].mxu0
      %v1735 = vadd.f32 0.0, %v1734
      %v1736 = vpop.f32.mrb[0].mxu0
      %1737 = vmatprep.mubr.bf16.mxu0 0
      %1738 = vmatmul.mubr.bf16.gmra.mrb[0].mxu0 %v1681
      %v1739 = vpop.f32.mrb[0].mxu0
      %v1740 = vadd.f32 0.0, %v1739
      %v1741 = vpop.f32.mrb[0].mxu0
      %v1742 = vpop.f32.mrb[0].mxu0
      %v1743 = vadd.f32 0.0, %v1742
      %v1744 = vpop.f32.mrb[0].mxu0
      %1745 = vmatprep.mubr.bf16.mxu0 0
      %1746 = vmatmul.mubr.bf16.gmra.mrb[0].mxu0 %v1684
      %v1747 = vpop.f32.mrb[0].mxu0
      %v1748 = vadd.f32 0.0, %v1747
      %v1749 = vpop.f32.mrb[0].mxu0
      %v1750 = vpop.f32.mrb[0].mxu0
      %v1751 = vadd.f32 0.0, %v1750
      %v1752 = vpop.f32.mrb[0].mxu0
      %1753 = vdwg.mxu0
      %v1754 = vadd.f32 %v1596, %v1724
      %v1755 = vadd.f32 %v1597, %v1727
      %v1756 = vadd.f32 %v1598, %v1732
      %v1757 = vadd.f32 %v1599, %v1735
      %v1758 = vadd.f32 %v1600, %v1740
      %v1759 = vadd.f32 %v1601, %v1743
      %v1760 = vadd.f32 %v1602, %v1748
      %v1761 = vadd.f32 %v1603, %v1751
      %v1762 = vld [vmem:[%s2] sm:$0x1]
      %v1764 = vlaneseq
      %v1765 = vshrl.u32 %v1764, 7
      %v1766 = vsub.s32 0, %v1765
      %v1767 = vrot.slane %v1762, %v1766
      %v1769 = vadd.f32 %v1754, %v1767
      %v1770 = vadd.f32 %v1755, %v1767
      %v1771 = vadd.f32 %v1756, %v1767
      %v1772 = vadd.f32 %v1757, %v1767
      %v1773 = vadd.f32 %v1758, %v1767
      %v1774 = vadd.f32 %v1759, %v1767
      %v1775 = vadd.f32 %v1760, %v1767
      %v1776 = vadd.f32 %v1761, %v1767
      %v1777 = vmax.f32 %v1769, 0.0
      %v1778 = vmax.f32 %v1770, 0.0
      %v1779 = vmax.f32 %v1771, 0.0
      %v1780 = vmax.f32 %v1772, 0.0
      %v1781 = vmax.f32 %v1773, 0.0
      %v1782 = vmax.f32 %v1774, 0.0
      %v1783 = vmax.f32 %v1775, 0.0
      %v1784 = vmax.f32 %v1776, 0.0
      %v1785 = vpack.c.bf16 %v1778, %v1777
      %v1786 = vpack.c.bf16 %v1780, %v1779
      %v1787 = vpack.c.bf16 %v1782, %v1781
      %v1788 = vpack.c.bf16 %v1784, %v1783
      %v1789 = vld [vmem:[%s3] sm:$0x3]
      %v1790 = vld [vmem:[%s4] sm:$0x1]
      %v1792 = vlaneseq
      %v1793 = vshrl.u32 %v1792, 7
      %v1794 = vsub.s32 0, %v1793
      %v1795 = vrot.slane %v1790, %v1794
      %vm1797 = vcmask 31744
      %v1799 = vsel %vm1797, %v1785, 0
      %v1802 = vsel %vm1797, %v1786, 0
      %v1805 = vsel %vm1797, %v1787, 0
      %v1808 = vsel %vm1797, %v1788, 0
      %vm1810 = vcmask 1041408
      %v1812 = vsel %vm1810, %v1789, 0
      %1814 = vmatprep.subr.bf16.mxu0 0
      %1815 = vmatpush1.bf16.msra.mxu0 %v1812
      %1816 = vmatprep.subr.bf16.mxu0 0
      %1817 = vmatpush1.bf16.msra.mxu0 0
      %1818 = vmatprep.subr.bf16.mxu0 0
      %1819 = vmatpush1.bf16.msra.mxu0 0
      %1820 = vmatprep.subr.bf16.mxu0 0
      %1821 = vmatpush1.bf16.msra.mxu0 0
      %1822 = vmatprep.subr.bf16.mxu0 0
      %1823 = vmatpush1.bf16.msra.mxu0 0
      %1824 = vmatprep.subr.bf16.mxu0 0
      %1825 = vmatpush1.bf16.msra.mxu0 0
      %1826 = vmatprep.subr.bf16.mxu0 0
      %1827 = vmatpush1.bf16.msra.mxu0 0
      %1828 = vmatprep.subr.bf16.mxu0 0
      %1829 = vmatpush1.bf16.msra.mxu0 0
      %1830 = vmatprep.subr.bf16.mxu0 0
      %1831 = vmatpush1.bf16.msra.mxu0 0
      %1832 = vmatprep.subr.bf16.mxu0 0
      %1833 = vmatpush1.bf16.msra.mxu0 0
      %1834 = vmatprep.subr.bf16.mxu0 0
      %1835 = vmatpush1.bf16.msra.mxu0 0
      %1836 = vmatprep.subr.bf16.mxu0 0
      %1837 = vmatpush1.bf16.msra.mxu0 0
      %1838 = vmatprep.subr.bf16.mxu0 0
      %1839 = vmatpush1.bf16.msra.mxu0 0
      %1840 = vmatprep.subr.bf16.mxu0 0
      %1841 = vmatpush1.bf16.msra.mxu0 0
      %1842 = vmatprep.subr.bf16.mxu0 0
      %1843 = vmatpush1.bf16.msra.mxu0 0
      %1844 = vmatprep.subr.bf16.mxu0 0
      %1845 = vmatpush1.bf16.msra.mxu0 0
      %1846 = vmatprep.mubr.bf16.mxu0 0
      %1847 = vmatmul.mubr.bf16.gmra.mrb[0].mxu0 %v1799
      %v1848 = vpop.f32.mrb[0].mxu0
      %v1849 = vadd.f32 %v1795, %v1848
      %v1850 = vpop.f32.mrb[0].mxu0
      %v1851 = vpop.f32.mrb[0].mxu0
      %v1852 = vadd.f32 %v1795, %v1851
      %v1853 = vpop.f32.mrb[0].mxu0
      %1854 = vmatprep.mubr.bf16.mxu0 0
      %1855 = vmatmul.mubr.bf16.gmra.mrb[0].mxu0 %v1802
      %v1856 = vpop.f32.mrb[0].mxu0
      %v1857 = vadd.f32 %v1795, %v1856
      %v1858 = vpop.f32.mrb[0].mxu0
      %v1859 = vpop.f32.mrb[0].mxu0
      %v1860 = vadd.f32 %v1795, %v1859
      %v1861 = vpop.f32.mrb[0].mxu0
      %1862 = vmatprep.mubr.bf16.mxu0 0
      %1863 = vmatmul.mubr.bf16.gmra.mrb[0].mxu0 %v1805
      %v1864 = vpop.f32.mrb[0].mxu0
      %v1865 = vadd.f32 %v1795, %v1864
      %v1866 = vpop.f32.mrb[0].mxu0
      %v1867 = vpop.f32.mrb[0].mxu0
      %v1868 = vadd.f32 %v1795, %v1867
      %v1869 = vpop.f32.mrb[0].mxu0
      %1870 = vmatprep.mubr.bf16.mxu0 0
      %1871 = vmatmul.mubr.bf16.gmra.mrb[0].mxu0 %v1808
      %v1872 = vpop.f32.mrb[0].mxu0
      %v1873 = vadd.f32 %v1795, %v1872
      %v1874 = vpop.f32.mrb[0].mxu0
      %v1875 = vpop.f32.mrb[0].mxu0
      %v1876 = vadd.f32 %v1795, %v1875
      %v1877 = vpop.f32.mrb[0].mxu0
      %1878 = vdwg.mxu0
      %vm1879 = vcmask 48128
      %1880 = vst.msk [vmem:[%s246] sm:$0xff] %vm1879, %v1849
      %1881 = vst.msk [vmem:[%s246 + $0x8] sm:$0xff] %vm1879, %v1852
      %1882 = vst.msk [vmem:[%s246 + $0x10] sm:$0xff] %vm1879, %v1857
      %1883 = vst.msk [vmem:[%s246 + $0x18] sm:$0xff] %vm1879, %v1860
      %1884 = vst.msk [vmem:[%s246 + $0x20] sm:$0xff] %vm1879, %v1865
      %1885 = vst.msk [vmem:[%s246 + $0x28] sm:$0xff] %vm1879, %v1868
      %1886 = vst.msk [vmem:[%s246 + $0x30] sm:$0xff] %vm1879, %v1873
      %1887 = vst.msk [vmem:[%s246 + $0x38] sm:$0xff] %vm1879, %v1876
      %s1888 = smul.u32 8, %s21
      %p1889 = scmp.lt.s32.totalorder %s20, 1
      %s1890 = scalar_select %p1889, %s20, 1
      %p1891 = scmp.lt.s32.totalorder %s1888, 7
      %s1892 = scalar_select %p1891, %s1888, 7
      %s1893 = smul.addr %s1890, 8
      %s1894 = sadd.s32 %s1892, %s1893
      %s1895 = smul.addr %s1894, 8
      %s1896 = scalar_lea.vmem %s5, %s1895
      // Predicated region
      $region41: #{fcn_forward.8} parent=39 // pred_check
        %p1897 = pneg %p158
      $region42: #{fcn_forward.8} parent=39 // pred_check_branch
        %1899 = sbr.rel (%p1897) target = $region44
      $region43: #{fcn_forward.8} parent=39 // pred_region
        %s1900 = smul.u32 8, %s21
      $region44: #{fcn_forward.8} parent=39 // pred_fallthru
        _
    $region40: #{fcn_forward.8} parent=5 // pred_fallthru
      _
    %p1901 = scmp.le.s32.totalorder 2, %s11
    // Predicated region
    $region45: #{fcn_forward.8} parent=5 // pred_check
      %p1902 = pneg %p1901
    $region46: #{fcn_forward.8} parent=5 // pred_check_branch
      %1904 = sbr.rel (%p1902) target = $region48
    $region47: #{fcn_forward.8} parent=5 // pred_region
      %s1905 = ssub.s32 %s11, 2
      // Predicated region
      $region49: #{fcn_forward.8} parent=47 // pred_check
        %p1906 = pneg %p164
      $region50: #{fcn_forward.8} parent=47 // pred_check_branch
        %1908 = sbr.rel (%p1906) target = $region52
      $region51: #{fcn_forward.8} parent=47 // pred_region
        %s1909 = smul.u32 8, %s23
        %p1910 = scmp.lt.s32.totalorder %s22, 1
        %s1911 = scalar_select %p1910, %s22, 1
        %p1912 = scmp.lt.s32.totalorder %s1909, 7
        %s1913 = scalar_select %p1912, %s1909, 7
        %s1914 = smul.addr %s1911, 8
        %s1915 = sadd.s32 %s1913, %s1914
        %s1916 = smul.addr %s1915, 8
        %s1917 = scalar_lea.vmem %s5, %s1916
      $region52: #{fcn_forward.8} parent=47 // pred_fallthru
        _
    $region48: #{fcn_forward.8} parent=5 // pred_fallthru
      _
  $region6: #{fcn_forward.8} parent=0 // loop_footer
    %s15 = sadd.s32 1, %s11
  $region7: #{fcn_forward.8} parent=0 // loop_footer_branch
    %10 = sbr.rel target = $region3
  $region8: #{fcn_forward.8} parent=0 // loop_exit
    _

// kernel: fcn_forward.9
$region0: #{fcn_forward.9}
  #allocation0 [shape = 'u32[]', space=smem, size = 0x4, offset = 0x4, fixed_abs, tag = 'smem constant byte address 0x4 - core index']
  #allocation1 [shape = 'u32[144,128]{1,0:T(1,128)}', space=vmem, size = 0x12000, scoped, tag = 'internal scratch']
  %s0 = inlined_call_operand.vmem [shape: f32[12,4,4], index: 0, kind: input, shape index: {}]
  %s1 = inlined_call_operand.vmem [shape: f32[12,8,8], index: 1, kind: input, shape index: {}]
  %s2 = inlined_call_operand.vmem [shape: f32[16,4], index: 2, kind: input, shape index: {}]
  %s3 = inlined_call_operand.vmem [shape: f32[4,16], index: 3, kind: input, shape index: {}]
  %s4 = inlined_call_operand.vmem [shape: f32[16,8], index: 4, kind: input, shape index: {}]
  %s5 = inlined_call_operand.vmem [shape: f32[8,16], index: 5, kind: input, shape index: {}]
  %s6 = inlined_call_operand.hbm [shape: f32[12,16,16], index: 6, kind: output, shape index: {}]
  %s7 = sld [smem:[#allocation0]]
  $region34: #{fcn_forward.9} parent=0
    _
  %s9 = ssub.s32 1, %s7
  %s10 = scalar_select 0, %s9, %s7
  $region1: #{fcn_forward.9} parent=0
    #allocation2 [shape = 'u8[98304]{0}', space=vmem, size = 0x18000, scoped, tag = 'output window, operand 0, single buffered']
    #allocation3 [shape = 's32[1]{0}', space=sflag, size = 0x4, scoped, tag = 'scoped memory for fcn_forward.9']
    %11 = vsyncpa [#allocation3], 0
    // Predicated region
    $region2: #{fcn_forward.9} parent=1 // pred_check
      _
    $region3: #{fcn_forward.9} parent=1 // pred_check_branch
      %13 = sbr.rel (0) target = $region5
    $region4: #{fcn_forward.9} parent=1 // pred_region
      _
    $region5: #{fcn_forward.9} parent=1 // pred_fallthru
      _
    // Predicated region
    $region6: #{fcn_forward.9} parent=1 // pred_check
      _
    $region7: #{fcn_forward.9} parent=1 // pred_check_branch
      %15 = sbr.rel (0) target = $region9
    $region8: #{fcn_forward.9} parent=1 // pred_region
      _
    $region9: #{fcn_forward.9} parent=1 // pred_fallthru
      _
    // Predicated region
    $region10: #{fcn_forward.9} parent=1 // pred_check
      _
    $region11: #{fcn_forward.9} parent=1 // pred_check_branch
      %17 = sbr.rel (0) target = $region13
    $region12: #{fcn_forward.9} parent=1 // pred_region
      _
    $region13: #{fcn_forward.9} parent=1 // pred_fallthru
      _
    // Predicated region
    $region14: #{fcn_forward.9} parent=1 // pred_check
      _
    $region15: #{fcn_forward.9} parent=1 // pred_check_branch
      %19 = sbr.rel (0) target = $region17
    $region16: #{fcn_forward.9} parent=1 // pred_region
      _
    $region17: #{fcn_forward.9} parent=1 // pred_fallthru
      _
    // Predicated region
    $region18: #{fcn_forward.9} parent=1 // pred_check
      _
    $region19: #{fcn_forward.9} parent=1 // pred_check_branch
      %21 = sbr.rel (0) target = $region21
    $region20: #{fcn_forward.9} parent=1 // pred_region
      _
    $region21: #{fcn_forward.9} parent=1 // pred_fallthru
      _
    // Predicated region
    $region22: #{fcn_forward.9} parent=1 // pred_check
      _
    $region23: #{fcn_forward.9} parent=1 // pred_check_branch
      %23 = sbr.rel (0) target = $region25
    $region24: #{fcn_forward.9} parent=1 // pred_region
      _
    $region25: #{fcn_forward.9} parent=1 // pred_fallthru
      _
    %v24 = vld [vmem:[%s2] sm:$0xff]
    %v25 = vld [vmem:[%s2 + $0x8] sm:$0xff]
    %v26 = vld [vmem:[%s3] sm:$0xf]
    %v27 = vld [vmem:[%s0] sm:$0xf]
    %v28 = vld [vmem:[%s0 + $0x4] sm:$0xf]
    %v29 = vld [vmem:[%s0 + $0x8] sm:$0xf]
    %v30 = vld [vmem:[%s0 + $0xc] sm:$0xf]
    %v31 = vld [vmem:[%s0 + $0x10] sm:$0xf]
    %v32 = vld [vmem:[%s0 + $0x14] sm:$0xf]
    %v33 = vld [vmem:[%s0 + $0x18] sm:$0xf]
    %v34 = vld [vmem:[%s0 + $0x1c] sm:$0xf]
    %v35 = vld [vmem:[%s0 + $0x20] sm:$0xf]
    %v36 = vld [vmem:[%s0 + $0x24] sm:$0xf]
    %v37 = vld [vmem:[%s0 + $0x28] sm:$0xf]
    %v38 = vld [vmem:[%s0 + $0x2c] sm:$0xf]
    %v51 = vcombine.low %v27, %v28
    %v52 = vcombine.low %v29, %v30
    %v53 = vcombine.low %v31, %v32
    %v54 = vcombine.low %v33, %v34
    %v55 = vcombine.low %v35, %v36
    %v56 = vcombine.low %v37, %v38
    %vm57 = vcmask 31744
    %v58 = vsel %vm57, %v51, 0
    %v60 = vsel %vm57, %v52, 0
    %v62 = vsel %vm57, %v53, 0
    %v64 = vsel %vm57, %v54, 0
    %v66 = vsel %vm57, %v55, 0
    %v68 = vsel %vm57, %v56, 0
    %vm70 = vcmask 1043456
    %v72 = vsel %vm70, %v26, 0
    %74 = vmatprep.subr.mxu0 0.0
    %75 = vmatpush1.msra.mxu0 %v72
    %76 = vmatprep.subr.mxu0 0.0
    %77 = vmatpush1.msra.mxu0 0.0
    %78 = vmatprep.subr.mxu0 0.0
    %79 = vmatpush1.msra.mxu0 0.0
    %80 = vmatprep.subr.mxu0 0.0
    %81 = vmatpush1.msra.mxu0 0.0
    %82 = vmatprep.subr.mxu0 0.0
    %83 = vmatpush1.msra.mxu0 0.0
    %84 = vmatprep.subr.mxu0 0.0
    %85 = vmatpush1.msra.mxu0 0.0
    %86 = vmatprep.subr.mxu0 0.0
    %87 = vmatpush1.msra.mxu0 0.0
    %88 = vmatprep.subr.mxu0 0.0
    %89 = vmatpush1.msra.mxu0 0.0
    %90 = vmatprep.subr.mxu0 0.0
    %91 = vmatpush1.msra.mxu0 0.0
    %92 = vmatprep.subr.mxu0 0.0
    %93 = vmatpush1.msra.mxu0 0.0
    %94 = vmatprep.subr.mxu0 0.0
    %95 = vmatpush1.msra.mxu0 0.0
    %96 = vmatprep.subr.mxu0 0.0
    %97 = vmatpush1.msra.mxu0 0.0
    %98 = vmatprep.subr.mxu0 0.0
    %99 = vmatpush1.msra.mxu0 0.0
    %100 = vmatprep.subr.mxu0 0.0
    %101 = vmatpush1.msra.mxu0 0.0
    %102 = vmatprep.subr.mxu0 0.0
    %103 = vmatpush1.msra.mxu0 0.0
    %104 = vmatprep.subr.mxu0 0.0
    %105 = vmatpush1.msra.mxu0 0.0
    %106 = vmatprep.subr.mxu0 0.0
    %107 = vmatpush1.msra.mxu0 0.0
    %108 = vmatprep.subr.mxu0 0.0
    %109 = vmatpush1.msra.mxu0 0.0
    %110 = vmatprep.subr.mxu0 0.0
    %111 = vmatpush1.msra.mxu0 0.0
    %112 = vmatprep.subr.mxu0 0.0
    %113 = vmatpush1.msra.mxu0 0.0
    %114 = vmatprep.subr.mxu0 0.0
    %115 = vmatpush1.msra.mxu0 0.0
    %116 = vmatprep.subr.mxu0 0.0
    %117 = vmatpush1.msra.mxu0 0.0
    %118 = vmatprep.subr.mxu0 0.0
    %119 = vmatpush1.msra.mxu0 0.0
    %120 = vmatprep.subr.mxu0 0.0
    %121 = vmatpush1.msra.mxu0 0.0
    %122 = vmatprep.subr.mxu0 0.0
    %123 = vmatpush1.msra.mxu0 0.0
    %124 = vmatprep.subr.mxu0 0.0
    %125 = vmatpush1.msra.mxu0 0.0
    %126 = vmatprep.subr.mxu0 0.0
    %127 = vmatpush1.msra.mxu0 0.0
    %128 = vmatprep.subr.mxu0 0.0
    %129 = vmatpush1.msra.mxu0 0.0
    %130 = vmatprep.subr.mxu0 0.0
    %131 = vmatpush1.msra.mxu0 0.0
    %132 = vmatprep.subr.mxu0 0.0
    %133 = vmatpush1.msra.mxu0 0.0
    %134 = vmatprep.subr.mxu0 0.0
    %135 = vmatpush1.msra.mxu0 0.0
    %136 = vmatprep.subr.mxu0 0.0
    %137 = vmatpush1.msra.mxu0 0.0
    %138 = vmatprep.mubr.f32.mxu0 0.0
    %139 = vmatmul.mubr.f32.gmra.mrb[0].mxu0 %v58
    %v140 = vpop.f32.mrb[0].mxu0
    %v141 = vadd.f32 0.0, %v140
    %v142 = vpop.f32.mrb[0].mxu0
    %143 = vmatprep.mubr.f32.mxu0 0.0
    %144 = vmatmul.mubr.f32.gmra.mrb[0].mxu0 %v60
    %v145 = vpop.f32.mrb[0].mxu0
    %v146 = vadd.f32 0.0, %v145
    %v147 = vpop.f32.mrb[0].mxu0
    %148 = vmatprep.mubr.f32.mxu0 0.0
    %149 = vmatmul.mubr.f32.gmra.mrb[0].mxu0 %v62
    %v150 = vpop.f32.mrb[0].mxu0
    %v151 = vadd.f32 0.0, %v150
    %v152 = vpop.f32.mrb[0].mxu0
    %153 = vmatprep.mubr.f32.mxu0 0.0
    %154 = vmatmul.mubr.f32.gmra.mrb[0].mxu0 %v64
    %v155 = vpop.f32.mrb[0].mxu0
    %v156 = vadd.f32 0.0, %v155
    %v157 = vpop.f32.mrb[0].mxu0
    %158 = vmatprep.mubr.f32.mxu0 0.0
    %159 = vmatmul.mubr.f32.gmra.mrb[0].mxu0 %v66
    %v160 = vpop.f32.mrb[0].mxu0
    %v161 = vadd.f32 0.0, %v160
    %v162 = vpop.f32.mrb[0].mxu0
    %163 = vmatprep.mubr.f32.mxu0 0.0
    %164 = vmatmul.mubr.f32.gmra.mrb[0].mxu0 %v68
    %v165 = vpop.f32.mrb[0].mxu0
    %v166 = vadd.f32 0.0, %v165
    %v167 = vpop.f32.mrb[0].mxu0
    %168 = vdwg.mxu0
    %v175 = vcombine.high %v141, %v141
    %v176 = vcombine.high %v146, %v146
    %v177 = vcombine.high %v151, %v151
    %v178 = vcombine.high %v156, %v156
    %v179 = vcombine.high %v161, %v161
    %v180 = vcombine.high %v166, %v166
    %v187 = vcombine.low %v141, %v146
    %v189 = vunpack.c.l.s4 1983009808
    %v190 = vunpack.c.0.s8 %v189
    %v191 = vlaneseq
    %v192 = vshrl.u32 %v191, 7
    %v193 = vsub.s32 %v190, %v192
    %v194 = vrot.slane %v187, %v193
    %v195 = vcombine.low %v175, %v176
    %v197 = vunpack.c.l.s4 1983009808
    %v198 = vunpack.c.0.s8 %v197
    %v199 = vlaneseq
    %v200 = vshrl.u32 %v199, 7
    %v201 = vsub.s32 %v198, %v200
    %v202 = vrot.slane %v195, %v201
    %v203 = vcombine.low %v194, %v202
    %v204 = vcombine.high %v194, %v202
    %v206 = vunpack.c.l.s4 1934713408
    %v207 = vunpack.c.0.s8 %v206
    %v208 = vlaneseq
    %v209 = vshrl.u32 %v208, 7
    %v210 = vsub.s32 %v207, %v209
    %v211 = vrot.slane %v203, %v210
    %v213 = vunpack.c.l.s4 1934713408
    %v214 = vunpack.c.0.s8 %v213
    %v215 = vlaneseq
    %v216 = vshrl.u32 %v215, 7
    %v217 = vsub.s32 %v214, %v216
    %v218 = vrot.slane %v204, %v217
    %v219 = vcombine.high %v211, 0.0
    %v220 = vcombine.high %v218, 0.0
    %v221 = vcombine.low %v151, %v156
    %v223 = vunpack.c.l.s4 1983009808
    %v224 = vunpack.c.0.s8 %v223
    %v225 = vlaneseq
    %v226 = vshrl.u32 %v225, 7
    %v227 = vsub.s32 %v224, %v226
    %v228 = vrot.slane %v221, %v227
    %v229 = vcombine.low %v177, %v178
    %v231 = vunpack.c.l.s4 1983009808
    %v232 = vunpack.c.0.s8 %v231
    %v233 = vlaneseq
    %v234 = vshrl.u32 %v233, 7
    %v235 = vsub.s32 %v232, %v234
    %v236 = vrot.slane %v229, %v235
    %v237 = vcombine.low %v228, %v236
    %v238 = vcombine.high %v228, %v236
    %v240 = vunpack.c.l.s4 1934713408
    %v241 = vunpack.c.0.s8 %v240
    %v242 = vlaneseq
    %v243 = vshrl.u32 %v242, 7
    %v244 = vsub.s32 %v241, %v243
    %v245 = vrot.slane %v237, %v244
    %v247 = vunpack.c.l.s4 1934713408
    %v248 = vunpack.c.0.s8 %v247
    %v249 = vlaneseq
    %v250 = vshrl.u32 %v249, 7
    %v251 = vsub.s32 %v248, %v250
    %v252 = vrot.slane %v238, %v251
    %v253 = vcombine.high %v245, 0.0
    %v254 = vcombine.high %v252, 0.0
    %v255 = vcombine.low %v161, %v166
    %v257 = vunpack.c.l.s4 1983009808
    %v258 = vunpack.c.0.s8 %v257
    %v259 = vlaneseq
    %v260 = vshrl.u32 %v259, 7
    %v261 = vsub.s32 %v258, %v260
    %v262 = vrot.slane %v255, %v261
    %v263 = vcombine.low %v179, %v180
    %v265 = vunpack.c.l.s4 1983009808
    %v266 = vunpack.c.0.s8 %v265
    %v267 = vlaneseq
    %v268 = vshrl.u32 %v267, 7
    %v269 = vsub.s32 %v266, %v268
    %v270 = vrot.slane %v263, %v269
    %v271 = vcombine.low %v262, %v270
    %v272 = vcombine.high %v262, %v270
    %v274 = vunpack.c.l.s4 1934713408
    %v275 = vunpack.c.0.s8 %v274
    %v276 = vlaneseq
    %v277 = vshrl.u32 %v276, 7
    %v278 = vsub.s32 %v275, %v277
    %v279 = vrot.slane %v271, %v278
    %v281 = vunpack.c.l.s4 1934713408
    %v282 = vunpack.c.0.s8 %v281
    %v283 = vlaneseq
    %v284 = vshrl.u32 %v283, 7
    %v285 = vsub.s32 %v282, %v284
    %v286 = vrot.slane %v272, %v285
    %v287 = vcombine.high %v279, 0.0
    %v288 = vcombine.high %v286, 0.0
    %v289 = vcombine.low %v211, %v218
    %v291 = vunpack.c.l.s4 1983009808
    %v292 = vunpack.c.0.s8 %v291
    %v293 = vlaneseq
    %v294 = vshrl.u32 %v293, 7
    %v295 = vsub.s32 %v292, %v294
    %v296 = vrot.slane %v289, %v295
    %v297 = vcombine.low %v219, %v220
    %v299 = vunpack.c.l.s4 1983009808
    %v300 = vunpack.c.0.s8 %v299
    %v301 = vlaneseq
    %v302 = vshrl.u32 %v301, 7
    %v303 = vsub.s32 %v300, %v302
    %v304 = vrot.slane %v297, %v303
    %v305 = vcombine.low %v296, %v304
    %v306 = vcombine.high %v296, %v304
    %v308 = vunpack.c.l.s4 1934713408
    %v309 = vunpack.c.0.s8 %v308
    %v310 = vlaneseq
    %v311 = vshrl.u32 %v310, 7
    %v312 = vsub.s32 %v309, %v311
    %v313 = vrot.slane %v305, %v312
    %v315 = vunpack.c.l.s4 1934713408
    %v316 = vunpack.c.0.s8 %v315
    %v317 = vlaneseq
    %v318 = vshrl.u32 %v317, 7
    %v319 = vsub.s32 %v316, %v318
    %v320 = vrot.slane %v306, %v319
    %v321 = vcombine.high %v313, 0.0
    %v322 = vcombine.high %v320, 0.0
    %v323 = vcombine.low %v245, %v252
    %v325 = vunpack.c.l.s4 1983009808
    %v326 = vunpack.c.0.s8 %v325
    %v327 = vlaneseq
    %v328 = vshrl.u32 %v327, 7
    %v329 = vsub.s32 %v326, %v328
    %v330 = vrot.slane %v323, %v329
    %v331 = vcombine.low %v253, %v254
    %v333 = vunpack.c.l.s4 1983009808
    %v334 = vunpack.c.0.s8 %v333
    %v335 = vlaneseq
    %v336 = vshrl.u32 %v335, 7
    %v337 = vsub.s32 %v334, %v336
    %v338 = vrot.slane %v331, %v337
    %v339 = vcombine.low %v330, %v338
    %v340 = vcombine.high %v330, %v338
    %v342 = vunpack.c.l.s4 1934713408
    %v343 = vunpack.c.0.s8 %v342
    %v344 = vlaneseq
    %v345 = vshrl.u32 %v344, 7
    %v346 = vsub.s32 %v343, %v345
    %v347 = vrot.slane %v339, %v346
    %v349 = vunpack.c.l.s4 1934713408
    %v350 = vunpack.c.0.s8 %v349
    %v351 = vlaneseq
    %v352 = vshrl.u32 %v351, 7
    %v353 = vsub.s32 %v350, %v352
    %v354 = vrot.slane %v340, %v353
    %v355 = vcombine.high %v347, 0.0
    %v356 = vcombine.high %v354, 0.0
    %v357 = vcombine.low %v279, %v286
    %v359 = vunpack.c.l.s4 1983009808
    %v360 = vunpack.c.0.s8 %v359
    %v361 = vlaneseq
    %v362 = vshrl.u32 %v361, 7
    %v363 = vsub.s32 %v360, %v362
    %v364 = vrot.slane %v357, %v363
    %v365 = vcombine.low %v287, %v288
    %v367 = vunpack.c.l.s4 1983009808
    %v368 = vunpack.c.0.s8 %v367
    %v369 = vlaneseq
    %v370 = vshrl.u32 %v369, 7
    %v371 = vsub.s32 %v368, %v370
    %v372 = vrot.slane %v365, %v371
    %v373 = vcombine.low %v364, %v372
    %v374 = vcombine.high %v364, %v372
    %v376 = vunpack.c.l.s4 1934713408
    %v377 = vunpack.c.0.s8 %v376
    %v378 = vlaneseq
    %v379 = vshrl.u32 %v378, 7
    %v380 = vsub.s32 %v377, %v379
    %v381 = vrot.slane %v373, %v380
    %v383 = vunpack.c.l.s4 1934713408
    %v384 = vunpack.c.0.s8 %v383
    %v385 = vlaneseq
    %v386 = vshrl.u32 %v385, 7
    %v387 = vsub.s32 %v384, %v386
    %v388 = vrot.slane %v374, %v387
    %v389 = vcombine.high %v381, 0.0
    %v390 = vcombine.high %v388, 0.0
    %392 = vrot.lane.b32.xlu0 %v321, 16
    %v393 = vpop.permute.xlu0 %392
    %396 = vrot.lane.b32.xlu0 %v320, 32
    %v397 = vpop.permute.xlu0 %396
    %400 = vrot.lane.b32.xlu0 %v322, 48
    %v401 = vpop.permute.xlu0 %400
    %404 = vrot.lane.b32.xlu0 %v347, 64
    %v405 = vpop.permute.xlu0 %404
    %408 = vrot.lane.b32.xlu0 %v355, 80
    %v409 = vpop.permute.xlu0 %408
    %412 = vrot.lane.b32.xlu0 %v354, 96
    %v413 = vpop.permute.xlu0 %412
    %416 = vrot.lane.b32.xlu0 %v356, 112
    %v417 = vpop.permute.xlu0 %416
    %420 = vrot.lane.b32.xlu0 %v389, 16
    %v421 = vpop.permute.xlu0 %420
    %424 = vrot.lane.b32.xlu0 %v388, 32
    %v425 = vpop.permute.xlu0 %424
    %428 = vrot.lane.b32.xlu0 %v390, 48
    %v429 = vpop.permute.xlu0 %428
    %vm431 = vcmask 130048
    %v432 = vsel %vm431, %v313, %v393
    %vm433 = vcmask 261120
    %v434 = vsel %vm433, %v432, %v397
    %vm435 = vcmask 392192
    %v436 = vsel %vm435, %v434, %v401
    %vm437 = vcmask 523264
    %v438 = vsel %vm437, %v436, %v405
    %vm439 = vcmask 654336
    %v440 = vsel %vm439, %v438, %v409
    %vm441 = vcmask 785408
    %v442 = vsel %vm441, %v440, %v413
    %vm443 = vcmask 916480
    %v444 = vsel %vm443, %v442, %v417
    %v445 = vsel %vm431, %v381, %v421
    %v446 = vsel %vm433, %v445, %v425
    %v447 = vsel %vm435, %v446, %v429
    %v448 = vcombine.low 0.0, 0.0
    %v450 = vunpack.c.l.s4 1983009808
    %v451 = vunpack.c.0.s8 %v450
    %v452 = vlaneseq
    %v453 = vshrl.u32 %v452, 7
    %v454 = vsub.s32 %v451, %v453
    %v455 = vrot.slane %v448, %v454
    %v456 = vcombine.low %v455, %v455
    %v457 = vcombine.high %v455, %v455
    %v459 = vunpack.c.l.s4 1934713408
    %v460 = vunpack.c.0.s8 %v459
    %v461 = vlaneseq
    %v462 = vshrl.u32 %v461, 7
    %v463 = vsub.s32 %v460, %v462
    %v464 = vrot.slane %v456, %v463
    %v466 = vunpack.c.l.s4 1934713408
    %v467 = vunpack.c.0.s8 %v466
    %v468 = vlaneseq
    %v469 = vshrl.u32 %v468, 7
    %v470 = vsub.s32 %v467, %v469
    %v471 = vrot.slane %v457, %v470
    %v472 = vcombine.low %v464, %v464
    %v473 = vcombine.high %v464, %v464
    %v474 = vcombine.low %v471, %v471
    %v475 = vcombine.high %v471, %v471
    %477 = vrot.lane.b32.xlu0 %v473, 16
    %v478 = vpop.permute.xlu0 %477
    %481 = vrot.lane.b32.xlu0 %v474, 32
    %v482 = vpop.permute.xlu0 %481
    %485 = vrot.lane.b32.xlu0 %v475, 48
    %v486 = vpop.permute.xlu0 %485
    %489 = vrot.lane.b32.xlu0 0.0, 64
    %v490 = vpop.permute.xlu0 %489
    %492 = vrot.lane.b32.xlu0 0.0, 80
    %v493 = vpop.permute.xlu0 %492
    %495 = vrot.lane.b32.xlu0 0.0, 96
    %v496 = vpop.permute.xlu0 %495
    %498 = vrot.lane.b32.xlu0 0.0, 112
    %v499 = vpop.permute.xlu0 %498
    %v501 = vsel %vm431, %v472, %v478
    %v502 = vsel %vm433, %v501, %v482
    %v503 = vsel %vm435, %v502, %v486
    %v504 = vsel %vm437, %v503, %v490
    %v505 = vsel %vm439, %v504, %v493
    %v506 = vsel %vm441, %v505, %v496
    %v507 = vsel %vm443, %v506, %v499
    %v509 = vsel %vm57, %v24, 0
    %v512 = vsel %vm57, %v25, 0
    %v515 = vsel %vm70, %v444, 0
    %v518 = vsel %vm70, %v447, 0
    %520 = vmatprep.subr.mxu0 %v518
    %521 = vmatpush1.msra.mxu0 %v515
    %522 = vmatprep.subr.mxu0 0.0
    %523 = vmatpush1.msra.mxu0 0.0
    %524 = vmatprep.subr.mxu0 0.0
    %525 = vmatpush1.msra.mxu0 0.0
    %526 = vmatprep.subr.mxu0 0.0
    %527 = vmatpush1.msra.mxu0 0.0
    %528 = vmatprep.subr.mxu0 0.0
    %529 = vmatpush1.msra.mxu0 0.0
    %530 = vmatprep.subr.mxu0 0.0
    %531 = vmatpush1.msra.mxu0 0.0
    %532 = vmatprep.subr.mxu0 0.0
    %533 = vmatpush1.msra.mxu0 0.0
    %534 = vmatprep.subr.mxu0 0.0
    %535 = vmatpush1.msra.mxu0 0.0
    %536 = vmatprep.subr.mxu0 0.0
    %537 = vmatpush1.msra.mxu0 0.0
    %538 = vmatprep.subr.mxu0 0.0
    %539 = vmatpush1.msra.mxu0 0.0
    %540 = vmatprep.subr.mxu0 0.0
    %541 = vmatpush1.msra.mxu0 0.0
    %542 = vmatprep.subr.mxu0 0.0
    %543 = vmatpush1.msra.mxu0 0.0
    %544 = vmatprep.subr.mxu0 0.0
    %545 = vmatpush1.msra.mxu0 0.0
    %546 = vmatprep.subr.mxu0 0.0
    %547 = vmatpush1.msra.mxu0 0.0
    %548 = vmatprep.subr.mxu0 0.0
    %549 = vmatpush1.msra.mxu0 0.0
    %550 = vmatprep.subr.mxu0 0.0
    %551 = vmatpush1.msra.mxu0 0.0
    %552 = vmatprep.subr.mxu0 0.0
    %553 = vmatpush1.msra.mxu0 0.0
    %554 = vmatprep.subr.mxu0 0.0
    %555 = vmatpush1.msra.mxu0 0.0
    %556 = vmatprep.subr.mxu0 0.0
    %557 = vmatpush1.msra.mxu0 0.0
    %558 = vmatprep.subr.mxu0 0.0
    %559 = vmatpush1.msra.mxu0 0.0
    %560 = vmatprep.subr.mxu0 0.0
    %561 = vmatpush1.msra.mxu0 0.0
    %562 = vmatprep.subr.mxu0 0.0
    %563 = vmatpush1.msra.mxu0 0.0
    %564 = vmatprep.subr.mxu0 0.0
    %565 = vmatpush1.msra.mxu0 0.0
    %566 = vmatprep.subr.mxu0 0.0
    %567 = vmatpush1.msra.mxu0 0.0
    %568 = vmatprep.subr.mxu0 0.0
    %569 = vmatpush1.msra.mxu0 0.0
    %570 = vmatprep.subr.mxu0 0.0
    %571 = vmatpush1.msra.mxu0 0.0
    %572 = vmatprep.subr.mxu0 0.0
    %573 = vmatpush1.msra.mxu0 0.0
    %574 = vmatprep.subr.mxu0 0.0
    %575 = vmatpush1.msra.mxu0 0.0
    %576 = vmatprep.subr.mxu0 0.0
    %577 = vmatpush1.msra.mxu0 0.0
    %578 = vmatprep.subr.mxu0 0.0
    %579 = vmatpush1.msra.mxu0 0.0
    %580 = vmatprep.subr.mxu0 0.0
    %581 = vmatpush1.msra.mxu0 0.0
    %582 = vmatprep.subr.mxu0 0.0
    %583 = vmatpush1.msra.mxu0 0.0
    %584 = vmatprep.mubr.f32.mxu0 0.0
    %585 = vmatmul.mubr.f32.gmra.mrb[0].mxu0 %v509
    %v586 = vpop.f32.mrb[0].mxu0
    %v587 = vadd.f32 %v507, %v586
    %v588 = vpop.f32.mrb[0].mxu0
    %v589 = vadd.f32 %v503, %v588
    %590 = vmatprep.mubr.f32.mxu0 0.0
    %591 = vmatmul.mubr.f32.gmra.mrb[0].mxu0 %v512
    %v592 = vpop.f32.mrb[0].mxu0
    %v593 = vadd.f32 %v507, %v592
    %v594 = vpop.f32.mrb[0].mxu0
    %v595 = vadd.f32 %v503, %v594
    %596 = vdwg.mxu0
    %599 = vrot.lane.b32.xlu0 %v587, 112
    %v600 = vpop.permute.xlu0 %599
    %601 = vrot.lane.b32.xlu0 %v593, 112
    %v602 = vpop.permute.xlu0 %601
    %605 = vrot.lane.b32.xlu0 %v587, 96
    %v606 = vpop.permute.xlu0 %605
    %607 = vrot.lane.b32.xlu0 %v593, 96
    %v608 = vpop.permute.xlu0 %607
    %611 = vrot.lane.b32.xlu0 %v587, 80
    %v612 = vpop.permute.xlu0 %611
    %613 = vrot.lane.b32.xlu0 %v593, 80
    %v614 = vpop.permute.xlu0 %613
    %617 = vrot.lane.b32.xlu0 %v587, 64
    %v618 = vpop.permute.xlu0 %617
    %619 = vrot.lane.b32.xlu0 %v593, 64
    %v620 = vpop.permute.xlu0 %619
    %623 = vrot.lane.b32.xlu0 %v587, 48
    %v624 = vpop.permute.xlu0 %623
    %625 = vrot.lane.b32.xlu0 %v593, 48
    %v626 = vpop.permute.xlu0 %625
    %629 = vrot.lane.b32.xlu0 %v587, 32
    %v630 = vpop.permute.xlu0 %629
    %631 = vrot.lane.b32.xlu0 %v593, 32
    %v632 = vpop.permute.xlu0 %631
    %635 = vrot.lane.b32.xlu0 %v587, 16
    %v636 = vpop.permute.xlu0 %635
    %637 = vrot.lane.b32.xlu0 %v593, 16
    %v638 = vpop.permute.xlu0 %637
    %643 = vrot.lane.b32.xlu0 %v589, 112
    %v644 = vpop.permute.xlu0 %643
    %645 = vrot.lane.b32.xlu0 %v595, 112
    %v646 = vpop.permute.xlu0 %645
    %649 = vrot.lane.b32.xlu0 %v589, 96
    %v650 = vpop.permute.xlu0 %649
    %651 = vrot.lane.b32.xlu0 %v595, 96
    %v652 = vpop.permute.xlu0 %651
    %655 = vrot.lane.b32.xlu0 %v589, 80
    %v656 = vpop.permute.xlu0 %655
    %657 = vrot.lane.b32.xlu0 %v595, 80
    %v658 = vpop.permute.xlu0 %657
    %v661 = vcombine.low %v587, %v606
    %v662 = vcombine.high %v587, %v606
    %v664 = vunpack.c.l.s4 1983009808
    %v665 = vunpack.c.0.s8 %v664
    %v666 = vlaneseq
    %v667 = vshrl.u32 %v666, 7
    %v668 = vsub.s32 %v665, %v667
    %v669 = vrot.slane %v661, %v668
    %v671 = vunpack.c.l.s4 1983009808
    %v672 = vunpack.c.0.s8 %v671
    %v673 = vlaneseq
    %v674 = vshrl.u32 %v673, 7
    %v675 = vsub.s32 %v672, %v674
    %v676 = vrot.slane %v662, %v675
    %v677 = vcombine.low %v600, %v612
    %v678 = vcombine.high %v600, %v612
    %v680 = vunpack.c.l.s4 1983009808
    %v681 = vunpack.c.0.s8 %v680
    %v682 = vlaneseq
    %v683 = vshrl.u32 %v682, 7
    %v684 = vsub.s32 %v681, %v683
    %v685 = vrot.slane %v677, %v684
    %v687 = vunpack.c.l.s4 1983009808
    %v688 = vunpack.c.0.s8 %v687
    %v689 = vlaneseq
    %v690 = vshrl.u32 %v689, 7
    %v691 = vsub.s32 %v688, %v690
    %v692 = vrot.slane %v678, %v691
    %v693 = vcombine.low %v618, %v630
    %v694 = vcombine.high %v618, %v630
    %v696 = vunpack.c.l.s4 1983009808
    %v697 = vunpack.c.0.s8 %v696
    %v698 = vlaneseq
    %v699 = vshrl.u32 %v698, 7
    %v700 = vsub.s32 %v697, %v699
    %v701 = vrot.slane %v693, %v700
    %v703 = vunpack.c.l.s4 1983009808
    %v704 = vunpack.c.0.s8 %v703
    %v705 = vlaneseq
    %v706 = vshrl.u32 %v705, 7
    %v707 = vsub.s32 %v704, %v706
    %v708 = vrot.slane %v694, %v707
    %v709 = vcombine.low %v624, %v636
    %v710 = vcombine.high %v624, %v636
    %v712 = vunpack.c.l.s4 1983009808
    %v713 = vunpack.c.0.s8 %v712
    %v714 = vlaneseq
    %v715 = vshrl.u32 %v714, 7
    %v716 = vsub.s32 %v713, %v715
    %v717 = vrot.slane %v709, %v716
    %v719 = vunpack.c.l.s4 1983009808
    %v720 = vunpack.c.0.s8 %v719
    %v721 = vlaneseq
    %v722 = vshrl.u32 %v721, 7
    %v723 = vsub.s32 %v720, %v722
    %v724 = vrot.slane %v710, %v723
    %v725 = vcombine.low %v669, %v685
    %v726 = vcombine.high %v669, %v685
    %v728 = vunpack.c.l.s4 1934713408
    %v729 = vunpack.c.0.s8 %v728
    %v730 = vlaneseq
    %v731 = vshrl.u32 %v730, 7
    %v732 = vsub.s32 %v729, %v731
    %v733 = vrot.slane %v725, %v732
    %v735 = vunpack.c.l.s4 1934713408
    %v736 = vunpack.c.0.s8 %v735
    %v737 = vlaneseq
    %v738 = vshrl.u32 %v737, 7
    %v739 = vsub.s32 %v736, %v738
    %v740 = vrot.slane %v726, %v739
    %v741 = vcombine.low %v676, %v692
    %v742 = vcombine.high %v676, %v692
    %v744 = vunpack.c.l.s4 1934713408
    %v745 = vunpack.c.0.s8 %v744
    %v746 = vlaneseq
    %v747 = vshrl.u32 %v746, 7
    %v748 = vsub.s32 %v745, %v747
    %v749 = vrot.slane %v741, %v748
    %v751 = vunpack.c.l.s4 1934713408
    %v752 = vunpack.c.0.s8 %v751
    %v753 = vlaneseq
    %v754 = vshrl.u32 %v753, 7
    %v755 = vsub.s32 %v752, %v754
    %v756 = vrot.slane %v742, %v755
    %v757 = vcombine.low %v701, %v717
    %v758 = vcombine.high %v701, %v717
    %v760 = vunpack.c.l.s4 1934713408
    %v761 = vunpack.c.0.s8 %v760
    %v762 = vlaneseq
    %v763 = vshrl.u32 %v762, 7
    %v764 = vsub.s32 %v761, %v763
    %v765 = vrot.slane %v757, %v764
    %v767 = vunpack.c.l.s4 1934713408
    %v768 = vunpack.c.0.s8 %v767
    %v769 = vlaneseq
    %v770 = vshrl.u32 %v769, 7
    %v771 = vsub.s32 %v768, %v770
    %v772 = vrot.slane %v758, %v771
    %v773 = vcombine.low %v708, %v724
    %v774 = vcombine.high %v708, %v724
    %v776 = vunpack.c.l.s4 1934713408
    %v777 = vunpack.c.0.s8 %v776
    %v778 = vlaneseq
    %v779 = vshrl.u32 %v778, 7
    %v780 = vsub.s32 %v777, %v779
    %v781 = vrot.slane %v773, %v780
    %v783 = vunpack.c.l.s4 1934713408
    %v784 = vunpack.c.0.s8 %v783
    %v785 = vlaneseq
    %v786 = vshrl.u32 %v785, 7
    %v787 = vsub.s32 %v784, %v786
    %v788 = vrot.slane %v774, %v787
    %v789 = vcombine.low %v733, %v765
    %v790 = vcombine.high %v733, %v765
    %v791 = vcombine.low %v740, %v772
    %v792 = vcombine.high %v740, %v772
    %v793 = vcombine.low %v749, %v781
    %v794 = vcombine.high %v749, %v781
    %v795 = vcombine.low %v756, %v788
    %v796 = vcombine.high %v756, %v788
    %v797 = vcombine.low %v589, %v650
    %v798 = vcombine.high %v589, %v650
    %v800 = vunpack.c.l.s4 1983009808
    %v801 = vunpack.c.0.s8 %v800
    %v802 = vlaneseq
    %v803 = vshrl.u32 %v802, 7
    %v804 = vsub.s32 %v801, %v803
    %v805 = vrot.slane %v797, %v804
    %v807 = vunpack.c.l.s4 1983009808
    %v808 = vunpack.c.0.s8 %v807
    %v809 = vlaneseq
    %v810 = vshrl.u32 %v809, 7
    %v811 = vsub.s32 %v808, %v810
    %v812 = vrot.slane %v798, %v811
    %v813 = vcombine.low %v644, %v656
    %v814 = vcombine.high %v644, %v656
    %v816 = vunpack.c.l.s4 1983009808
    %v817 = vunpack.c.0.s8 %v816
    %v818 = vlaneseq
    %v819 = vshrl.u32 %v818, 7
    %v820 = vsub.s32 %v817, %v819
    %v821 = vrot.slane %v813, %v820
    %v823 = vunpack.c.l.s4 1983009808
    %v824 = vunpack.c.0.s8 %v823
    %v825 = vlaneseq
    %v826 = vshrl.u32 %v825, 7
    %v827 = vsub.s32 %v824, %v826
    %v828 = vrot.slane %v814, %v827
    %v829 = vcombine.low %v805, %v821
    %v830 = vcombine.high %v805, %v821
    %v832 = vunpack.c.l.s4 1934713408
    %v833 = vunpack.c.0.s8 %v832
    %v834 = vlaneseq
    %v835 = vshrl.u32 %v834, 7
    %v836 = vsub.s32 %v833, %v835
    %v837 = vrot.slane %v829, %v836
    %v839 = vunpack.c.l.s4 1934713408
    %v840 = vunpack.c.0.s8 %v839
    %v841 = vlaneseq
    %v842 = vshrl.u32 %v841, 7
    %v843 = vsub.s32 %v840, %v842
    %v844 = vrot.slane %v830, %v843
    %v845 = vcombine.low %v812, %v828
    %v846 = vcombine.high %v812, %v828
    %v848 = vunpack.c.l.s4 1934713408
    %v849 = vunpack.c.0.s8 %v848
    %v850 = vlaneseq
    %v851 = vshrl.u32 %v850, 7
    %v852 = vsub.s32 %v849, %v851
    %v853 = vrot.slane %v845, %v852
    %v855 = vunpack.c.l.s4 1934713408
    %v856 = vunpack.c.0.s8 %v855
    %v857 = vlaneseq
    %v858 = vshrl.u32 %v857, 7
    %v859 = vsub.s32 %v856, %v858
    %v860 = vrot.slane %v846, %v859
    %v861 = vcombine.high %v837, 0.0
    %v862 = vcombine.high %v844, 0.0
    %v863 = vcombine.high %v853, 0.0
    %v864 = vcombine.high %v860, 0.0
    %v865 = vcombine.low %v593, %v608
    %v866 = vcombine.high %v593, %v608
    %v868 = vunpack.c.l.s4 1983009808
    %v869 = vunpack.c.0.s8 %v868
    %v870 = vlaneseq
    %v871 = vshrl.u32 %v870, 7
    %v872 = vsub.s32 %v869, %v871
    %v873 = vrot.slane %v865, %v872
    %v875 = vunpack.c.l.s4 1983009808
    %v876 = vunpack.c.0.s8 %v875
    %v877 = vlaneseq
    %v878 = vshrl.u32 %v877, 7
    %v879 = vsub.s32 %v876, %v878
    %v880 = vrot.slane %v866, %v879
    %v881 = vcombine.low %v602, %v614
    %v882 = vcombine.high %v602, %v614
    %v884 = vunpack.c.l.s4 1983009808
    %v885 = vunpack.c.0.s8 %v884
    %v886 = vlaneseq
    %v887 = vshrl.u32 %v886, 7
    %v888 = vsub.s32 %v885, %v887
    %v889 = vrot.slane %v881, %v888
    %v891 = vunpack.c.l.s4 1983009808
    %v892 = vunpack.c.0.s8 %v891
    %v893 = vlaneseq
    %v894 = vshrl.u32 %v893, 7
    %v895 = vsub.s32 %v892, %v894
    %v896 = vrot.slane %v882, %v895
    %v897 = vcombine.low %v620, %v632
    %v898 = vcombine.high %v620, %v632
    %v900 = vunpack.c.l.s4 1983009808
    %v901 = vunpack.c.0.s8 %v900
    %v902 = vlaneseq
    %v903 = vshrl.u32 %v902, 7
    %v904 = vsub.s32 %v901, %v903
    %v905 = vrot.slane %v897, %v904
    %v907 = vunpack.c.l.s4 1983009808
    %v908 = vunpack.c.0.s8 %v907
    %v909 = vlaneseq
    %v910 = vshrl.u32 %v909, 7
    %v911 = vsub.s32 %v908, %v910
    %v912 = vrot.slane %v898, %v911
    %v913 = vcombine.low %v626, %v638
    %v914 = vcombine.high %v626, %v638
    %v916 = vunpack.c.l.s4 1983009808
    %v917 = vunpack.c.0.s8 %v916
    %v918 = vlaneseq
    %v919 = vshrl.u32 %v918, 7
    %v920 = vsub.s32 %v917, %v919
    %v921 = vrot.slane %v913, %v920
    %v923 = vunpack.c.l.s4 1983009808
    %v924 = vunpack.c.0.s8 %v923
    %v925 = vlaneseq
    %v926 = vshrl.u32 %v925, 7
    %v927 = vsub.s32 %v924, %v926
    %v928 = vrot.slane %v914, %v927
    %v929 = vcombine.low %v873, %v889
    %v930 = vcombine.high %v873, %v889
    %v932 = vunpack.c.l.s4 1934713408
    %v933 = vunpack.c.0.s8 %v932
    %v934 = vlaneseq
    %v935 = vshrl.u32 %v934, 7
    %v936 = vsub.s32 %v933, %v935
    %v937 = vrot.slane %v929, %v936
    %v939 = vunpack.c.l.s4 1934713408
    %v940 = vunpack.c.0.s8 %v939
    %v941 = vlaneseq
    %v942 = vshrl.u32 %v941, 7
    %v943 = vsub.s32 %v940, %v942
    %v944 = vrot.slane %v930, %v943
    %v945 = vcombine.low %v880, %v896
    %v946 = vcombine.high %v880, %v896
    %v948 = vunpack.c.l.s4 1934713408
    %v949 = vunpack.c.0.s8 %v948
    %v950 = vlaneseq
    %v951 = vshrl.u32 %v950, 7
    %v952 = vsub.s32 %v949, %v951
    %v953 = vrot.slane %v945, %v952
    %v955 = vunpack.c.l.s4 1934713408
    %v956 = vunpack.c.0.s8 %v955
    %v957 = vlaneseq
    %v958 = vshrl.u32 %v957, 7
    %v959 = vsub.s32 %v956, %v958
    %v960 = vrot.slane %v946, %v959
    %v961 = vcombine.low %v905, %v921
    %v962 = vcombine.high %v905, %v921
    %v964 = vunpack.c.l.s4 1934713408
    %v965 = vunpack.c.0.s8 %v964
    %v966 = vlaneseq
    %v967 = vshrl.u32 %v966, 7
    %v968 = vsub.s32 %v965, %v967
    %v969 = vrot.slane %v961, %v968
    %v971 = vunpack.c.l.s4 1934713408
    %v972 = vunpack.c.0.s8 %v971
    %v973 = vlaneseq
    %v974 = vshrl.u32 %v973, 7
    %v975 = vsub.s32 %v972, %v974
    %v976 = vrot.slane %v962, %v975
    %v977 = vcombine.low %v912, %v928
    %v978 = vcombine.high %v912, %v928
    %v980 = vunpack.c.l.s4 1934713408
    %v981 = vunpack.c.0.s8 %v980
    %v982 = vlaneseq
    %v983 = vshrl.u32 %v982, 7
    %v984 = vsub.s32 %v981, %v983
    %v985 = vrot.slane %v977, %v984
    %v987 = vunpack.c.l.s4 1934713408
    %v988 = vunpack.c.0.s8 %v987
    %v989 = vlaneseq
    %v990 = vshrl.u32 %v989, 7
    %v991 = vsub.s32 %v988, %v990
    %v992 = vrot.slane %v978, %v991
    %v993 = vcombine.low %v937, %v969
    %v994 = vcombine.high %v937, %v969
    %v995 = vcombine.low %v944, %v976
    %v996 = vcombine.high %v944, %v976
    %v997 = vcombine.low %v953, %v985
    %v998 = vcombine.high %v953, %v985
    %v999 = vcombine.low %v960, %v992
    %v1000 = vcombine.high %v960, %v992
    %v1001 = vcombine.low %v595, %v652
    %v1002 = vcombine.high %v595, %v652
    %v1004 = vunpack.c.l.s4 1983009808
    %v1005 = vunpack.c.0.s8 %v1004
    %v1006 = vlaneseq
    %v1007 = vshrl.u32 %v1006, 7
    %v1008 = vsub.s32 %v1005, %v1007
    %v1009 = vrot.slane %v1001, %v1008
    %v1011 = vunpack.c.l.s4 1983009808
    %v1012 = vunpack.c.0.s8 %v1011
    %v1013 = vlaneseq
    %v1014 = vshrl.u32 %v1013, 7
    %v1015 = vsub.s32 %v1012, %v1014
    %v1016 = vrot.slane %v1002, %v1015
    %v1017 = vcombine.low %v646, %v658
    %v1018 = vcombine.high %v646, %v658
    %v1020 = vunpack.c.l.s4 1983009808
    %v1021 = vunpack.c.0.s8 %v1020
    %v1022 = vlaneseq
    %v1023 = vshrl.u32 %v1022, 7
    %v1024 = vsub.s32 %v1021, %v1023
    %v1025 = vrot.slane %v1017, %v1024
    %v1027 = vunpack.c.l.s4 1983009808
    %v1028 = vunpack.c.0.s8 %v1027
    %v1029 = vlaneseq
    %v1030 = vshrl.u32 %v1029, 7
    %v1031 = vsub.s32 %v1028, %v1030
    %v1032 = vrot.slane %v1018, %v1031
    %v1033 = vcombine.low %v1009, %v1025
    %v1034 = vcombine.high %v1009, %v1025
    %v1036 = vunpack.c.l.s4 1934713408
    %v1037 = vunpack.c.0.s8 %v1036
    %v1038 = vlaneseq
    %v1039 = vshrl.u32 %v1038, 7
    %v1040 = vsub.s32 %v1037, %v1039
    %v1041 = vrot.slane %v1033, %v1040
    %v1043 = vunpack.c.l.s4 1934713408
    %v1044 = vunpack.c.0.s8 %v1043
    %v1045 = vlaneseq
    %v1046 = vshrl.u32 %v1045, 7
    %v1047 = vsub.s32 %v1044, %v1046
    %v1048 = vrot.slane %v1034, %v1047
    %v1049 = vcombine.low %v1016, %v1032
    %v1050 = vcombine.high %v1016, %v1032
    %v1052 = vunpack.c.l.s4 1934713408
    %v1053 = vunpack.c.0.s8 %v1052
    %v1054 = vlaneseq
    %v1055 = vshrl.u32 %v1054, 7
    %v1056 = vsub.s32 %v1053, %v1055
    %v1057 = vrot.slane %v1049, %v1056
    %v1059 = vunpack.c.l.s4 1934713408
    %v1060 = vunpack.c.0.s8 %v1059
    %v1061 = vlaneseq
    %v1062 = vshrl.u32 %v1061, 7
    %v1063 = vsub.s32 %v1060, %v1062
    %v1064 = vrot.slane %v1050, %v1063
    %v1065 = vcombine.high %v1041, 0.0
    %v1066 = vcombine.high %v1048, 0.0
    %v1067 = vcombine.high %v1057, 0.0
    %v1068 = vcombine.high %v1064, 0.0
    %v1069 = vcombine.low %v789, %v791
    %v1070 = vcombine.high %v789, %v791
    %v1072 = vunpack.c.l.s4 1983009808
    %v1073 = vunpack.c.0.s8 %v1072
    %v1074 = vlaneseq
    %v1075 = vshrl.u32 %v1074, 7
    %v1076 = vsub.s32 %v1073, %v1075
    %v1077 = vrot.slane %v1069, %v1076
    %v1079 = vunpack.c.l.s4 1983009808
    %v1080 = vunpack.c.0.s8 %v1079
    %v1081 = vlaneseq
    %v1082 = vshrl.u32 %v1081, 7
    %v1083 = vsub.s32 %v1080, %v1082
    %v1084 = vrot.slane %v1070, %v1083
    %v1085 = vcombine.low %v790, %v792
    %v1086 = vcombine.high %v790, %v792
    %v1088 = vunpack.c.l.s4 1983009808
    %v1089 = vunpack.c.0.s8 %v1088
    %v1090 = vlaneseq
    %v1091 = vshrl.u32 %v1090, 7
    %v1092 = vsub.s32 %v1089, %v1091
    %v1093 = vrot.slane %v1085, %v1092
    %v1095 = vunpack.c.l.s4 1983009808
    %v1096 = vunpack.c.0.s8 %v1095
    %v1097 = vlaneseq
    %v1098 = vshrl.u32 %v1097, 7
    %v1099 = vsub.s32 %v1096, %v1098
    %v1100 = vrot.slane %v1086, %v1099
    %v1101 = vcombine.low %v793, %v795
    %v1102 = vcombine.high %v793, %v795
    %v1104 = vunpack.c.l.s4 1983009808
    %v1105 = vunpack.c.0.s8 %v1104
    %v1106 = vlaneseq
    %v1107 = vshrl.u32 %v1106, 7
    %v1108 = vsub.s32 %v1105, %v1107
    %v1109 = vrot.slane %v1101, %v1108
    %v1111 = vunpack.c.l.s4 1983009808
    %v1112 = vunpack.c.0.s8 %v1111
    %v1113 = vlaneseq
    %v1114 = vshrl.u32 %v1113, 7
    %v1115 = vsub.s32 %v1112, %v1114
    %v1116 = vrot.slane %v1102, %v1115
    %v1117 = vcombine.low %v794, %v796
    %v1118 = vcombine.high %v794, %v796
    %v1120 = vunpack.c.l.s4 1983009808
    %v1121 = vunpack.c.0.s8 %v1120
    %v1122 = vlaneseq
    %v1123 = vshrl.u32 %v1122, 7
    %v1124 = vsub.s32 %v1121, %v1123
    %v1125 = vrot.slane %v1117, %v1124
    %v1127 = vunpack.c.l.s4 1983009808
    %v1128 = vunpack.c.0.s8 %v1127
    %v1129 = vlaneseq
    %v1130 = vshrl.u32 %v1129, 7
    %v1131 = vsub.s32 %v1128, %v1130
    %v1132 = vrot.slane %v1118, %v1131
    %v1133 = vcombine.low %v1077, %v1093
    %v1134 = vcombine.high %v1077, %v1093
    %v1136 = vunpack.c.l.s4 1934713408
    %v1137 = vunpack.c.0.s8 %v1136
    %v1138 = vlaneseq
    %v1139 = vshrl.u32 %v1138, 7
    %v1140 = vsub.s32 %v1137, %v1139
    %v1141 = vrot.slane %v1133, %v1140
    %v1143 = vunpack.c.l.s4 1934713408
    %v1144 = vunpack.c.0.s8 %v1143
    %v1145 = vlaneseq
    %v1146 = vshrl.u32 %v1145, 7
    %v1147 = vsub.s32 %v1144, %v1146
    %v1148 = vrot.slane %v1134, %v1147
    %v1149 = vcombine.low %v1084, %v1100
    %v1150 = vcombine.high %v1084, %v1100
    %v1152 = vunpack.c.l.s4 1934713408
    %v1153 = vunpack.c.0.s8 %v1152
    %v1154 = vlaneseq
    %v1155 = vshrl.u32 %v1154, 7
    %v1156 = vsub.s32 %v1153, %v1155
    %v1157 = vrot.slane %v1149, %v1156
    %v1159 = vunpack.c.l.s4 1934713408
    %v1160 = vunpack.c.0.s8 %v1159
    %v1161 = vlaneseq
    %v1162 = vshrl.u32 %v1161, 7
    %v1163 = vsub.s32 %v1160, %v1162
    %v1164 = vrot.slane %v1150, %v1163
    %v1165 = vcombine.low %v1109, %v1125
    %v1166 = vcombine.high %v1109, %v1125
    %v1168 = vunpack.c.l.s4 1934713408
    %v1169 = vunpack.c.0.s8 %v1168
    %v1170 = vlaneseq
    %v1171 = vshrl.u32 %v1170, 7
    %v1172 = vsub.s32 %v1169, %v1171
    %v1173 = vrot.slane %v1165, %v1172
    %v1175 = vunpack.c.l.s4 1934713408
    %v1176 = vunpack.c.0.s8 %v1175
    %v1177 = vlaneseq
    %v1178 = vshrl.u32 %v1177, 7
    %v1179 = vsub.s32 %v1176, %v1178
    %v1180 = vrot.slane %v1166, %v1179
    %v1181 = vcombine.low %v1116, %v1132
    %v1182 = vcombine.high %v1116, %v1132
    %v1184 = vunpack.c.l.s4 1934713408
    %v1185 = vunpack.c.0.s8 %v1184
    %v1186 = vlaneseq
    %v1187 = vshrl.u32 %v1186, 7
    %v1188 = vsub.s32 %v1185, %v1187
    %v1189 = vrot.slane %v1181, %v1188
    %v1191 = vunpack.c.l.s4 1934713408
    %v1192 = vunpack.c.0.s8 %v1191
    %v1193 = vlaneseq
    %v1194 = vshrl.u32 %v1193, 7
    %v1195 = vsub.s32 %v1192, %v1194
    %v1196 = vrot.slane %v1182, %v1195
    %v1197 = vcombine.low %v1141, %v1173
    %v1198 = vcombine.high %v1141, %v1173
    %v1199 = vcombine.low %v1148, %v1180
    %v1200 = vcombine.high %v1148, %v1180
    %v1201 = vcombine.low %v1157, %v1189
    %v1202 = vcombine.high %v1157, %v1189
    %v1203 = vcombine.low %v1164, %v1196
    %v1204 = vcombine.high %v1164, %v1196
    %v1205 = vcombine.low %v993, %v995
    %v1206 = vcombine.high %v993, %v995
    %v1208 = vunpack.c.l.s4 1983009808
    %v1209 = vunpack.c.0.s8 %v1208
    %v1210 = vlaneseq
    %v1211 = vshrl.u32 %v1210, 7
    %v1212 = vsub.s32 %v1209, %v1211
    %v1213 = vrot.slane %v1205, %v1212
    %v1215 = vunpack.c.l.s4 1983009808
    %v1216 = vunpack.c.0.s8 %v1215
    %v1217 = vlaneseq
    %v1218 = vshrl.u32 %v1217, 7
    %v1219 = vsub.s32 %v1216, %v1218
    %v1220 = vrot.slane %v1206, %v1219
    %v1221 = vcombine.low %v994, %v996
    %v1222 = vcombine.high %v994, %v996
    %v1224 = vunpack.c.l.s4 1983009808
    %v1225 = vunpack.c.0.s8 %v1224
    %v1226 = vlaneseq
    %v1227 = vshrl.u32 %v1226, 7
    %v1228 = vsub.s32 %v1225, %v1227
    %v1229 = vrot.slane %v1221, %v1228
    %v1231 = vunpack.c.l.s4 1983009808
    %v1232 = vunpack.c.0.s8 %v1231
    %v1233 = vlaneseq
    %v1234 = vshrl.u32 %v1233, 7
    %v1235 = vsub.s32 %v1232, %v1234
    %v1236 = vrot.slane %v1222, %v1235
    %v1237 = vcombine.low %v997, %v999
    %v1238 = vcombine.high %v997, %v999
    %v1240 = vunpack.c.l.s4 1983009808
    %v1241 = vunpack.c.0.s8 %v1240
    %v1242 = vlaneseq
    %v1243 = vshrl.u32 %v1242, 7
    %v1244 = vsub.s32 %v1241, %v1243
    %v1245 = vrot.slane %v1237, %v1244
    %v1247 = vunpack.c.l.s4 1983009808
    %v1248 = vunpack.c.0.s8 %v1247
    %v1249 = vlaneseq
    %v1250 = vshrl.u32 %v1249, 7
    %v1251 = vsub.s32 %v1248, %v1250
    %v1252 = vrot.slane %v1238, %v1251
    %v1253 = vcombine.low %v998, %v1000
    %v1254 = vcombine.high %v998, %v1000
    %v1256 = vunpack.c.l.s4 1983009808
    %v1257 = vunpack.c.0.s8 %v1256
    %v1258 = vlaneseq
    %v1259 = vshrl.u32 %v1258, 7
    %v1260 = vsub.s32 %v1257, %v1259
    %v1261 = vrot.slane %v1253, %v1260
    %v1263 = vunpack.c.l.s4 1983009808
    %v1264 = vunpack.c.0.s8 %v1263
    %v1265 = vlaneseq
    %v1266 = vshrl.u32 %v1265, 7
    %v1267 = vsub.s32 %v1264, %v1266
    %v1268 = vrot.slane %v1254, %v1267
    %v1269 = vcombine.low %v1213, %v1229
    %v1270 = vcombine.high %v1213, %v1229
    %v1272 = vunpack.c.l.s4 1934713408
    %v1273 = vunpack.c.0.s8 %v1272
    %v1274 = vlaneseq
    %v1275 = vshrl.u32 %v1274, 7
    %v1276 = vsub.s32 %v1273, %v1275
    %v1277 = vrot.slane %v1269, %v1276
    %v1279 = vunpack.c.l.s4 1934713408
    %v1280 = vunpack.c.0.s8 %v1279
    %v1281 = vlaneseq
    %v1282 = vshrl.u32 %v1281, 7
    %v1283 = vsub.s32 %v1280, %v1282
    %v1284 = vrot.slane %v1270, %v1283
    %v1285 = vcombine.low %v1220, %v1236
    %v1286 = vcombine.high %v1220, %v1236
    %v1288 = vunpack.c.l.s4 1934713408
    %v1289 = vunpack.c.0.s8 %v1288
    %v1290 = vlaneseq
    %v1291 = vshrl.u32 %v1290, 7
    %v1292 = vsub.s32 %v1289, %v1291
    %v1293 = vrot.slane %v1285, %v1292
    %v1295 = vunpack.c.l.s4 1934713408
    %v1296 = vunpack.c.0.s8 %v1295
    %v1297 = vlaneseq
    %v1298 = vshrl.u32 %v1297, 7
    %v1299 = vsub.s32 %v1296, %v1298
    %v1300 = vrot.slane %v1286, %v1299
    %v1301 = vcombine.low %v1245, %v1261
    %v1302 = vcombine.high %v1245, %v1261
    %v1304 = vunpack.c.l.s4 1934713408
    %v1305 = vunpack.c.0.s8 %v1304
    %v1306 = vlaneseq
    %v1307 = vshrl.u32 %v1306, 7
    %v1308 = vsub.s32 %v1305, %v1307
    %v1309 = vrot.slane %v1301, %v1308
    %v1311 = vunpack.c.l.s4 1934713408
    %v1312 = vunpack.c.0.s8 %v1311
    %v1313 = vlaneseq
    %v1314 = vshrl.u32 %v1313, 7
    %v1315 = vsub.s32 %v1312, %v1314
    %v1316 = vrot.slane %v1302, %v1315
    %v1317 = vcombine.low %v1252, %v1268
    %v1318 = vcombine.high %v1252, %v1268
    %v1320 = vunpack.c.l.s4 1934713408
    %v1321 = vunpack.c.0.s8 %v1320
    %v1322 = vlaneseq
    %v1323 = vshrl.u32 %v1322, 7
    %v1324 = vsub.s32 %v1321, %v1323
    %v1325 = vrot.slane %v1317, %v1324
    %v1327 = vunpack.c.l.s4 1934713408
    %v1328 = vunpack.c.0.s8 %v1327
    %v1329 = vlaneseq
    %v1330 = vshrl.u32 %v1329, 7
    %v1331 = vsub.s32 %v1328, %v1330
    %v1332 = vrot.slane %v1318, %v1331
    %v1333 = vcombine.low %v1277, %v1309
    %v1334 = vcombine.high %v1277, %v1309
    %v1335 = vcombine.low %v1284, %v1316
    %v1336 = vcombine.high %v1284, %v1316
    %v1337 = vcombine.low %v1293, %v1325
    %v1338 = vcombine.high %v1293, %v1325
    %v1339 = vcombine.low %v1300, %v1332
    %v1340 = vcombine.high %v1300, %v1332
    %v1341 = vcombine.low %v837, %v844
    %v1343 = vunpack.c.l.s4 1983009808
    %v1344 = vunpack.c.0.s8 %v1343
    %v1345 = vlaneseq
    %v1346 = vshrl.u32 %v1345, 7
    %v1347 = vsub.s32 %v1344, %v1346
    %v1348 = vrot.slane %v1341, %v1347
    %v1349 = vcombine.low %v861, %v862
    %v1351 = vunpack.c.l.s4 1983009808
    %v1352 = vunpack.c.0.s8 %v1351
    %v1353 = vlaneseq
    %v1354 = vshrl.u32 %v1353, 7
    %v1355 = vsub.s32 %v1352, %v1354
    %v1356 = vrot.slane %v1349, %v1355
    %v1357 = vcombine.low %v853, %v860
    %v1359 = vunpack.c.l.s4 1983009808
    %v1360 = vunpack.c.0.s8 %v1359
    %v1361 = vlaneseq
    %v1362 = vshrl.u32 %v1361, 7
    %v1363 = vsub.s32 %v1360, %v1362
    %v1364 = vrot.slane %v1357, %v1363
    %v1365 = vcombine.low %v863, %v864
    %v1367 = vunpack.c.l.s4 1983009808
    %v1368 = vunpack.c.0.s8 %v1367
    %v1369 = vlaneseq
    %v1370 = vshrl.u32 %v1369, 7
    %v1371 = vsub.s32 %v1368, %v1370
    %v1372 = vrot.slane %v1365, %v1371
    %v1373 = vcombine.low %v1348, %v1356
    %v1374 = vcombine.high %v1348, %v1356
    %v1376 = vunpack.c.l.s4 1934713408
    %v1377 = vunpack.c.0.s8 %v1376
    %v1378 = vlaneseq
    %v1379 = vshrl.u32 %v1378, 7
    %v1380 = vsub.s32 %v1377, %v1379
    %v1381 = vrot.slane %v1373, %v1380
    %v1383 = vunpack.c.l.s4 1934713408
    %v1384 = vunpack.c.0.s8 %v1383
    %v1385 = vlaneseq
    %v1386 = vshrl.u32 %v1385, 7
    %v1387 = vsub.s32 %v1384, %v1386
    %v1388 = vrot.slane %v1374, %v1387
    %v1389 = vcombine.low %v1364, %v1372
    %v1390 = vcombine.high %v1364, %v1372
    %v1392 = vunpack.c.l.s4 1934713408
    %v1393 = vunpack.c.0.s8 %v1392
    %v1394 = vlaneseq
    %v1395 = vshrl.u32 %v1394, 7
    %v1396 = vsub.s32 %v1393, %v1395
    %v1397 = vrot.slane %v1389, %v1396
    %v1399 = vunpack.c.l.s4 1934713408
    %v1400 = vunpack.c.0.s8 %v1399
    %v1401 = vlaneseq
    %v1402 = vshrl.u32 %v1401, 7
    %v1403 = vsub.s32 %v1400, %v1402
    %v1404 = vrot.slane %v1390, %v1403
    %v1405 = vcombine.low %v1381, %v1397
    %v1406 = vcombine.high %v1381, %v1397
    %v1407 = vcombine.low %v1388, %v1404
    %v1408 = vcombine.high %v1388, %v1404
    %v1409 = vcombine.low %v1041, %v1048
    %v1411 = vunpack.c.l.s4 1983009808
    %v1412 = vunpack.c.0.s8 %v1411
    %v1413 = vlaneseq
    %v1414 = vshrl.u32 %v1413, 7
    %v1415 = vsub.s32 %v1412, %v1414
    %v1416 = vrot.slane %v1409, %v1415
    %v1417 = vcombine.low %v1065, %v1066
    %v1419 = vunpack.c.l.s4 1983009808
    %v1420 = vunpack.c.0.s8 %v1419
    %v1421 = vlaneseq
    %v1422 = vshrl.u32 %v1421, 7
    %v1423 = vsub.s32 %v1420, %v1422
    %v1424 = vrot.slane %v1417, %v1423
    %v1425 = vcombine.low %v1057, %v1064
    %v1427 = vunpack.c.l.s4 1983009808
    %v1428 = vunpack.c.0.s8 %v1427
    %v1429 = vlaneseq
    %v1430 = vshrl.u32 %v1429, 7
    %v1431 = vsub.s32 %v1428, %v1430
    %v1432 = vrot.slane %v1425, %v1431
    %v1433 = vcombine.low %v1067, %v1068
    %v1435 = vunpack.c.l.s4 1983009808
    %v1436 = vunpack.c.0.s8 %v1435
    %v1437 = vlaneseq
    %v1438 = vshrl.u32 %v1437, 7
    %v1439 = vsub.s32 %v1436, %v1438
    %v1440 = vrot.slane %v1433, %v1439
    %v1441 = vcombine.low %v1416, %v1424
    %v1442 = vcombine.high %v1416, %v1424
    %v1444 = vunpack.c.l.s4 1934713408
    %v1445 = vunpack.c.0.s8 %v1444
    %v1446 = vlaneseq
    %v1447 = vshrl.u32 %v1446, 7
    %v1448 = vsub.s32 %v1445, %v1447
    %v1449 = vrot.slane %v1441, %v1448
    %v1451 = vunpack.c.l.s4 1934713408
    %v1452 = vunpack.c.0.s8 %v1451
    %v1453 = vlaneseq
    %v1454 = vshrl.u32 %v1453, 7
    %v1455 = vsub.s32 %v1452, %v1454
    %v1456 = vrot.slane %v1442, %v1455
    %v1457 = vcombine.low %v1432, %v1440
    %v1458 = vcombine.high %v1432, %v1440
    %v1460 = vunpack.c.l.s4 1934713408
    %v1461 = vunpack.c.0.s8 %v1460
    %v1462 = vlaneseq
    %v1463 = vshrl.u32 %v1462, 7
    %v1464 = vsub.s32 %v1461, %v1463
    %v1465 = vrot.slane %v1457, %v1464
    %v1467 = vunpack.c.l.s4 1934713408
    %v1468 = vunpack.c.0.s8 %v1467
    %v1469 = vlaneseq
    %v1470 = vshrl.u32 %v1469, 7
    %v1471 = vsub.s32 %v1468, %v1470
    %v1472 = vrot.slane %v1458, %v1471
    %v1473 = vcombine.low %v1449, %v1465
    %v1474 = vcombine.high %v1449, %v1465
    %v1475 = vcombine.low %v1456, %v1472
    %v1476 = vcombine.high %v1456, %v1472
    %v1477 = vld [vmem:[%s4] sm:$0xff]
    %v1478 = vld [vmem:[%s4 + $0x8] sm:$0xff]
    %v1479 = vld [vmem:[%s5] sm:$0xff]
    %v1480 = vld [vmem:[%s1] sm:$0xff]
    %v1481 = vld [vmem:[%s1 + $0x8] sm:$0xff]
    %v1482 = vld [vmem:[%s1 + $0x10] sm:$0xff]
    %v1483 = vld [vmem:[%s1 + $0x18] sm:$0xff]
    %v1484 = vld [vmem:[%s1 + $0x20] sm:$0xff]
    %v1485 = vld [vmem:[%s1 + $0x28] sm:$0xff]
    %v1486 = vld [vmem:[%s1 + $0x30] sm:$0xff]
    %v1487 = vld [vmem:[%s1 + $0x38] sm:$0xff]
    %v1488 = vld [vmem:[%s1 + $0x40] sm:$0xff]
    %v1489 = vld [vmem:[%s1 + $0x48] sm:$0xff]
    %v1490 = vld [vmem:[%s1 + $0x50] sm:$0xff]
    %v1491 = vld [vmem:[%s1 + $0x58] sm:$0xff]
    %vm1492 = vcmask 64512
    %v1494 = vsel %vm1492, %v1480, 0
    %v1497 = vsel %vm1492, %v1481, 0
    %v1500 = vsel %vm1492, %v1482, 0
    %v1503 = vsel %vm1492, %v1483, 0
    %v1506 = vsel %vm1492, %v1484, 0
    %v1509 = vsel %vm1492, %v1485, 0
    %v1512 = vsel %vm1492, %v1486, 0
    %v1515 = vsel %vm1492, %v1487, 0
    %v1518 = vsel %vm1492, %v1488, 0
    %v1521 = vsel %vm1492, %v1489, 0
    %v1524 = vsel %vm1492, %v1490, 0
    %v1527 = vsel %vm1492, %v1491, 0
    %1529 = vmatprep.subr.mxu0 0.0
    %1530 = vmatpush1.msra.mxu0 %v1479
    %1531 = vmatprep.subr.mxu0 0.0
    %1532 = vmatpush1.msra.mxu0 0.0
    %1533 = vmatprep.subr.mxu0 0.0
    %1534 = vmatpush1.msra.mxu0 0.0
    %1535 = vmatprep.subr.mxu0 0.0
    %1536 = vmatpush1.msra.mxu0 0.0
    %1537 = vmatprep.subr.mxu0 0.0
    %1538 = vmatpush1.msra.mxu0 0.0
    %1539 = vmatprep.subr.mxu0 0.0
    %1540 = vmatpush1.msra.mxu0 0.0
    %1541 = vmatprep.subr.mxu0 0.0
    %1542 = vmatpush1.msra.mxu0 0.0
    %1543 = vmatprep.subr.mxu0 0.0
    %1544 = vmatpush1.msra.mxu0 0.0
    %1545 = vmatprep.subr.mxu0 0.0
    %1546 = vmatpush1.msra.mxu0 0.0
    %1547 = vmatprep.subr.mxu0 0.0
    %1548 = vmatpush1.msra.mxu0 0.0
    %1549 = vmatprep.subr.mxu0 0.0
    %1550 = vmatpush1.msra.mxu0 0.0
    %1551 = vmatprep.subr.mxu0 0.0
    %1552 = vmatpush1.msra.mxu0 0.0
    %1553 = vmatprep.subr.mxu0 0.0
    %1554 = vmatpush1.msra.mxu0 0.0
    %1555 = vmatprep.subr.mxu0 0.0
    %1556 = vmatpush1.msra.mxu0 0.0
    %1557 = vmatprep.subr.mxu0 0.0
    %1558 = vmatpush1.msra.mxu0 0.0
    %1559 = vmatprep.subr.mxu0 0.0
    %1560 = vmatpush1.msra.mxu0 0.0
    %1561 = vmatprep.subr.mxu0 0.0
    %1562 = vmatpush1.msra.mxu0 0.0
    %1563 = vmatprep.subr.mxu0 0.0
    %1564 = vmatpush1.msra.mxu0 0.0
    %1565 = vmatprep.subr.mxu0 0.0
    %1566 = vmatpush1.msra.mxu0 0.0
    %1567 = vmatprep.subr.mxu0 0.0
    %1568 = vmatpush1.msra.mxu0 0.0
    %1569 = vmatprep.subr.mxu0 0.0
    %1570 = vmatpush1.msra.mxu0 0.0
    %1571 = vmatprep.subr.mxu0 0.0
    %1572 = vmatpush1.msra.mxu0 0.0
    %1573 = vmatprep.subr.mxu0 0.0
    %1574 = vmatpush1.msra.mxu0 0.0
    %1575 = vmatprep.subr.mxu0 0.0
    %1576 = vmatpush1.msra.mxu0 0.0
    %1577 = vmatprep.subr.mxu0 0.0
    %1578 = vmatpush1.msra.mxu0 0.0
    %1579 = vmatprep.subr.mxu0 0.0
    %1580 = vmatpush1.msra.mxu0 0.0
    %1581 = vmatprep.subr.mxu0 0.0
    %1582 = vmatpush1.msra.mxu0 0.0
    %1583 = vmatprep.subr.mxu0 0.0
    %1584 = vmatpush1.msra.mxu0 0.0
    %1585 = vmatprep.subr.mxu0 0.0
    %1586 = vmatpush1.msra.mxu0 0.0
    %1587 = vmatprep.subr.mxu0 0.0
    %1588 = vmatpush1.msra.mxu0 0.0
    %1589 = vmatprep.subr.mxu0 0.0
    %1590 = vmatpush1.msra.mxu0 0.0
    %1591 = vmatprep.subr.mxu0 0.0
    %1592 = vmatpush1.msra.mxu0 0.0
    %1593 = vmatprep.mubr.f32.mxu0 0.0
    %1594 = vmatmul.mubr.f32.gmra.mrb[0].mxu0 %v1494
    %v1595 = vpop.f32.mrb[0].mxu0
    %v1596 = vadd.f32 0.0, %v1595
    %v1597 = vpop.f32.mrb[0].mxu0
    %1598 = vmatprep.mubr.f32.mxu0 0.0
    %1599 = vmatmul.mubr.f32.gmra.mrb[0].mxu0 %v1497
    %v1600 = vpop.f32.mrb[0].mxu0
    %v1601 = vadd.f32 0.0, %v1600
    %v1602 = vpop.f32.mrb[0].mxu0
    %1603 = vmatprep.mubr.f32.mxu0 0.0
    %1604 = vmatmul.mubr.f32.gmra.mrb[0].mxu0 %v1500
    %v1605 = vpop.f32.mrb[0].mxu0
    %v1606 = vadd.f32 0.0, %v1605
    %v1607 = vpop.f32.mrb[0].mxu0
    %1608 = vmatprep.mubr.f32.mxu0 0.0
    %1609 = vmatmul.mubr.f32.gmra.mrb[0].mxu0 %v1503
    %v1610 = vpop.f32.mrb[0].mxu0
    %v1611 = vadd.f32 0.0, %v1610
    %v1612 = vpop.f32.mrb[0].mxu0
    %1613 = vmatprep.mubr.f32.mxu0 0.0
    %1614 = vmatmul.mubr.f32.gmra.mrb[0].mxu0 %v1506
    %v1615 = vpop.f32.mrb[0].mxu0
    %v1616 = vadd.f32 0.0, %v1615
    %v1617 = vpop.f32.mrb[0].mxu0
    %1618 = vmatprep.mubr.f32.mxu0 0.0
    %1619 = vmatmul.mubr.f32.gmra.mrb[0].mxu0 %v1509
    %v1620 = vpop.f32.mrb[0].mxu0
    %v1621 = vadd.f32 0.0, %v1620
    %v1622 = vpop.f32.mrb[0].mxu0
    %1623 = vmatprep.mubr.f32.mxu0 0.0
    %1624 = vmatmul.mubr.f32.gmra.mrb[0].mxu0 %v1512
    %v1625 = vpop.f32.mrb[0].mxu0
    %v1626 = vadd.f32 0.0, %v1625
    %v1627 = vpop.f32.mrb[0].mxu0
    %1628 = vmatprep.mubr.f32.mxu0 0.0
    %1629 = vmatmul.mubr.f32.gmra.mrb[0].mxu0 %v1515
    %v1630 = vpop.f32.mrb[0].mxu0
    %v1631 = vadd.f32 0.0, %v1630
    %v1632 = vpop.f32.mrb[0].mxu0
    %1633 = vmatprep.mubr.f32.mxu0 0.0
    %1634 = vmatmul.mubr.f32.gmra.mrb[0].mxu0 %v1518
    %v1635 = vpop.f32.mrb[0].mxu0
    %v1636 = vadd.f32 0.0, %v1635
    %v1637 = vpop.f32.mrb[0].mxu0
    %1638 = vmatprep.mubr.f32.mxu0 0.0
    %1639 = vmatmul.mubr.f32.gmra.mrb[0].mxu0 %v1521
    %v1640 = vpop.f32.mrb[0].mxu0
    %v1641 = vadd.f32 0.0, %v1640
    %v1642 = vpop.f32.mrb[0].mxu0
    %1643 = vmatprep.mubr.f32.mxu0 0.0
    %1644 = vmatmul.mubr.f32.gmra.mrb[0].mxu0 %v1524
    %v1645 = vpop.f32.mrb[0].mxu0
    %v1646 = vadd.f32 0.0, %v1645
    %v1647 = vpop.f32.mrb[0].mxu0
    %1648 = vmatprep.mubr.f32.mxu0 0.0
    %1649 = vmatmul.mubr.f32.gmra.mrb[0].mxu0 %v1527
    %v1650 = vpop.f32.mrb[0].mxu0
    %v1651 = vadd.f32 0.0, %v1650
    %v1652 = vpop.f32.mrb[0].mxu0
    %1653 = vdwg.mxu0
    %v1654 = vcombine.low %v1596, %v1606
    %v1655 = vcombine.high %v1596, %v1606
    %v1657 = vunpack.c.l.s4 1983009808
    %v1658 = vunpack.c.0.s8 %v1657
    %v1659 = vlaneseq
    %v1660 = vshrl.u32 %v1659, 7
    %v1661 = vsub.s32 %v1658, %v1660
    %v1662 = vrot.slane %v1654, %v1661
    %v1664 = vunpack.c.l.s4 1983009808
    %v1665 = vunpack.c.0.s8 %v1664
    %v1666 = vlaneseq
    %v1667 = vshrl.u32 %v1666, 7
    %v1668 = vsub.s32 %v1665, %v1667
    %v1669 = vrot.slane %v1655, %v1668
    %v1670 = vcombine.low %v1601, %v1611
    %v1671 = vcombine.high %v1601, %v1611
    %v1673 = vunpack.c.l.s4 1983009808
    %v1674 = vunpack.c.0.s8 %v1673
    %v1675 = vlaneseq
    %v1676 = vshrl.u32 %v1675, 7
    %v1677 = vsub.s32 %v1674, %v1676
    %v1678 = vrot.slane %v1670, %v1677
    %v1680 = vunpack.c.l.s4 1983009808
    %v1681 = vunpack.c.0.s8 %v1680
    %v1682 = vlaneseq
    %v1683 = vshrl.u32 %v1682, 7
    %v1684 = vsub.s32 %v1681, %v1683
    %v1685 = vrot.slane %v1671, %v1684
    %v1686 = vcombine.low %v1616, %v1626
    %v1687 = vcombine.high %v1616, %v1626
    %v1689 = vunpack.c.l.s4 1983009808
    %v1690 = vunpack.c.0.s8 %v1689
    %v1691 = vlaneseq
    %v1692 = vshrl.u32 %v1691, 7
    %v1693 = vsub.s32 %v1690, %v1692
    %v1694 = vrot.slane %v1686, %v1693
    %v1696 = vunpack.c.l.s4 1983009808
    %v1697 = vunpack.c.0.s8 %v1696
    %v1698 = vlaneseq
    %v1699 = vshrl.u32 %v1698, 7
    %v1700 = vsub.s32 %v1697, %v1699
    %v1701 = vrot.slane %v1687, %v1700
    %v1702 = vcombine.low %v1621, %v1631
    %v1703 = vcombine.high %v1621, %v1631
    %v1705 = vunpack.c.l.s4 1983009808
    %v1706 = vunpack.c.0.s8 %v1705
    %v1707 = vlaneseq
    %v1708 = vshrl.u32 %v1707, 7
    %v1709 = vsub.s32 %v1706, %v1708
    %v1710 = vrot.slane %v1702, %v1709
    %v1712 = vunpack.c.l.s4 1983009808
    %v1713 = vunpack.c.0.s8 %v1712
    %v1714 = vlaneseq
    %v1715 = vshrl.u32 %v1714, 7
    %v1716 = vsub.s32 %v1713, %v1715
    %v1717 = vrot.slane %v1703, %v1716
    %v1718 = vcombine.low %v1662, %v1678
    %v1719 = vcombine.high %v1662, %v1678
    %v1721 = vunpack.c.l.s4 1934713408
    %v1722 = vunpack.c.0.s8 %v1721
    %v1723 = vlaneseq
    %v1724 = vshrl.u32 %v1723, 7
    %v1725 = vsub.s32 %v1722, %v1724
    %v1726 = vrot.slane %v1718, %v1725
    %v1728 = vunpack.c.l.s4 1934713408
    %v1729 = vunpack.c.0.s8 %v1728
    %v1730 = vlaneseq
    %v1731 = vshrl.u32 %v1730, 7
    %v1732 = vsub.s32 %v1729, %v1731
    %v1733 = vrot.slane %v1719, %v1732
    %v1734 = vcombine.low %v1669, %v1685
    %v1735 = vcombine.high %v1669, %v1685
    %v1737 = vunpack.c.l.s4 1934713408
    %v1738 = vunpack.c.0.s8 %v1737
    %v1739 = vlaneseq
    %v1740 = vshrl.u32 %v1739, 7
    %v1741 = vsub.s32 %v1738, %v1740
    %v1742 = vrot.slane %v1734, %v1741
    %v1744 = vunpack.c.l.s4 1934713408
    %v1745 = vunpack.c.0.s8 %v1744
    %v1746 = vlaneseq
    %v1747 = vshrl.u32 %v1746, 7
    %v1748 = vsub.s32 %v1745, %v1747
    %v1749 = vrot.slane %v1735, %v1748
    %v1750 = vcombine.low %v1694, %v1710
    %v1751 = vcombine.high %v1694, %v1710
    %v1753 = vunpack.c.l.s4 1934713408
    %v1754 = vunpack.c.0.s8 %v1753
    %v1755 = vlaneseq
    %v1756 = vshrl.u32 %v1755, 7
    %v1757 = vsub.s32 %v1754, %v1756
    %v1758 = vrot.slane %v1750, %v1757
    %v1760 = vunpack.c.l.s4 1934713408
    %v1761 = vunpack.c.0.s8 %v1760
    %v1762 = vlaneseq
    %v1763 = vshrl.u32 %v1762, 7
    %v1764 = vsub.s32 %v1761, %v1763
    %v1765 = vrot.slane %v1751, %v1764
    %v1766 = vcombine.low %v1701, %v1717
    %v1767 = vcombine.high %v1701, %v1717
    %v1769 = vunpack.c.l.s4 1934713408
    %v1770 = vunpack.c.0.s8 %v1769
    %v1771 = vlaneseq
    %v1772 = vshrl.u32 %v1771, 7
    %v1773 = vsub.s32 %v1770, %v1772
    %v1774 = vrot.slane %v1766, %v1773
    %v1776 = vunpack.c.l.s4 1934713408
    %v1777 = vunpack.c.0.s8 %v1776
    %v1778 = vlaneseq
    %v1779 = vshrl.u32 %v1778, 7
    %v1780 = vsub.s32 %v1777, %v1779
    %v1781 = vrot.slane %v1767, %v1780
    %v1782 = vcombine.low %v1726, %v1758
    %v1783 = vcombine.high %v1726, %v1758
    %v1784 = vcombine.low %v1733, %v1765
    %v1785 = vcombine.high %v1733, %v1765
    %v1786 = vcombine.low %v1742, %v1774
    %v1787 = vcombine.high %v1742, %v1774
    %v1788 = vcombine.low %v1749, %v1781
    %v1789 = vcombine.high %v1749, %v1781
    %v1790 = vcombine.low %v1636, %v1646
    %v1791 = vcombine.high %v1636, %v1646
    %v1793 = vunpack.c.l.s4 1983009808
    %v1794 = vunpack.c.0.s8 %v1793
    %v1795 = vlaneseq
    %v1796 = vshrl.u32 %v1795, 7
    %v1797 = vsub.s32 %v1794, %v1796
    %v1798 = vrot.slane %v1790, %v1797
    %v1800 = vunpack.c.l.s4 1983009808
    %v1801 = vunpack.c.0.s8 %v1800
    %v1802 = vlaneseq
    %v1803 = vshrl.u32 %v1802, 7
    %v1804 = vsub.s32 %v1801, %v1803
    %v1805 = vrot.slane %v1791, %v1804
    %v1806 = vcombine.low %v1641, %v1651
    %v1807 = vcombine.high %v1641, %v1651
    %v1809 = vunpack.c.l.s4 1983009808
    %v1810 = vunpack.c.0.s8 %v1809
    %v1811 = vlaneseq
    %v1812 = vshrl.u32 %v1811, 7
    %v1813 = vsub.s32 %v1810, %v1812
    %v1814 = vrot.slane %v1806, %v1813
    %v1816 = vunpack.c.l.s4 1983009808
    %v1817 = vunpack.c.0.s8 %v1816
    %v1818 = vlaneseq
    %v1819 = vshrl.u32 %v1818, 7
    %v1820 = vsub.s32 %v1817, %v1819
    %v1821 = vrot.slane %v1807, %v1820
    %v1822 = vcombine.low %v1798, %v1814
    %v1823 = vcombine.high %v1798, %v1814
    %v1825 = vunpack.c.l.s4 1934713408
    %v1826 = vunpack.c.0.s8 %v1825
    %v1827 = vlaneseq
    %v1828 = vshrl.u32 %v1827, 7
    %v1829 = vsub.s32 %v1826, %v1828
    %v1830 = vrot.slane %v1822, %v1829
    %v1832 = vunpack.c.l.s4 1934713408
    %v1833 = vunpack.c.0.s8 %v1832
    %v1834 = vlaneseq
    %v1835 = vshrl.u32 %v1834, 7
    %v1836 = vsub.s32 %v1833, %v1835
    %v1837 = vrot.slane %v1823, %v1836
    %v1838 = vcombine.low %v1805, %v1821
    %v1839 = vcombine.high %v1805, %v1821
    %v1841 = vunpack.c.l.s4 1934713408
    %v1842 = vunpack.c.0.s8 %v1841
    %v1843 = vlaneseq
    %v1844 = vshrl.u32 %v1843, 7
    %v1845 = vsub.s32 %v1842, %v1844
    %v1846 = vrot.slane %v1838, %v1845
    %v1848 = vunpack.c.l.s4 1934713408
    %v1849 = vunpack.c.0.s8 %v1848
    %v1850 = vlaneseq
    %v1851 = vshrl.u32 %v1850, 7
    %v1852 = vsub.s32 %v1849, %v1851
    %v1853 = vrot.slane %v1839, %v1852
    %v1854 = vcombine.high %v1830, 0.0
    %v1855 = vcombine.high %v1837, 0.0
    %v1856 = vcombine.high %v1846, 0.0
    %v1857 = vcombine.high %v1853, 0.0
    %v1858 = vcombine.low %v1782, %v1784
    %v1859 = vcombine.high %v1782, %v1784
    %v1861 = vunpack.c.l.s4 1983009808
    %v1862 = vunpack.c.0.s8 %v1861
    %v1863 = vlaneseq
    %v1864 = vshrl.u32 %v1863, 7
    %v1865 = vsub.s32 %v1862, %v1864
    %v1866 = vrot.slane %v1858, %v1865
    %v1868 = vunpack.c.l.s4 1983009808
    %v1869 = vunpack.c.0.s8 %v1868
    %v1870 = vlaneseq
    %v1871 = vshrl.u32 %v1870, 7
    %v1872 = vsub.s32 %v1869, %v1871
    %v1873 = vrot.slane %v1859, %v1872
    %v1874 = vcombine.low %v1783, %v1785
    %v1875 = vcombine.high %v1783, %v1785
    %v1877 = vunpack.c.l.s4 1983009808
    %v1878 = vunpack.c.0.s8 %v1877
    %v1879 = vlaneseq
    %v1880 = vshrl.u32 %v1879, 7
    %v1881 = vsub.s32 %v1878, %v1880
    %v1882 = vrot.slane %v1874, %v1881
    %v1884 = vunpack.c.l.s4 1983009808
    %v1885 = vunpack.c.0.s8 %v1884
    %v1886 = vlaneseq
    %v1887 = vshrl.u32 %v1886, 7
    %v1888 = vsub.s32 %v1885, %v1887
    %v1889 = vrot.slane %v1875, %v1888
    %v1890 = vcombine.low %v1786, %v1788
    %v1891 = vcombine.high %v1786, %v1788
    %v1893 = vunpack.c.l.s4 1983009808
    %v1894 = vunpack.c.0.s8 %v1893
    %v1895 = vlaneseq
    %v1896 = vshrl.u32 %v1895, 7
    %v1897 = vsub.s32 %v1894, %v1896
    %v1898 = vrot.slane %v1890, %v1897
    %v1900 = vunpack.c.l.s4 1983009808
    %v1901 = vunpack.c.0.s8 %v1900
    %v1902 = vlaneseq
    %v1903 = vshrl.u32 %v1902, 7
    %v1904 = vsub.s32 %v1901, %v1903
    %v1905 = vrot.slane %v1891, %v1904
    %v1906 = vcombine.low %v1787, %v1789
    %v1907 = vcombine.high %v1787, %v1789
    %v1909 = vunpack.c.l.s4 1983009808
    %v1910 = vunpack.c.0.s8 %v1909
    %v1911 = vlaneseq
    %v1912 = vshrl.u32 %v1911, 7
    %v1913 = vsub.s32 %v1910, %v1912
    %v1914 = vrot.slane %v1906, %v1913
    %v1916 = vunpack.c.l.s4 1983009808
    %v1917 = vunpack.c.0.s8 %v1916
    %v1918 = vlaneseq
    %v1919 = vshrl.u32 %v1918, 7
    %v1920 = vsub.s32 %v1917, %v1919
    %v1921 = vrot.slane %v1907, %v1920
    %v1922 = vcombine.low %v1866, %v1882
    %v1923 = vcombine.high %v1866, %v1882
    %v1925 = vunpack.c.l.s4 1934713408
    %v1926 = vunpack.c.0.s8 %v1925
    %v1927 = vlaneseq
    %v1928 = vshrl.u32 %v1927, 7
    %v1929 = vsub.s32 %v1926, %v1928
    %v1930 = vrot.slane %v1922, %v1929
    %v1932 = vunpack.c.l.s4 1934713408
    %v1933 = vunpack.c.0.s8 %v1932
    %v1934 = vlaneseq
    %v1935 = vshrl.u32 %v1934, 7
    %v1936 = vsub.s32 %v1933, %v1935
    %v1937 = vrot.slane %v1923, %v1936
    %v1938 = vcombine.low %v1873, %v1889
    %v1939 = vcombine.high %v1873, %v1889
    %v1941 = vunpack.c.l.s4 1934713408
    %v1942 = vunpack.c.0.s8 %v1941
    %v1943 = vlaneseq
    %v1944 = vshrl.u32 %v1943, 7
    %v1945 = vsub.s32 %v1942, %v1944
    %v1946 = vrot.slane %v1938, %v1945
    %v1948 = vunpack.c.l.s4 1934713408
    %v1949 = vunpack.c.0.s8 %v1948
    %v1950 = vlaneseq
    %v1951 = vshrl.u32 %v1950, 7
    %v1952 = vsub.s32 %v1949, %v1951
    %v1953 = vrot.slane %v1939, %v1952
    %v1954 = vcombine.low %v1898, %v1914
    %v1955 = vcombine.high %v1898, %v1914
    %v1957 = vunpack.c.l.s4 1934713408
    %v1958 = vunpack.c.0.s8 %v1957
    %v1959 = vlaneseq
    %v1960 = vshrl.u32 %v1959, 7
    %v1961 = vsub.s32 %v1958, %v1960
    %v1962 = vrot.slane %v1954, %v1961
    %v1964 = vunpack.c.l.s4 1934713408
    %v1965 = vunpack.c.0.s8 %v1964
    %v1966 = vlaneseq
    %v1967 = vshrl.u32 %v1966, 7
    %v1968 = vsub.s32 %v1965, %v1967
    %v1969 = vrot.slane %v1955, %v1968
    %v1970 = vcombine.low %v1905, %v1921
    %v1971 = vcombine.high %v1905, %v1921
    %v1973 = vunpack.c.l.s4 1934713408
    %v1974 = vunpack.c.0.s8 %v1973
    %v1975 = vlaneseq
    %v1976 = vshrl.u32 %v1975, 7
    %v1977 = vsub.s32 %v1974, %v1976
    %v1978 = vrot.slane %v1970, %v1977
    %v1980 = vunpack.c.l.s4 1934713408
    %v1981 = vunpack.c.0.s8 %v1980
    %v1982 = vlaneseq
    %v1983 = vshrl.u32 %v1982, 7
    %v1984 = vsub.s32 %v1981, %v1983
    %v1985 = vrot.slane %v1971, %v1984
    %v1986 = vcombine.low %v1930, %v1962
    %v1987 = vcombine.high %v1930, %v1962
    %v1988 = vcombine.low %v1937, %v1969
    %v1989 = vcombine.high %v1937, %v1969
    %v1990 = vcombine.low %v1946, %v1978
    %v1991 = vcombine.high %v1946, %v1978
    %v1992 = vcombine.low %v1953, %v1985
    %v1993 = vcombine.high %v1953, %v1985
    %v1994 = vcombine.low %v1830, %v1837
    %v1996 = vunpack.c.l.s4 1983009808
    %v1997 = vunpack.c.0.s8 %v1996
    %v1998 = vlaneseq
    %v1999 = vshrl.u32 %v1998, 7
    %v2000 = vsub.s32 %v1997, %v1999
    %v2001 = vrot.slane %v1994, %v2000
    %v2002 = vcombine.low %v1854, %v1855
    %v2004 = vunpack.c.l.s4 1983009808
    %v2005 = vunpack.c.0.s8 %v2004
    %v2006 = vlaneseq
    %v2007 = vshrl.u32 %v2006, 7
    %v2008 = vsub.s32 %v2005, %v2007
    %v2009 = vrot.slane %v2002, %v2008
    %v2010 = vcombine.low %v1846, %v1853
    %v2012 = vunpack.c.l.s4 1983009808
    %v2013 = vunpack.c.0.s8 %v2012
    %v2014 = vlaneseq
    %v2015 = vshrl.u32 %v2014, 7
    %v2016 = vsub.s32 %v2013, %v2015
    %v2017 = vrot.slane %v2010, %v2016
    %v2018 = vcombine.low %v1856, %v1857
    %v2020 = vunpack.c.l.s4 1983009808
    %v2021 = vunpack.c.0.s8 %v2020
    %v2022 = vlaneseq
    %v2023 = vshrl.u32 %v2022, 7
    %v2024 = vsub.s32 %v2021, %v2023
    %v2025 = vrot.slane %v2018, %v2024
    %v2026 = vcombine.low %v2001, %v2009
    %v2027 = vcombine.high %v2001, %v2009
    %v2029 = vunpack.c.l.s4 1934713408
    %v2030 = vunpack.c.0.s8 %v2029
    %v2031 = vlaneseq
    %v2032 = vshrl.u32 %v2031, 7
    %v2033 = vsub.s32 %v2030, %v2032
    %v2034 = vrot.slane %v2026, %v2033
    %v2036 = vunpack.c.l.s4 1934713408
    %v2037 = vunpack.c.0.s8 %v2036
    %v2038 = vlaneseq
    %v2039 = vshrl.u32 %v2038, 7
    %v2040 = vsub.s32 %v2037, %v2039
    %v2041 = vrot.slane %v2027, %v2040
    %v2042 = vcombine.low %v2017, %v2025
    %v2043 = vcombine.high %v2017, %v2025
    %v2045 = vunpack.c.l.s4 1934713408
    %v2046 = vunpack.c.0.s8 %v2045
    %v2047 = vlaneseq
    %v2048 = vshrl.u32 %v2047, 7
    %v2049 = vsub.s32 %v2046, %v2048
    %v2050 = vrot.slane %v2042, %v2049
    %v2052 = vunpack.c.l.s4 1934713408
    %v2053 = vunpack.c.0.s8 %v2052
    %v2054 = vlaneseq
    %v2055 = vshrl.u32 %v2054, 7
    %v2056 = vsub.s32 %v2053, %v2055
    %v2057 = vrot.slane %v2043, %v2056
    %v2058 = vcombine.low %v2034, %v2050
    %v2059 = vcombine.high %v2034, %v2050
    %v2060 = vcombine.low %v2041, %v2057
    %v2061 = vcombine.high %v2041, %v2057
    %2063 = vrot.lane.b32.xlu0 %v1987, 16
    %v2064 = vpop.permute.xlu0 %2063
    %2067 = vrot.lane.b32.xlu0 %v1988, 32
    %v2068 = vpop.permute.xlu0 %2067
    %2071 = vrot.lane.b32.xlu0 %v1989, 48
    %v2072 = vpop.permute.xlu0 %2071
    %2075 = vrot.lane.b32.xlu0 %v1990, 64
    %v2076 = vpop.permute.xlu0 %2075
    %2079 = vrot.lane.b32.xlu0 %v1991, 80
    %v2080 = vpop.permute.xlu0 %2079
    %2083 = vrot.lane.b32.xlu0 %v1992, 96
    %v2084 = vpop.permute.xlu0 %2083
    %2087 = vrot.lane.b32.xlu0 %v1993, 112
    %v2088 = vpop.permute.xlu0 %2087
    %2091 = vrot.lane.b32.xlu0 %v2059, 16
    %v2092 = vpop.permute.xlu0 %2091
    %2095 = vrot.lane.b32.xlu0 %v2060, 32
    %v2096 = vpop.permute.xlu0 %2095
    %2099 = vrot.lane.b32.xlu0 %v2061, 48
    %v2100 = vpop.permute.xlu0 %2099
    %v2102 = vsel %vm431, %v1986, %v2064
    %v2103 = vsel %vm433, %v2102, %v2068
    %v2104 = vsel %vm435, %v2103, %v2072
    %v2105 = vsel %vm437, %v2104, %v2076
    %v2106 = vsel %vm439, %v2105, %v2080
    %v2107 = vsel %vm441, %v2106, %v2084
    %v2108 = vsel %vm443, %v2107, %v2088
    %v2109 = vsel %vm431, %v2058, %v2092
    %v2110 = vsel %vm433, %v2109, %v2096
    %v2111 = vsel %vm435, %v2110, %v2100
    %v2113 = vsel %vm1492, %v1477, 0
    %v2116 = vsel %vm1492, %v1478, 0
    %2118 = vmatprep.subr.mxu0 %v2111
    %2119 = vmatpush1.msra.mxu0 %v2108
    %2120 = vmatprep.subr.mxu0 0.0
    %2121 = vmatpush1.msra.mxu0 0.0
    %2122 = vmatprep.subr.mxu0 0.0
    %2123 = vmatpush1.msra.mxu0 0.0
    %2124 = vmatprep.subr.mxu0 0.0
    %2125 = vmatpush1.msra.mxu0 0.0
    %2126 = vmatprep.subr.mxu0 0.0
    %2127 = vmatpush1.msra.mxu0 0.0
    %2128 = vmatprep.subr.mxu0 0.0
    %2129 = vmatpush1.msra.mxu0 0.0
    %2130 = vmatprep.subr.mxu0 0.0
    %2131 = vmatpush1.msra.mxu0 0.0
    %2132 = vmatprep.subr.mxu0 0.0
    %2133 = vmatpush1.msra.mxu0 0.0
    %2134 = vmatprep.subr.mxu0 0.0
    %2135 = vmatpush1.msra.mxu0 0.0
    %2136 = vmatprep.subr.mxu0 0.0
    %2137 = vmatpush1.msra.mxu0 0.0
    %2138 = vmatprep.subr.mxu0 0.0
    %2139 = vmatpush1.msra.mxu0 0.0
    %2140 = vmatprep.subr.mxu0 0.0
    %2141 = vmatpush1.msra.mxu0 0.0
    %2142 = vmatprep.subr.mxu0 0.0
    %2143 = vmatpush1.msra.mxu0 0.0
    %2144 = vmatprep.subr.mxu0 0.0
    %2145 = vmatpush1.msra.mxu0 0.0
    %2146 = vmatprep.subr.mxu0 0.0
    %2147 = vmatpush1.msra.mxu0 0.0
    %2148 = vmatprep.subr.mxu0 0.0
    %2149 = vmatpush1.msra.mxu0 0.0
    %2150 = vmatprep.subr.mxu0 0.0
    %2151 = vmatpush1.msra.mxu0 0.0
    %2152 = vmatprep.subr.mxu0 0.0
    %2153 = vmatpush1.msra.mxu0 0.0
    %2154 = vmatprep.subr.mxu0 0.0
    %2155 = vmatpush1.msra.mxu0 0.0
    %2156 = vmatprep.subr.mxu0 0.0
    %2157 = vmatpush1.msra.mxu0 0.0
    %2158 = vmatprep.subr.mxu0 0.0
    %2159 = vmatpush1.msra.mxu0 0.0
    %2160 = vmatprep.subr.mxu0 0.0
    %2161 = vmatpush1.msra.mxu0 0.0
    %2162 = vmatprep.subr.mxu0 0.0
    %2163 = vmatpush1.msra.mxu0 0.0
    %2164 = vmatprep.subr.mxu0 0.0
    %2165 = vmatpush1.msra.mxu0 0.0
    %2166 = vmatprep.subr.mxu0 0.0
    %2167 = vmatpush1.msra.mxu0 0.0
    %2168 = vmatprep.subr.mxu0 0.0
    %2169 = vmatpush1.msra.mxu0 0.0
    %2170 = vmatprep.subr.mxu0 0.0
    %2171 = vmatpush1.msra.mxu0 0.0
    %2172 = vmatprep.subr.mxu0 0.0
    %2173 = vmatpush1.msra.mxu0 0.0
    %2174 = vmatprep.subr.mxu0 0.0
    %2175 = vmatpush1.msra.mxu0 0.0
    %2176 = vmatprep.subr.mxu0 0.0
    %2177 = vmatpush1.msra.mxu0 0.0
    %2178 = vmatprep.subr.mxu0 0.0
    %2179 = vmatpush1.msra.mxu0 0.0
    %2180 = vmatprep.subr.mxu0 0.0
    %2181 = vmatpush1.msra.mxu0 0.0
    %2182 = vmatprep.mubr.f32.mxu0 0.0
    %2183 = vmatmul.mubr.f32.gmra.mrb[0].mxu0 %v2113
    %v2184 = vpop.f32.mrb[0].mxu0
    %v2185 = vadd.f32 %v507, %v2184
    %v2186 = vpop.f32.mrb[0].mxu0
    %v2187 = vadd.f32 %v503, %v2186
    %2188 = vmatprep.mubr.f32.mxu0 0.0
    %2189 = vmatmul.mubr.f32.gmra.mrb[0].mxu0 %v2116
    %v2190 = vpop.f32.mrb[0].mxu0
    %v2191 = vadd.f32 %v507, %v2190
    %v2192 = vpop.f32.mrb[0].mxu0
    %v2193 = vadd.f32 %v503, %v2192
    %2194 = vdwg.mxu0
    %2197 = vrot.lane.b32.xlu0 %v2185, 112
    %v2198 = vpop.permute.xlu0 %2197
    %2199 = vrot.lane.b32.xlu0 %v2191, 112
    %v2200 = vpop.permute.xlu0 %2199
    %2203 = vrot.lane.b32.xlu0 %v2185, 96
    %v2204 = vpop.permute.xlu0 %2203
    %2205 = vrot.lane.b32.xlu0 %v2191, 96
    %v2206 = vpop.permute.xlu0 %2205
    %2209 = vrot.lane.b32.xlu0 %v2185, 80
    %v2210 = vpop.permute.xlu0 %2209
    %2211 = vrot.lane.b32.xlu0 %v2191, 80
    %v2212 = vpop.permute.xlu0 %2211
    %2215 = vrot.lane.b32.xlu0 %v2185, 64
    %v2216 = vpop.permute.xlu0 %2215
    %2217 = vrot.lane.b32.xlu0 %v2191, 64
    %v2218 = vpop.permute.xlu0 %2217
    %2221 = vrot.lane.b32.xlu0 %v2185, 48
    %v2222 = vpop.permute.xlu0 %2221
    %2223 = vrot.lane.b32.xlu0 %v2191, 48
    %v2224 = vpop.permute.xlu0 %2223
    %2227 = vrot.lane.b32.xlu0 %v2185, 32
    %v2228 = vpop.permute.xlu0 %2227
    %2229 = vrot.lane.b32.xlu0 %v2191, 32
    %v2230 = vpop.permute.xlu0 %2229
    %2233 = vrot.lane.b32.xlu0 %v2185, 16
    %v2234 = vpop.permute.xlu0 %2233
    %2235 = vrot.lane.b32.xlu0 %v2191, 16
    %v2236 = vpop.permute.xlu0 %2235
    %2241 = vrot.lane.b32.xlu0 %v2187, 112
    %v2242 = vpop.permute.xlu0 %2241
    %2243 = vrot.lane.b32.xlu0 %v2193, 112
    %v2244 = vpop.permute.xlu0 %2243
    %2247 = vrot.lane.b32.xlu0 %v2187, 96
    %v2248 = vpop.permute.xlu0 %2247
    %2249 = vrot.lane.b32.xlu0 %v2193, 96
    %v2250 = vpop.permute.xlu0 %2249
    %2253 = vrot.lane.b32.xlu0 %v2187, 80
    %v2254 = vpop.permute.xlu0 %2253
    %2255 = vrot.lane.b32.xlu0 %v2193, 80
    %v2256 = vpop.permute.xlu0 %2255
    %v2259 = vcombine.low %v2185, %v2204
    %v2260 = vcombine.high %v2185, %v2204
    %v2262 = vunpack.c.l.s4 1983009808
    %v2263 = vunpack.c.0.s8 %v2262
    %v2264 = vlaneseq
    %v2265 = vshrl.u32 %v2264, 7
    %v2266 = vsub.s32 %v2263, %v2265
    %v2267 = vrot.slane %v2259, %v2266
    %v2269 = vunpack.c.l.s4 1983009808
    %v2270 = vunpack.c.0.s8 %v2269
    %v2271 = vlaneseq
    %v2272 = vshrl.u32 %v2271, 7
    %v2273 = vsub.s32 %v2270, %v2272
    %v2274 = vrot.slane %v2260, %v2273
    %v2275 = vcombine.low %v2198, %v2210
    %v2276 = vcombine.high %v2198, %v2210
    %v2278 = vunpack.c.l.s4 1983009808
    %v2279 = vunpack.c.0.s8 %v2278
    %v2280 = vlaneseq
    %v2281 = vshrl.u32 %v2280, 7
    %v2282 = vsub.s32 %v2279, %v2281
    %v2283 = vrot.slane %v2275, %v2282
    %v2285 = vunpack.c.l.s4 1983009808
    %v2286 = vunpack.c.0.s8 %v2285
    %v2287 = vlaneseq
    %v2288 = vshrl.u32 %v2287, 7
    %v2289 = vsub.s32 %v2286, %v2288
    %v2290 = vrot.slane %v2276, %v2289
    %v2291 = vcombine.low %v2216, %v2228
    %v2292 = vcombine.high %v2216, %v2228
    %v2294 = vunpack.c.l.s4 1983009808
    %v2295 = vunpack.c.0.s8 %v2294
    %v2296 = vlaneseq
    %v2297 = vshrl.u32 %v2296, 7
    %v2298 = vsub.s32 %v2295, %v2297
    %v2299 = vrot.slane %v2291, %v2298
    %v2301 = vunpack.c.l.s4 1983009808
    %v2302 = vunpack.c.0.s8 %v2301
    %v2303 = vlaneseq
    %v2304 = vshrl.u32 %v2303, 7
    %v2305 = vsub.s32 %v2302, %v2304
    %v2306 = vrot.slane %v2292, %v2305
    %v2307 = vcombine.low %v2222, %v2234
    %v2308 = vcombine.high %v2222, %v2234
    %v2310 = vunpack.c.l.s4 1983009808
    %v2311 = vunpack.c.0.s8 %v2310
    %v2312 = vlaneseq
    %v2313 = vshrl.u32 %v2312, 7
    %v2314 = vsub.s32 %v2311, %v2313
    %v2315 = vrot.slane %v2307, %v2314
    %v2317 = vunpack.c.l.s4 1983009808
    %v2318 = vunpack.c.0.s8 %v2317
    %v2319 = vlaneseq
    %v2320 = vshrl.u32 %v2319, 7
    %v2321 = vsub.s32 %v2318, %v2320
    %v2322 = vrot.slane %v2308, %v2321
    %v2323 = vcombine.low %v2267, %v2283
    %v2324 = vcombine.high %v2267, %v2283
    %v2326 = vunpack.c.l.s4 1934713408
    %v2327 = vunpack.c.0.s8 %v2326
    %v2328 = vlaneseq
    %v2329 = vshrl.u32 %v2328, 7
    %v2330 = vsub.s32 %v2327, %v2329
    %v2331 = vrot.slane %v2323, %v2330
    %v2333 = vunpack.c.l.s4 1934713408
    %v2334 = vunpack.c.0.s8 %v2333
    %v2335 = vlaneseq
    %v2336 = vshrl.u32 %v2335, 7
    %v2337 = vsub.s32 %v2334, %v2336
    %v2338 = vrot.slane %v2324, %v2337
    %v2339 = vcombine.low %v2274, %v2290
    %v2340 = vcombine.high %v2274, %v2290
    %v2342 = vunpack.c.l.s4 1934713408
    %v2343 = vunpack.c.0.s8 %v2342
    %v2344 = vlaneseq
    %v2345 = vshrl.u32 %v2344, 7
    %v2346 = vsub.s32 %v2343, %v2345
    %v2347 = vrot.slane %v2339, %v2346
    %v2349 = vunpack.c.l.s4 1934713408
    %v2350 = vunpack.c.0.s8 %v2349
    %v2351 = vlaneseq
    %v2352 = vshrl.u32 %v2351, 7
    %v2353 = vsub.s32 %v2350, %v2352
    %v2354 = vrot.slane %v2340, %v2353
    %v2355 = vcombine.low %v2299, %v2315
    %v2356 = vcombine.high %v2299, %v2315
    %v2358 = vunpack.c.l.s4 1934713408
    %v2359 = vunpack.c.0.s8 %v2358
    %v2360 = vlaneseq
    %v2361 = vshrl.u32 %v2360, 7
    %v2362 = vsub.s32 %v2359, %v2361
    %v2363 = vrot.slane %v2355, %v2362
    %v2365 = vunpack.c.l.s4 1934713408
    %v2366 = vunpack.c.0.s8 %v2365
    %v2367 = vlaneseq
    %v2368 = vshrl.u32 %v2367, 7
    %v2369 = vsub.s32 %v2366, %v2368
    %v2370 = vrot.slane %v2356, %v2369
    %v2371 = vcombine.low %v2306, %v2322
    %v2372 = vcombine.high %v2306, %v2322
    %v2374 = vunpack.c.l.s4 1934713408
    %v2375 = vunpack.c.0.s8 %v2374
    %v2376 = vlaneseq
    %v2377 = vshrl.u32 %v2376, 7
    %v2378 = vsub.s32 %v2375, %v2377
    %v2379 = vrot.slane %v2371, %v2378
    %v2381 = vunpack.c.l.s4 1934713408
    %v2382 = vunpack.c.0.s8 %v2381
    %v2383 = vlaneseq
    %v2384 = vshrl.u32 %v2383, 7
    %v2385 = vsub.s32 %v2382, %v2384
    %v2386 = vrot.slane %v2372, %v2385
    %v2387 = vcombine.low %v2331, %v2363
    %v2388 = vcombine.high %v2331, %v2363
    %v2389 = vcombine.low %v2338, %v2370
    %v2390 = vcombine.high %v2338, %v2370
    %v2391 = vcombine.low %v2347, %v2379
    %v2392 = vcombine.high %v2347, %v2379
    %v2393 = vcombine.low %v2354, %v2386
    %v2394 = vcombine.high %v2354, %v2386
    %v2395 = vcombine.low %v2187, %v2248
    %v2396 = vcombine.high %v2187, %v2248
    %v2398 = vunpack.c.l.s4 1983009808
    %v2399 = vunpack.c.0.s8 %v2398
    %v2400 = vlaneseq
    %v2401 = vshrl.u32 %v2400, 7
    %v2402 = vsub.s32 %v2399, %v2401
    %v2403 = vrot.slane %v2395, %v2402
    %v2405 = vunpack.c.l.s4 1983009808
    %v2406 = vunpack.c.0.s8 %v2405
    %v2407 = vlaneseq
    %v2408 = vshrl.u32 %v2407, 7
    %v2409 = vsub.s32 %v2406, %v2408
    %v2410 = vrot.slane %v2396, %v2409
    %v2411 = vcombine.low %v2242, %v2254
    %v2412 = vcombine.high %v2242, %v2254
    %v2414 = vunpack.c.l.s4 1983009808
    %v2415 = vunpack.c.0.s8 %v2414
    %v2416 = vlaneseq
    %v2417 = vshrl.u32 %v2416, 7
    %v2418 = vsub.s32 %v2415, %v2417
    %v2419 = vrot.slane %v2411, %v2418
    %v2421 = vunpack.c.l.s4 1983009808
    %v2422 = vunpack.c.0.s8 %v2421
    %v2423 = vlaneseq
    %v2424 = vshrl.u32 %v2423, 7
    %v2425 = vsub.s32 %v2422, %v2424
    %v2426 = vrot.slane %v2412, %v2425
    %v2427 = vcombine.low %v2403, %v2419
    %v2428 = vcombine.high %v2403, %v2419
    %v2430 = vunpack.c.l.s4 1934713408
    %v2431 = vunpack.c.0.s8 %v2430
    %v2432 = vlaneseq
    %v2433 = vshrl.u32 %v2432, 7
    %v2434 = vsub.s32 %v2431, %v2433
    %v2435 = vrot.slane %v2427, %v2434
    %v2437 = vunpack.c.l.s4 1934713408
    %v2438 = vunpack.c.0.s8 %v2437
    %v2439 = vlaneseq
    %v2440 = vshrl.u32 %v2439, 7
    %v2441 = vsub.s32 %v2438, %v2440
    %v2442 = vrot.slane %v2428, %v2441
    %v2443 = vcombine.low %v2410, %v2426
    %v2444 = vcombine.high %v2410, %v2426
    %v2446 = vunpack.c.l.s4 1934713408
    %v2447 = vunpack.c.0.s8 %v2446
    %v2448 = vlaneseq
    %v2449 = vshrl.u32 %v2448, 7
    %v2450 = vsub.s32 %v2447, %v2449
    %v2451 = vrot.slane %v2443, %v2450
    %v2453 = vunpack.c.l.s4 1934713408
    %v2454 = vunpack.c.0.s8 %v2453
    %v2455 = vlaneseq
    %v2456 = vshrl.u32 %v2455, 7
    %v2457 = vsub.s32 %v2454, %v2456
    %v2458 = vrot.slane %v2444, %v2457
    %v2459 = vcombine.high %v2435, 0.0
    %v2460 = vcombine.high %v2442, 0.0
    %v2461 = vcombine.high %v2451, 0.0
    %v2462 = vcombine.high %v2458, 0.0
    %v2463 = vcombine.low %v2191, %v2206
    %v2464 = vcombine.high %v2191, %v2206
    %v2466 = vunpack.c.l.s4 1983009808
    %v2467 = vunpack.c.0.s8 %v2466
    %v2468 = vlaneseq
    %v2469 = vshrl.u32 %v2468, 7
    %v2470 = vsub.s32 %v2467, %v2469
    %v2471 = vrot.slane %v2463, %v2470
    %v2473 = vunpack.c.l.s4 1983009808
    %v2474 = vunpack.c.0.s8 %v2473
    %v2475 = vlaneseq
    %v2476 = vshrl.u32 %v2475, 7
    %v2477 = vsub.s32 %v2474, %v2476
    %v2478 = vrot.slane %v2464, %v2477
    %v2479 = vcombine.low %v2200, %v2212
    %v2480 = vcombine.high %v2200, %v2212
    %v2482 = vunpack.c.l.s4 1983009808
    %v2483 = vunpack.c.0.s8 %v2482
    %v2484 = vlaneseq
    %v2485 = vshrl.u32 %v2484, 7
    %v2486 = vsub.s32 %v2483, %v2485
    %v2487 = vrot.slane %v2479, %v2486
    %v2489 = vunpack.c.l.s4 1983009808
    %v2490 = vunpack.c.0.s8 %v2489
    %v2491 = vlaneseq
    %v2492 = vshrl.u32 %v2491, 7
    %v2493 = vsub.s32 %v2490, %v2492
    %v2494 = vrot.slane %v2480, %v2493
    %v2495 = vcombine.low %v2218, %v2230
    %v2496 = vcombine.high %v2218, %v2230
    %v2498 = vunpack.c.l.s4 1983009808
    %v2499 = vunpack.c.0.s8 %v2498
    %v2500 = vlaneseq
    %v2501 = vshrl.u32 %v2500, 7
    %v2502 = vsub.s32 %v2499, %v2501
    %v2503 = vrot.slane %v2495, %v2502
    %v2505 = vunpack.c.l.s4 1983009808
    %v2506 = vunpack.c.0.s8 %v2505
    %v2507 = vlaneseq
    %v2508 = vshrl.u32 %v2507, 7
    %v2509 = vsub.s32 %v2506, %v2508
    %v2510 = vrot.slane %v2496, %v2509
    %v2511 = vcombine.low %v2224, %v2236
    %v2512 = vcombine.high %v2224, %v2236
    %v2514 = vunpack.c.l.s4 1983009808
    %v2515 = vunpack.c.0.s8 %v2514
    %v2516 = vlaneseq
    %v2517 = vshrl.u32 %v2516, 7
    %v2518 = vsub.s32 %v2515, %v2517
    %v2519 = vrot.slane %v2511, %v2518
    %v2521 = vunpack.c.l.s4 1983009808
    %v2522 = vunpack.c.0.s8 %v2521
    %v2523 = vlaneseq
    %v2524 = vshrl.u32 %v2523, 7
    %v2525 = vsub.s32 %v2522, %v2524
    %v2526 = vrot.slane %v2512, %v2525
    %v2527 = vcombine.low %v2471, %v2487
    %v2528 = vcombine.high %v2471, %v2487
    %v2530 = vunpack.c.l.s4 1934713408
    %v2531 = vunpack.c.0.s8 %v2530
    %v2532 = vlaneseq
    %v2533 = vshrl.u32 %v2532, 7
    %v2534 = vsub.s32 %v2531, %v2533
    %v2535 = vrot.slane %v2527, %v2534
    %v2537 = vunpack.c.l.s4 1934713408
    %v2538 = vunpack.c.0.s8 %v2537
    %v2539 = vlaneseq
    %v2540 = vshrl.u32 %v2539, 7
    %v2541 = vsub.s32 %v2538, %v2540
    %v2542 = vrot.slane %v2528, %v2541
    %v2543 = vcombine.low %v2478, %v2494
    %v2544 = vcombine.high %v2478, %v2494
    %v2546 = vunpack.c.l.s4 1934713408
    %v2547 = vunpack.c.0.s8 %v2546
    %v2548 = vlaneseq
    %v2549 = vshrl.u32 %v2548, 7
    %v2550 = vsub.s32 %v2547, %v2549
    %v2551 = vrot.slane %v2543, %v2550
    %v2553 = vunpack.c.l.s4 1934713408
    %v2554 = vunpack.c.0.s8 %v2553
    %v2555 = vlaneseq
    %v2556 = vshrl.u32 %v2555, 7
    %v2557 = vsub.s32 %v2554, %v2556
    %v2558 = vrot.slane %v2544, %v2557
    %v2559 = vcombine.low %v2503, %v2519
    %v2560 = vcombine.high %v2503, %v2519
    %v2562 = vunpack.c.l.s4 1934713408
    %v2563 = vunpack.c.0.s8 %v2562
    %v2564 = vlaneseq
    %v2565 = vshrl.u32 %v2564, 7
    %v2566 = vsub.s32 %v2563, %v2565
    %v2567 = vrot.slane %v2559, %v2566
    %v2569 = vunpack.c.l.s4 1934713408
    %v2570 = vunpack.c.0.s8 %v2569
    %v2571 = vlaneseq
    %v2572 = vshrl.u32 %v2571, 7
    %v2573 = vsub.s32 %v2570, %v2572
    %v2574 = vrot.slane %v2560, %v2573
    %v2575 = vcombine.low %v2510, %v2526
    %v2576 = vcombine.high %v2510, %v2526
    %v2578 = vunpack.c.l.s4 1934713408
    %v2579 = vunpack.c.0.s8 %v2578
    %v2580 = vlaneseq
    %v2581 = vshrl.u32 %v2580, 7
    %v2582 = vsub.s32 %v2579, %v2581
    %v2583 = vrot.slane %v2575, %v2582
    %v2585 = vunpack.c.l.s4 1934713408
    %v2586 = vunpack.c.0.s8 %v2585
    %v2587 = vlaneseq
    %v2588 = vshrl.u32 %v2587, 7
    %v2589 = vsub.s32 %v2586, %v2588
    %v2590 = vrot.slane %v2576, %v2589
    %v2591 = vcombine.low %v2535, %v2567
    %v2592 = vcombine.high %v2535, %v2567
    %v2593 = vcombine.low %v2542, %v2574
    %v2594 = vcombine.high %v2542, %v2574
    %v2595 = vcombine.low %v2551, %v2583
    %v2596 = vcombine.high %v2551, %v2583
    %v2597 = vcombine.low %v2558, %v2590
    %v2598 = vcombine.high %v2558, %v2590
    %v2599 = vcombine.low %v2193, %v2250
    %v2600 = vcombine.high %v2193, %v2250
    %v2602 = vunpack.c.l.s4 1983009808
    %v2603 = vunpack.c.0.s8 %v2602
    %v2604 = vlaneseq
    %v2605 = vshrl.u32 %v2604, 7
    %v2606 = vsub.s32 %v2603, %v2605
    %v2607 = vrot.slane %v2599, %v2606
    %v2609 = vunpack.c.l.s4 1983009808
    %v2610 = vunpack.c.0.s8 %v2609
    %v2611 = vlaneseq
    %v2612 = vshrl.u32 %v2611, 7
    %v2613 = vsub.s32 %v2610, %v2612
    %v2614 = vrot.slane %v2600, %v2613
    %v2615 = vcombine.low %v2244, %v2256
    %v2616 = vcombine.high %v2244, %v2256
    %v2618 = vunpack.c.l.s4 1983009808
    %v2619 = vunpack.c.0.s8 %v2618
    %v2620 = vlaneseq
    %v2621 = vshrl.u32 %v2620, 7
    %v2622 = vsub.s32 %v2619, %v2621
    %v2623 = vrot.slane %v2615, %v2622
    %v2625 = vunpack.c.l.s4 1983009808
    %v2626 = vunpack.c.0.s8 %v2625
    %v2627 = vlaneseq
    %v2628 = vshrl.u32 %v2627, 7
    %v2629 = vsub.s32 %v2626, %v2628
    %v2630 = vrot.slane %v2616, %v2629
    %v2631 = vcombine.low %v2607, %v2623
    %v2632 = vcombine.high %v2607, %v2623
    %v2634 = vunpack.c.l.s4 1934713408
    %v2635 = vunpack.c.0.s8 %v2634
    %v2636 = vlaneseq
    %v2637 = vshrl.u32 %v2636, 7
    %v2638 = vsub.s32 %v2635, %v2637
    %v2639 = vrot.slane %v2631, %v2638
    %v2641 = vunpack.c.l.s4 1934713408
    %v2642 = vunpack.c.0.s8 %v2641
    %v2643 = vlaneseq
    %v2644 = vshrl.u32 %v2643, 7
    %v2645 = vsub.s32 %v2642, %v2644
    %v2646 = vrot.slane %v2632, %v2645
    %v2647 = vcombine.low %v2614, %v2630
    %v2648 = vcombine.high %v2614, %v2630
    %v2650 = vunpack.c.l.s4 1934713408
    %v2651 = vunpack.c.0.s8 %v2650
    %v2652 = vlaneseq
    %v2653 = vshrl.u32 %v2652, 7
    %v2654 = vsub.s32 %v2651, %v2653
    %v2655 = vrot.slane %v2647, %v2654
    %v2657 = vunpack.c.l.s4 1934713408
    %v2658 = vunpack.c.0.s8 %v2657
    %v2659 = vlaneseq
    %v2660 = vshrl.u32 %v2659, 7
    %v2661 = vsub.s32 %v2658, %v2660
    %v2662 = vrot.slane %v2648, %v2661
    %v2663 = vcombine.high %v2639, 0.0
    %v2664 = vcombine.high %v2646, 0.0
    %v2665 = vcombine.high %v2655, 0.0
    %v2666 = vcombine.high %v2662, 0.0
    %v2667 = vcombine.low %v2387, %v2389
    %v2668 = vcombine.high %v2387, %v2389
    %v2670 = vunpack.c.l.s4 1983009808
    %v2671 = vunpack.c.0.s8 %v2670
    %v2672 = vlaneseq
    %v2673 = vshrl.u32 %v2672, 7
    %v2674 = vsub.s32 %v2671, %v2673
    %v2675 = vrot.slane %v2667, %v2674
    %v2677 = vunpack.c.l.s4 1983009808
    %v2678 = vunpack.c.0.s8 %v2677
    %v2679 = vlaneseq
    %v2680 = vshrl.u32 %v2679, 7
    %v2681 = vsub.s32 %v2678, %v2680
    %v2682 = vrot.slane %v2668, %v2681
    %v2683 = vcombine.low %v2388, %v2390
    %v2684 = vcombine.high %v2388, %v2390
    %v2686 = vunpack.c.l.s4 1983009808
    %v2687 = vunpack.c.0.s8 %v2686
    %v2688 = vlaneseq
    %v2689 = vshrl.u32 %v2688, 7
    %v2690 = vsub.s32 %v2687, %v2689
    %v2691 = vrot.slane %v2683, %v2690
    %v2693 = vunpack.c.l.s4 1983009808
    %v2694 = vunpack.c.0.s8 %v2693
    %v2695 = vlaneseq
    %v2696 = vshrl.u32 %v2695, 7
    %v2697 = vsub.s32 %v2694, %v2696
    %v2698 = vrot.slane %v2684, %v2697
    %v2699 = vcombine.low %v2391, %v2393
    %v2700 = vcombine.high %v2391, %v2393
    %v2702 = vunpack.c.l.s4 1983009808
    %v2703 = vunpack.c.0.s8 %v2702
    %v2704 = vlaneseq
    %v2705 = vshrl.u32 %v2704, 7
    %v2706 = vsub.s32 %v2703, %v2705
    %v2707 = vrot.slane %v2699, %v2706
    %v2709 = vunpack.c.l.s4 1983009808
    %v2710 = vunpack.c.0.s8 %v2709
    %v2711 = vlaneseq
    %v2712 = vshrl.u32 %v2711, 7
    %v2713 = vsub.s32 %v2710, %v2712
    %v2714 = vrot.slane %v2700, %v2713
    %v2715 = vcombine.low %v2392, %v2394
    %v2716 = vcombine.high %v2392, %v2394
    %v2718 = vunpack.c.l.s4 1983009808
    %v2719 = vunpack.c.0.s8 %v2718
    %v2720 = vlaneseq
    %v2721 = vshrl.u32 %v2720, 7
    %v2722 = vsub.s32 %v2719, %v2721
    %v2723 = vrot.slane %v2715, %v2722
    %v2725 = vunpack.c.l.s4 1983009808
    %v2726 = vunpack.c.0.s8 %v2725
    %v2727 = vlaneseq
    %v2728 = vshrl.u32 %v2727, 7
    %v2729 = vsub.s32 %v2726, %v2728
    %v2730 = vrot.slane %v2716, %v2729
    %v2731 = vcombine.low %v2675, %v2691
    %v2732 = vcombine.high %v2675, %v2691
    %v2734 = vunpack.c.l.s4 1934713408
    %v2735 = vunpack.c.0.s8 %v2734
    %v2736 = vlaneseq
    %v2737 = vshrl.u32 %v2736, 7
    %v2738 = vsub.s32 %v2735, %v2737
    %v2739 = vrot.slane %v2731, %v2738
    %v2741 = vunpack.c.l.s4 1934713408
    %v2742 = vunpack.c.0.s8 %v2741
    %v2743 = vlaneseq
    %v2744 = vshrl.u32 %v2743, 7
    %v2745 = vsub.s32 %v2742, %v2744
    %v2746 = vrot.slane %v2732, %v2745
    %v2747 = vcombine.low %v2682, %v2698
    %v2748 = vcombine.high %v2682, %v2698
    %v2750 = vunpack.c.l.s4 1934713408
    %v2751 = vunpack.c.0.s8 %v2750
    %v2752 = vlaneseq
    %v2753 = vshrl.u32 %v2752, 7
    %v2754 = vsub.s32 %v2751, %v2753
    %v2755 = vrot.slane %v2747, %v2754
    %v2757 = vunpack.c.l.s4 1934713408
    %v2758 = vunpack.c.0.s8 %v2757
    %v2759 = vlaneseq
    %v2760 = vshrl.u32 %v2759, 7
    %v2761 = vsub.s32 %v2758, %v2760
    %v2762 = vrot.slane %v2748, %v2761
    %v2763 = vcombine.low %v2707, %v2723
    %v2764 = vcombine.high %v2707, %v2723
    %v2766 = vunpack.c.l.s4 1934713408
    %v2767 = vunpack.c.0.s8 %v2766
    %v2768 = vlaneseq
    %v2769 = vshrl.u32 %v2768, 7
    %v2770 = vsub.s32 %v2767, %v2769
    %v2771 = vrot.slane %v2763, %v2770
    %v2773 = vunpack.c.l.s4 1934713408
    %v2774 = vunpack.c.0.s8 %v2773
    %v2775 = vlaneseq
    %v2776 = vshrl.u32 %v2775, 7
    %v2777 = vsub.s32 %v2774, %v2776
    %v2778 = vrot.slane %v2764, %v2777
    %v2779 = vcombine.low %v2714, %v2730
    %v2780 = vcombine.high %v2714, %v2730
    %v2782 = vunpack.c.l.s4 1934713408
    %v2783 = vunpack.c.0.s8 %v2782
    %v2784 = vlaneseq
    %v2785 = vshrl.u32 %v2784, 7
    %v2786 = vsub.s32 %v2783, %v2785
    %v2787 = vrot.slane %v2779, %v2786
    %v2789 = vunpack.c.l.s4 1934713408
    %v2790 = vunpack.c.0.s8 %v2789
    %v2791 = vlaneseq
    %v2792 = vshrl.u32 %v2791, 7
    %v2793 = vsub.s32 %v2790, %v2792
    %v2794 = vrot.slane %v2780, %v2793
    %v2795 = vcombine.low %v2739, %v2771
    %v2796 = vcombine.high %v2739, %v2771
    %v2797 = vcombine.low %v2746, %v2778
    %v2798 = vcombine.high %v2746, %v2778
    %v2799 = vcombine.low %v2755, %v2787
    %v2800 = vcombine.high %v2755, %v2787
    %v2801 = vcombine.low %v2762, %v2794
    %v2802 = vcombine.high %v2762, %v2794
    %v2803 = vcombine.low %v2591, %v2593
    %v2804 = vcombine.high %v2591, %v2593
    %v2806 = vunpack.c.l.s4 1983009808
    %v2807 = vunpack.c.0.s8 %v2806
    %v2808 = vlaneseq
    %v2809 = vshrl.u32 %v2808, 7
    %v2810 = vsub.s32 %v2807, %v2809
    %v2811 = vrot.slane %v2803, %v2810
    %v2813 = vunpack.c.l.s4 1983009808
    %v2814 = vunpack.c.0.s8 %v2813
    %v2815 = vlaneseq
    %v2816 = vshrl.u32 %v2815, 7
    %v2817 = vsub.s32 %v2814, %v2816
    %v2818 = vrot.slane %v2804, %v2817
    %v2819 = vcombine.low %v2592, %v2594
    %v2820 = vcombine.high %v2592, %v2594
    %v2822 = vunpack.c.l.s4 1983009808
    %v2823 = vunpack.c.0.s8 %v2822
    %v2824 = vlaneseq
    %v2825 = vshrl.u32 %v2824, 7
    %v2826 = vsub.s32 %v2823, %v2825
    %v2827 = vrot.slane %v2819, %v2826
    %v2829 = vunpack.c.l.s4 1983009808
    %v2830 = vunpack.c.0.s8 %v2829
    %v2831 = vlaneseq
    %v2832 = vshrl.u32 %v2831, 7
    %v2833 = vsub.s32 %v2830, %v2832
    %v2834 = vrot.slane %v2820, %v2833
    %v2835 = vcombine.low %v2595, %v2597
    %v2836 = vcombine.high %v2595, %v2597
    %v2838 = vunpack.c.l.s4 1983009808
    %v2839 = vunpack.c.0.s8 %v2838
    %v2840 = vlaneseq
    %v2841 = vshrl.u32 %v2840, 7
    %v2842 = vsub.s32 %v2839, %v2841
    %v2843 = vrot.slane %v2835, %v2842
    %v2845 = vunpack.c.l.s4 1983009808
    %v2846 = vunpack.c.0.s8 %v2845
    %v2847 = vlaneseq
    %v2848 = vshrl.u32 %v2847, 7
    %v2849 = vsub.s32 %v2846, %v2848
    %v2850 = vrot.slane %v2836, %v2849
    %v2851 = vcombine.low %v2596, %v2598
    %v2852 = vcombine.high %v2596, %v2598
    %v2854 = vunpack.c.l.s4 1983009808
    %v2855 = vunpack.c.0.s8 %v2854
    %v2856 = vlaneseq
    %v2857 = vshrl.u32 %v2856, 7
    %v2858 = vsub.s32 %v2855, %v2857
    %v2859 = vrot.slane %v2851, %v2858
    %v2861 = vunpack.c.l.s4 1983009808
    %v2862 = vunpack.c.0.s8 %v2861
    %v2863 = vlaneseq
    %v2864 = vshrl.u32 %v2863, 7
    %v2865 = vsub.s32 %v2862, %v2864
    %v2866 = vrot.slane %v2852, %v2865
    %v2867 = vcombine.low %v2811, %v2827
    %v2868 = vcombine.high %v2811, %v2827
    %v2870 = vunpack.c.l.s4 1934713408
    %v2871 = vunpack.c.0.s8 %v2870
    %v2872 = vlaneseq
    %v2873 = vshrl.u32 %v2872, 7
    %v2874 = vsub.s32 %v2871, %v2873
    %v2875 = vrot.slane %v2867, %v2874
    %v2877 = vunpack.c.l.s4 1934713408
    %v2878 = vunpack.c.0.s8 %v2877
    %v2879 = vlaneseq
    %v2880 = vshrl.u32 %v2879, 7
    %v2881 = vsub.s32 %v2878, %v2880
    %v2882 = vrot.slane %v2868, %v2881
    %v2883 = vcombine.low %v2818, %v2834
    %v2884 = vcombine.high %v2818, %v2834
    %v2886 = vunpack.c.l.s4 1934713408
    %v2887 = vunpack.c.0.s8 %v2886
    %v2888 = vlaneseq
    %v2889 = vshrl.u32 %v2888, 7
    %v2890 = vsub.s32 %v2887, %v2889
    %v2891 = vrot.slane %v2883, %v2890
    %v2893 = vunpack.c.l.s4 1934713408
    %v2894 = vunpack.c.0.s8 %v2893
    %v2895 = vlaneseq
    %v2896 = vshrl.u32 %v2895, 7
    %v2897 = vsub.s32 %v2894, %v2896
    %v2898 = vrot.slane %v2884, %v2897
    %v2899 = vcombine.low %v2843, %v2859
    %v2900 = vcombine.high %v2843, %v2859
    %v2902 = vunpack.c.l.s4 1934713408
    %v2903 = vunpack.c.0.s8 %v2902
    %v2904 = vlaneseq
    %v2905 = vshrl.u32 %v2904, 7
    %v2906 = vsub.s32 %v2903, %v2905
    %v2907 = vrot.slane %v2899, %v2906
    %v2909 = vunpack.c.l.s4 1934713408
    %v2910 = vunpack.c.0.s8 %v2909
    %v2911 = vlaneseq
    %v2912 = vshrl.u32 %v2911, 7
    %v2913 = vsub.s32 %v2910, %v2912
    %v2914 = vrot.slane %v2900, %v2913
    %v2915 = vcombine.low %v2850, %v2866
    %v2916 = vcombine.high %v2850, %v2866
    %v2918 = vunpack.c.l.s4 1934713408
    %v2919 = vunpack.c.0.s8 %v2918
    %v2920 = vlaneseq
    %v2921 = vshrl.u32 %v2920, 7
    %v2922 = vsub.s32 %v2919, %v2921
    %v2923 = vrot.slane %v2915, %v2922
    %v2925 = vunpack.c.l.s4 1934713408
    %v2926 = vunpack.c.0.s8 %v2925
    %v2927 = vlaneseq
    %v2928 = vshrl.u32 %v2927, 7
    %v2929 = vsub.s32 %v2926, %v2928
    %v2930 = vrot.slane %v2916, %v2929
    %v2931 = vcombine.low %v2875, %v2907
    %v2932 = vcombine.high %v2875, %v2907
    %v2933 = vcombine.low %v2882, %v2914
    %v2934 = vcombine.high %v2882, %v2914
    %v2935 = vcombine.low %v2891, %v2923
    %v2936 = vcombine.high %v2891, %v2923
    %v2937 = vcombine.low %v2898, %v2930
    %v2938 = vcombine.high %v2898, %v2930
    %v2939 = vcombine.low %v2435, %v2442
    %v2941 = vunpack.c.l.s4 1983009808
    %v2942 = vunpack.c.0.s8 %v2941
    %v2943 = vlaneseq
    %v2944 = vshrl.u32 %v2943, 7
    %v2945 = vsub.s32 %v2942, %v2944
    %v2946 = vrot.slane %v2939, %v2945
    %v2947 = vcombine.low %v2459, %v2460
    %v2949 = vunpack.c.l.s4 1983009808
    %v2950 = vunpack.c.0.s8 %v2949
    %v2951 = vlaneseq
    %v2952 = vshrl.u32 %v2951, 7
    %v2953 = vsub.s32 %v2950, %v2952
    %v2954 = vrot.slane %v2947, %v2953
    %v2955 = vcombine.low %v2451, %v2458
    %v2957 = vunpack.c.l.s4 1983009808
    %v2958 = vunpack.c.0.s8 %v2957
    %v2959 = vlaneseq
    %v2960 = vshrl.u32 %v2959, 7
    %v2961 = vsub.s32 %v2958, %v2960
    %v2962 = vrot.slane %v2955, %v2961
    %v2963 = vcombine.low %v2461, %v2462
    %v2965 = vunpack.c.l.s4 1983009808
    %v2966 = vunpack.c.0.s8 %v2965
    %v2967 = vlaneseq
    %v2968 = vshrl.u32 %v2967, 7
    %v2969 = vsub.s32 %v2966, %v2968
    %v2970 = vrot.slane %v2963, %v2969
    %v2971 = vcombine.low %v2946, %v2954
    %v2972 = vcombine.high %v2946, %v2954
    %v2974 = vunpack.c.l.s4 1934713408
    %v2975 = vunpack.c.0.s8 %v2974
    %v2976 = vlaneseq
    %v2977 = vshrl.u32 %v2976, 7
    %v2978 = vsub.s32 %v2975, %v2977
    %v2979 = vrot.slane %v2971, %v2978
    %v2981 = vunpack.c.l.s4 1934713408
    %v2982 = vunpack.c.0.s8 %v2981
    %v2983 = vlaneseq
    %v2984 = vshrl.u32 %v2983, 7
    %v2985 = vsub.s32 %v2982, %v2984
    %v2986 = vrot.slane %v2972, %v2985
    %v2987 = vcombine.low %v2962, %v2970
    %v2988 = vcombine.high %v2962, %v2970
    %v2990 = vunpack.c.l.s4 1934713408
    %v2991 = vunpack.c.0.s8 %v2990
    %v2992 = vlaneseq
    %v2993 = vshrl.u32 %v2992, 7
    %v2994 = vsub.s32 %v2991, %v2993
    %v2995 = vrot.slane %v2987, %v2994
    %v2997 = vunpack.c.l.s4 1934713408
    %v2998 = vunpack.c.0.s8 %v2997
    %v2999 = vlaneseq
    %v3000 = vshrl.u32 %v2999, 7
    %v3001 = vsub.s32 %v2998, %v3000
    %v3002 = vrot.slane %v2988, %v3001
    %v3003 = vcombine.low %v2979, %v2995
    %v3004 = vcombine.high %v2979, %v2995
    %v3005 = vcombine.low %v2986, %v3002
    %v3006 = vcombine.high %v2986, %v3002
    %v3007 = vcombine.low %v2639, %v2646
    %v3009 = vunpack.c.l.s4 1983009808
    %v3010 = vunpack.c.0.s8 %v3009
    %v3011 = vlaneseq
    %v3012 = vshrl.u32 %v3011, 7
    %v3013 = vsub.s32 %v3010, %v3012
    %v3014 = vrot.slane %v3007, %v3013
    %v3015 = vcombine.low %v2663, %v2664
    %v3017 = vunpack.c.l.s4 1983009808
    %v3018 = vunpack.c.0.s8 %v3017
    %v3019 = vlaneseq
    %v3020 = vshrl.u32 %v3019, 7
    %v3021 = vsub.s32 %v3018, %v3020
    %v3022 = vrot.slane %v3015, %v3021
    %v3023 = vcombine.low %v2655, %v2662
    %v3025 = vunpack.c.l.s4 1983009808
    %v3026 = vunpack.c.0.s8 %v3025
    %v3027 = vlaneseq
    %v3028 = vshrl.u32 %v3027, 7
    %v3029 = vsub.s32 %v3026, %v3028
    %v3030 = vrot.slane %v3023, %v3029
    %v3031 = vcombine.low %v2665, %v2666
    %v3033 = vunpack.c.l.s4 1983009808
    %v3034 = vunpack.c.0.s8 %v3033
    %v3035 = vlaneseq
    %v3036 = vshrl.u32 %v3035, 7
    %v3037 = vsub.s32 %v3034, %v3036
    %v3038 = vrot.slane %v3031, %v3037
    %v3039 = vcombine.low %v3014, %v3022
    %v3040 = vcombine.high %v3014, %v3022
    %v3042 = vunpack.c.l.s4 1934713408
    %v3043 = vunpack.c.0.s8 %v3042
    %v3044 = vlaneseq
    %v3045 = vshrl.u32 %v3044, 7
    %v3046 = vsub.s32 %v3043, %v3045
    %v3047 = vrot.slane %v3039, %v3046
    %v3049 = vunpack.c.l.s4 1934713408
    %v3050 = vunpack.c.0.s8 %v3049
    %v3051 = vlaneseq
    %v3052 = vshrl.u32 %v3051, 7
    %v3053 = vsub.s32 %v3050, %v3052
    %v3054 = vrot.slane %v3040, %v3053
    %v3055 = vcombine.low %v3030, %v3038
    %v3056 = vcombine.high %v3030, %v3038
    %v3058 = vunpack.c.l.s4 1934713408
    %v3059 = vunpack.c.0.s8 %v3058
    %v3060 = vlaneseq
    %v3061 = vshrl.u32 %v3060, 7
    %v3062 = vsub.s32 %v3059, %v3061
    %v3063 = vrot.slane %v3055, %v3062
    %v3065 = vunpack.c.l.s4 1934713408
    %v3066 = vunpack.c.0.s8 %v3065
    %v3067 = vlaneseq
    %v3068 = vshrl.u32 %v3067, 7
    %v3069 = vsub.s32 %v3066, %v3068
    %v3070 = vrot.slane %v3056, %v3069
    %v3071 = vcombine.low %v3047, %v3063
    %v3072 = vcombine.high %v3047, %v3063
    %v3073 = vcombine.low %v3054, %v3070
    %v3074 = vcombine.high %v3054, %v3070
    %v3075 = vmul.f32 %v1197, 0.5
    %v3076 = vmul.f32 %v1333, 0.5
    %v3077 = vmul.f32 %v1198, 0.5
    %v3078 = vmul.f32 %v1334, 0.5
    %v3079 = vmul.f32 %v1199, 0.5
    %v3080 = vmul.f32 %v1335, 0.5
    %v3081 = vmul.f32 %v1200, 0.5
    %v3082 = vmul.f32 %v1336, 0.5
    %v3083 = vmul.f32 %v1201, 0.5
    %v3084 = vmul.f32 %v1337, 0.5
    %v3085 = vmul.f32 %v1202, 0.5
    %v3086 = vmul.f32 %v1338, 0.5
    %v3087 = vmul.f32 %v1203, 0.5
    %v3088 = vmul.f32 %v1339, 0.5
    %v3089 = vmul.f32 %v1204, 0.5
    %v3090 = vmul.f32 %v1340, 0.5
    %v3091 = vmul.f32 %v1405, 0.5
    %v3092 = vmul.f32 %v1473, 0.5
    %v3093 = vmul.f32 %v1406, 0.5
    %v3094 = vmul.f32 %v1474, 0.5
    %v3095 = vmul.f32 %v1407, 0.5
    %v3096 = vmul.f32 %v1475, 0.5
    %v3097 = vmul.f32 %v1408, 0.5
    %v3098 = vmul.f32 %v1476, 0.5
    %v3099 = vmul.f32 %v2795, 0.5
    %v3100 = vmul.f32 %v2931, 0.5
    %v3101 = vmul.f32 %v2796, 0.5
    %v3102 = vmul.f32 %v2932, 0.5
    %v3103 = vmul.f32 %v2797, 0.5
    %v3104 = vmul.f32 %v2933, 0.5
    %v3105 = vmul.f32 %v2798, 0.5
    %v3106 = vmul.f32 %v2934, 0.5
    %v3107 = vmul.f32 %v2799, 0.5
    %v3108 = vmul.f32 %v2935, 0.5
    %v3109 = vmul.f32 %v2800, 0.5
    %v3110 = vmul.f32 %v2936, 0.5
    %v3111 = vmul.f32 %v2801, 0.5
    %v3112 = vmul.f32 %v2937, 0.5
    %v3113 = vmul.f32 %v2802, 0.5
    %v3114 = vmul.f32 %v2938, 0.5
    %v3115 = vmul.f32 %v3003, 0.5
    %v3116 = vmul.f32 %v3071, 0.5
    %v3117 = vmul.f32 %v3004, 0.5
    %v3118 = vmul.f32 %v3072, 0.5
    %v3119 = vmul.f32 %v3005, 0.5
    %v3120 = vmul.f32 %v3073, 0.5
    %v3121 = vmul.f32 %v3006, 0.5
    %v3122 = vmul.f32 %v3074, 0.5
    %v3123 = vadd.f32 %v3075, %v3099
    %v3124 = vadd.f32 %v3076, %v3100
    %v3125 = vadd.f32 %v3077, %v3101
    %v3126 = vadd.f32 %v3078, %v3102
    %v3127 = vadd.f32 %v3079, %v3103
    %v3128 = vadd.f32 %v3080, %v3104
    %v3129 = vadd.f32 %v3081, %v3105
    %v3130 = vadd.f32 %v3082, %v3106
    %v3131 = vadd.f32 %v3083, %v3107
    %v3132 = vadd.f32 %v3084, %v3108
    %v3133 = vadd.f32 %v3085, %v3109
    %v3134 = vadd.f32 %v3086, %v3110
    %v3135 = vadd.f32 %v3087, %v3111
    %v3136 = vadd.f32 %v3088, %v3112
    %v3137 = vadd.f32 %v3089, %v3113
    %v3138 = vadd.f32 %v3090, %v3114
    %v3139 = vadd.f32 %v3091, %v3115
    %v3140 = vadd.f32 %v3092, %v3116
    %v3141 = vadd.f32 %v3093, %v3117
    %v3142 = vadd.f32 %v3094, %v3118
    %v3143 = vadd.f32 %v3095, %v3119
    %v3144 = vadd.f32 %v3096, %v3120
    %v3145 = vadd.f32 %v3097, %v3121
    %v3146 = vadd.f32 %v3098, %v3122
    %3147 = vst.msk [vmem:[#allocation2] sm:$0xff] %vm431, %v3123
    %3148 = vst.msk [vmem:[#allocation2 + $0x8] sm:$0xff] %vm431, %v3124
    %3149 = vst.msk [vmem:[#allocation2 + $0x10] sm:$0xff] %vm431, %v3125
    %3150 = vst.msk [vmem:[#allocation2 + $0x18] sm:$0xff] %vm431, %v3126
    %3151 = vst.msk [vmem:[#allocation2 + $0x20] sm:$0xff] %vm431, %v3127
    %3152 = vst.msk [vmem:[#allocation2 + $0x28] sm:$0xff] %vm431, %v3128
    %3153 = vst.msk [vmem:[#allocation2 + $0x30] sm:$0xff] %vm431, %v3129
    %3154 = vst.msk [vmem:[#allocation2 + $0x38] sm:$0xff] %vm431, %v3130
    %3155 = vst.msk [vmem:[#allocation2 + $0x40] sm:$0xff] %vm431, %v3131
    %3156 = vst.msk [vmem:[#allocation2 + $0x48] sm:$0xff] %vm431, %v3132
    %3157 = vst.msk [vmem:[#allocation2 + $0x50] sm:$0xff] %vm431, %v3133
    %3158 = vst.msk [vmem:[#allocation2 + $0x58] sm:$0xff] %vm431, %v3134
    %3159 = vst.msk [vmem:[#allocation2 + $0x60] sm:$0xff] %vm431, %v3135
    %3160 = vst.msk [vmem:[#allocation2 + $0x68] sm:$0xff] %vm431, %v3136
    %3161 = vst.msk [vmem:[#allocation2 + $0x70] sm:$0xff] %vm431, %v3137
    %3162 = vst.msk [vmem:[#allocation2 + $0x78] sm:$0xff] %vm431, %v3138
    %3163 = vst.msk [vmem:[#allocation2 + $0x80] sm:$0xff] %vm431, %v3139
    %3164 = vst.msk [vmem:[#allocation2 + $0x88] sm:$0xff] %vm431, %v3140
    %3165 = vst.msk [vmem:[#allocation2 + $0x90] sm:$0xff] %vm431, %v3141
    %3166 = vst.msk [vmem:[#allocation2 + $0x98] sm:$0xff] %vm431, %v3142
    %3167 = vst.msk [vmem:[#allocation2 + $0xa0] sm:$0xff] %vm431, %v3143
    %3168 = vst.msk [vmem:[#allocation2 + $0xa8] sm:$0xff] %vm431, %v3144
    %3169 = vst.msk [vmem:[#allocation2 + $0xb0] sm:$0xff] %vm431, %v3145
    %3170 = vst.msk [vmem:[#allocation2 + $0xb8] sm:$0xff] %vm431, %v3146
    // Predicated region
    $region26: #{fcn_forward.9} parent=1 // pred_check
      _
    $region27: #{fcn_forward.9} parent=1 // pred_check_branch
      %3172 = sbr.rel (0) target = $region29
    $region28: #{fcn_forward.9} parent=1 // pred_region
      %s3174 = ssub.s32 3072, 3072
      %3175 = vsyncadd [#allocation3], %s3174
      %s3176 = sshll.u32 [#allocation2], 4
      %s3177 = int_to_ptr.vmem [resolvable:$true] %s3176
      %3182 = dma.vmem_to_hbm [thread:$0]  %s3177, 3072, %s6, [#allocation3], 128, 128, 8
    $region29: #{fcn_forward.9} parent=1 // pred_fallthru
      _
    // Predicated region
    $region30: #{fcn_forward.9} parent=1 // pred_check
      _
    $region31: #{fcn_forward.9} parent=1 // pred_check_branch
      %3184 = sbr.rel (0) target = $region33
    $region32: #{fcn_forward.9} parent=1 // pred_region
      %3185 = dma.done [#allocation3], 3072
    $region33: #{fcn_forward.9} parent=1 // pred_fallthru
      _
    %3186 = vsyncpa [#allocation3], 1

</llo_original>
